<compile_context>
chip_gen: v5e
topology: v5e:2x2
jax: 0.10.0
libtpu: 0.0.40
codegen_flags: <defaults>
</compile_context>

<pallas_src>
import functools

import jax
import jax.numpy as jnp
from jax import lax
from jax.experimental import pallas as pl
from jax.experimental.pallas import tpu as pltpu

EPS = 1e-5          # BatchNorm eps (PyTorch default)
NEG_SLOPE = 0.01    # LeakyReLU default negative_slope


def _leaky(v):
    return jnp.where(v > 0, v, NEG_SLOPE * v)


# --------------------------------------------------------------------------
# Fused network kernel (everything VMEM resident)
# --------------------------------------------------------------------------
def build_cnn_kernel(cfgs, Bb):
    """cfgs: per conv layer dict(H, W, Cin, Cout, pool) -- all static ints."""
    n_layers = len(cfgs)

    def kernel(*refs):
        i = 0
        x_ref = refs[i]; i += 1                            # [1, Bb, H+2, W+2, 1] (host-padded)
        w_refs = refs[i:i + n_layers]; i += n_layers       # [9*Cin, Cout] (BN scale folded)
        t_refs = refs[i:i + n_layers]; i += n_layers       # [1, Cout]     (bias + BN shift)
        w1_ref, t1_ref, w2_ref, t2_ref, w3_ref, b3_ref = refs[i:i + 6]; i += 6
        out_ref = refs[i]; i += 1                          # [1, Bb, num_classes]
        pad_refs = refs[i:i + (n_layers - 1)]              # halo-padded scratch (layers 1..)

        a = None                                           # [Bb, H, W, C] activation
        for li, cfg in enumerate(cfgs):
            H, W = cfg["H"], cfg["W"]
            Cin, Cout, pool = cfg["Cin"], cfg["Cout"], cfg["pool"]
            M = Bb * H * W

            if li == 0:
                # Layer 0 reads taps straight from the host-padded input ref.
                def get_tap(dy, dx):
                    return x_ref[0, :, 1 + dy:1 + dy + H, 1 + dx:1 + dx + W, :]
            else:
                pref = pad_refs[li - 1]                    # [Bb, H+2, W+2, Cin]
                # Zero only the four halo bands, then store the interior.
                pref[:, 0:1, :, :] = jnp.zeros((Bb, 1, W + 2, Cin), jnp.float32)
                pref[:, H + 1:H + 2, :, :] = jnp.zeros((Bb, 1, W + 2, Cin), jnp.float32)
                pref[:, :, 0:1, :] = jnp.zeros((Bb, H + 2, 1, Cin), jnp.float32)
                pref[:, :, W + 1:W + 2, :] = jnp.zeros((Bb, H + 2, 1, Cin), jnp.float32)
                pref[:, 1:H + 1, 1:W + 1, :] = a

                def get_tap(dy, dx, _pref=pref):
                    return _pref[:, 1 + dy:1 + dy + H, 1 + dx:1 + dx + W, :]

            # 3x3 conv: 9 halo-shifted static-slice taps -> one [M, 9*Cin]
            # im2col slab -> single MXU matmul (BN scale already in the weights).
            taps = [get_tap(dy, dx).reshape(M, Cin)
                    for dy in (-1, 0, 1) for dx in (-1, 0, 1)]
            big = jnp.concatenate(taps, axis=1)            # [M, 9*Cin]
            y = jnp.dot(big, w_refs[li][...],
                        preferred_element_type=jnp.float32)  # [M, Cout]
            y = _leaky(y + t_refs[li][...])                  # BN shift + LeakyReLU

            if pool:
                # 2x2 / stride-2 maxpool, no gather matmuls.
                # y-direction: pair index is a leading dim -> free regroup + max.
                t5 = y.reshape(Bb, H // 2, 2, W, Cout)
                t = jnp.maximum(t5[:, :, 0], t5[:, :, 1])      # [Bb, H/2, W, Cout]
                # x-direction: pair index becomes a size-2 second-minor dim.
                t = t.reshape(Bb, H // 2, W // 2, 2, Cout)
                a = jnp.max(t, axis=3)                         # [Bb, H/2, W/2, Cout]
            else:
                a = y.reshape(Bb, H, W, Cout)

        # AdaptiveAvgPool2d((1,1)) over a 1x1 map == identity -> a is [Bb,1,1,16].
        feat = a.reshape(Bb, a.shape[-1])
        h = _leaky(jnp.dot(feat, w1_ref[...],
                           preferred_element_type=jnp.float32) + t1_ref[...])
        h = _leaky(jnp.dot(h, w2_ref[...],
                           preferred_element_type=jnp.float32) + t2_ref[...])
        out_ref[0] = jnp.dot(h, w3_ref[...],
                             preferred_element_type=jnp.float32) + b3_ref[...]

    return kernel


# --------------------------------------------------------------------------
# Wrapper: single pallas_call, full-array blocks (everything is tiny)
# --------------------------------------------------------------------------
def _zero_index(i, n):
    return (0,) * n


def _full_spec(shape):
    return pl.BlockSpec(shape, functools.partial(_zero_index, n=len(shape)))


def cnn_forward(x, P, *, batch_blocks=1):
    """Eval-mode forward.  x: [B, C, H, W] (NCHW); only channel 0 is used.

    batch_blocks: grid steps the batch is split into.  Keep 1 on v5e/v6e
    (single TensorCore); set 2 on v7x so each TensorCore runs half the batch
    (the grid axis is marked "parallel").
    """
    B, _, H, W = x.shape
    G = batch_blocks
    assert B % G == 0, "batch must divide evenly over batch_blocks"
    Bb = B // G

    # Channel-select + zero-halo pad on the host (layer 0's halo buffer).
    x0 = jnp.pad(x[:, 0].astype(jnp.float32), ((0, 0), (1, 1), (1, 1)))
    x0 = x0.reshape(G, Bb, H + 2, W + 2, 1)

    feats = P["features"]
    cfgs = []
    h, w = H, W
    for layer in feats:
        cin = layer["wr"].shape[0] // 9
        cout = layer["wr"].shape[1]
        assert (not layer["pool"]) or (h % 2 == 0 and w % 2 == 0)
        cfgs.append(dict(H=h, W=w, Cin=cin, Cout=cout, pool=layer["pool"]))
        if layer["pool"]:
            h, w = h // 2, w // 2
    # TODO(synk): only the wpool==1 (maxpool=True, final 1x1 map) case is handled.
    assert h == 1 and w == 1, "final feature map must be 1x1 (maxpool=True)"

    c = P["classifier"]
    NC = c["w3"].shape[1]

    args = [x0]
    args += [layer["wr"] for layer in feats]
    args += [layer["shift"] for layer in feats]
    args += [c["w1f"], c["t1"], c["w2f"], c["t2"], c["w3"], c["b3"]]

    in_specs = [pl.BlockSpec((1, Bb, H + 2, W + 2, 1),
                             lambda i: (i, 0, 0, 0, 0))]
    in_specs += [_full_spec(a.shape) for a in args[1:]]
    out_specs = pl.BlockSpec((1, Bb, NC), lambda i: (i, 0, 0))

    # Halo-padded activation scratch for layers 1.. (layer 0 uses the input ref).
    scratch = [pltpu.VMEM((Bb, cfg["H"] + 2, cfg["W"] + 2, cfg["Cin"]), jnp.float32)
               for cfg in cfgs[1:]]

    out = pl.pallas_call(
        build_cnn_kernel(cfgs, Bb),
        out_shape=jax.ShapeDtypeStruct((G, Bb, NC), jnp.float32),
        grid=(G,),
        in_specs=in_specs,
        out_specs=out_specs,
        scratch_shapes=scratch,
        compiler_params=pltpu.CompilerParams(
            dimension_semantics=("parallel",)),
    )(*args)
    return out.reshape(B, NC)


# --------------------------------------------------------------------------
# Deterministic parameter init (shapes from CNN.__init__, num_channels=1, d=2)
# --------------------------------------------------------------------------
def _fold_bn(bias, gamma, beta, rmean, rvar):
    s = gamma / jnp.sqrt(rvar + EPS)
    scale = s.reshape(1, -1)
    shift = (beta + (bias - rmean) * s).reshape(1, -1)
    return scale, shift


def init_params(key, num_classes=5):
    d = 2
    # (Cin, Cout, maxpool) per conv block of `features`
    cfg = [(1, d, True), (d, 2 * d, True),
           (2 * d, 4 * d, False), (4 * d, 4 * d, True),
           (4 * d, 8 * d, False), (8 * d, 8 * d, True)]
    feats = []
    for ci, co, pool in cfg:
        key, k1, k2, k3, k4, k5, k6 = jax.random.split(key, 7)
        w4 = jax.random.normal(k1, (3, 3, ci, co), jnp.float32) / (3 * 3 * ci) ** 0.5
        b = 0.1 * jax.random.normal(k2, (co,), jnp.float32)
        gamma = 1.0 + 0.1 * jax.random.normal(k3, (co,), jnp.float32)
        beta = 0.1 * jax.random.normal(k4, (co,), jnp.float32)
        rmean = 0.05 * jax.random.normal(k5, (co,), jnp.float32)
        rvar = 1.0 + 0.1 * jax.random.uniform(k6, (co,), jnp.float32)
        scale, shift = _fold_bn(b, gamma, beta, rmean, rvar)
        # Fold BN scale into the conv weights; layout [9*Cin, Cout] (tap-major,
        # matching the in-kernel tap concatenation order: (dy, dx) row-major).
        wr = (w4.reshape(9, ci, co) * scale.reshape(1, 1, co)).reshape(9 * ci, co)
        feats.append(dict(w4=w4, wr=wr, scale=scale, shift=shift, pool=pool))

    fc_d = 8 * d  # wpool == 1 (maxpool=True) -> 16

    def fc_init(key, i, o):
        key, k1, k2, k3, k4, k5, k6 = jax.random.split(key, 7)
        w = jax.random.normal(k1, (i, o), jnp.float32) / i ** 0.5
        b = 0.1 * jax.random.normal(k2, (o,), jnp.float32)
        gamma = 1.0 + 0.1 * jax.random.normal(k3, (o,), jnp.float32)
        beta = 0.1 * jax.random.normal(k4, (o,), jnp.float32)
        rmean = 0.05 * jax.random.normal(k5, (o,), jnp.float32)
        rvar = 1.0 + 0.1 * jax.random.uniform(k6, (o,), jnp.float32)
        scale, shift = _fold_bn(b, gamma, beta, rmean, rvar)
        return key, w, scale, shift

    key, w1, s1, t1 = fc_init(key, fc_d, fc_d // 8)
    key, w2, s2, t2 = fc_init(key, fc_d // 8, fc_d)
    key, k1, k2 = jax.random.split(key, 3)
    w3 = jax.random.normal(k1, (fc_d, num_classes), jnp.float32) / fc_d ** 0.5
    b3 = (0.1 * jax.random.normal(k2, (num_classes,), jnp.float32)).reshape(1, -1)

    return dict(features=feats,
                classifier=dict(w1=w1, s1=s1, t1=t1, w1f=w1 * s1,
                                w2=w2, s2=s2, t2=t2, w2f=w2 * s2,
                                w3=w3, b3=b3))


# --------------------------------------------------------------------------
# Pure-JAX reference (lax.conv) to validate the Pallas path
# --------------------------------------------------------------------------
def reference_forward(x, P):
    h = jnp.transpose(x[:, 0:1].astype(jnp.float32), (0, 2, 3, 1))
    for layer in P["features"]:
        y = lax.conv_general_dilated(h, layer["w4"], (1, 1), "SAME",
                                     dimension_numbers=("NHWC", "HWIO", "NHWC"))
        y = y * layer["scale"].reshape(1, 1, 1, -1) + layer["shift"].reshape(1, 1, 1, -1)
        y = jnp.where(y > 0, y, NEG_SLOPE * y)
        if layer["pool"]:
            B, H, W, C = y.shape
            y = jnp.max(y.reshape(B, H // 2, 2, W // 2, 2, C), axis=(2, 4))
        h = y
    feat = jnp.mean(h, axis=(1, 2))
    c = P["classifier"]
    h1 = feat @ c["w1"] * c["s1"] + c["t1"]
    h1 = jnp.where(h1 > 0, h1, NEG_SLOPE * h1)
    h2 = h1 @ c["w2"] * c["s2"] + c["t2"]
    h2 = jnp.where(h2 > 0, h2, NEG_SLOPE * h2)
    return h2 @ c["w3"] + c["b3"]


if __name__ == "__main__":
    key = jax.random.PRNGKey(0)
    kx, kp = jax.random.split(key)
    # batch=2, 4 input channels (only channel 0 used), 16x16 spatial.
    x = jax.random.normal(kx, (2, 4, 16, 16), jnp.float32)
    params = init_params(kp, num_classes=5)

    ref = jax.block_until_ready(reference_forward(x, params))

    # Default single-grid-step path (v5e / v6e).
    out = jax.block_until_ready(cnn_forward(x, params))
    assert out.shape == (2, 5), out.shape
    assert jnp.allclose(out, ref, atol=2e-3, rtol=2e-3), (out, ref)

    # Batch-parallel grid (v7x: one batch half per TensorCore) -- same numerics.
    out2 = jax.block_until_ready(cnn_forward(x, params, batch_blocks=2))
    assert jnp.allclose(out2, ref, atol=2e-3, rtol=2e-3), (out2, ref)

    print("KERNEL_OK")
</pallas_src>

<mosaic_0001>
module attributes {stable_mosaic.version = 11 : i64} {
  func.func @kernel(%arg0: i32, %arg1: memref<1x2x18x18x1xf32, #tpu.memory_space<vmem>>, %arg2: memref<9x2xf32, #tpu.memory_space<vmem>>, %arg3: memref<18x4xf32, #tpu.memory_space<vmem>>, %arg4: memref<36x8xf32, #tpu.memory_space<vmem>>, %arg5: memref<72x8xf32, #tpu.memory_space<vmem>>, %arg6: memref<72x16xf32, #tpu.memory_space<vmem>>, %arg7: memref<144x16xf32, #tpu.memory_space<vmem>>, %arg8: memref<1x2xf32, #tpu.memory_space<vmem>>, %arg9: memref<1x4xf32, #tpu.memory_space<vmem>>, %arg10: memref<1x8xf32, #tpu.memory_space<vmem>>, %arg11: memref<1x8xf32, #tpu.memory_space<vmem>>, %arg12: memref<1x16xf32, #tpu.memory_space<vmem>>, %arg13: memref<1x16xf32, #tpu.memory_space<vmem>>, %arg14: memref<16x2xf32, #tpu.memory_space<vmem>>, %arg15: memref<1x2xf32, #tpu.memory_space<vmem>>, %arg16: memref<2x16xf32, #tpu.memory_space<vmem>>, %arg17: memref<1x16xf32, #tpu.memory_space<vmem>>, %arg18: memref<16x5xf32, #tpu.memory_space<vmem>>, %arg19: memref<1x5xf32, #tpu.memory_space<vmem>>, %arg20: memref<1x2x5xf32, #tpu.memory_space<vmem>>, %arg21: memref<2x10x10x2xf32, #tpu.memory_space<vmem>>, %arg22: memref<2x6x6x4xf32, #tpu.memory_space<vmem>>, %arg23: memref<2x6x6x8xf32, #tpu.memory_space<vmem>>, %arg24: memref<2x4x4x8xf32, #tpu.memory_space<vmem>>, %arg25: memref<2x4x4x16xf32, #tpu.memory_space<vmem>>) attributes {dimension_semantics = [#tpu.dimension_semantics<parallel>], iteration_bounds = array<i64: 1>, scalar_prefetch = 0 : i64, scratch_operands = 5 : i64, tpu.core_type = #tpu.core_type<tc>, window_params = [{transform_indices = @transform_0, window_bounds = array<i64: 1, 2, 18, 18, 1>}, {pipeline_mode = #tpu.pipeline_mode<synchronous>, transform_indices = @transform_1, window_bounds = array<i64: 9, 2>}, {pipeline_mode = #tpu.pipeline_mode<synchronous>, transform_indices = @transform_2, window_bounds = array<i64: 18, 4>}, {pipeline_mode = #tpu.pipeline_mode<synchronous>, transform_indices = @transform_3, window_bounds = array<i64: 36, 8>}, {pipeline_mode = #tpu.pipeline_mode<synchronous>, transform_indices = @transform_4, window_bounds = array<i64: 72, 8>}, {pipeline_mode = #tpu.pipeline_mode<synchronous>, transform_indices = @transform_5, window_bounds = array<i64: 72, 16>}, {pipeline_mode = #tpu.pipeline_mode<synchronous>, transform_indices = @transform_6, window_bounds = array<i64: 144, 16>}, {pipeline_mode = #tpu.pipeline_mode<synchronous>, transform_indices = @transform_7, window_bounds = array<i64: 1, 2>}, {pipeline_mode = #tpu.pipeline_mode<synchronous>, transform_indices = @transform_8, window_bounds = array<i64: 1, 4>}, {pipeline_mode = #tpu.pipeline_mode<synchronous>, transform_indices = @transform_9, window_bounds = array<i64: 1, 8>}, {pipeline_mode = #tpu.pipeline_mode<synchronous>, transform_indices = @transform_10, window_bounds = array<i64: 1, 8>}, {pipeline_mode = #tpu.pipeline_mode<synchronous>, transform_indices = @transform_11, window_bounds = array<i64: 1, 16>}, {pipeline_mode = #tpu.pipeline_mode<synchronous>, transform_indices = @transform_12, window_bounds = array<i64: 1, 16>}, {pipeline_mode = #tpu.pipeline_mode<synchronous>, transform_indices = @transform_13, window_bounds = array<i64: 16, 2>}, {pipeline_mode = #tpu.pipeline_mode<synchronous>, transform_indices = @transform_14, window_bounds = array<i64: 1, 2>}, {pipeline_mode = #tpu.pipeline_mode<synchronous>, transform_indices = @transform_15, window_bounds = array<i64: 2, 16>}, {pipeline_mode = #tpu.pipeline_mode<synchronous>, transform_indices = @transform_16, window_bounds = array<i64: 1, 16>}, {pipeline_mode = #tpu.pipeline_mode<synchronous>, transform_indices = @transform_17, window_bounds = array<i64: 16, 5>}, {pipeline_mode = #tpu.pipeline_mode<synchronous>, transform_indices = @transform_18, window_bounds = array<i64: 1, 5>}, {transform_indices = @transform_19, window_bounds = array<i64: 1, 2, 5>}]} {
    %c0 = arith.constant 0 : index
    %c0_0 = arith.constant 0 : index
    %c0_1 = arith.constant 0 : index
    %c0_2 = arith.constant 0 : index
    %c0_3 = arith.constant 0 : index
    %0 = vector.load %arg1[%c0, %c0_0, %c0_1, %c0_2, %c0_3] : memref<1x2x18x18x1xf32, #tpu.memory_space<vmem>>, vector<1x2x16x16x1xf32>
    %1 = vector.shape_cast %0 : vector<1x2x16x16x1xf32> to vector<2x16x16x1xf32>
    %2 = vector.shape_cast %1 : vector<2x16x16x1xf32> to vector<512x1xf32>
    %c0_4 = arith.constant 0 : index
    %c0_5 = arith.constant 0 : index
    %c0_6 = arith.constant 0 : index
    %c1 = arith.constant 1 : index
    %c0_7 = arith.constant 0 : index
    %3 = vector.load %arg1[%c0_4, %c0_5, %c0_6, %c1, %c0_7] : memref<1x2x18x18x1xf32, #tpu.memory_space<vmem>>, vector<1x2x16x16x1xf32>
    %4 = vector.shape_cast %3 : vector<1x2x16x16x1xf32> to vector<2x16x16x1xf32>
    %5 = vector.shape_cast %4 : vector<2x16x16x1xf32> to vector<512x1xf32>
    %c0_8 = arith.constant 0 : index
    %c0_9 = arith.constant 0 : index
    %c0_10 = arith.constant 0 : index
    %c2 = arith.constant 2 : index
    %c0_11 = arith.constant 0 : index
    %6 = vector.load %arg1[%c0_8, %c0_9, %c0_10, %c2, %c0_11] : memref<1x2x18x18x1xf32, #tpu.memory_space<vmem>>, vector<1x2x16x16x1xf32>
    %7 = vector.shape_cast %6 : vector<1x2x16x16x1xf32> to vector<2x16x16x1xf32>
    %8 = vector.shape_cast %7 : vector<2x16x16x1xf32> to vector<512x1xf32>
    %c0_12 = arith.constant 0 : index
    %c0_13 = arith.constant 0 : index
    %c1_14 = arith.constant 1 : index
    %c0_15 = arith.constant 0 : index
    %c0_16 = arith.constant 0 : index
    %9 = vector.load %arg1[%c0_12, %c0_13, %c1_14, %c0_15, %c0_16] : memref<1x2x18x18x1xf32, #tpu.memory_space<vmem>>, vector<1x2x16x16x1xf32>
    %10 = vector.shape_cast %9 : vector<1x2x16x16x1xf32> to vector<2x16x16x1xf32>
    %11 = vector.shape_cast %10 : vector<2x16x16x1xf32> to vector<512x1xf32>
    %c0_17 = arith.constant 0 : index
    %c0_18 = arith.constant 0 : index
    %c1_19 = arith.constant 1 : index
    %c1_20 = arith.constant 1 : index
    %c0_21 = arith.constant 0 : index
    %12 = vector.load %arg1[%c0_17, %c0_18, %c1_19, %c1_20, %c0_21] : memref<1x2x18x18x1xf32, #tpu.memory_space<vmem>>, vector<1x2x16x16x1xf32>
    %13 = vector.shape_cast %12 : vector<1x2x16x16x1xf32> to vector<2x16x16x1xf32>
    %14 = vector.shape_cast %13 : vector<2x16x16x1xf32> to vector<512x1xf32>
    %c0_22 = arith.constant 0 : index
    %c0_23 = arith.constant 0 : index
    %c1_24 = arith.constant 1 : index
    %c2_25 = arith.constant 2 : index
    %c0_26 = arith.constant 0 : index
    %15 = vector.load %arg1[%c0_22, %c0_23, %c1_24, %c2_25, %c0_26] : memref<1x2x18x18x1xf32, #tpu.memory_space<vmem>>, vector<1x2x16x16x1xf32>
    %16 = vector.shape_cast %15 : vector<1x2x16x16x1xf32> to vector<2x16x16x1xf32>
    %17 = vector.shape_cast %16 : vector<2x16x16x1xf32> to vector<512x1xf32>
    %c0_27 = arith.constant 0 : index
    %c0_28 = arith.constant 0 : index
    %c2_29 = arith.constant 2 : index
    %c0_30 = arith.constant 0 : index
    %c0_31 = arith.constant 0 : index
    %18 = vector.load %arg1[%c0_27, %c0_28, %c2_29, %c0_30, %c0_31] : memref<1x2x18x18x1xf32, #tpu.memory_space<vmem>>, vector<1x2x16x16x1xf32>
    %19 = vector.shape_cast %18 : vector<1x2x16x16x1xf32> to vector<2x16x16x1xf32>
    %20 = vector.shape_cast %19 : vector<2x16x16x1xf32> to vector<512x1xf32>
    %c0_32 = arith.constant 0 : index
    %c0_33 = arith.constant 0 : index
    %c2_34 = arith.constant 2 : index
    %c1_35 = arith.constant 1 : index
    %c0_36 = arith.constant 0 : index
    %21 = vector.load %arg1[%c0_32, %c0_33, %c2_34, %c1_35, %c0_36] : memref<1x2x18x18x1xf32, #tpu.memory_space<vmem>>, vector<1x2x16x16x1xf32>
    %22 = vector.shape_cast %21 : vector<1x2x16x16x1xf32> to vector<2x16x16x1xf32>
    %23 = vector.shape_cast %22 : vector<2x16x16x1xf32> to vector<512x1xf32>
    %c0_37 = arith.constant 0 : index
    %c0_38 = arith.constant 0 : index
    %c2_39 = arith.constant 2 : index
    %c2_40 = arith.constant 2 : index
    %c0_41 = arith.constant 0 : index
    %24 = vector.load %arg1[%c0_37, %c0_38, %c2_39, %c2_40, %c0_41] : memref<1x2x18x18x1xf32, #tpu.memory_space<vmem>>, vector<1x2x16x16x1xf32>
    %25 = vector.shape_cast %24 : vector<1x2x16x16x1xf32> to vector<2x16x16x1xf32>
    %26 = vector.shape_cast %25 : vector<2x16x16x1xf32> to vector<512x1xf32>
    %27 = tpu.concatenate %2, %5, %8, %11, %14, %17, %20, %23, %26 in 1 : vector<512x1xf32>, vector<512x1xf32>, vector<512x1xf32>, vector<512x1xf32>, vector<512x1xf32>, vector<512x1xf32>, vector<512x1xf32>, vector<512x1xf32>, vector<512x1xf32> -> vector<512x9xf32>
    %c0_42 = arith.constant 0 : index
    %c0_43 = arith.constant 0 : index
    %28 = vector.load %arg2[%c0_42, %c0_43] : memref<9x2xf32, #tpu.memory_space<vmem>>, vector<9x2xf32>
    %cst = arith.constant dense<0.000000e+00> : vector<512x2xf32>
    %29 = tpu.matmul %27, %28, %cst {dimension_numbers = #tpu.dot_dimension_numbers<[1], [0], [0], [1], [0, 0, 1, 1], [], []>} : vector<512x9xf32>, vector<9x2xf32>, vector<512x2xf32> -> vector<512x2xf32>
    %c0_44 = arith.constant 0 : index
    %c0_45 = arith.constant 0 : index
    %30 = vector.load %arg8[%c0_44, %c0_45] : memref<1x2xf32, #tpu.memory_space<vmem>>, vector<1x2xf32>
    %31 = vector.broadcast %30 : vector<1x2xf32> to vector<512x2xf32>
    %32 = arith.addf %29, %31 : vector<512x2xf32>
    %cst_46 = arith.constant 0.000000e+00 : f32
    %33 = vector.broadcast %cst_46 : f32 to vector<512x2xf32>
    %34 = arith.cmpf ogt, %32, %33 : vector<512x2xf32>
    %cst_47 = arith.constant 0.00999999977 : f32
    %35 = vector.broadcast %cst_47 : f32 to vector<512x2xf32>
    %36 = arith.mulf %35, %32 : vector<512x2xf32>
    %37 = arith.select %34, %32, %36 : vector<512x2xi1>, vector<512x2xf32>
    %38 = vector.shape_cast %37 : vector<512x2xf32> to vector<2x8x2x16x2xf32>
    %39 = vector.extract_strided_slice %38 {offsets = [0, 0, 0, 0, 0], sizes = [2, 8, 1, 16, 2], strides = [1, 1, 1, 1, 1]} : vector<2x8x2x16x2xf32> to vector<2x8x1x16x2xf32>
    %40 = vector.shape_cast %39 : vector<2x8x1x16x2xf32> to vector<2x8x16x2xf32>
    %41 = vector.extract_strided_slice %38 {offsets = [0, 0, 1, 0, 0], sizes = [2, 8, 1, 16, 2], strides = [1, 1, 1, 1, 1]} : vector<2x8x2x16x2xf32> to vector<2x8x1x16x2xf32>
    %42 = vector.shape_cast %41 : vector<2x8x1x16x2xf32> to vector<2x8x16x2xf32>
    %43 = arith.maximumf %40, %42 : vector<2x8x16x2xf32>
    %44 = vector.shape_cast %43 : vector<2x8x16x2xf32> to vector<2x8x8x2x2xf32>
    %cst_48 = arith.constant dense<0xFF800000> : vector<2x8x8x2xf32>
    %45 = vector.multi_reduction <maximumf>, %44, %cst_48 [3] : vector<2x8x8x2x2xf32> to vector<2x8x8x2xf32>
    %cst_49 = arith.constant 0.000000e+00 : f32
    %46 = vector.broadcast %cst_49 : f32 to vector<2x1x10x2xf32>
    %c0_50 = arith.constant 0 : index
    %c0_51 = arith.constant 0 : index
    %c0_52 = arith.constant 0 : index
    %c0_53 = arith.constant 0 : index
    %47 = vector.load %arg21[%c0_50, %c0_51, %c0_52, %c0_53] : memref<2x10x10x2xf32, #tpu.memory_space<vmem>>, vector<2x1x10x2xf32>
    tpu.vector_store %arg21[%c0_50, %c0_51, %c0_52, %c0_53], %46 {strides = array<i32>} : memref<2x10x10x2xf32, #tpu.memory_space<vmem>>, vector<2x1x10x2xf32>,
    %cst_54 = arith.constant 0.000000e+00 : f32
    %48 = vector.broadcast %cst_54 : f32 to vector<2x1x10x2xf32>
    %c0_55 = arith.constant 0 : index
    %c9 = arith.constant 9 : index
    %c0_56 = arith.constant 0 : index
    %c0_57 = arith.constant 0 : index
    %49 = vector.load %arg21[%c0_55, %c9, %c0_56, %c0_57] : memref<2x10x10x2xf32, #tpu.memory_space<vmem>>, vector<2x1x10x2xf32>
    tpu.vector_store %arg21[%c0_55, %c9, %c0_56, %c0_57], %48 {strides = array<i32>} : memref<2x10x10x2xf32, #tpu.memory_space<vmem>>, vector<2x1x10x2xf32>,
    %cst_58 = arith.constant 0.000000e+00 : f32
    %50 = vector.broadcast %cst_58 : f32 to vector<2x10x1x2xf32>
    %c0_59 = arith.constant 0 : index
    %c0_60 = arith.constant 0 : index
    %c0_61 = arith.constant 0 : index
    %c0_62 = arith.constant 0 : index
    %51 = vector.load %arg21[%c0_59, %c0_60, %c0_61, %c0_62] : memref<2x10x10x2xf32, #tpu.memory_space<vmem>>, vector<2x10x1x2xf32>
    tpu.vector_store %arg21[%c0_59, %c0_60, %c0_61, %c0_62], %50 {strides = array<i32>} : memref<2x10x10x2xf32, #tpu.memory_space<vmem>>, vector<2x10x1x2xf32>,
    %cst_63 = arith.constant 0.000000e+00 : f32
    %52 = vector.broadcast %cst_63 : f32 to vector<2x10x1x2xf32>
    %c0_64 = arith.constant 0 : index
    %c0_65 = arith.constant 0 : index
    %c9_66 = arith.constant 9 : index
    %c0_67 = arith.constant 0 : index
    %53 = vector.load %arg21[%c0_64, %c0_65, %c9_66, %c0_67] : memref<2x10x10x2xf32, #tpu.memory_space<vmem>>, vector<2x10x1x2xf32>
    tpu.vector_store %arg21[%c0_64, %c0_65, %c9_66, %c0_67], %52 {strides = array<i32>} : memref<2x10x10x2xf32, #tpu.memory_space<vmem>>, vector<2x10x1x2xf32>,
    %c0_68 = arith.constant 0 : index
    %c1_69 = arith.constant 1 : index
    %c1_70 = arith.constant 1 : index
    %c0_71 = arith.constant 0 : index
    %54 = vector.load %arg21[%c0_68, %c1_69, %c1_70, %c0_71] : memref<2x10x10x2xf32, #tpu.memory_space<vmem>>, vector<2x8x8x2xf32>
    tpu.vector_store %arg21[%c0_68, %c1_69, %c1_70, %c0_71], %45 {strides = array<i32>} : memref<2x10x10x2xf32, #tpu.memory_space<vmem>>, vector<2x8x8x2xf32>,
    %c0_72 = arith.constant 0 : index
    %c0_73 = arith.constant 0 : index
    %c0_74 = arith.constant 0 : index
    %c0_75 = arith.constant 0 : index
    %55 = vector.load %arg21[%c0_72, %c0_73, %c0_74, %c0_75] : memref<2x10x10x2xf32, #tpu.memory_space<vmem>>, vector<2x8x8x2xf32>
    %56 = vector.shape_cast %55 : vector<2x8x8x2xf32> to vector<128x2xf32>
    %c0_76 = arith.constant 0 : index
    %c0_77 = arith.constant 0 : index
    %c1_78 = arith.constant 1 : index
    %c0_79 = arith.constant 0 : index
    %57 = vector.load %arg21[%c0_76, %c0_77, %c1_78, %c0_79] : memref<2x10x10x2xf32, #tpu.memory_space<vmem>>, vector<2x8x8x2xf32>
    %58 = vector.shape_cast %57 : vector<2x8x8x2xf32> to vector<128x2xf32>
    %c0_80 = arith.constant 0 : index
    %c0_81 = arith.constant 0 : index
    %c2_82 = arith.constant 2 : index
    %c0_83 = arith.constant 0 : index
    %59 = vector.load %arg21[%c0_80, %c0_81, %c2_82, %c0_83] : memref<2x10x10x2xf32, #tpu.memory_space<vmem>>, vector<2x8x8x2xf32>
    %60 = vector.shape_cast %59 : vector<2x8x8x2xf32> to vector<128x2xf32>
    %c0_84 = arith.constant 0 : index
    %c1_85 = arith.constant 1 : index
    %c0_86 = arith.constant 0 : index
    %c0_87 = arith.constant 0 : index
    %61 = vector.load %arg21[%c0_84, %c1_85, %c0_86, %c0_87] : memref<2x10x10x2xf32, #tpu.memory_space<vmem>>, vector<2x8x8x2xf32>
    %62 = vector.shape_cast %61 : vector<2x8x8x2xf32> to vector<128x2xf32>
    %c0_88 = arith.constant 0 : index
    %c1_89 = arith.constant 1 : index
    %c1_90 = arith.constant 1 : index
    %c0_91 = arith.constant 0 : index
    %63 = vector.load %arg21[%c0_88, %c1_89, %c1_90, %c0_91] : memref<2x10x10x2xf32, #tpu.memory_space<vmem>>, vector<2x8x8x2xf32>
    %64 = vector.shape_cast %63 : vector<2x8x8x2xf32> to vector<128x2xf32>
    %c0_92 = arith.constant 0 : index
    %c1_93 = arith.constant 1 : index
    %c2_94 = arith.constant 2 : index
    %c0_95 = arith.constant 0 : index
    %65 = vector.load %arg21[%c0_92, %c1_93, %c2_94, %c0_95] : memref<2x10x10x2xf32, #tpu.memory_space<vmem>>, vector<2x8x8x2xf32>
    %66 = vector.shape_cast %65 : vector<2x8x8x2xf32> to vector<128x2xf32>
    %c0_96 = arith.constant 0 : index
    %c2_97 = arith.constant 2 : index
    %c0_98 = arith.constant 0 : index
    %c0_99 = arith.constant 0 : index
    %67 = vector.load %arg21[%c0_96, %c2_97, %c0_98, %c0_99] : memref<2x10x10x2xf32, #tpu.memory_space<vmem>>, vector<2x8x8x2xf32>
    %68 = vector.shape_cast %67 : vector<2x8x8x2xf32> to vector<128x2xf32>
    %c0_100 = arith.constant 0 : index
    %c2_101 = arith.constant 2 : index
    %c1_102 = arith.constant 1 : index
    %c0_103 = arith.constant 0 : index
    %69 = vector.load %arg21[%c0_100, %c2_101, %c1_102, %c0_103] : memref<2x10x10x2xf32, #tpu.memory_space<vmem>>, vector<2x8x8x2xf32>
    %70 = vector.shape_cast %69 : vector<2x8x8x2xf32> to vector<128x2xf32>
    %c0_104 = arith.constant 0 : index
    %c2_105 = arith.constant 2 : index
    %c2_106 = arith.constant 2 : index
    %c0_107 = arith.constant 0 : index
    %71 = vector.load %arg21[%c0_104, %c2_105, %c2_106, %c0_107] : memref<2x10x10x2xf32, #tpu.memory_space<vmem>>, vector<2x8x8x2xf32>
    %72 = vector.shape_cast %71 : vector<2x8x8x2xf32> to vector<128x2xf32>
    %73 = tpu.concatenate %56, %58, %60, %62, %64, %66, %68, %70, %72 in 1 : vector<128x2xf32>, vector<128x2xf32>, vector<128x2xf32>, vector<128x2xf32>, vector<128x2xf32>, vector<128x2xf32>, vector<128x2xf32>, vector<128x2xf32>, vector<128x2xf32> -> vector<128x18xf32>
    %c0_108 = arith.constant 0 : index
    %c0_109 = arith.constant 0 : index
    %74 = vector.load %arg3[%c0_108, %c0_109] : memref<18x4xf32, #tpu.memory_space<vmem>>, vector<18x4xf32>
    %cst_110 = arith.constant dense<0.000000e+00> : vector<128x4xf32>
    %75 = tpu.matmul %73, %74, %cst_110 {dimension_numbers = #tpu.dot_dimension_numbers<[1], [0], [0], [1], [0, 0, 1, 1], [], []>} : vector<128x18xf32>, vector<18x4xf32>, vector<128x4xf32> -> vector<128x4xf32>
    %c0_111 = arith.constant 0 : index
    %c0_112 = arith.constant 0 : index
    %76 = vector.load %arg9[%c0_111, %c0_112] : memref<1x4xf32, #tpu.memory_space<vmem>>, vector<1x4xf32>
    %77 = vector.broadcast %76 : vector<1x4xf32> to vector<128x4xf32>
    %78 = arith.addf %75, %77 : vector<128x4xf32>
    %cst_113 = arith.constant 0.000000e+00 : f32
    %79 = vector.broadcast %cst_113 : f32 to vector<128x4xf32>
    %80 = arith.cmpf ogt, %78, %79 : vector<128x4xf32>
    %cst_114 = arith.constant 0.00999999977 : f32
    %81 = vector.broadcast %cst_114 : f32 to vector<128x4xf32>
    %82 = arith.mulf %81, %78 : vector<128x4xf32>
    %83 = arith.select %80, %78, %82 : vector<128x4xi1>, vector<128x4xf32>
    %84 = vector.shape_cast %83 : vector<128x4xf32> to vector<2x4x2x8x4xf32>
    %85 = vector.extract_strided_slice %84 {offsets = [0, 0, 0, 0, 0], sizes = [2, 4, 1, 8, 4], strides = [1, 1, 1, 1, 1]} : vector<2x4x2x8x4xf32> to vector<2x4x1x8x4xf32>
    %86 = vector.shape_cast %85 : vector<2x4x1x8x4xf32> to vector<2x4x8x4xf32>
    %87 = vector.extract_strided_slice %84 {offsets = [0, 0, 1, 0, 0], sizes = [2, 4, 1, 8, 4], strides = [1, 1, 1, 1, 1]} : vector<2x4x2x8x4xf32> to vector<2x4x1x8x4xf32>
    %88 = vector.shape_cast %87 : vector<2x4x1x8x4xf32> to vector<2x4x8x4xf32>
    %89 = arith.maximumf %86, %88 : vector<2x4x8x4xf32>
    %90 = vector.shape_cast %89 : vector<2x4x8x4xf32> to vector<2x4x4x2x4xf32>
    %cst_115 = arith.constant dense<0xFF800000> : vector<2x4x4x4xf32>
    %91 = vector.multi_reduction <maximumf>, %90, %cst_115 [3] : vector<2x4x4x2x4xf32> to vector<2x4x4x4xf32>
    %cst_116 = arith.constant 0.000000e+00 : f32
    %92 = vector.broadcast %cst_116 : f32 to vector<2x1x6x4xf32>
    %c0_117 = arith.constant 0 : index
    %c0_118 = arith.constant 0 : index
    %c0_119 = arith.constant 0 : index
    %c0_120 = arith.constant 0 : index
    %93 = vector.load %arg22[%c0_117, %c0_118, %c0_119, %c0_120] : memref<2x6x6x4xf32, #tpu.memory_space<vmem>>, vector<2x1x6x4xf32>
    tpu.vector_store %arg22[%c0_117, %c0_118, %c0_119, %c0_120], %92 {strides = array<i32>} : memref<2x6x6x4xf32, #tpu.memory_space<vmem>>, vector<2x1x6x4xf32>,
    %cst_121 = arith.constant 0.000000e+00 : f32
    %94 = vector.broadcast %cst_121 : f32 to vector<2x1x6x4xf32>
    %c0_122 = arith.constant 0 : index
    %c5 = arith.constant 5 : index
    %c0_123 = arith.constant 0 : index
    %c0_124 = arith.constant 0 : index
    %95 = vector.load %arg22[%c0_122, %c5, %c0_123, %c0_124] : memref<2x6x6x4xf32, #tpu.memory_space<vmem>>, vector<2x1x6x4xf32>
    tpu.vector_store %arg22[%c0_122, %c5, %c0_123, %c0_124], %94 {strides = array<i32>} : memref<2x6x6x4xf32, #tpu.memory_space<vmem>>, vector<2x1x6x4xf32>,
    %cst_125 = arith.constant 0.000000e+00 : f32
    %96 = vector.broadcast %cst_125 : f32 to vector<2x6x1x4xf32>
    %c0_126 = arith.constant 0 : index
    %c0_127 = arith.constant 0 : index
    %c0_128 = arith.constant 0 : index
    %c0_129 = arith.constant 0 : index
    %97 = vector.load %arg22[%c0_126, %c0_127, %c0_128, %c0_129] : memref<2x6x6x4xf32, #tpu.memory_space<vmem>>, vector<2x6x1x4xf32>
    tpu.vector_store %arg22[%c0_126, %c0_127, %c0_128, %c0_129], %96 {strides = array<i32>} : memref<2x6x6x4xf32, #tpu.memory_space<vmem>>, vector<2x6x1x4xf32>,
    %cst_130 = arith.constant 0.000000e+00 : f32
    %98 = vector.broadcast %cst_130 : f32 to vector<2x6x1x4xf32>
    %c0_131 = arith.constant 0 : index
    %c0_132 = arith.constant 0 : index
    %c5_133 = arith.constant 5 : index
    %c0_134 = arith.constant 0 : index
    %99 = vector.load %arg22[%c0_131, %c0_132, %c5_133, %c0_134] : memref<2x6x6x4xf32, #tpu.memory_space<vmem>>, vector<2x6x1x4xf32>
    tpu.vector_store %arg22[%c0_131, %c0_132, %c5_133, %c0_134], %98 {strides = array<i32>} : memref<2x6x6x4xf32, #tpu.memory_space<vmem>>, vector<2x6x1x4xf32>,
    %c0_135 = arith.constant 0 : index
    %c1_136 = arith.constant 1 : index
    %c1_137 = arith.constant 1 : index
    %c0_138 = arith.constant 0 : index
    %100 = vector.load %arg22[%c0_135, %c1_136, %c1_137, %c0_138] : memref<2x6x6x4xf32, #tpu.memory_space<vmem>>, vector<2x4x4x4xf32>
    tpu.vector_store %arg22[%c0_135, %c1_136, %c1_137, %c0_138], %91 {strides = array<i32>} : memref<2x6x6x4xf32, #tpu.memory_space<vmem>>, vector<2x4x4x4xf32>,
    %c0_139 = arith.constant 0 : index
    %c0_140 = arith.constant 0 : index
    %c0_141 = arith.constant 0 : index
    %c0_142 = arith.constant 0 : index
    %101 = vector.load %arg22[%c0_139, %c0_140, %c0_141, %c0_142] : memref<2x6x6x4xf32, #tpu.memory_space<vmem>>, vector<2x4x4x4xf32>
    %102 = vector.shape_cast %101 : vector<2x4x4x4xf32> to vector<32x4xf32>
    %c0_143 = arith.constant 0 : index
    %c0_144 = arith.constant 0 : index
    %c1_145 = arith.constant 1 : index
    %c0_146 = arith.constant 0 : index
    %103 = vector.load %arg22[%c0_143, %c0_144, %c1_145, %c0_146] : memref<2x6x6x4xf32, #tpu.memory_space<vmem>>, vector<2x4x4x4xf32>
    %104 = vector.shape_cast %103 : vector<2x4x4x4xf32> to vector<32x4xf32>
    %c0_147 = arith.constant 0 : index
    %c0_148 = arith.constant 0 : index
    %c2_149 = arith.constant 2 : index
    %c0_150 = arith.constant 0 : index
    %105 = vector.load %arg22[%c0_147, %c0_148, %c2_149, %c0_150] : memref<2x6x6x4xf32, #tpu.memory_space<vmem>>, vector<2x4x4x4xf32>
    %106 = vector.shape_cast %105 : vector<2x4x4x4xf32> to vector<32x4xf32>
    %c0_151 = arith.constant 0 : index
    %c1_152 = arith.constant 1 : index
    %c0_153 = arith.constant 0 : index
    %c0_154 = arith.constant 0 : index
    %107 = vector.load %arg22[%c0_151, %c1_152, %c0_153, %c0_154] : memref<2x6x6x4xf32, #tpu.memory_space<vmem>>, vector<2x4x4x4xf32>
    %108 = vector.shape_cast %107 : vector<2x4x4x4xf32> to vector<32x4xf32>
    %c0_155 = arith.constant 0 : index
    %c1_156 = arith.constant 1 : index
    %c1_157 = arith.constant 1 : index
    %c0_158 = arith.constant 0 : index
    %109 = vector.load %arg22[%c0_155, %c1_156, %c1_157, %c0_158] : memref<2x6x6x4xf32, #tpu.memory_space<vmem>>, vector<2x4x4x4xf32>
    %110 = vector.shape_cast %109 : vector<2x4x4x4xf32> to vector<32x4xf32>
    %c0_159 = arith.constant 0 : index
    %c1_160 = arith.constant 1 : index
    %c2_161 = arith.constant 2 : index
    %c0_162 = arith.constant 0 : index
    %111 = vector.load %arg22[%c0_159, %c1_160, %c2_161, %c0_162] : memref<2x6x6x4xf32, #tpu.memory_space<vmem>>, vector<2x4x4x4xf32>
    %112 = vector.shape_cast %111 : vector<2x4x4x4xf32> to vector<32x4xf32>
    %c0_163 = arith.constant 0 : index
    %c2_164 = arith.constant 2 : index
    %c0_165 = arith.constant 0 : index
    %c0_166 = arith.constant 0 : index
    %113 = vector.load %arg22[%c0_163, %c2_164, %c0_165, %c0_166] : memref<2x6x6x4xf32, #tpu.memory_space<vmem>>, vector<2x4x4x4xf32>
    %114 = vector.shape_cast %113 : vector<2x4x4x4xf32> to vector<32x4xf32>
    %c0_167 = arith.constant 0 : index
    %c2_168 = arith.constant 2 : index
    %c1_169 = arith.constant 1 : index
    %c0_170 = arith.constant 0 : index
    %115 = vector.load %arg22[%c0_167, %c2_168, %c1_169, %c0_170] : memref<2x6x6x4xf32, #tpu.memory_space<vmem>>, vector<2x4x4x4xf32>
    %116 = vector.shape_cast %115 : vector<2x4x4x4xf32> to vector<32x4xf32>
    %c0_171 = arith.constant 0 : index
    %c2_172 = arith.constant 2 : index
    %c2_173 = arith.constant 2 : index
    %c0_174 = arith.constant 0 : index
    %117 = vector.load %arg22[%c0_171, %c2_172, %c2_173, %c0_174] : memref<2x6x6x4xf32, #tpu.memory_space<vmem>>, vector<2x4x4x4xf32>
    %118 = vector.shape_cast %117 : vector<2x4x4x4xf32> to vector<32x4xf32>
    %119 = tpu.concatenate %102, %104, %106, %108, %110, %112, %114, %116, %118 in 1 : vector<32x4xf32>, vector<32x4xf32>, vector<32x4xf32>, vector<32x4xf32>, vector<32x4xf32>, vector<32x4xf32>, vector<32x4xf32>, vector<32x4xf32>, vector<32x4xf32> -> vector<32x36xf32>
    %c0_175 = arith.constant 0 : index
    %c0_176 = arith.constant 0 : index
    %120 = vector.load %arg4[%c0_175, %c0_176] : memref<36x8xf32, #tpu.memory_space<vmem>>, vector<36x8xf32>
    %cst_177 = arith.constant dense<0.000000e+00> : vector<32x8xf32>
    %121 = tpu.matmul %119, %120, %cst_177 {dimension_numbers = #tpu.dot_dimension_numbers<[1], [0], [0], [1], [0, 0, 1, 1], [], []>} : vector<32x36xf32>, vector<36x8xf32>, vector<32x8xf32> -> vector<32x8xf32>
    %c0_178 = arith.constant 0 : index
    %c0_179 = arith.constant 0 : index
    %122 = vector.load %arg10[%c0_178, %c0_179] : memref<1x8xf32, #tpu.memory_space<vmem>>, vector<1x8xf32>
    %123 = vector.broadcast %122 : vector<1x8xf32> to vector<32x8xf32>
    %124 = arith.addf %121, %123 : vector<32x8xf32>
    %cst_180 = arith.constant 0.000000e+00 : f32
    %125 = vector.broadcast %cst_180 : f32 to vector<32x8xf32>
    %126 = arith.cmpf ogt, %124, %125 : vector<32x8xf32>
    %cst_181 = arith.constant 0.00999999977 : f32
    %127 = vector.broadcast %cst_181 : f32 to vector<32x8xf32>
    %128 = arith.mulf %127, %124 : vector<32x8xf32>
    %129 = arith.select %126, %124, %128 : vector<32x8xi1>, vector<32x8xf32>
    %130 = vector.shape_cast %129 : vector<32x8xf32> to vector<2x4x4x8xf32>
    %cst_182 = arith.constant 0.000000e+00 : f32
    %131 = vector.broadcast %cst_182 : f32 to vector<2x1x6x8xf32>
    %c0_183 = arith.constant 0 : index
    %c0_184 = arith.constant 0 : index
    %c0_185 = arith.constant 0 : index
    %c0_186 = arith.constant 0 : index
    %132 = vector.load %arg23[%c0_183, %c0_184, %c0_185, %c0_186] : memref<2x6x6x8xf32, #tpu.memory_space<vmem>>, vector<2x1x6x8xf32>
    tpu.vector_store %arg23[%c0_183, %c0_184, %c0_185, %c0_186], %131 {strides = array<i32>} : memref<2x6x6x8xf32, #tpu.memory_space<vmem>>, vector<2x1x6x8xf32>,
    %cst_187 = arith.constant 0.000000e+00 : f32
    %133 = vector.broadcast %cst_187 : f32 to vector<2x1x6x8xf32>
    %c0_188 = arith.constant 0 : index
    %c5_189 = arith.constant 5 : index
    %c0_190 = arith.constant 0 : index
    %c0_191 = arith.constant 0 : index
    %134 = vector.load %arg23[%c0_188, %c5_189, %c0_190, %c0_191] : memref<2x6x6x8xf32, #tpu.memory_space<vmem>>, vector<2x1x6x8xf32>
    tpu.vector_store %arg23[%c0_188, %c5_189, %c0_190, %c0_191], %133 {strides = array<i32>} : memref<2x6x6x8xf32, #tpu.memory_space<vmem>>, vector<2x1x6x8xf32>,
    %cst_192 = arith.constant 0.000000e+00 : f32
    %135 = vector.broadcast %cst_192 : f32 to vector<2x6x1x8xf32>
    %c0_193 = arith.constant 0 : index
    %c0_194 = arith.constant 0 : index
    %c0_195 = arith.constant 0 : index
    %c0_196 = arith.constant 0 : index
    %136 = vector.load %arg23[%c0_193, %c0_194, %c0_195, %c0_196] : memref<2x6x6x8xf32, #tpu.memory_space<vmem>>, vector<2x6x1x8xf32>
    tpu.vector_store %arg23[%c0_193, %c0_194, %c0_195, %c0_196], %135 {strides = array<i32>} : memref<2x6x6x8xf32, #tpu.memory_space<vmem>>, vector<2x6x1x8xf32>,
    %cst_197 = arith.constant 0.000000e+00 : f32
    %137 = vector.broadcast %cst_197 : f32 to vector<2x6x1x8xf32>
    %c0_198 = arith.constant 0 : index
    %c0_199 = arith.constant 0 : index
    %c5_200 = arith.constant 5 : index
    %c0_201 = arith.constant 0 : index
    %138 = vector.load %arg23[%c0_198, %c0_199, %c5_200, %c0_201] : memref<2x6x6x8xf32, #tpu.memory_space<vmem>>, vector<2x6x1x8xf32>
    tpu.vector_store %arg23[%c0_198, %c0_199, %c5_200, %c0_201], %137 {strides = array<i32>} : memref<2x6x6x8xf32, #tpu.memory_space<vmem>>, vector<2x6x1x8xf32>,
    %c0_202 = arith.constant 0 : index
    %c1_203 = arith.constant 1 : index
    %c1_204 = arith.constant 1 : index
    %c0_205 = arith.constant 0 : index
    %139 = vector.load %arg23[%c0_202, %c1_203, %c1_204, %c0_205] : memref<2x6x6x8xf32, #tpu.memory_space<vmem>>, vector<2x4x4x8xf32>
    tpu.vector_store %arg23[%c0_202, %c1_203, %c1_204, %c0_205], %130 {strides = array<i32>} : memref<2x6x6x8xf32, #tpu.memory_space<vmem>>, vector<2x4x4x8xf32>,
    %c0_206 = arith.constant 0 : index
    %c0_207 = arith.constant 0 : index
    %c0_208 = arith.constant 0 : index
    %c0_209 = arith.constant 0 : index
    %140 = vector.load %arg23[%c0_206, %c0_207, %c0_208, %c0_209] : memref<2x6x6x8xf32, #tpu.memory_space<vmem>>, vector<2x4x4x8xf32>
    %141 = vector.shape_cast %140 : vector<2x4x4x8xf32> to vector<32x8xf32>
    %c0_210 = arith.constant 0 : index
    %c0_211 = arith.constant 0 : index
    %c1_212 = arith.constant 1 : index
    %c0_213 = arith.constant 0 : index
    %142 = vector.load %arg23[%c0_210, %c0_211, %c1_212, %c0_213] : memref<2x6x6x8xf32, #tpu.memory_space<vmem>>, vector<2x4x4x8xf32>
    %143 = vector.shape_cast %142 : vector<2x4x4x8xf32> to vector<32x8xf32>
    %c0_214 = arith.constant 0 : index
    %c0_215 = arith.constant 0 : index
    %c2_216 = arith.constant 2 : index
    %c0_217 = arith.constant 0 : index
    %144 = vector.load %arg23[%c0_214, %c0_215, %c2_216, %c0_217] : memref<2x6x6x8xf32, #tpu.memory_space<vmem>>, vector<2x4x4x8xf32>
    %145 = vector.shape_cast %144 : vector<2x4x4x8xf32> to vector<32x8xf32>
    %c0_218 = arith.constant 0 : index
    %c1_219 = arith.constant 1 : index
    %c0_220 = arith.constant 0 : index
    %c0_221 = arith.constant 0 : index
    %146 = vector.load %arg23[%c0_218, %c1_219, %c0_220, %c0_221] : memref<2x6x6x8xf32, #tpu.memory_space<vmem>>, vector<2x4x4x8xf32>
    %147 = vector.shape_cast %146 : vector<2x4x4x8xf32> to vector<32x8xf32>
    %c0_222 = arith.constant 0 : index
    %c1_223 = arith.constant 1 : index
    %c1_224 = arith.constant 1 : index
    %c0_225 = arith.constant 0 : index
    %148 = vector.load %arg23[%c0_222, %c1_223, %c1_224, %c0_225] : memref<2x6x6x8xf32, #tpu.memory_space<vmem>>, vector<2x4x4x8xf32>
    %149 = vector.shape_cast %148 : vector<2x4x4x8xf32> to vector<32x8xf32>
    %c0_226 = arith.constant 0 : index
    %c1_227 = arith.constant 1 : index
    %c2_228 = arith.constant 2 : index
    %c0_229 = arith.constant 0 : index
    %150 = vector.load %arg23[%c0_226, %c1_227, %c2_228, %c0_229] : memref<2x6x6x8xf32, #tpu.memory_space<vmem>>, vector<2x4x4x8xf32>
    %151 = vector.shape_cast %150 : vector<2x4x4x8xf32> to vector<32x8xf32>
    %c0_230 = arith.constant 0 : index
    %c2_231 = arith.constant 2 : index
    %c0_232 = arith.constant 0 : index
    %c0_233 = arith.constant 0 : index
    %152 = vector.load %arg23[%c0_230, %c2_231, %c0_232, %c0_233] : memref<2x6x6x8xf32, #tpu.memory_space<vmem>>, vector<2x4x4x8xf32>
    %153 = vector.shape_cast %152 : vector<2x4x4x8xf32> to vector<32x8xf32>
    %c0_234 = arith.constant 0 : index
    %c2_235 = arith.constant 2 : index
    %c1_236 = arith.constant 1 : index
    %c0_237 = arith.constant 0 : index
    %154 = vector.load %arg23[%c0_234, %c2_235, %c1_236, %c0_237] : memref<2x6x6x8xf32, #tpu.memory_space<vmem>>, vector<2x4x4x8xf32>
    %155 = vector.shape_cast %154 : vector<2x4x4x8xf32> to vector<32x8xf32>
    %c0_238 = arith.constant 0 : index
    %c2_239 = arith.constant 2 : index
    %c2_240 = arith.constant 2 : index
    %c0_241 = arith.constant 0 : index
    %156 = vector.load %arg23[%c0_238, %c2_239, %c2_240, %c0_241] : memref<2x6x6x8xf32, #tpu.memory_space<vmem>>, vector<2x4x4x8xf32>
    %157 = vector.shape_cast %156 : vector<2x4x4x8xf32> to vector<32x8xf32>
    %158 = tpu.concatenate %141, %143, %145, %147, %149, %151, %153, %155, %157 in 1 : vector<32x8xf32>, vector<32x8xf32>, vector<32x8xf32>, vector<32x8xf32>, vector<32x8xf32>, vector<32x8xf32>, vector<32x8xf32>, vector<32x8xf32>, vector<32x8xf32> -> vector<32x72xf32>
    %c0_242 = arith.constant 0 : index
    %c0_243 = arith.constant 0 : index
    %159 = vector.load %arg5[%c0_242, %c0_243] : memref<72x8xf32, #tpu.memory_space<vmem>>, vector<72x8xf32>
    %cst_244 = arith.constant dense<0.000000e+00> : vector<32x8xf32>
    %160 = tpu.matmul %158, %159, %cst_244 {dimension_numbers = #tpu.dot_dimension_numbers<[1], [0], [0], [1], [0, 0, 1, 1], [], []>} : vector<32x72xf32>, vector<72x8xf32>, vector<32x8xf32> -> vector<32x8xf32>
    %c0_245 = arith.constant 0 : index
    %c0_246 = arith.constant 0 : index
    %161 = vector.load %arg11[%c0_245, %c0_246] : memref<1x8xf32, #tpu.memory_space<vmem>>, vector<1x8xf32>
    %162 = vector.broadcast %161 : vector<1x8xf32> to vector<32x8xf32>
    %163 = arith.addf %160, %162 : vector<32x8xf32>
    %cst_247 = arith.constant 0.000000e+00 : f32
    %164 = vector.broadcast %cst_247 : f32 to vector<32x8xf32>
    %165 = arith.cmpf ogt, %163, %164 : vector<32x8xf32>
    %cst_248 = arith.constant 0.00999999977 : f32
    %166 = vector.broadcast %cst_248 : f32 to vector<32x8xf32>
    %167 = arith.mulf %166, %163 : vector<32x8xf32>
    %168 = arith.select %165, %163, %167 : vector<32x8xi1>, vector<32x8xf32>
    %169 = vector.shape_cast %168 : vector<32x8xf32> to vector<2x2x2x4x8xf32>
    %170 = vector.extract_strided_slice %169 {offsets = [0, 0, 0, 0, 0], sizes = [2, 2, 1, 4, 8], strides = [1, 1, 1, 1, 1]} : vector<2x2x2x4x8xf32> to vector<2x2x1x4x8xf32>
    %171 = vector.shape_cast %170 : vector<2x2x1x4x8xf32> to vector<2x2x4x8xf32>
    %172 = vector.extract_strided_slice %169 {offsets = [0, 0, 1, 0, 0], sizes = [2, 2, 1, 4, 8], strides = [1, 1, 1, 1, 1]} : vector<2x2x2x4x8xf32> to vector<2x2x1x4x8xf32>
    %173 = vector.shape_cast %172 : vector<2x2x1x4x8xf32> to vector<2x2x4x8xf32>
    %174 = arith.maximumf %171, %173 : vector<2x2x4x8xf32>
    %175 = vector.shape_cast %174 : vector<2x2x4x8xf32> to vector<2x2x2x2x8xf32>
    %cst_249 = arith.constant dense<0xFF800000> : vector<2x2x2x8xf32>
    %176 = vector.multi_reduction <maximumf>, %175, %cst_249 [3] : vector<2x2x2x2x8xf32> to vector<2x2x2x8xf32>
    %cst_250 = arith.constant 0.000000e+00 : f32
    %177 = vector.broadcast %cst_250 : f32 to vector<2x1x4x8xf32>
    %c0_251 = arith.constant 0 : index
    %c0_252 = arith.constant 0 : index
    %c0_253 = arith.constant 0 : index
    %c0_254 = arith.constant 0 : index
    %178 = vector.load %arg24[%c0_251, %c0_252, %c0_253, %c0_254] : memref<2x4x4x8xf32, #tpu.memory_space<vmem>>, vector<2x1x4x8xf32>
    tpu.vector_store %arg24[%c0_251, %c0_252, %c0_253, %c0_254], %177 {strides = array<i32>} : memref<2x4x4x8xf32, #tpu.memory_space<vmem>>, vector<2x1x4x8xf32>,
    %cst_255 = arith.constant 0.000000e+00 : f32
    %179 = vector.broadcast %cst_255 : f32 to vector<2x1x4x8xf32>
    %c0_256 = arith.constant 0 : index
    %c3 = arith.constant 3 : index
    %c0_257 = arith.constant 0 : index
    %c0_258 = arith.constant 0 : index
    %180 = vector.load %arg24[%c0_256, %c3, %c0_257, %c0_258] : memref<2x4x4x8xf32, #tpu.memory_space<vmem>>, vector<2x1x4x8xf32>
    tpu.vector_store %arg24[%c0_256, %c3, %c0_257, %c0_258], %179 {strides = array<i32>} : memref<2x4x4x8xf32, #tpu.memory_space<vmem>>, vector<2x1x4x8xf32>,
    %cst_259 = arith.constant 0.000000e+00 : f32
    %181 = vector.broadcast %cst_259 : f32 to vector<2x4x1x8xf32>
    %c0_260 = arith.constant 0 : index
    %c0_261 = arith.constant 0 : index
    %c0_262 = arith.constant 0 : index
    %c0_263 = arith.constant 0 : index
    %182 = vector.load %arg24[%c0_260, %c0_261, %c0_262, %c0_263] : memref<2x4x4x8xf32, #tpu.memory_space<vmem>>, vector<2x4x1x8xf32>
    tpu.vector_store %arg24[%c0_260, %c0_261, %c0_262, %c0_263], %181 {strides = array<i32>} : memref<2x4x4x8xf32, #tpu.memory_space<vmem>>, vector<2x4x1x8xf32>,
    %cst_264 = arith.constant 0.000000e+00 : f32
    %183 = vector.broadcast %cst_264 : f32 to vector<2x4x1x8xf32>
    %c0_265 = arith.constant 0 : index
    %c0_266 = arith.constant 0 : index
    %c3_267 = arith.constant 3 : index
    %c0_268 = arith.constant 0 : index
    %184 = vector.load %arg24[%c0_265, %c0_266, %c3_267, %c0_268] : memref<2x4x4x8xf32, #tpu.memory_space<vmem>>, vector<2x4x1x8xf32>
    tpu.vector_store %arg24[%c0_265, %c0_266, %c3_267, %c0_268], %183 {strides = array<i32>} : memref<2x4x4x8xf32, #tpu.memory_space<vmem>>, vector<2x4x1x8xf32>,
    %c0_269 = arith.constant 0 : index
    %c1_270 = arith.constant 1 : index
    %c1_271 = arith.constant 1 : index
    %c0_272 = arith.constant 0 : index
    %185 = vector.load %arg24[%c0_269, %c1_270, %c1_271, %c0_272] : memref<2x4x4x8xf32, #tpu.memory_space<vmem>>, vector<2x2x2x8xf32>
    tpu.vector_store %arg24[%c0_269, %c1_270, %c1_271, %c0_272], %176 {strides = array<i32>} : memref<2x4x4x8xf32, #tpu.memory_space<vmem>>, vector<2x2x2x8xf32>,
    %c0_273 = arith.constant 0 : index
    %c0_274 = arith.constant 0 : index
    %c0_275 = arith.constant 0 : index
    %c0_276 = arith.constant 0 : index
    %186 = vector.load %arg24[%c0_273, %c0_274, %c0_275, %c0_276] : memref<2x4x4x8xf32, #tpu.memory_space<vmem>>, vector<2x2x2x8xf32>
    %187 = vector.shape_cast %186 : vector<2x2x2x8xf32> to vector<8x8xf32>
    %c0_277 = arith.constant 0 : index
    %c0_278 = arith.constant 0 : index
    %c1_279 = arith.constant 1 : index
    %c0_280 = arith.constant 0 : index
    %188 = vector.load %arg24[%c0_277, %c0_278, %c1_279, %c0_280] : memref<2x4x4x8xf32, #tpu.memory_space<vmem>>, vector<2x2x2x8xf32>
    %189 = vector.shape_cast %188 : vector<2x2x2x8xf32> to vector<8x8xf32>
    %c0_281 = arith.constant 0 : index
    %c0_282 = arith.constant 0 : index
    %c2_283 = arith.constant 2 : index
    %c0_284 = arith.constant 0 : index
    %190 = vector.load %arg24[%c0_281, %c0_282, %c2_283, %c0_284] : memref<2x4x4x8xf32, #tpu.memory_space<vmem>>, vector<2x2x2x8xf32>
    %191 = vector.shape_cast %190 : vector<2x2x2x8xf32> to vector<8x8xf32>
    %c0_285 = arith.constant 0 : index
    %c1_286 = arith.constant 1 : index
    %c0_287 = arith.constant 0 : index
    %c0_288 = arith.constant 0 : index
    %192 = vector.load %arg24[%c0_285, %c1_286, %c0_287, %c0_288] : memref<2x4x4x8xf32, #tpu.memory_space<vmem>>, vector<2x2x2x8xf32>
    %193 = vector.shape_cast %192 : vector<2x2x2x8xf32> to vector<8x8xf32>
    %c0_289 = arith.constant 0 : index
    %c1_290 = arith.constant 1 : index
    %c1_291 = arith.constant 1 : index
    %c0_292 = arith.constant 0 : index
    %194 = vector.load %arg24[%c0_289, %c1_290, %c1_291, %c0_292] : memref<2x4x4x8xf32, #tpu.memory_space<vmem>>, vector<2x2x2x8xf32>
    %195 = vector.shape_cast %194 : vector<2x2x2x8xf32> to vector<8x8xf32>
    %c0_293 = arith.constant 0 : index
    %c1_294 = arith.constant 1 : index
    %c2_295 = arith.constant 2 : index
    %c0_296 = arith.constant 0 : index
    %196 = vector.load %arg24[%c0_293, %c1_294, %c2_295, %c0_296] : memref<2x4x4x8xf32, #tpu.memory_space<vmem>>, vector<2x2x2x8xf32>
    %197 = vector.shape_cast %196 : vector<2x2x2x8xf32> to vector<8x8xf32>
    %c0_297 = arith.constant 0 : index
    %c2_298 = arith.constant 2 : index
    %c0_299 = arith.constant 0 : index
    %c0_300 = arith.constant 0 : index
    %198 = vector.load %arg24[%c0_297, %c2_298, %c0_299, %c0_300] : memref<2x4x4x8xf32, #tpu.memory_space<vmem>>, vector<2x2x2x8xf32>
    %199 = vector.shape_cast %198 : vector<2x2x2x8xf32> to vector<8x8xf32>
    %c0_301 = arith.constant 0 : index
    %c2_302 = arith.constant 2 : index
    %c1_303 = arith.constant 1 : index
    %c0_304 = arith.constant 0 : index
    %200 = vector.load %arg24[%c0_301, %c2_302, %c1_303, %c0_304] : memref<2x4x4x8xf32, #tpu.memory_space<vmem>>, vector<2x2x2x8xf32>
    %201 = vector.shape_cast %200 : vector<2x2x2x8xf32> to vector<8x8xf32>
    %c0_305 = arith.constant 0 : index
    %c2_306 = arith.constant 2 : index
    %c2_307 = arith.constant 2 : index
    %c0_308 = arith.constant 0 : index
    %202 = vector.load %arg24[%c0_305, %c2_306, %c2_307, %c0_308] : memref<2x4x4x8xf32, #tpu.memory_space<vmem>>, vector<2x2x2x8xf32>
    %203 = vector.shape_cast %202 : vector<2x2x2x8xf32> to vector<8x8xf32>
    %204 = tpu.concatenate %187, %189, %191, %193, %195, %197, %199, %201, %203 in 1 : vector<8x8xf32>, vector<8x8xf32>, vector<8x8xf32>, vector<8x8xf32>, vector<8x8xf32>, vector<8x8xf32>, vector<8x8xf32>, vector<8x8xf32>, vector<8x8xf32> -> vector<8x72xf32>
    %c0_309 = arith.constant 0 : index
    %c0_310 = arith.constant 0 : index
    %205 = vector.load %arg6[%c0_309, %c0_310] : memref<72x16xf32, #tpu.memory_space<vmem>>, vector<72x16xf32>
    %cst_311 = arith.constant dense<0.000000e+00> : vector<8x16xf32>
    %206 = tpu.matmul %204, %205, %cst_311 {dimension_numbers = #tpu.dot_dimension_numbers<[1], [0], [0], [1], [0, 0, 1, 1], [], []>} : vector<8x72xf32>, vector<72x16xf32>, vector<8x16xf32> -> vector<8x16xf32>
    %c0_312 = arith.constant 0 : index
    %c0_313 = arith.constant 0 : index
    %207 = vector.load %arg12[%c0_312, %c0_313] : memref<1x16xf32, #tpu.memory_space<vmem>>, vector<1x16xf32>
    %208 = vector.broadcast %207 : vector<1x16xf32> to vector<8x16xf32>
    %209 = arith.addf %206, %208 : vector<8x16xf32>
    %cst_314 = arith.constant 0.000000e+00 : f32
    %210 = vector.broadcast %cst_314 : f32 to vector<8x16xf32>
    %211 = arith.cmpf ogt, %209, %210 : vector<8x16xf32>
    %cst_315 = arith.constant 0.00999999977 : f32
    %212 = vector.broadcast %cst_315 : f32 to vector<8x16xf32>
    %213 = arith.mulf %212, %209 : vector<8x16xf32>
    %214 = arith.select %211, %209, %213 : vector<8x16xi1>, vector<8x16xf32>
    %215 = vector.shape_cast %214 : vector<8x16xf32> to vector<2x2x2x16xf32>
    %cst_316 = arith.constant 0.000000e+00 : f32
    %216 = vector.broadcast %cst_316 : f32 to vector<2x1x4x16xf32>
    %c0_317 = arith.constant 0 : index
    %c0_318 = arith.constant 0 : index
    %c0_319 = arith.constant 0 : index
    %c0_320 = arith.constant 0 : index
    %217 = vector.load %arg25[%c0_317, %c0_318, %c0_319, %c0_320] : memref<2x4x4x16xf32, #tpu.memory_space<vmem>>, vector<2x1x4x16xf32>
    tpu.vector_store %arg25[%c0_317, %c0_318, %c0_319, %c0_320], %216 {strides = array<i32>} : memref<2x4x4x16xf32, #tpu.memory_space<vmem>>, vector<2x1x4x16xf32>,
    %cst_321 = arith.constant 0.000000e+00 : f32
    %218 = vector.broadcast %cst_321 : f32 to vector<2x1x4x16xf32>
    %c0_322 = arith.constant 0 : index
    %c3_323 = arith.constant 3 : index
    %c0_324 = arith.constant 0 : index
    %c0_325 = arith.constant 0 : index
    %219 = vector.load %arg25[%c0_322, %c3_323, %c0_324, %c0_325] : memref<2x4x4x16xf32, #tpu.memory_space<vmem>>, vector<2x1x4x16xf32>
    tpu.vector_store %arg25[%c0_322, %c3_323, %c0_324, %c0_325], %218 {strides = array<i32>} : memref<2x4x4x16xf32, #tpu.memory_space<vmem>>, vector<2x1x4x16xf32>,
    %cst_326 = arith.constant 0.000000e+00 : f32
    %220 = vector.broadcast %cst_326 : f32 to vector<2x4x1x16xf32>
    %c0_327 = arith.constant 0 : index
    %c0_328 = arith.constant 0 : index
    %c0_329 = arith.constant 0 : index
    %c0_330 = arith.constant 0 : index
    %221 = vector.load %arg25[%c0_327, %c0_328, %c0_329, %c0_330] : memref<2x4x4x16xf32, #tpu.memory_space<vmem>>, vector<2x4x1x16xf32>
    tpu.vector_store %arg25[%c0_327, %c0_328, %c0_329, %c0_330], %220 {strides = array<i32>} : memref<2x4x4x16xf32, #tpu.memory_space<vmem>>, vector<2x4x1x16xf32>,
    %cst_331 = arith.constant 0.000000e+00 : f32
    %222 = vector.broadcast %cst_331 : f32 to vector<2x4x1x16xf32>
    %c0_332 = arith.constant 0 : index
    %c0_333 = arith.constant 0 : index
    %c3_334 = arith.constant 3 : index
    %c0_335 = arith.constant 0 : index
    %223 = vector.load %arg25[%c0_332, %c0_333, %c3_334, %c0_335] : memref<2x4x4x16xf32, #tpu.memory_space<vmem>>, vector<2x4x1x16xf32>
    tpu.vector_store %arg25[%c0_332, %c0_333, %c3_334, %c0_335], %222 {strides = array<i32>} : memref<2x4x4x16xf32, #tpu.memory_space<vmem>>, vector<2x4x1x16xf32>,
    %c0_336 = arith.constant 0 : index
    %c1_337 = arith.constant 1 : index
    %c1_338 = arith.constant 1 : index
    %c0_339 = arith.constant 0 : index
    %224 = vector.load %arg25[%c0_336, %c1_337, %c1_338, %c0_339] : memref<2x4x4x16xf32, #tpu.memory_space<vmem>>, vector<2x2x2x16xf32>
    tpu.vector_store %arg25[%c0_336, %c1_337, %c1_338, %c0_339], %215 {strides = array<i32>} : memref<2x4x4x16xf32, #tpu.memory_space<vmem>>, vector<2x2x2x16xf32>,
    %c0_340 = arith.constant 0 : index
    %c0_341 = arith.constant 0 : index
    %c0_342 = arith.constant 0 : index
    %c0_343 = arith.constant 0 : index
    %225 = vector.load %arg25[%c0_340, %c0_341, %c0_342, %c0_343] : memref<2x4x4x16xf32, #tpu.memory_space<vmem>>, vector<2x2x2x16xf32>
    %226 = vector.shape_cast %225 : vector<2x2x2x16xf32> to vector<8x16xf32>
    %c0_344 = arith.constant 0 : index
    %c0_345 = arith.constant 0 : index
    %c1_346 = arith.constant 1 : index
    %c0_347 = arith.constant 0 : index
    %227 = vector.load %arg25[%c0_344, %c0_345, %c1_346, %c0_347] : memref<2x4x4x16xf32, #tpu.memory_space<vmem>>, vector<2x2x2x16xf32>
    %228 = vector.shape_cast %227 : vector<2x2x2x16xf32> to vector<8x16xf32>
    %c0_348 = arith.constant 0 : index
    %c0_349 = arith.constant 0 : index
    %c2_350 = arith.constant 2 : index
    %c0_351 = arith.constant 0 : index
    %229 = vector.load %arg25[%c0_348, %c0_349, %c2_350, %c0_351] : memref<2x4x4x16xf32, #tpu.memory_space<vmem>>, vector<2x2x2x16xf32>
    %230 = vector.shape_cast %229 : vector<2x2x2x16xf32> to vector<8x16xf32>
    %c0_352 = arith.constant 0 : index
    %c1_353 = arith.constant 1 : index
    %c0_354 = arith.constant 0 : index
    %c0_355 = arith.constant 0 : index
    %231 = vector.load %arg25[%c0_352, %c1_353, %c0_354, %c0_355] : memref<2x4x4x16xf32, #tpu.memory_space<vmem>>, vector<2x2x2x16xf32>
    %232 = vector.shape_cast %231 : vector<2x2x2x16xf32> to vector<8x16xf32>
    %c0_356 = arith.constant 0 : index
    %c1_357 = arith.constant 1 : index
    %c1_358 = arith.constant 1 : index
    %c0_359 = arith.constant 0 : index
    %233 = vector.load %arg25[%c0_356, %c1_357, %c1_358, %c0_359] : memref<2x4x4x16xf32, #tpu.memory_space<vmem>>, vector<2x2x2x16xf32>
    %234 = vector.shape_cast %233 : vector<2x2x2x16xf32> to vector<8x16xf32>
    %c0_360 = arith.constant 0 : index
    %c1_361 = arith.constant 1 : index
    %c2_362 = arith.constant 2 : index
    %c0_363 = arith.constant 0 : index
    %235 = vector.load %arg25[%c0_360, %c1_361, %c2_362, %c0_363] : memref<2x4x4x16xf32, #tpu.memory_space<vmem>>, vector<2x2x2x16xf32>
    %236 = vector.shape_cast %235 : vector<2x2x2x16xf32> to vector<8x16xf32>
    %c0_364 = arith.constant 0 : index
    %c2_365 = arith.constant 2 : index
    %c0_366 = arith.constant 0 : index
    %c0_367 = arith.constant 0 : index
    %237 = vector.load %arg25[%c0_364, %c2_365, %c0_366, %c0_367] : memref<2x4x4x16xf32, #tpu.memory_space<vmem>>, vector<2x2x2x16xf32>
    %238 = vector.shape_cast %237 : vector<2x2x2x16xf32> to vector<8x16xf32>
    %c0_368 = arith.constant 0 : index
    %c2_369 = arith.constant 2 : index
    %c1_370 = arith.constant 1 : index
    %c0_371 = arith.constant 0 : index
    %239 = vector.load %arg25[%c0_368, %c2_369, %c1_370, %c0_371] : memref<2x4x4x16xf32, #tpu.memory_space<vmem>>, vector<2x2x2x16xf32>
    %240 = vector.shape_cast %239 : vector<2x2x2x16xf32> to vector<8x16xf32>
    %c0_372 = arith.constant 0 : index
    %c2_373 = arith.constant 2 : index
    %c2_374 = arith.constant 2 : index
    %c0_375 = arith.constant 0 : index
    %241 = vector.load %arg25[%c0_372, %c2_373, %c2_374, %c0_375] : memref<2x4x4x16xf32, #tpu.memory_space<vmem>>, vector<2x2x2x16xf32>
    %242 = vector.shape_cast %241 : vector<2x2x2x16xf32> to vector<8x16xf32>
    %243 = tpu.concatenate %226, %228, %230, %232, %234, %236, %238, %240, %242 in 1 : vector<8x16xf32>, vector<8x16xf32>, vector<8x16xf32>, vector<8x16xf32>, vector<8x16xf32>, vector<8x16xf32>, vector<8x16xf32>, vector<8x16xf32>, vector<8x16xf32> -> vector<8x144xf32>
    %c0_376 = arith.constant 0 : index
    %c0_377 = arith.constant 0 : index
    %244 = vector.load %arg7[%c0_376, %c0_377] : memref<144x16xf32, #tpu.memory_space<vmem>>, vector<144x16xf32>
    %cst_378 = arith.constant dense<0.000000e+00> : vector<8x16xf32>
    %245 = tpu.matmul %243, %244, %cst_378 {dimension_numbers = #tpu.dot_dimension_numbers<[1], [0], [0], [1], [0, 0, 1, 1], [], []>} : vector<8x144xf32>, vector<144x16xf32>, vector<8x16xf32> -> vector<8x16xf32>
    %c0_379 = arith.constant 0 : index
    %c0_380 = arith.constant 0 : index
    %246 = vector.load %arg13[%c0_379, %c0_380] : memref<1x16xf32, #tpu.memory_space<vmem>>, vector<1x16xf32>
    %247 = vector.broadcast %246 : vector<1x16xf32> to vector<8x16xf32>
    %248 = arith.addf %245, %247 : vector<8x16xf32>
    %cst_381 = arith.constant 0.000000e+00 : f32
    %249 = vector.broadcast %cst_381 : f32 to vector<8x16xf32>
    %250 = arith.cmpf ogt, %248, %249 : vector<8x16xf32>
    %cst_382 = arith.constant 0.00999999977 : f32
    %251 = vector.broadcast %cst_382 : f32 to vector<8x16xf32>
    %252 = arith.mulf %251, %248 : vector<8x16xf32>
    %253 = arith.select %250, %248, %252 : vector<8x16xi1>, vector<8x16xf32>
    %254 = vector.shape_cast %253 : vector<8x16xf32> to vector<2x1x2x2x16xf32>
    %255 = vector.extract_strided_slice %254 {offsets = [0, 0, 0, 0, 0], sizes = [2, 1, 1, 2, 16], strides = [1, 1, 1, 1, 1]} : vector<2x1x2x2x16xf32> to vector<2x1x1x2x16xf32>
    %256 = vector.shape_cast %255 : vector<2x1x1x2x16xf32> to vector<2x1x2x16xf32>
    %257 = vector.extract_strided_slice %254 {offsets = [0, 0, 1, 0, 0], sizes = [2, 1, 1, 2, 16], strides = [1, 1, 1, 1, 1]} : vector<2x1x2x2x16xf32> to vector<2x1x1x2x16xf32>
    %258 = vector.shape_cast %257 : vector<2x1x1x2x16xf32> to vector<2x1x2x16xf32>
    %259 = arith.maximumf %256, %258 : vector<2x1x2x16xf32>
    %260 = vector.shape_cast %259 : vector<2x1x2x16xf32> to vector<2x1x1x2x16xf32>
    %cst_383 = arith.constant dense<0xFF800000> : vector<2x1x1x16xf32>
    %261 = vector.multi_reduction <maximumf>, %260, %cst_383 [3] : vector<2x1x1x2x16xf32> to vector<2x1x1x16xf32>
    %262 = vector.shape_cast %261 : vector<2x1x1x16xf32> to vector<2x16xf32>
    %c0_384 = arith.constant 0 : index
    %c0_385 = arith.constant 0 : index
    %263 = vector.load %arg14[%c0_384, %c0_385] : memref<16x2xf32, #tpu.memory_space<vmem>>, vector<16x2xf32>
    %cst_386 = arith.constant dense<0.000000e+00> : vector<2x2xf32>
    %264 = tpu.matmul %262, %263, %cst_386 {dimension_numbers = #tpu.dot_dimension_numbers<[1], [0], [0], [1], [0, 0, 1, 1], [], []>} : vector<2x16xf32>, vector<16x2xf32>, vector<2x2xf32> -> vector<2x2xf32>
    %c0_387 = arith.constant 0 : index
    %c0_388 = arith.constant 0 : index
    %265 = vector.load %arg15[%c0_387, %c0_388] : memref<1x2xf32, #tpu.memory_space<vmem>>, vector<1x2xf32>
    %266 = vector.broadcast %265 : vector<1x2xf32> to vector<2x2xf32>
    %267 = arith.addf %264, %266 : vector<2x2xf32>
    %cst_389 = arith.constant 0.000000e+00 : f32
    %268 = vector.broadcast %cst_389 : f32 to vector<2x2xf32>
    %269 = arith.cmpf ogt, %267, %268 : vector<2x2xf32>
    %cst_390 = arith.constant 0.00999999977 : f32
    %270 = vector.broadcast %cst_390 : f32 to vector<2x2xf32>
    %271 = arith.mulf %270, %267 : vector<2x2xf32>
    %272 = arith.select %269, %267, %271 : vector<2x2xi1>, vector<2x2xf32>
    %c0_391 = arith.constant 0 : index
    %c0_392 = arith.constant 0 : index
    %273 = vector.load %arg16[%c0_391, %c0_392] : memref<2x16xf32, #tpu.memory_space<vmem>>, vector<2x16xf32>
    %cst_393 = arith.constant dense<0.000000e+00> : vector<2x16xf32>
    %274 = tpu.matmul %272, %273, %cst_393 {dimension_numbers = #tpu.dot_dimension_numbers<[1], [0], [0], [1], [0, 0, 1, 1], [], []>} : vector<2x2xf32>, vector<2x16xf32>, vector<2x16xf32> -> vector<2x16xf32>
    %c0_394 = arith.constant 0 : index
    %c0_395 = arith.constant 0 : index
    %275 = vector.load %arg17[%c0_394, %c0_395] : memref<1x16xf32, #tpu.memory_space<vmem>>, vector<1x16xf32>
    %276 = vector.broadcast %275 : vector<1x16xf32> to vector<2x16xf32>
    %277 = arith.addf %274, %276 : vector<2x16xf32>
    %cst_396 = arith.constant 0.000000e+00 : f32
    %278 = vector.broadcast %cst_396 : f32 to vector<2x16xf32>
    %279 = arith.cmpf ogt, %277, %278 : vector<2x16xf32>
    %cst_397 = arith.constant 0.00999999977 : f32
    %280 = vector.broadcast %cst_397 : f32 to vector<2x16xf32>
    %281 = arith.mulf %280, %277 : vector<2x16xf32>
    %282 = arith.select %279, %277, %281 : vector<2x16xi1>, vector<2x16xf32>
    %c0_398 = arith.constant 0 : index
    %c0_399 = arith.constant 0 : index
    %283 = vector.load %arg18[%c0_398, %c0_399] : memref<16x5xf32, #tpu.memory_space<vmem>>, vector<16x5xf32>
    %cst_400 = arith.constant dense<0.000000e+00> : vector<2x5xf32>
    %284 = tpu.matmul %282, %283, %cst_400 {dimension_numbers = #tpu.dot_dimension_numbers<[1], [0], [0], [1], [0, 0, 1, 1], [], []>} : vector<2x16xf32>, vector<16x5xf32>, vector<2x5xf32> -> vector<2x5xf32>
    %c0_401 = arith.constant 0 : index
    %c0_402 = arith.constant 0 : index
    %285 = vector.load %arg19[%c0_401, %c0_402] : memref<1x5xf32, #tpu.memory_space<vmem>>, vector<1x5xf32>
    %286 = vector.broadcast %285 : vector<1x5xf32> to vector<2x5xf32>
    %287 = arith.addf %284, %286 : vector<2x5xf32>
    %c0_403 = arith.constant 0 : index
    %c0_404 = arith.constant 0 : index
    %c0_405 = arith.constant 0 : index
    %288 = vector.load %arg20[%c0_403, %c0_404, %c0_405] : memref<1x2x5xf32, #tpu.memory_space<vmem>>, vector<1x2x5xf32>
    %289 = vector.shape_cast %288 : vector<1x2x5xf32> to vector<2x5xf32>
    %290 = vector.shape_cast %287 : vector<2x5xf32> to vector<1x2x5xf32>
    tpu.vector_store %arg20[%c0_403, %c0_404, %c0_405], %290 {strides = array<i32>} : memref<1x2x5xf32, #tpu.memory_space<vmem>>, vector<1x2x5xf32>,
    return
  }
  func.func @transform_0(%arg0: i32) -> (i32, i32, i32, i32, i32) {
    %c0_i32 = arith.constant 0 : i32
    %c0_i32_0 = arith.constant 0 : i32
    %c0_i32_1 = arith.constant 0 : i32
    %c0_i32_2 = arith.constant 0 : i32
    %c0_i32_3 = arith.constant 0 : i32
    return %arg0, %c0_i32, %c0_i32_0, %c0_i32_1, %c0_i32_2 : i32, i32, i32, i32, i32
  }
  func.func @transform_1(%arg0: i32) -> (i32, i32) {
    %c0_i32 = arith.constant 0 : i32
    %c0_i32_0 = arith.constant 0 : i32
    %c0_i32_1 = arith.constant 0 : i32
    return %c0_i32, %c0_i32_0 : i32, i32
  }
  func.func @transform_2(%arg0: i32) -> (i32, i32) {
    %c0_i32 = arith.constant 0 : i32
    %c0_i32_0 = arith.constant 0 : i32
    %c0_i32_1 = arith.constant 0 : i32
    return %c0_i32, %c0_i32_0 : i32, i32
  }
  func.func @transform_3(%arg0: i32) -> (i32, i32) {
    %c0_i32 = arith.constant 0 : i32
    %c0_i32_0 = arith.constant 0 : i32
    %c0_i32_1 = arith.constant 0 : i32
    return %c0_i32, %c0_i32_0 : i32, i32
  }
  func.func @transform_4(%arg0: i32) -> (i32, i32) {
    %c0_i32 = arith.constant 0 : i32
    %c0_i32_0 = arith.constant 0 : i32
    %c0_i32_1 = arith.constant 0 : i32
    return %c0_i32, %c0_i32_0 : i32, i32
  }
  func.func @transform_5(%arg0: i32) -> (i32, i32) {
    %c0_i32 = arith.constant 0 : i32
    %c0_i32_0 = arith.constant 0 : i32
    %c0_i32_1 = arith.constant 0 : i32
    return %c0_i32, %c0_i32_0 : i32, i32
  }
  func.func @transform_6(%arg0: i32) -> (i32, i32) {
    %c0_i32 = arith.constant 0 : i32
    %c0_i32_0 = arith.constant 0 : i32
    %c0_i32_1 = arith.constant 0 : i32
    return %c0_i32, %c0_i32_0 : i32, i32
  }
  func.func @transform_7(%arg0: i32) -> (i32, i32) {
    %c0_i32 = arith.constant 0 : i32
    %c0_i32_0 = arith.constant 0 : i32
    %c0_i32_1 = arith.constant 0 : i32
    return %c0_i32, %c0_i32_0 : i32, i32
  }
  func.func @transform_8(%arg0: i32) -> (i32, i32) {
    %c0_i32 = arith.constant 0 : i32
    %c0_i32_0 = arith.constant 0 : i32
    %c0_i32_1 = arith.constant 0 : i32
    return %c0_i32, %c0_i32_0 : i32, i32
  }
  func.func @transform_9(%arg0: i32) -> (i32, i32) {
    %c0_i32 = arith.constant 0 : i32
    %c0_i32_0 = arith.constant 0 : i32
    %c0_i32_1 = arith.constant 0 : i32
    return %c0_i32, %c0_i32_0 : i32, i32
  }
  func.func @transform_10(%arg0: i32) -> (i32, i32) {
    %c0_i32 = arith.constant 0 : i32
    %c0_i32_0 = arith.constant 0 : i32
    %c0_i32_1 = arith.constant 0 : i32
    return %c0_i32, %c0_i32_0 : i32, i32
  }
  func.func @transform_11(%arg0: i32) -> (i32, i32) {
    %c0_i32 = arith.constant 0 : i32
    %c0_i32_0 = arith.constant 0 : i32
    %c0_i32_1 = arith.constant 0 : i32
    return %c0_i32, %c0_i32_0 : i32, i32
  }
  func.func @transform_12(%arg0: i32) -> (i32, i32) {
    %c0_i32 = arith.constant 0 : i32
    %c0_i32_0 = arith.constant 0 : i32
    %c0_i32_1 = arith.constant 0 : i32
    return %c0_i32, %c0_i32_0 : i32, i32
  }
  func.func @transform_13(%arg0: i32) -> (i32, i32) {
    %c0_i32 = arith.constant 0 : i32
    %c0_i32_0 = arith.constant 0 : i32
    %c0_i32_1 = arith.constant 0 : i32
    return %c0_i32, %c0_i32_0 : i32, i32
  }
  func.func @transform_14(%arg0: i32) -> (i32, i32) {
    %c0_i32 = arith.constant 0 : i32
    %c0_i32_0 = arith.constant 0 : i32
    %c0_i32_1 = arith.constant 0 : i32
    return %c0_i32, %c0_i32_0 : i32, i32
  }
  func.func @transform_15(%arg0: i32) -> (i32, i32) {
    %c0_i32 = arith.constant 0 : i32
    %c0_i32_0 = arith.constant 0 : i32
    %c0_i32_1 = arith.constant 0 : i32
    return %c0_i32, %c0_i32_0 : i32, i32
  }
  func.func @transform_16(%arg0: i32) -> (i32, i32) {
    %c0_i32 = arith.constant 0 : i32
    %c0_i32_0 = arith.constant 0 : i32
    %c0_i32_1 = arith.constant 0 : i32
    return %c0_i32, %c0_i32_0 : i32, i32
  }
  func.func @transform_17(%arg0: i32) -> (i32, i32) {
    %c0_i32 = arith.constant 0 : i32
    %c0_i32_0 = arith.constant 0 : i32
    %c0_i32_1 = arith.constant 0 : i32
    return %c0_i32, %c0_i32_0 : i32, i32
  }
  func.func @transform_18(%arg0: i32) -> (i32, i32) {
    %c0_i32 = arith.constant 0 : i32
    %c0_i32_0 = arith.constant 0 : i32
    %c0_i32_1 = arith.constant 0 : i32
    return %c0_i32, %c0_i32_0 : i32, i32
  }
  func.func @transform_19(%arg0: i32) -> (i32, i32, i32) {
    %c0_i32 = arith.constant 0 : i32
    %c0_i32_0 = arith.constant 0 : i32
    %c0_i32_1 = arith.constant 0 : i32
    return %arg0, %c0_i32, %c0_i32_0 : i32, i32, i32
  }
}

</mosaic_0001>

<llo_original>
// kernel: tpu_custom_call.1
$region0: #{tpu_custom_call.1}
  #allocation0 [shape = 'u32[]', space=smem, size = 0x4, offset = 0x4, fixed_abs, tag = 'smem constant byte address 0x4 - core index']
  #allocation1 [shape = 'u32[72,128]{1,0:T(1,128)}', space=vmem, size = 0x9000, scoped, tag = 'internal scratch']
  #allocation2 [shape = 'f32[2,10,10,2]{3,2,1,0:T(8,128)}', space=vmem, size = 0x28000, scoped, tag = 'scratch operand']
  #allocation3 [shape = 'f32[2,6,6,4]{3,2,1,0:T(8,128)}', space=vmem, size = 0xc000, scoped, tag = 'scratch operand']
  #allocation4 [shape = 'f32[2,6,6,8]{3,2,1,0:T(8,128)}', space=vmem, size = 0xc000, scoped, tag = 'scratch operand']
  #allocation5 [shape = 'f32[2,4,4,8]{3,2,1,0:T(4,128)}', space=vmem, size = 0x4000, scoped, tag = 'scratch operand']
  #allocation6 [shape = 'f32[2,4,4,16]{3,2,1,0:T(4,128)}', space=vmem, size = 0x4000, scoped, tag = 'scratch operand']
  %s0 = inlined_call_operand.vmem [shape: f32[1,2,18,18,1], index: 0, kind: input, shape index: {}]
  %s1 = inlined_call_operand.vmem [shape: f32[9,2], index: 1, kind: input, shape index: {}]
  %s2 = inlined_call_operand.vmem [shape: f32[18,4], index: 2, kind: input, shape index: {}]
  %s3 = inlined_call_operand.vmem [shape: f32[36,8], index: 3, kind: input, shape index: {}]
  %s4 = inlined_call_operand.vmem [shape: f32[72,8], index: 4, kind: input, shape index: {}]
  %s5 = inlined_call_operand.vmem [shape: f32[72,16], index: 5, kind: input, shape index: {}]
  %s6 = inlined_call_operand.vmem [shape: f32[144,16], index: 6, kind: input, shape index: {}]
  %s7 = inlined_call_operand.vmem [shape: f32[1,2], index: 7, kind: input, shape index: {}]
  %s8 = inlined_call_operand.vmem [shape: f32[1,4], index: 8, kind: input, shape index: {}]
  %s9 = inlined_call_operand.vmem [shape: f32[1,8], index: 9, kind: input, shape index: {}]
  %s10 = inlined_call_operand.vmem [shape: f32[1,8], index: 10, kind: input, shape index: {}]
  %s11 = inlined_call_operand.vmem [shape: f32[1,16], index: 11, kind: input, shape index: {}]
  %s12 = inlined_call_operand.vmem [shape: f32[1,16], index: 12, kind: input, shape index: {}]
  %s13 = inlined_call_operand.vmem [shape: f32[16,2], index: 13, kind: input, shape index: {}]
  %s14 = inlined_call_operand.vmem [shape: f32[1,2], index: 14, kind: input, shape index: {}]
  %s15 = inlined_call_operand.vmem [shape: f32[2,16], index: 15, kind: input, shape index: {}]
  %s16 = inlined_call_operand.vmem [shape: f32[1,16], index: 16, kind: input, shape index: {}]
  %s17 = inlined_call_operand.vmem [shape: f32[16,5], index: 17, kind: input, shape index: {}]
  %s18 = inlined_call_operand.vmem [shape: f32[1,5], index: 18, kind: input, shape index: {}]
  %s19 = inlined_call_operand.hbm [shape: f32[1,2,5], index: 19, kind: output, shape index: {}]
  %s20 = sld [smem:[#allocation0]]
  $region86: #{tpu_custom_call.1} parent=0
    _
  %s22 = ssub.s32 1, %s20
  %s23 = scalar_select 0, %s22, %s20
  $region1: #{tpu_custom_call.1} parent=0
    #allocation7 [shape = 'u8[1024]{0}', space=vmem, size = 0x400, scoped, tag = 'output window, operand 0, single buffered']
    #allocation8 [shape = 's32[1]{0}', space=sflag, size = 0x4, scoped, tag = 'scoped memory for tpu_custom_call.1']
    %24 = vsyncpa [#allocation8], 0
    // Predicated region
    $region2: #{tpu_custom_call.1} parent=1 // pred_check
      _
    $region3: #{tpu_custom_call.1} parent=1 // pred_check_branch
      %26 = sbr.rel (0) target = $region5
    $region4: #{tpu_custom_call.1} parent=1 // pred_region
      _
    $region5: #{tpu_custom_call.1} parent=1 // pred_fallthru
      _
    // Predicated region
    $region6: #{tpu_custom_call.1} parent=1 // pred_check
      _
    $region7: #{tpu_custom_call.1} parent=1 // pred_check_branch
      %28 = sbr.rel (0) target = $region9
    $region8: #{tpu_custom_call.1} parent=1 // pred_region
      _
    $region9: #{tpu_custom_call.1} parent=1 // pred_fallthru
      _
    // Predicated region
    $region10: #{tpu_custom_call.1} parent=1 // pred_check
      _
    $region11: #{tpu_custom_call.1} parent=1 // pred_check_branch
      %30 = sbr.rel (0) target = $region13
    $region12: #{tpu_custom_call.1} parent=1 // pred_region
      _
    $region13: #{tpu_custom_call.1} parent=1 // pred_fallthru
      _
    // Predicated region
    $region14: #{tpu_custom_call.1} parent=1 // pred_check
      _
    $region15: #{tpu_custom_call.1} parent=1 // pred_check_branch
      %32 = sbr.rel (0) target = $region17
    $region16: #{tpu_custom_call.1} parent=1 // pred_region
      _
    $region17: #{tpu_custom_call.1} parent=1 // pred_fallthru
      _
    // Predicated region
    $region18: #{tpu_custom_call.1} parent=1 // pred_check
      _
    $region19: #{tpu_custom_call.1} parent=1 // pred_check_branch
      %34 = sbr.rel (0) target = $region21
    $region20: #{tpu_custom_call.1} parent=1 // pred_region
      _
    $region21: #{tpu_custom_call.1} parent=1 // pred_fallthru
      _
    // Predicated region
    $region22: #{tpu_custom_call.1} parent=1 // pred_check
      _
    $region23: #{tpu_custom_call.1} parent=1 // pred_check_branch
      %36 = sbr.rel (0) target = $region25
    $region24: #{tpu_custom_call.1} parent=1 // pred_region
      _
    $region25: #{tpu_custom_call.1} parent=1 // pred_fallthru
      _
    // Predicated region
    $region26: #{tpu_custom_call.1} parent=1 // pred_check
      _
    $region27: #{tpu_custom_call.1} parent=1 // pred_check_branch
      %38 = sbr.rel (0) target = $region29
    $region28: #{tpu_custom_call.1} parent=1 // pred_region
      _
    $region29: #{tpu_custom_call.1} parent=1 // pred_fallthru
      _
    // Predicated region
    $region30: #{tpu_custom_call.1} parent=1 // pred_check
      _
    $region31: #{tpu_custom_call.1} parent=1 // pred_check_branch
      %40 = sbr.rel (0) target = $region33
    $region32: #{tpu_custom_call.1} parent=1 // pred_region
      _
    $region33: #{tpu_custom_call.1} parent=1 // pred_fallthru
      _
    // Predicated region
    $region34: #{tpu_custom_call.1} parent=1 // pred_check
      _
    $region35: #{tpu_custom_call.1} parent=1 // pred_check_branch
      %42 = sbr.rel (0) target = $region37
    $region36: #{tpu_custom_call.1} parent=1 // pred_region
      _
    $region37: #{tpu_custom_call.1} parent=1 // pred_fallthru
      _
    // Predicated region
    $region38: #{tpu_custom_call.1} parent=1 // pred_check
      _
    $region39: #{tpu_custom_call.1} parent=1 // pred_check_branch
      %44 = sbr.rel (0) target = $region41
    $region40: #{tpu_custom_call.1} parent=1 // pred_region
      _
    $region41: #{tpu_custom_call.1} parent=1 // pred_fallthru
      _
    // Predicated region
    $region42: #{tpu_custom_call.1} parent=1 // pred_check
      _
    $region43: #{tpu_custom_call.1} parent=1 // pred_check_branch
      %46 = sbr.rel (0) target = $region45
    $region44: #{tpu_custom_call.1} parent=1 // pred_region
      _
    $region45: #{tpu_custom_call.1} parent=1 // pred_fallthru
      _
    // Predicated region
    $region46: #{tpu_custom_call.1} parent=1 // pred_check
      _
    $region47: #{tpu_custom_call.1} parent=1 // pred_check_branch
      %48 = sbr.rel (0) target = $region49
    $region48: #{tpu_custom_call.1} parent=1 // pred_region
      _
    $region49: #{tpu_custom_call.1} parent=1 // pred_fallthru
      _
    // Predicated region
    $region50: #{tpu_custom_call.1} parent=1 // pred_check
      _
    $region51: #{tpu_custom_call.1} parent=1 // pred_check_branch
      %50 = sbr.rel (0) target = $region53
    $region52: #{tpu_custom_call.1} parent=1 // pred_region
      _
    $region53: #{tpu_custom_call.1} parent=1 // pred_fallthru
      _
    // Predicated region
    $region54: #{tpu_custom_call.1} parent=1 // pred_check
      _
    $region55: #{tpu_custom_call.1} parent=1 // pred_check_branch
      %52 = sbr.rel (0) target = $region57
    $region56: #{tpu_custom_call.1} parent=1 // pred_region
      _
    $region57: #{tpu_custom_call.1} parent=1 // pred_fallthru
      _
    // Predicated region
    $region58: #{tpu_custom_call.1} parent=1 // pred_check
      _
    $region59: #{tpu_custom_call.1} parent=1 // pred_check_branch
      %54 = sbr.rel (0) target = $region61
    $region60: #{tpu_custom_call.1} parent=1 // pred_region
      _
    $region61: #{tpu_custom_call.1} parent=1 // pred_fallthru
      _
    // Predicated region
    $region62: #{tpu_custom_call.1} parent=1 // pred_check
      _
    $region63: #{tpu_custom_call.1} parent=1 // pred_check_branch
      %56 = sbr.rel (0) target = $region65
    $region64: #{tpu_custom_call.1} parent=1 // pred_region
      _
    $region65: #{tpu_custom_call.1} parent=1 // pred_fallthru
      _
    // Predicated region
    $region66: #{tpu_custom_call.1} parent=1 // pred_check
      _
    $region67: #{tpu_custom_call.1} parent=1 // pred_check_branch
      %58 = sbr.rel (0) target = $region69
    $region68: #{tpu_custom_call.1} parent=1 // pred_region
      _
    $region69: #{tpu_custom_call.1} parent=1 // pred_fallthru
      _
    // Predicated region
    $region70: #{tpu_custom_call.1} parent=1 // pred_check
      _
    $region71: #{tpu_custom_call.1} parent=1 // pred_check_branch
      %60 = sbr.rel (0) target = $region73
    $region72: #{tpu_custom_call.1} parent=1 // pred_region
      _
    $region73: #{tpu_custom_call.1} parent=1 // pred_fallthru
      _
    // Predicated region
    $region74: #{tpu_custom_call.1} parent=1 // pred_check
      _
    $region75: #{tpu_custom_call.1} parent=1 // pred_check_branch
      %62 = sbr.rel (0) target = $region77
    $region76: #{tpu_custom_call.1} parent=1 // pred_region
      _
    $region77: #{tpu_custom_call.1} parent=1 // pred_fallthru
      _
    %v63 = vld [vmem:[%s0] sm:$0xff]
    %v64 = vld [vmem:[%s0 + $0x8] sm:$0xff]
    %v65 = vld [vmem:[%s0 + $0x18] sm:$0xff]
    %v66 = vld [vmem:[%s0 + $0x20] sm:$0xff]
    %v67 = vld [vmem:[%s0 + $0x30] sm:$0xff]
    %v68 = vld [vmem:[%s0 + $0x38] sm:$0xff]
    %v69 = vld [vmem:[%s0 + $0x48] sm:$0xff]
    %v70 = vld [vmem:[%s0 + $0x50] sm:$0xff]
    %v71 = vld [vmem:[%s0 + $0x60] sm:$0xff]
    %v72 = vld [vmem:[%s0 + $0x68] sm:$0xff]
    %v73 = vld [vmem:[%s0 + $0x78] sm:$0xff]
    %v74 = vld [vmem:[%s0 + $0x80] sm:$0xff]
    %v75 = vld [vmem:[%s0 + $0x90] sm:$0xff]
    %v76 = vld [vmem:[%s0 + $0x98] sm:$0xff]
    %v77 = vld [vmem:[%s0 + $0xa8] sm:$0xff]
    %v78 = vld [vmem:[%s0 + $0xb0] sm:$0xff]
    %v79 = vld [vmem:[%s0 + $0xc0] sm:$0xff]
    %v80 = vld [vmem:[%s0 + $0xc8] sm:$0xff]
    %v81 = vld [vmem:[%s0 + $0xd8] sm:$0xff]
    %v82 = vld [vmem:[%s0 + $0xe0] sm:$0xff]
    %v83 = vld [vmem:[%s0 + $0xf0] sm:$0xff]
    %v84 = vld [vmem:[%s0 + $0xf8] sm:$0xff]
    %v85 = vld [vmem:[%s0 + $0x108] sm:$0xff]
    %v86 = vld [vmem:[%s0 + $0x110] sm:$0xff]
    %v87 = vld [vmem:[%s0 + $0x120] sm:$0xff]
    %v88 = vld [vmem:[%s0 + $0x128] sm:$0xff]
    %v89 = vld [vmem:[%s0 + $0x138] sm:$0xff]
    %v90 = vld [vmem:[%s0 + $0x140] sm:$0xff]
    %v91 = vld [vmem:[%s0 + $0x150] sm:$0xff]
    %v92 = vld [vmem:[%s0 + $0x158] sm:$0xff]
    %v93 = vld [vmem:[%s0 + $0x168] sm:$0xff]
    %v94 = vld [vmem:[%s0 + $0x170] sm:$0xff]
    %v95 = vld [vmem:[%s0 + $0x1b0] sm:$0xff]
    %v96 = vld [vmem:[%s0 + $0x1b8] sm:$0xff]
    %v97 = vld [vmem:[%s0 + $0x1c8] sm:$0xff]
    %v98 = vld [vmem:[%s0 + $0x1d0] sm:$0xff]
    %v99 = vld [vmem:[%s0 + $0x1e0] sm:$0xff]
    %v100 = vld [vmem:[%s0 + $0x1e8] sm:$0xff]
    %v101 = vld [vmem:[%s0 + $0x1f8] sm:$0xff]
    %v102 = vld [vmem:[%s0 + $0x200] sm:$0xff]
    %v103 = vld [vmem:[%s0 + $0x210] sm:$0xff]
    %v104 = vld [vmem:[%s0 + $0x218] sm:$0xff]
    %v105 = vld [vmem:[%s0 + $0x228] sm:$0xff]
    %v106 = vld [vmem:[%s0 + $0x230] sm:$0xff]
    %v107 = vld [vmem:[%s0 + $0x240] sm:$0xff]
    %v108 = vld [vmem:[%s0 + $0x248] sm:$0xff]
    %v109 = vld [vmem:[%s0 + $0x258] sm:$0xff]
    %v110 = vld [vmem:[%s0 + $0x260] sm:$0xff]
    %v111 = vld [vmem:[%s0 + $0x270] sm:$0xff]
    %v112 = vld [vmem:[%s0 + $0x278] sm:$0xff]
    %v113 = vld [vmem:[%s0 + $0x288] sm:$0xff]
    %v114 = vld [vmem:[%s0 + $0x290] sm:$0xff]
    %v115 = vld [vmem:[%s0 + $0x2a0] sm:$0xff]
    %v116 = vld [vmem:[%s0 + $0x2a8] sm:$0xff]
    %v117 = vld [vmem:[%s0 + $0x2b8] sm:$0xff]
    %v118 = vld [vmem:[%s0 + $0x2c0] sm:$0xff]
    %v119 = vld [vmem:[%s0 + $0x2d0] sm:$0xff]
    %v120 = vld [vmem:[%s0 + $0x2d8] sm:$0xff]
    %v121 = vld [vmem:[%s0 + $0x2e8] sm:$0xff]
    %v122 = vld [vmem:[%s0 + $0x2f0] sm:$0xff]
    %v123 = vld [vmem:[%s0 + $0x300] sm:$0xff]
    %v124 = vld [vmem:[%s0 + $0x308] sm:$0xff]
    %v125 = vld [vmem:[%s0 + $0x318] sm:$0xff]
    %v126 = vld [vmem:[%s0 + $0x320] sm:$0xff]
    %v127 = vld [vmem:[%s0 + $0x1] sm:$0xff]
    %v128 = vld [vmem:[%s0 + $0x9] sm:$0xff]
    %v129 = vld [vmem:[%s0 + $0x19] sm:$0xff]
    %v130 = vld [vmem:[%s0 + $0x21] sm:$0xff]
    %v131 = vld [vmem:[%s0 + $0x31] sm:$0xff]
    %v132 = vld [vmem:[%s0 + $0x39] sm:$0xff]
    %v133 = vld [vmem:[%s0 + $0x49] sm:$0xff]
    %v134 = vld [vmem:[%s0 + $0x51] sm:$0xff]
    %v135 = vld [vmem:[%s0 + $0x61] sm:$0xff]
    %v136 = vld [vmem:[%s0 + $0x69] sm:$0xff]
    %v137 = vld [vmem:[%s0 + $0x79] sm:$0xff]
    %v138 = vld [vmem:[%s0 + $0x81] sm:$0xff]
    %v139 = vld [vmem:[%s0 + $0x91] sm:$0xff]
    %v140 = vld [vmem:[%s0 + $0x99] sm:$0xff]
    %v141 = vld [vmem:[%s0 + $0xa9] sm:$0xff]
    %v142 = vld [vmem:[%s0 + $0xb1] sm:$0xff]
    %v143 = vld [vmem:[%s0 + $0xc1] sm:$0xff]
    %v144 = vld [vmem:[%s0 + $0xc9] sm:$0xff]
    %v145 = vld [vmem:[%s0 + $0xd9] sm:$0xff]
    %v146 = vld [vmem:[%s0 + $0xe1] sm:$0xff]
    %v147 = vld [vmem:[%s0 + $0xf1] sm:$0xff]
    %v148 = vld [vmem:[%s0 + $0xf9] sm:$0xff]
    %v149 = vld [vmem:[%s0 + $0x109] sm:$0xff]
    %v150 = vld [vmem:[%s0 + $0x111] sm:$0xff]
    %v151 = vld [vmem:[%s0 + $0x121] sm:$0xff]
    %v152 = vld [vmem:[%s0 + $0x129] sm:$0xff]
    %v153 = vld [vmem:[%s0 + $0x139] sm:$0xff]
    %v154 = vld [vmem:[%s0 + $0x141] sm:$0xff]
    %v155 = vld [vmem:[%s0 + $0x151] sm:$0xff]
    %v156 = vld [vmem:[%s0 + $0x159] sm:$0xff]
    %v157 = vld [vmem:[%s0 + $0x169] sm:$0xff]
    %v158 = vld [vmem:[%s0 + $0x171] sm:$0xff]
    %v159 = vld [vmem:[%s0 + $0x1b1] sm:$0xff]
    %v160 = vld [vmem:[%s0 + $0x1b9] sm:$0xff]
    %v161 = vld [vmem:[%s0 + $0x1c9] sm:$0xff]
    %v162 = vld [vmem:[%s0 + $0x1d1] sm:$0xff]
    %v163 = vld [vmem:[%s0 + $0x1e1] sm:$0xff]
    %v164 = vld [vmem:[%s0 + $0x1e9] sm:$0xff]
    %v165 = vld [vmem:[%s0 + $0x1f9] sm:$0xff]
    %v166 = vld [vmem:[%s0 + $0x201] sm:$0xff]
    %v167 = vld [vmem:[%s0 + $0x211] sm:$0xff]
    %v168 = vld [vmem:[%s0 + $0x219] sm:$0xff]
    %v169 = vld [vmem:[%s0 + $0x229] sm:$0xff]
    %v170 = vld [vmem:[%s0 + $0x231] sm:$0xff]
    %v171 = vld [vmem:[%s0 + $0x241] sm:$0xff]
    %v172 = vld [vmem:[%s0 + $0x249] sm:$0xff]
    %v173 = vld [vmem:[%s0 + $0x259] sm:$0xff]
    %v174 = vld [vmem:[%s0 + $0x261] sm:$0xff]
    %v175 = vld [vmem:[%s0 + $0x271] sm:$0xff]
    %v176 = vld [vmem:[%s0 + $0x279] sm:$0xff]
    %v177 = vld [vmem:[%s0 + $0x289] sm:$0xff]
    %v178 = vld [vmem:[%s0 + $0x291] sm:$0xff]
    %v179 = vld [vmem:[%s0 + $0x2a1] sm:$0xff]
    %v180 = vld [vmem:[%s0 + $0x2a9] sm:$0xff]
    %v181 = vld [vmem:[%s0 + $0x2b9] sm:$0xff]
    %v182 = vld [vmem:[%s0 + $0x2c1] sm:$0xff]
    %v183 = vld [vmem:[%s0 + $0x2d1] sm:$0xff]
    %v184 = vld [vmem:[%s0 + $0x2d9] sm:$0xff]
    %v185 = vld [vmem:[%s0 + $0x2e9] sm:$0xff]
    %v186 = vld [vmem:[%s0 + $0x2f1] sm:$0xff]
    %v187 = vld [vmem:[%s0 + $0x301] sm:$0xff]
    %v188 = vld [vmem:[%s0 + $0x309] sm:$0xff]
    %v189 = vld [vmem:[%s0 + $0x319] sm:$0xff]
    %v190 = vld [vmem:[%s0 + $0x321] sm:$0xff]
    %v191 = vld [vmem:[%s0 + $0x2] sm:$0xff]
    %v192 = vld [vmem:[%s0 + $0xa] sm:$0xff]
    %v193 = vld [vmem:[%s0 + $0x1a] sm:$0xff]
    %v194 = vld [vmem:[%s0 + $0x22] sm:$0xff]
    %v195 = vld [vmem:[%s0 + $0x32] sm:$0xff]
    %v196 = vld [vmem:[%s0 + $0x3a] sm:$0xff]
    %v197 = vld [vmem:[%s0 + $0x4a] sm:$0xff]
    %v198 = vld [vmem:[%s0 + $0x52] sm:$0xff]
    %v199 = vld [vmem:[%s0 + $0x62] sm:$0xff]
    %v200 = vld [vmem:[%s0 + $0x6a] sm:$0xff]
    %v201 = vld [vmem:[%s0 + $0x7a] sm:$0xff]
    %v202 = vld [vmem:[%s0 + $0x82] sm:$0xff]
    %v203 = vld [vmem:[%s0 + $0x92] sm:$0xff]
    %v204 = vld [vmem:[%s0 + $0x9a] sm:$0xff]
    %v205 = vld [vmem:[%s0 + $0xaa] sm:$0xff]
    %v206 = vld [vmem:[%s0 + $0xb2] sm:$0xff]
    %v207 = vld [vmem:[%s0 + $0xc2] sm:$0xff]
    %v208 = vld [vmem:[%s0 + $0xca] sm:$0xff]
    %v209 = vld [vmem:[%s0 + $0xda] sm:$0xff]
    %v210 = vld [vmem:[%s0 + $0xe2] sm:$0xff]
    %v211 = vld [vmem:[%s0 + $0xf2] sm:$0xff]
    %v212 = vld [vmem:[%s0 + $0xfa] sm:$0xff]
    %v213 = vld [vmem:[%s0 + $0x10a] sm:$0xff]
    %v214 = vld [vmem:[%s0 + $0x112] sm:$0xff]
    %v215 = vld [vmem:[%s0 + $0x122] sm:$0xff]
    %v216 = vld [vmem:[%s0 + $0x12a] sm:$0xff]
    %v217 = vld [vmem:[%s0 + $0x13a] sm:$0xff]
    %v218 = vld [vmem:[%s0 + $0x142] sm:$0xff]
    %v219 = vld [vmem:[%s0 + $0x152] sm:$0xff]
    %v220 = vld [vmem:[%s0 + $0x15a] sm:$0xff]
    %v221 = vld [vmem:[%s0 + $0x16a] sm:$0xff]
    %v222 = vld [vmem:[%s0 + $0x172] sm:$0xff]
    %v223 = vld [vmem:[%s0 + $0x1b2] sm:$0xff]
    %v224 = vld [vmem:[%s0 + $0x1ba] sm:$0xff]
    %v225 = vld [vmem:[%s0 + $0x1ca] sm:$0xff]
    %v226 = vld [vmem:[%s0 + $0x1d2] sm:$0xff]
    %v227 = vld [vmem:[%s0 + $0x1e2] sm:$0xff]
    %v228 = vld [vmem:[%s0 + $0x1ea] sm:$0xff]
    %v229 = vld [vmem:[%s0 + $0x1fa] sm:$0xff]
    %v230 = vld [vmem:[%s0 + $0x202] sm:$0xff]
    %v231 = vld [vmem:[%s0 + $0x212] sm:$0xff]
    %v232 = vld [vmem:[%s0 + $0x21a] sm:$0xff]
    %v233 = vld [vmem:[%s0 + $0x22a] sm:$0xff]
    %v234 = vld [vmem:[%s0 + $0x232] sm:$0xff]
    %v235 = vld [vmem:[%s0 + $0x242] sm:$0xff]
    %v236 = vld [vmem:[%s0 + $0x24a] sm:$0xff]
    %v237 = vld [vmem:[%s0 + $0x25a] sm:$0xff]
    %v238 = vld [vmem:[%s0 + $0x262] sm:$0xff]
    %v239 = vld [vmem:[%s0 + $0x272] sm:$0xff]
    %v240 = vld [vmem:[%s0 + $0x27a] sm:$0xff]
    %v241 = vld [vmem:[%s0 + $0x28a] sm:$0xff]
    %v242 = vld [vmem:[%s0 + $0x292] sm:$0xff]
    %v243 = vld [vmem:[%s0 + $0x2a2] sm:$0xff]
    %v244 = vld [vmem:[%s0 + $0x2aa] sm:$0xff]
    %v245 = vld [vmem:[%s0 + $0x2ba] sm:$0xff]
    %v246 = vld [vmem:[%s0 + $0x2c2] sm:$0xff]
    %v247 = vld [vmem:[%s0 + $0x2d2] sm:$0xff]
    %v248 = vld [vmem:[%s0 + $0x2da] sm:$0xff]
    %v249 = vld [vmem:[%s0 + $0x2ea] sm:$0xff]
    %v250 = vld [vmem:[%s0 + $0x2f2] sm:$0xff]
    %v251 = vld [vmem:[%s0 + $0x302] sm:$0xff]
    %v252 = vld [vmem:[%s0 + $0x30a] sm:$0xff]
    %v253 = vld [vmem:[%s0 + $0x31a] sm:$0xff]
    %v254 = vld [vmem:[%s0 + $0x322] sm:$0xff]
    %s255 = scalar_lea.vmem %s0, 24
    %v256 = vld [vmem:[%s255] sm:$0xff]
    %v257 = vld [vmem:[%s255 + $0x8] sm:$0xff]
    %v258 = vld [vmem:[%s255 + $0x18] sm:$0xff]
    %v259 = vld [vmem:[%s255 + $0x20] sm:$0xff]
    %v260 = vld [vmem:[%s255 + $0x30] sm:$0xff]
    %v261 = vld [vmem:[%s255 + $0x38] sm:$0xff]
    %v262 = vld [vmem:[%s255 + $0x48] sm:$0xff]
    %v263 = vld [vmem:[%s255 + $0x50] sm:$0xff]
    %v264 = vld [vmem:[%s255 + $0x60] sm:$0xff]
    %v265 = vld [vmem:[%s255 + $0x68] sm:$0xff]
    %v266 = vld [vmem:[%s255 + $0x78] sm:$0xff]
    %v267 = vld [vmem:[%s255 + $0x80] sm:$0xff]
    %v268 = vld [vmem:[%s255 + $0x90] sm:$0xff]
    %v269 = vld [vmem:[%s255 + $0x98] sm:$0xff]
    %v270 = vld [vmem:[%s255 + $0xa8] sm:$0xff]
    %v271 = vld [vmem:[%s255 + $0xb0] sm:$0xff]
    %v272 = vld [vmem:[%s255 + $0xc0] sm:$0xff]
    %v273 = vld [vmem:[%s255 + $0xc8] sm:$0xff]
    %v274 = vld [vmem:[%s255 + $0xd8] sm:$0xff]
    %v275 = vld [vmem:[%s255 + $0xe0] sm:$0xff]
    %v276 = vld [vmem:[%s255 + $0xf0] sm:$0xff]
    %v277 = vld [vmem:[%s255 + $0xf8] sm:$0xff]
    %v278 = vld [vmem:[%s255 + $0x108] sm:$0xff]
    %v279 = vld [vmem:[%s255 + $0x110] sm:$0xff]
    %v280 = vld [vmem:[%s255 + $0x120] sm:$0xff]
    %v281 = vld [vmem:[%s255 + $0x128] sm:$0xff]
    %v282 = vld [vmem:[%s255 + $0x138] sm:$0xff]
    %v283 = vld [vmem:[%s255 + $0x140] sm:$0xff]
    %v284 = vld [vmem:[%s255 + $0x150] sm:$0xff]
    %v285 = vld [vmem:[%s255 + $0x158] sm:$0xff]
    %v286 = vld [vmem:[%s255 + $0x168] sm:$0xff]
    %v287 = vld [vmem:[%s255 + $0x170] sm:$0xff]
    %v288 = vld [vmem:[%s255 + $0x1b0] sm:$0xff]
    %v289 = vld [vmem:[%s255 + $0x1b8] sm:$0xff]
    %v290 = vld [vmem:[%s255 + $0x1c8] sm:$0xff]
    %v291 = vld [vmem:[%s255 + $0x1d0] sm:$0xff]
    %v292 = vld [vmem:[%s255 + $0x1e0] sm:$0xff]
    %v293 = vld [vmem:[%s255 + $0x1e8] sm:$0xff]
    %v294 = vld [vmem:[%s255 + $0x1f8] sm:$0xff]
    %v295 = vld [vmem:[%s255 + $0x200] sm:$0xff]
    %v296 = vld [vmem:[%s255 + $0x210] sm:$0xff]
    %v297 = vld [vmem:[%s255 + $0x218] sm:$0xff]
    %v298 = vld [vmem:[%s255 + $0x228] sm:$0xff]
    %v299 = vld [vmem:[%s255 + $0x230] sm:$0xff]
    %v300 = vld [vmem:[%s255 + $0x240] sm:$0xff]
    %v301 = vld [vmem:[%s255 + $0x248] sm:$0xff]
    %v302 = vld [vmem:[%s255 + $0x258] sm:$0xff]
    %v303 = vld [vmem:[%s255 + $0x260] sm:$0xff]
    %v304 = vld [vmem:[%s255 + $0x270] sm:$0xff]
    %v305 = vld [vmem:[%s255 + $0x278] sm:$0xff]
    %v306 = vld [vmem:[%s255 + $0x288] sm:$0xff]
    %v307 = vld [vmem:[%s255 + $0x290] sm:$0xff]
    %v308 = vld [vmem:[%s255 + $0x2a0] sm:$0xff]
    %v309 = vld [vmem:[%s255 + $0x2a8] sm:$0xff]
    %v310 = vld [vmem:[%s255 + $0x2b8] sm:$0xff]
    %v311 = vld [vmem:[%s255 + $0x2c0] sm:$0xff]
    %v312 = vld [vmem:[%s255 + $0x2d0] sm:$0xff]
    %v313 = vld [vmem:[%s255 + $0x2d8] sm:$0xff]
    %v314 = vld [vmem:[%s255 + $0x2e8] sm:$0xff]
    %v315 = vld [vmem:[%s255 + $0x2f0] sm:$0xff]
    %v316 = vld [vmem:[%s255 + $0x300] sm:$0xff]
    %v317 = vld [vmem:[%s255 + $0x308] sm:$0xff]
    %v318 = vld [vmem:[%s255 + $0x318] sm:$0xff]
    %v319 = vld [vmem:[%s255 + $0x320] sm:$0xff]
    %v320 = vld [vmem:[%s255 + $0x1] sm:$0xff]
    %v321 = vld [vmem:[%s255 + $0x9] sm:$0xff]
    %v322 = vld [vmem:[%s255 + $0x19] sm:$0xff]
    %v323 = vld [vmem:[%s255 + $0x21] sm:$0xff]
    %v324 = vld [vmem:[%s255 + $0x31] sm:$0xff]
    %v325 = vld [vmem:[%s255 + $0x39] sm:$0xff]
    %v326 = vld [vmem:[%s255 + $0x49] sm:$0xff]
    %v327 = vld [vmem:[%s255 + $0x51] sm:$0xff]
    %v328 = vld [vmem:[%s255 + $0x61] sm:$0xff]
    %v329 = vld [vmem:[%s255 + $0x69] sm:$0xff]
    %v330 = vld [vmem:[%s255 + $0x79] sm:$0xff]
    %v331 = vld [vmem:[%s255 + $0x81] sm:$0xff]
    %v332 = vld [vmem:[%s255 + $0x91] sm:$0xff]
    %v333 = vld [vmem:[%s255 + $0x99] sm:$0xff]
    %v334 = vld [vmem:[%s255 + $0xa9] sm:$0xff]
    %v335 = vld [vmem:[%s255 + $0xb1] sm:$0xff]
    %v336 = vld [vmem:[%s255 + $0xc1] sm:$0xff]
    %v337 = vld [vmem:[%s255 + $0xc9] sm:$0xff]
    %v338 = vld [vmem:[%s255 + $0xd9] sm:$0xff]
    %v339 = vld [vmem:[%s255 + $0xe1] sm:$0xff]
    %v340 = vld [vmem:[%s255 + $0xf1] sm:$0xff]
    %v341 = vld [vmem:[%s255 + $0xf9] sm:$0xff]
    %v342 = vld [vmem:[%s255 + $0x109] sm:$0xff]
    %v343 = vld [vmem:[%s255 + $0x111] sm:$0xff]
    %v344 = vld [vmem:[%s255 + $0x121] sm:$0xff]
    %v345 = vld [vmem:[%s255 + $0x129] sm:$0xff]
    %v346 = vld [vmem:[%s255 + $0x139] sm:$0xff]
    %v347 = vld [vmem:[%s255 + $0x141] sm:$0xff]
    %v348 = vld [vmem:[%s255 + $0x151] sm:$0xff]
    %v349 = vld [vmem:[%s255 + $0x159] sm:$0xff]
    %v350 = vld [vmem:[%s255 + $0x169] sm:$0xff]
    %v351 = vld [vmem:[%s255 + $0x171] sm:$0xff]
    %v352 = vld [vmem:[%s255 + $0x1b1] sm:$0xff]
    %v353 = vld [vmem:[%s255 + $0x1b9] sm:$0xff]
    %v354 = vld [vmem:[%s255 + $0x1c9] sm:$0xff]
    %v355 = vld [vmem:[%s255 + $0x1d1] sm:$0xff]
    %v356 = vld [vmem:[%s255 + $0x1e1] sm:$0xff]
    %v357 = vld [vmem:[%s255 + $0x1e9] sm:$0xff]
    %v358 = vld [vmem:[%s255 + $0x1f9] sm:$0xff]
    %v359 = vld [vmem:[%s255 + $0x201] sm:$0xff]
    %v360 = vld [vmem:[%s255 + $0x211] sm:$0xff]
    %v361 = vld [vmem:[%s255 + $0x219] sm:$0xff]
    %v362 = vld [vmem:[%s255 + $0x229] sm:$0xff]
    %v363 = vld [vmem:[%s255 + $0x231] sm:$0xff]
    %v364 = vld [vmem:[%s255 + $0x241] sm:$0xff]
    %v365 = vld [vmem:[%s255 + $0x249] sm:$0xff]
    %v366 = vld [vmem:[%s255 + $0x259] sm:$0xff]
    %v367 = vld [vmem:[%s255 + $0x261] sm:$0xff]
    %v368 = vld [vmem:[%s255 + $0x271] sm:$0xff]
    %v369 = vld [vmem:[%s255 + $0x279] sm:$0xff]
    %v370 = vld [vmem:[%s255 + $0x289] sm:$0xff]
    %v371 = vld [vmem:[%s255 + $0x291] sm:$0xff]
    %v372 = vld [vmem:[%s255 + $0x2a1] sm:$0xff]
    %v373 = vld [vmem:[%s255 + $0x2a9] sm:$0xff]
    %v374 = vld [vmem:[%s255 + $0x2b9] sm:$0xff]
    %v375 = vld [vmem:[%s255 + $0x2c1] sm:$0xff]
    %v376 = vld [vmem:[%s255 + $0x2d1] sm:$0xff]
    %v377 = vld [vmem:[%s255 + $0x2d9] sm:$0xff]
    %v378 = vld [vmem:[%s255 + $0x2e9] sm:$0xff]
    %v379 = vld [vmem:[%s255 + $0x2f1] sm:$0xff]
    %v380 = vld [vmem:[%s255 + $0x301] sm:$0xff]
    %v381 = vld [vmem:[%s255 + $0x309] sm:$0xff]
    %v382 = vld [vmem:[%s255 + $0x319] sm:$0xff]
    %v383 = vld [vmem:[%s255 + $0x321] sm:$0xff]
    %v384 = vld [vmem:[%s255 + $0x2] sm:$0xff]
    %v385 = vld [vmem:[%s255 + $0xa] sm:$0xff]
    %v386 = vld [vmem:[%s255 + $0x1a] sm:$0xff]
    %v387 = vld [vmem:[%s255 + $0x22] sm:$0xff]
    %v388 = vld [vmem:[%s255 + $0x32] sm:$0xff]
    %v389 = vld [vmem:[%s255 + $0x3a] sm:$0xff]
    %v390 = vld [vmem:[%s255 + $0x4a] sm:$0xff]
    %v391 = vld [vmem:[%s255 + $0x52] sm:$0xff]
    %v392 = vld [vmem:[%s255 + $0x62] sm:$0xff]
    %v393 = vld [vmem:[%s255 + $0x6a] sm:$0xff]
    %v394 = vld [vmem:[%s255 + $0x7a] sm:$0xff]
    %v395 = vld [vmem:[%s255 + $0x82] sm:$0xff]
    %v396 = vld [vmem:[%s255 + $0x92] sm:$0xff]
    %v397 = vld [vmem:[%s255 + $0x9a] sm:$0xff]
    %v398 = vld [vmem:[%s255 + $0xaa] sm:$0xff]
    %v399 = vld [vmem:[%s255 + $0xb2] sm:$0xff]
    %v400 = vld [vmem:[%s255 + $0xc2] sm:$0xff]
    %v401 = vld [vmem:[%s255 + $0xca] sm:$0xff]
    %v402 = vld [vmem:[%s255 + $0xda] sm:$0xff]
    %v403 = vld [vmem:[%s255 + $0xe2] sm:$0xff]
    %v404 = vld [vmem:[%s255 + $0xf2] sm:$0xff]
    %v405 = vld [vmem:[%s255 + $0xfa] sm:$0xff]
    %v406 = vld [vmem:[%s255 + $0x10a] sm:$0xff]
    %v407 = vld [vmem:[%s255 + $0x112] sm:$0xff]
    %v408 = vld [vmem:[%s255 + $0x122] sm:$0xff]
    %v409 = vld [vmem:[%s255 + $0x12a] sm:$0xff]
    %v410 = vld [vmem:[%s255 + $0x13a] sm:$0xff]
    %v411 = vld [vmem:[%s255 + $0x142] sm:$0xff]
    %v412 = vld [vmem:[%s255 + $0x152] sm:$0xff]
    %v413 = vld [vmem:[%s255 + $0x15a] sm:$0xff]
    %v414 = vld [vmem:[%s255 + $0x16a] sm:$0xff]
    %v415 = vld [vmem:[%s255 + $0x172] sm:$0xff]
    %v416 = vld [vmem:[%s255 + $0x1b2] sm:$0xff]
    %v417 = vld [vmem:[%s255 + $0x1ba] sm:$0xff]
    %v418 = vld [vmem:[%s255 + $0x1ca] sm:$0xff]
    %v419 = vld [vmem:[%s255 + $0x1d2] sm:$0xff]
    %v420 = vld [vmem:[%s255 + $0x1e2] sm:$0xff]
    %v421 = vld [vmem:[%s255 + $0x1ea] sm:$0xff]
    %v422 = vld [vmem:[%s255 + $0x1fa] sm:$0xff]
    %v423 = vld [vmem:[%s255 + $0x202] sm:$0xff]
    %v424 = vld [vmem:[%s255 + $0x212] sm:$0xff]
    %v425 = vld [vmem:[%s255 + $0x21a] sm:$0xff]
    %v426 = vld [vmem:[%s255 + $0x22a] sm:$0xff]
    %v427 = vld [vmem:[%s255 + $0x232] sm:$0xff]
    %v428 = vld [vmem:[%s255 + $0x242] sm:$0xff]
    %v429 = vld [vmem:[%s255 + $0x24a] sm:$0xff]
    %v430 = vld [vmem:[%s255 + $0x25a] sm:$0xff]
    %v431 = vld [vmem:[%s255 + $0x262] sm:$0xff]
    %v432 = vld [vmem:[%s255 + $0x272] sm:$0xff]
    %v433 = vld [vmem:[%s255 + $0x27a] sm:$0xff]
    %v434 = vld [vmem:[%s255 + $0x28a] sm:$0xff]
    %v435 = vld [vmem:[%s255 + $0x292] sm:$0xff]
    %v436 = vld [vmem:[%s255 + $0x2a2] sm:$0xff]
    %v437 = vld [vmem:[%s255 + $0x2aa] sm:$0xff]
    %v438 = vld [vmem:[%s255 + $0x2ba] sm:$0xff]
    %v439 = vld [vmem:[%s255 + $0x2c2] sm:$0xff]
    %v440 = vld [vmem:[%s255 + $0x2d2] sm:$0xff]
    %v441 = vld [vmem:[%s255 + $0x2da] sm:$0xff]
    %v442 = vld [vmem:[%s255 + $0x2ea] sm:$0xff]
    %v443 = vld [vmem:[%s255 + $0x2f2] sm:$0xff]
    %v444 = vld [vmem:[%s255 + $0x302] sm:$0xff]
    %v445 = vld [vmem:[%s255 + $0x30a] sm:$0xff]
    %v446 = vld [vmem:[%s255 + $0x31a] sm:$0xff]
    %v447 = vld [vmem:[%s255 + $0x322] sm:$0xff]
    %s448 = scalar_lea.vmem %s0, 48
    %v449 = vld [vmem:[%s448] sm:$0xff]
    %v450 = vld [vmem:[%s448 + $0x8] sm:$0xff]
    %v451 = vld [vmem:[%s448 + $0x18] sm:$0xff]
    %v452 = vld [vmem:[%s448 + $0x20] sm:$0xff]
    %v453 = vld [vmem:[%s448 + $0x30] sm:$0xff]
    %v454 = vld [vmem:[%s448 + $0x38] sm:$0xff]
    %v455 = vld [vmem:[%s448 + $0x48] sm:$0xff]
    %v456 = vld [vmem:[%s448 + $0x50] sm:$0xff]
    %v457 = vld [vmem:[%s448 + $0x60] sm:$0xff]
    %v458 = vld [vmem:[%s448 + $0x68] sm:$0xff]
    %v459 = vld [vmem:[%s448 + $0x78] sm:$0xff]
    %v460 = vld [vmem:[%s448 + $0x80] sm:$0xff]
    %v461 = vld [vmem:[%s448 + $0x90] sm:$0xff]
    %v462 = vld [vmem:[%s448 + $0x98] sm:$0xff]
    %v463 = vld [vmem:[%s448 + $0xa8] sm:$0xff]
    %v464 = vld [vmem:[%s448 + $0xb0] sm:$0xff]
    %v465 = vld [vmem:[%s448 + $0xc0] sm:$0xff]
    %v466 = vld [vmem:[%s448 + $0xc8] sm:$0xff]
    %v467 = vld [vmem:[%s448 + $0xd8] sm:$0xff]
    %v468 = vld [vmem:[%s448 + $0xe0] sm:$0xff]
    %v469 = vld [vmem:[%s448 + $0xf0] sm:$0xff]
    %v470 = vld [vmem:[%s448 + $0xf8] sm:$0xff]
    %v471 = vld [vmem:[%s448 + $0x108] sm:$0xff]
    %v472 = vld [vmem:[%s448 + $0x110] sm:$0xff]
    %v473 = vld [vmem:[%s448 + $0x120] sm:$0xff]
    %v474 = vld [vmem:[%s448 + $0x128] sm:$0xff]
    %v475 = vld [vmem:[%s448 + $0x138] sm:$0xff]
    %v476 = vld [vmem:[%s448 + $0x140] sm:$0xff]
    %v477 = vld [vmem:[%s448 + $0x150] sm:$0xff]
    %v478 = vld [vmem:[%s448 + $0x158] sm:$0xff]
    %v479 = vld [vmem:[%s448 + $0x168] sm:$0xff]
    %v480 = vld [vmem:[%s448 + $0x170] sm:$0xff]
    %v481 = vld [vmem:[%s448 + $0x1b0] sm:$0xff]
    %v482 = vld [vmem:[%s448 + $0x1b8] sm:$0xff]
    %v483 = vld [vmem:[%s448 + $0x1c8] sm:$0xff]
    %v484 = vld [vmem:[%s448 + $0x1d0] sm:$0xff]
    %v485 = vld [vmem:[%s448 + $0x1e0] sm:$0xff]
    %v486 = vld [vmem:[%s448 + $0x1e8] sm:$0xff]
    %v487 = vld [vmem:[%s448 + $0x1f8] sm:$0xff]
    %v488 = vld [vmem:[%s448 + $0x200] sm:$0xff]
    %v489 = vld [vmem:[%s448 + $0x210] sm:$0xff]
    %v490 = vld [vmem:[%s448 + $0x218] sm:$0xff]
    %v491 = vld [vmem:[%s448 + $0x228] sm:$0xff]
    %v492 = vld [vmem:[%s448 + $0x230] sm:$0xff]
    %v493 = vld [vmem:[%s448 + $0x240] sm:$0xff]
    %v494 = vld [vmem:[%s448 + $0x248] sm:$0xff]
    %v495 = vld [vmem:[%s448 + $0x258] sm:$0xff]
    %v496 = vld [vmem:[%s448 + $0x260] sm:$0xff]
    %v497 = vld [vmem:[%s448 + $0x270] sm:$0xff]
    %v498 = vld [vmem:[%s448 + $0x278] sm:$0xff]
    %v499 = vld [vmem:[%s448 + $0x288] sm:$0xff]
    %v500 = vld [vmem:[%s448 + $0x290] sm:$0xff]
    %v501 = vld [vmem:[%s448 + $0x2a0] sm:$0xff]
    %v502 = vld [vmem:[%s448 + $0x2a8] sm:$0xff]
    %v503 = vld [vmem:[%s448 + $0x2b8] sm:$0xff]
    %v504 = vld [vmem:[%s448 + $0x2c0] sm:$0xff]
    %v505 = vld [vmem:[%s448 + $0x2d0] sm:$0xff]
    %v506 = vld [vmem:[%s448 + $0x2d8] sm:$0xff]
    %v507 = vld [vmem:[%s448 + $0x2e8] sm:$0xff]
    %v508 = vld [vmem:[%s448 + $0x2f0] sm:$0xff]
    %v509 = vld [vmem:[%s448 + $0x300] sm:$0xff]
    %v510 = vld [vmem:[%s448 + $0x308] sm:$0xff]
    %v511 = vld [vmem:[%s448 + $0x318] sm:$0xff]
    %v512 = vld [vmem:[%s448 + $0x320] sm:$0xff]
    %v513 = vld [vmem:[%s448 + $0x1] sm:$0xff]
    %v514 = vld [vmem:[%s448 + $0x9] sm:$0xff]
    %v515 = vld [vmem:[%s448 + $0x19] sm:$0xff]
    %v516 = vld [vmem:[%s448 + $0x21] sm:$0xff]
    %v517 = vld [vmem:[%s448 + $0x31] sm:$0xff]
    %v518 = vld [vmem:[%s448 + $0x39] sm:$0xff]
    %v519 = vld [vmem:[%s448 + $0x49] sm:$0xff]
    %v520 = vld [vmem:[%s448 + $0x51] sm:$0xff]
    %v521 = vld [vmem:[%s448 + $0x61] sm:$0xff]
    %v522 = vld [vmem:[%s448 + $0x69] sm:$0xff]
    %v523 = vld [vmem:[%s448 + $0x79] sm:$0xff]
    %v524 = vld [vmem:[%s448 + $0x81] sm:$0xff]
    %v525 = vld [vmem:[%s448 + $0x91] sm:$0xff]
    %v526 = vld [vmem:[%s448 + $0x99] sm:$0xff]
    %v527 = vld [vmem:[%s448 + $0xa9] sm:$0xff]
    %v528 = vld [vmem:[%s448 + $0xb1] sm:$0xff]
    %v529 = vld [vmem:[%s448 + $0xc1] sm:$0xff]
    %v530 = vld [vmem:[%s448 + $0xc9] sm:$0xff]
    %v531 = vld [vmem:[%s448 + $0xd9] sm:$0xff]
    %v532 = vld [vmem:[%s448 + $0xe1] sm:$0xff]
    %v533 = vld [vmem:[%s448 + $0xf1] sm:$0xff]
    %v534 = vld [vmem:[%s448 + $0xf9] sm:$0xff]
    %v535 = vld [vmem:[%s448 + $0x109] sm:$0xff]
    %v536 = vld [vmem:[%s448 + $0x111] sm:$0xff]
    %v537 = vld [vmem:[%s448 + $0x121] sm:$0xff]
    %v538 = vld [vmem:[%s448 + $0x129] sm:$0xff]
    %v539 = vld [vmem:[%s448 + $0x139] sm:$0xff]
    %v540 = vld [vmem:[%s448 + $0x141] sm:$0xff]
    %v541 = vld [vmem:[%s448 + $0x151] sm:$0xff]
    %v542 = vld [vmem:[%s448 + $0x159] sm:$0xff]
    %v543 = vld [vmem:[%s448 + $0x169] sm:$0xff]
    %v544 = vld [vmem:[%s448 + $0x171] sm:$0xff]
    %v545 = vld [vmem:[%s448 + $0x1b1] sm:$0xff]
    %v546 = vld [vmem:[%s448 + $0x1b9] sm:$0xff]
    %v547 = vld [vmem:[%s448 + $0x1c9] sm:$0xff]
    %v548 = vld [vmem:[%s448 + $0x1d1] sm:$0xff]
    %v549 = vld [vmem:[%s448 + $0x1e1] sm:$0xff]
    %v550 = vld [vmem:[%s448 + $0x1e9] sm:$0xff]
    %v551 = vld [vmem:[%s448 + $0x1f9] sm:$0xff]
    %v552 = vld [vmem:[%s448 + $0x201] sm:$0xff]
    %v553 = vld [vmem:[%s448 + $0x211] sm:$0xff]
    %v554 = vld [vmem:[%s448 + $0x219] sm:$0xff]
    %v555 = vld [vmem:[%s448 + $0x229] sm:$0xff]
    %v556 = vld [vmem:[%s448 + $0x231] sm:$0xff]
    %v557 = vld [vmem:[%s448 + $0x241] sm:$0xff]
    %v558 = vld [vmem:[%s448 + $0x249] sm:$0xff]
    %v559 = vld [vmem:[%s448 + $0x259] sm:$0xff]
    %v560 = vld [vmem:[%s448 + $0x261] sm:$0xff]
    %v561 = vld [vmem:[%s448 + $0x271] sm:$0xff]
    %v562 = vld [vmem:[%s448 + $0x279] sm:$0xff]
    %v563 = vld [vmem:[%s448 + $0x289] sm:$0xff]
    %v564 = vld [vmem:[%s448 + $0x291] sm:$0xff]
    %v565 = vld [vmem:[%s448 + $0x2a1] sm:$0xff]
    %v566 = vld [vmem:[%s448 + $0x2a9] sm:$0xff]
    %v567 = vld [vmem:[%s448 + $0x2b9] sm:$0xff]
    %v568 = vld [vmem:[%s448 + $0x2c1] sm:$0xff]
    %v569 = vld [vmem:[%s448 + $0x2d1] sm:$0xff]
    %v570 = vld [vmem:[%s448 + $0x2d9] sm:$0xff]
    %v571 = vld [vmem:[%s448 + $0x2e9] sm:$0xff]
    %v572 = vld [vmem:[%s448 + $0x2f1] sm:$0xff]
    %v573 = vld [vmem:[%s448 + $0x301] sm:$0xff]
    %v574 = vld [vmem:[%s448 + $0x309] sm:$0xff]
    %v575 = vld [vmem:[%s448 + $0x319] sm:$0xff]
    %v576 = vld [vmem:[%s448 + $0x321] sm:$0xff]
    %v577 = vld [vmem:[%s448 + $0x2] sm:$0xff]
    %v578 = vld [vmem:[%s448 + $0xa] sm:$0xff]
    %v579 = vld [vmem:[%s448 + $0x1a] sm:$0xff]
    %v580 = vld [vmem:[%s448 + $0x22] sm:$0xff]
    %v581 = vld [vmem:[%s448 + $0x32] sm:$0xff]
    %v582 = vld [vmem:[%s448 + $0x3a] sm:$0xff]
    %v583 = vld [vmem:[%s448 + $0x4a] sm:$0xff]
    %v584 = vld [vmem:[%s448 + $0x52] sm:$0xff]
    %v585 = vld [vmem:[%s448 + $0x62] sm:$0xff]
    %v586 = vld [vmem:[%s448 + $0x6a] sm:$0xff]
    %v587 = vld [vmem:[%s448 + $0x7a] sm:$0xff]
    %v588 = vld [vmem:[%s448 + $0x82] sm:$0xff]
    %v589 = vld [vmem:[%s448 + $0x92] sm:$0xff]
    %v590 = vld [vmem:[%s448 + $0x9a] sm:$0xff]
    %v591 = vld [vmem:[%s448 + $0xaa] sm:$0xff]
    %v592 = vld [vmem:[%s448 + $0xb2] sm:$0xff]
    %v593 = vld [vmem:[%s448 + $0xc2] sm:$0xff]
    %v594 = vld [vmem:[%s448 + $0xca] sm:$0xff]
    %v595 = vld [vmem:[%s448 + $0xda] sm:$0xff]
    %v596 = vld [vmem:[%s448 + $0xe2] sm:$0xff]
    %v597 = vld [vmem:[%s448 + $0xf2] sm:$0xff]
    %v598 = vld [vmem:[%s448 + $0xfa] sm:$0xff]
    %v599 = vld [vmem:[%s448 + $0x10a] sm:$0xff]
    %v600 = vld [vmem:[%s448 + $0x112] sm:$0xff]
    %v601 = vld [vmem:[%s448 + $0x122] sm:$0xff]
    %v602 = vld [vmem:[%s448 + $0x12a] sm:$0xff]
    %v603 = vld [vmem:[%s448 + $0x13a] sm:$0xff]
    %v604 = vld [vmem:[%s448 + $0x142] sm:$0xff]
    %v605 = vld [vmem:[%s448 + $0x152] sm:$0xff]
    %v606 = vld [vmem:[%s448 + $0x15a] sm:$0xff]
    %v607 = vld [vmem:[%s448 + $0x16a] sm:$0xff]
    %v608 = vld [vmem:[%s448 + $0x172] sm:$0xff]
    %v609 = vld [vmem:[%s448 + $0x1b2] sm:$0xff]
    %v610 = vld [vmem:[%s448 + $0x1ba] sm:$0xff]
    %v611 = vld [vmem:[%s448 + $0x1ca] sm:$0xff]
    %v612 = vld [vmem:[%s448 + $0x1d2] sm:$0xff]
    %v613 = vld [vmem:[%s448 + $0x1e2] sm:$0xff]
    %v614 = vld [vmem:[%s448 + $0x1ea] sm:$0xff]
    %v615 = vld [vmem:[%s448 + $0x1fa] sm:$0xff]
    %v616 = vld [vmem:[%s448 + $0x202] sm:$0xff]
    %v617 = vld [vmem:[%s448 + $0x212] sm:$0xff]
    %v618 = vld [vmem:[%s448 + $0x21a] sm:$0xff]
    %v619 = vld [vmem:[%s448 + $0x22a] sm:$0xff]
    %v620 = vld [vmem:[%s448 + $0x232] sm:$0xff]
    %v621 = vld [vmem:[%s448 + $0x242] sm:$0xff]
    %v622 = vld [vmem:[%s448 + $0x24a] sm:$0xff]
    %v623 = vld [vmem:[%s448 + $0x25a] sm:$0xff]
    %v624 = vld [vmem:[%s448 + $0x262] sm:$0xff]
    %v625 = vld [vmem:[%s448 + $0x272] sm:$0xff]
    %v626 = vld [vmem:[%s448 + $0x27a] sm:$0xff]
    %v627 = vld [vmem:[%s448 + $0x28a] sm:$0xff]
    %v628 = vld [vmem:[%s448 + $0x292] sm:$0xff]
    %v629 = vld [vmem:[%s448 + $0x2a2] sm:$0xff]
    %v630 = vld [vmem:[%s448 + $0x2aa] sm:$0xff]
    %v631 = vld [vmem:[%s448 + $0x2ba] sm:$0xff]
    %v632 = vld [vmem:[%s448 + $0x2c2] sm:$0xff]
    %v633 = vld [vmem:[%s448 + $0x2d2] sm:$0xff]
    %v634 = vld [vmem:[%s448 + $0x2da] sm:$0xff]
    %v635 = vld [vmem:[%s448 + $0x2ea] sm:$0xff]
    %v636 = vld [vmem:[%s448 + $0x2f2] sm:$0xff]
    %v637 = vld [vmem:[%s448 + $0x302] sm:$0xff]
    %v638 = vld [vmem:[%s448 + $0x30a] sm:$0xff]
    %v639 = vld [vmem:[%s448 + $0x31a] sm:$0xff]
    %v640 = vld [vmem:[%s448 + $0x322] sm:$0xff]
    %705 = vrot.lane.b32.xlu0 %v127, 1
    %v706 = vpop.permute.xlu0 %705
    %707 = vrot.lane.b32.xlu0 %v128, 1
    %v708 = vpop.permute.xlu0 %707
    %709 = vrot.lane.b32.xlu0 %v129, 1
    %v710 = vpop.permute.xlu0 %709
    %711 = vrot.lane.b32.xlu0 %v130, 1
    %v712 = vpop.permute.xlu0 %711
    %713 = vrot.lane.b32.xlu0 %v131, 1
    %v714 = vpop.permute.xlu0 %713
    %715 = vrot.lane.b32.xlu0 %v132, 1
    %v716 = vpop.permute.xlu0 %715
    %717 = vrot.lane.b32.xlu0 %v133, 1
    %v718 = vpop.permute.xlu0 %717
    %719 = vrot.lane.b32.xlu0 %v134, 1
    %v720 = vpop.permute.xlu0 %719
    %721 = vrot.lane.b32.xlu0 %v135, 1
    %v722 = vpop.permute.xlu0 %721
    %723 = vrot.lane.b32.xlu0 %v136, 1
    %v724 = vpop.permute.xlu0 %723
    %725 = vrot.lane.b32.xlu0 %v137, 1
    %v726 = vpop.permute.xlu0 %725
    %727 = vrot.lane.b32.xlu0 %v138, 1
    %v728 = vpop.permute.xlu0 %727
    %729 = vrot.lane.b32.xlu0 %v139, 1
    %v730 = vpop.permute.xlu0 %729
    %731 = vrot.lane.b32.xlu0 %v140, 1
    %v732 = vpop.permute.xlu0 %731
    %733 = vrot.lane.b32.xlu0 %v141, 1
    %v734 = vpop.permute.xlu0 %733
    %735 = vrot.lane.b32.xlu0 %v142, 1
    %v736 = vpop.permute.xlu0 %735
    %737 = vrot.lane.b32.xlu0 %v143, 1
    %v738 = vpop.permute.xlu0 %737
    %739 = vrot.lane.b32.xlu0 %v144, 1
    %v740 = vpop.permute.xlu0 %739
    %741 = vrot.lane.b32.xlu0 %v145, 1
    %v742 = vpop.permute.xlu0 %741
    %743 = vrot.lane.b32.xlu0 %v146, 1
    %v744 = vpop.permute.xlu0 %743
    %745 = vrot.lane.b32.xlu0 %v147, 1
    %v746 = vpop.permute.xlu0 %745
    %747 = vrot.lane.b32.xlu0 %v148, 1
    %v748 = vpop.permute.xlu0 %747
    %749 = vrot.lane.b32.xlu0 %v149, 1
    %v750 = vpop.permute.xlu0 %749
    %751 = vrot.lane.b32.xlu0 %v150, 1
    %v752 = vpop.permute.xlu0 %751
    %753 = vrot.lane.b32.xlu0 %v151, 1
    %v754 = vpop.permute.xlu0 %753
    %755 = vrot.lane.b32.xlu0 %v152, 1
    %v756 = vpop.permute.xlu0 %755
    %757 = vrot.lane.b32.xlu0 %v153, 1
    %v758 = vpop.permute.xlu0 %757
    %759 = vrot.lane.b32.xlu0 %v154, 1
    %v760 = vpop.permute.xlu0 %759
    %761 = vrot.lane.b32.xlu0 %v155, 1
    %v762 = vpop.permute.xlu0 %761
    %763 = vrot.lane.b32.xlu0 %v156, 1
    %v764 = vpop.permute.xlu0 %763
    %765 = vrot.lane.b32.xlu0 %v157, 1
    %v766 = vpop.permute.xlu0 %765
    %767 = vrot.lane.b32.xlu0 %v158, 1
    %v768 = vpop.permute.xlu0 %767
    %769 = vrot.lane.b32.xlu0 %v159, 1
    %v770 = vpop.permute.xlu0 %769
    %771 = vrot.lane.b32.xlu0 %v160, 1
    %v772 = vpop.permute.xlu0 %771
    %773 = vrot.lane.b32.xlu0 %v161, 1
    %v774 = vpop.permute.xlu0 %773
    %775 = vrot.lane.b32.xlu0 %v162, 1
    %v776 = vpop.permute.xlu0 %775
    %777 = vrot.lane.b32.xlu0 %v163, 1
    %v778 = vpop.permute.xlu0 %777
    %779 = vrot.lane.b32.xlu0 %v164, 1
    %v780 = vpop.permute.xlu0 %779
    %781 = vrot.lane.b32.xlu0 %v165, 1
    %v782 = vpop.permute.xlu0 %781
    %783 = vrot.lane.b32.xlu0 %v166, 1
    %v784 = vpop.permute.xlu0 %783
    %785 = vrot.lane.b32.xlu0 %v167, 1
    %v786 = vpop.permute.xlu0 %785
    %787 = vrot.lane.b32.xlu0 %v168, 1
    %v788 = vpop.permute.xlu0 %787
    %789 = vrot.lane.b32.xlu0 %v169, 1
    %v790 = vpop.permute.xlu0 %789
    %791 = vrot.lane.b32.xlu0 %v170, 1
    %v792 = vpop.permute.xlu0 %791
    %793 = vrot.lane.b32.xlu0 %v171, 1
    %v794 = vpop.permute.xlu0 %793
    %795 = vrot.lane.b32.xlu0 %v172, 1
    %v796 = vpop.permute.xlu0 %795
    %797 = vrot.lane.b32.xlu0 %v173, 1
    %v798 = vpop.permute.xlu0 %797
    %799 = vrot.lane.b32.xlu0 %v174, 1
    %v800 = vpop.permute.xlu0 %799
    %801 = vrot.lane.b32.xlu0 %v175, 1
    %v802 = vpop.permute.xlu0 %801
    %803 = vrot.lane.b32.xlu0 %v176, 1
    %v804 = vpop.permute.xlu0 %803
    %805 = vrot.lane.b32.xlu0 %v177, 1
    %v806 = vpop.permute.xlu0 %805
    %807 = vrot.lane.b32.xlu0 %v178, 1
    %v808 = vpop.permute.xlu0 %807
    %809 = vrot.lane.b32.xlu0 %v179, 1
    %v810 = vpop.permute.xlu0 %809
    %811 = vrot.lane.b32.xlu0 %v180, 1
    %v812 = vpop.permute.xlu0 %811
    %813 = vrot.lane.b32.xlu0 %v181, 1
    %v814 = vpop.permute.xlu0 %813
    %815 = vrot.lane.b32.xlu0 %v182, 1
    %v816 = vpop.permute.xlu0 %815
    %817 = vrot.lane.b32.xlu0 %v183, 1
    %v818 = vpop.permute.xlu0 %817
    %819 = vrot.lane.b32.xlu0 %v184, 1
    %v820 = vpop.permute.xlu0 %819
    %821 = vrot.lane.b32.xlu0 %v185, 1
    %v822 = vpop.permute.xlu0 %821
    %823 = vrot.lane.b32.xlu0 %v186, 1
    %v824 = vpop.permute.xlu0 %823
    %825 = vrot.lane.b32.xlu0 %v187, 1
    %v826 = vpop.permute.xlu0 %825
    %827 = vrot.lane.b32.xlu0 %v188, 1
    %v828 = vpop.permute.xlu0 %827
    %829 = vrot.lane.b32.xlu0 %v189, 1
    %v830 = vpop.permute.xlu0 %829
    %831 = vrot.lane.b32.xlu0 %v190, 1
    %v832 = vpop.permute.xlu0 %831
    %961 = vrot.lane.b32.xlu0 %v191, 2
    %v962 = vpop.permute.xlu0 %961
    %963 = vrot.lane.b32.xlu0 %v192, 2
    %v964 = vpop.permute.xlu0 %963
    %965 = vrot.lane.b32.xlu0 %v193, 2
    %v966 = vpop.permute.xlu0 %965
    %967 = vrot.lane.b32.xlu0 %v194, 2
    %v968 = vpop.permute.xlu0 %967
    %969 = vrot.lane.b32.xlu0 %v195, 2
    %v970 = vpop.permute.xlu0 %969
    %971 = vrot.lane.b32.xlu0 %v196, 2
    %v972 = vpop.permute.xlu0 %971
    %973 = vrot.lane.b32.xlu0 %v197, 2
    %v974 = vpop.permute.xlu0 %973
    %975 = vrot.lane.b32.xlu0 %v198, 2
    %v976 = vpop.permute.xlu0 %975
    %977 = vrot.lane.b32.xlu0 %v199, 2
    %v978 = vpop.permute.xlu0 %977
    %979 = vrot.lane.b32.xlu0 %v200, 2
    %v980 = vpop.permute.xlu0 %979
    %981 = vrot.lane.b32.xlu0 %v201, 2
    %v982 = vpop.permute.xlu0 %981
    %983 = vrot.lane.b32.xlu0 %v202, 2
    %v984 = vpop.permute.xlu0 %983
    %985 = vrot.lane.b32.xlu0 %v203, 2
    %v986 = vpop.permute.xlu0 %985
    %987 = vrot.lane.b32.xlu0 %v204, 2
    %v988 = vpop.permute.xlu0 %987
    %989 = vrot.lane.b32.xlu0 %v205, 2
    %v990 = vpop.permute.xlu0 %989
    %991 = vrot.lane.b32.xlu0 %v206, 2
    %v992 = vpop.permute.xlu0 %991
    %993 = vrot.lane.b32.xlu0 %v207, 2
    %v994 = vpop.permute.xlu0 %993
    %995 = vrot.lane.b32.xlu0 %v208, 2
    %v996 = vpop.permute.xlu0 %995
    %997 = vrot.lane.b32.xlu0 %v209, 2
    %v998 = vpop.permute.xlu0 %997
    %999 = vrot.lane.b32.xlu0 %v210, 2
    %v1000 = vpop.permute.xlu0 %999
    %1001 = vrot.lane.b32.xlu0 %v211, 2
    %v1002 = vpop.permute.xlu0 %1001
    %1003 = vrot.lane.b32.xlu0 %v212, 2
    %v1004 = vpop.permute.xlu0 %1003
    %1005 = vrot.lane.b32.xlu0 %v213, 2
    %v1006 = vpop.permute.xlu0 %1005
    %1007 = vrot.lane.b32.xlu0 %v214, 2
    %v1008 = vpop.permute.xlu0 %1007
    %1009 = vrot.lane.b32.xlu0 %v215, 2
    %v1010 = vpop.permute.xlu0 %1009
    %1011 = vrot.lane.b32.xlu0 %v216, 2
    %v1012 = vpop.permute.xlu0 %1011
    %1013 = vrot.lane.b32.xlu0 %v217, 2
    %v1014 = vpop.permute.xlu0 %1013
    %1015 = vrot.lane.b32.xlu0 %v218, 2
    %v1016 = vpop.permute.xlu0 %1015
    %1017 = vrot.lane.b32.xlu0 %v219, 2
    %v1018 = vpop.permute.xlu0 %1017
    %1019 = vrot.lane.b32.xlu0 %v220, 2
    %v1020 = vpop.permute.xlu0 %1019
    %1021 = vrot.lane.b32.xlu0 %v221, 2
    %v1022 = vpop.permute.xlu0 %1021
    %1023 = vrot.lane.b32.xlu0 %v222, 2
    %v1024 = vpop.permute.xlu0 %1023
    %1025 = vrot.lane.b32.xlu0 %v223, 2
    %v1026 = vpop.permute.xlu0 %1025
    %1027 = vrot.lane.b32.xlu0 %v224, 2
    %v1028 = vpop.permute.xlu0 %1027
    %1029 = vrot.lane.b32.xlu0 %v225, 2
    %v1030 = vpop.permute.xlu0 %1029
    %1031 = vrot.lane.b32.xlu0 %v226, 2
    %v1032 = vpop.permute.xlu0 %1031
    %1033 = vrot.lane.b32.xlu0 %v227, 2
    %v1034 = vpop.permute.xlu0 %1033
    %1035 = vrot.lane.b32.xlu0 %v228, 2
    %v1036 = vpop.permute.xlu0 %1035
    %1037 = vrot.lane.b32.xlu0 %v229, 2
    %v1038 = vpop.permute.xlu0 %1037
    %1039 = vrot.lane.b32.xlu0 %v230, 2
    %v1040 = vpop.permute.xlu0 %1039
    %1041 = vrot.lane.b32.xlu0 %v231, 2
    %v1042 = vpop.permute.xlu0 %1041
    %1043 = vrot.lane.b32.xlu0 %v232, 2
    %v1044 = vpop.permute.xlu0 %1043
    %1045 = vrot.lane.b32.xlu0 %v233, 2
    %v1046 = vpop.permute.xlu0 %1045
    %1047 = vrot.lane.b32.xlu0 %v234, 2
    %v1048 = vpop.permute.xlu0 %1047
    %1049 = vrot.lane.b32.xlu0 %v235, 2
    %v1050 = vpop.permute.xlu0 %1049
    %1051 = vrot.lane.b32.xlu0 %v236, 2
    %v1052 = vpop.permute.xlu0 %1051
    %1053 = vrot.lane.b32.xlu0 %v237, 2
    %v1054 = vpop.permute.xlu0 %1053
    %1055 = vrot.lane.b32.xlu0 %v238, 2
    %v1056 = vpop.permute.xlu0 %1055
    %1057 = vrot.lane.b32.xlu0 %v239, 2
    %v1058 = vpop.permute.xlu0 %1057
    %1059 = vrot.lane.b32.xlu0 %v240, 2
    %v1060 = vpop.permute.xlu0 %1059
    %1061 = vrot.lane.b32.xlu0 %v241, 2
    %v1062 = vpop.permute.xlu0 %1061
    %1063 = vrot.lane.b32.xlu0 %v242, 2
    %v1064 = vpop.permute.xlu0 %1063
    %1065 = vrot.lane.b32.xlu0 %v243, 2
    %v1066 = vpop.permute.xlu0 %1065
    %1067 = vrot.lane.b32.xlu0 %v244, 2
    %v1068 = vpop.permute.xlu0 %1067
    %1069 = vrot.lane.b32.xlu0 %v245, 2
    %v1070 = vpop.permute.xlu0 %1069
    %1071 = vrot.lane.b32.xlu0 %v246, 2
    %v1072 = vpop.permute.xlu0 %1071
    %1073 = vrot.lane.b32.xlu0 %v247, 2
    %v1074 = vpop.permute.xlu0 %1073
    %1075 = vrot.lane.b32.xlu0 %v248, 2
    %v1076 = vpop.permute.xlu0 %1075
    %1077 = vrot.lane.b32.xlu0 %v249, 2
    %v1078 = vpop.permute.xlu0 %1077
    %1079 = vrot.lane.b32.xlu0 %v250, 2
    %v1080 = vpop.permute.xlu0 %1079
    %1081 = vrot.lane.b32.xlu0 %v251, 2
    %v1082 = vpop.permute.xlu0 %1081
    %1083 = vrot.lane.b32.xlu0 %v252, 2
    %v1084 = vpop.permute.xlu0 %1083
    %1085 = vrot.lane.b32.xlu0 %v253, 2
    %v1086 = vpop.permute.xlu0 %1085
    %1087 = vrot.lane.b32.xlu0 %v254, 2
    %v1088 = vpop.permute.xlu0 %1087
    %1217 = vrot.lane.b32.xlu0 %v256, 3
    %v1218 = vpop.permute.xlu0 %1217
    %1219 = vrot.lane.b32.xlu0 %v257, 3
    %v1220 = vpop.permute.xlu0 %1219
    %1221 = vrot.lane.b32.xlu0 %v258, 3
    %v1222 = vpop.permute.xlu0 %1221
    %1223 = vrot.lane.b32.xlu0 %v259, 3
    %v1224 = vpop.permute.xlu0 %1223
    %1225 = vrot.lane.b32.xlu0 %v260, 3
    %v1226 = vpop.permute.xlu0 %1225
    %1227 = vrot.lane.b32.xlu0 %v261, 3
    %v1228 = vpop.permute.xlu0 %1227
    %1229 = vrot.lane.b32.xlu0 %v262, 3
    %v1230 = vpop.permute.xlu0 %1229
    %1231 = vrot.lane.b32.xlu0 %v263, 3
    %v1232 = vpop.permute.xlu0 %1231
    %1233 = vrot.lane.b32.xlu0 %v264, 3
    %v1234 = vpop.permute.xlu0 %1233
    %1235 = vrot.lane.b32.xlu0 %v265, 3
    %v1236 = vpop.permute.xlu0 %1235
    %1237 = vrot.lane.b32.xlu0 %v266, 3
    %v1238 = vpop.permute.xlu0 %1237
    %1239 = vrot.lane.b32.xlu0 %v267, 3
    %v1240 = vpop.permute.xlu0 %1239
    %1241 = vrot.lane.b32.xlu0 %v268, 3
    %v1242 = vpop.permute.xlu0 %1241
    %1243 = vrot.lane.b32.xlu0 %v269, 3
    %v1244 = vpop.permute.xlu0 %1243
    %1245 = vrot.lane.b32.xlu0 %v270, 3
    %v1246 = vpop.permute.xlu0 %1245
    %1247 = vrot.lane.b32.xlu0 %v271, 3
    %v1248 = vpop.permute.xlu0 %1247
    %1249 = vrot.lane.b32.xlu0 %v272, 3
    %v1250 = vpop.permute.xlu0 %1249
    %1251 = vrot.lane.b32.xlu0 %v273, 3
    %v1252 = vpop.permute.xlu0 %1251
    %1253 = vrot.lane.b32.xlu0 %v274, 3
    %v1254 = vpop.permute.xlu0 %1253
    %1255 = vrot.lane.b32.xlu0 %v275, 3
    %v1256 = vpop.permute.xlu0 %1255
    %1257 = vrot.lane.b32.xlu0 %v276, 3
    %v1258 = vpop.permute.xlu0 %1257
    %1259 = vrot.lane.b32.xlu0 %v277, 3
    %v1260 = vpop.permute.xlu0 %1259
    %1261 = vrot.lane.b32.xlu0 %v278, 3
    %v1262 = vpop.permute.xlu0 %1261
    %1263 = vrot.lane.b32.xlu0 %v279, 3
    %v1264 = vpop.permute.xlu0 %1263
    %1265 = vrot.lane.b32.xlu0 %v280, 3
    %v1266 = vpop.permute.xlu0 %1265
    %1267 = vrot.lane.b32.xlu0 %v281, 3
    %v1268 = vpop.permute.xlu0 %1267
    %1269 = vrot.lane.b32.xlu0 %v282, 3
    %v1270 = vpop.permute.xlu0 %1269
    %1271 = vrot.lane.b32.xlu0 %v283, 3
    %v1272 = vpop.permute.xlu0 %1271
    %1273 = vrot.lane.b32.xlu0 %v284, 3
    %v1274 = vpop.permute.xlu0 %1273
    %1275 = vrot.lane.b32.xlu0 %v285, 3
    %v1276 = vpop.permute.xlu0 %1275
    %1277 = vrot.lane.b32.xlu0 %v286, 3
    %v1278 = vpop.permute.xlu0 %1277
    %1279 = vrot.lane.b32.xlu0 %v287, 3
    %v1280 = vpop.permute.xlu0 %1279
    %1281 = vrot.lane.b32.xlu0 %v288, 3
    %v1282 = vpop.permute.xlu0 %1281
    %1283 = vrot.lane.b32.xlu0 %v289, 3
    %v1284 = vpop.permute.xlu0 %1283
    %1285 = vrot.lane.b32.xlu0 %v290, 3
    %v1286 = vpop.permute.xlu0 %1285
    %1287 = vrot.lane.b32.xlu0 %v291, 3
    %v1288 = vpop.permute.xlu0 %1287
    %1289 = vrot.lane.b32.xlu0 %v292, 3
    %v1290 = vpop.permute.xlu0 %1289
    %1291 = vrot.lane.b32.xlu0 %v293, 3
    %v1292 = vpop.permute.xlu0 %1291
    %1293 = vrot.lane.b32.xlu0 %v294, 3
    %v1294 = vpop.permute.xlu0 %1293
    %1295 = vrot.lane.b32.xlu0 %v295, 3
    %v1296 = vpop.permute.xlu0 %1295
    %1297 = vrot.lane.b32.xlu0 %v296, 3
    %v1298 = vpop.permute.xlu0 %1297
    %1299 = vrot.lane.b32.xlu0 %v297, 3
    %v1300 = vpop.permute.xlu0 %1299
    %1301 = vrot.lane.b32.xlu0 %v298, 3
    %v1302 = vpop.permute.xlu0 %1301
    %1303 = vrot.lane.b32.xlu0 %v299, 3
    %v1304 = vpop.permute.xlu0 %1303
    %1305 = vrot.lane.b32.xlu0 %v300, 3
    %v1306 = vpop.permute.xlu0 %1305
    %1307 = vrot.lane.b32.xlu0 %v301, 3
    %v1308 = vpop.permute.xlu0 %1307
    %1309 = vrot.lane.b32.xlu0 %v302, 3
    %v1310 = vpop.permute.xlu0 %1309
    %1311 = vrot.lane.b32.xlu0 %v303, 3
    %v1312 = vpop.permute.xlu0 %1311
    %1313 = vrot.lane.b32.xlu0 %v304, 3
    %v1314 = vpop.permute.xlu0 %1313
    %1315 = vrot.lane.b32.xlu0 %v305, 3
    %v1316 = vpop.permute.xlu0 %1315
    %1317 = vrot.lane.b32.xlu0 %v306, 3
    %v1318 = vpop.permute.xlu0 %1317
    %1319 = vrot.lane.b32.xlu0 %v307, 3
    %v1320 = vpop.permute.xlu0 %1319
    %1321 = vrot.lane.b32.xlu0 %v308, 3
    %v1322 = vpop.permute.xlu0 %1321
    %1323 = vrot.lane.b32.xlu0 %v309, 3
    %v1324 = vpop.permute.xlu0 %1323
    %1325 = vrot.lane.b32.xlu0 %v310, 3
    %v1326 = vpop.permute.xlu0 %1325
    %1327 = vrot.lane.b32.xlu0 %v311, 3
    %v1328 = vpop.permute.xlu0 %1327
    %1329 = vrot.lane.b32.xlu0 %v312, 3
    %v1330 = vpop.permute.xlu0 %1329
    %1331 = vrot.lane.b32.xlu0 %v313, 3
    %v1332 = vpop.permute.xlu0 %1331
    %1333 = vrot.lane.b32.xlu0 %v314, 3
    %v1334 = vpop.permute.xlu0 %1333
    %1335 = vrot.lane.b32.xlu0 %v315, 3
    %v1336 = vpop.permute.xlu0 %1335
    %1337 = vrot.lane.b32.xlu0 %v316, 3
    %v1338 = vpop.permute.xlu0 %1337
    %1339 = vrot.lane.b32.xlu0 %v317, 3
    %v1340 = vpop.permute.xlu0 %1339
    %1341 = vrot.lane.b32.xlu0 %v318, 3
    %v1342 = vpop.permute.xlu0 %1341
    %1343 = vrot.lane.b32.xlu0 %v319, 3
    %v1344 = vpop.permute.xlu0 %1343
    %1473 = vrot.lane.b32.xlu0 %v320, 4
    %v1474 = vpop.permute.xlu0 %1473
    %1475 = vrot.lane.b32.xlu0 %v321, 4
    %v1476 = vpop.permute.xlu0 %1475
    %1477 = vrot.lane.b32.xlu0 %v322, 4
    %v1478 = vpop.permute.xlu0 %1477
    %1479 = vrot.lane.b32.xlu0 %v323, 4
    %v1480 = vpop.permute.xlu0 %1479
    %1481 = vrot.lane.b32.xlu0 %v324, 4
    %v1482 = vpop.permute.xlu0 %1481
    %1483 = vrot.lane.b32.xlu0 %v325, 4
    %v1484 = vpop.permute.xlu0 %1483
    %1485 = vrot.lane.b32.xlu0 %v326, 4
    %v1486 = vpop.permute.xlu0 %1485
    %1487 = vrot.lane.b32.xlu0 %v327, 4
    %v1488 = vpop.permute.xlu0 %1487
    %1489 = vrot.lane.b32.xlu0 %v328, 4
    %v1490 = vpop.permute.xlu0 %1489
    %1491 = vrot.lane.b32.xlu0 %v329, 4
    %v1492 = vpop.permute.xlu0 %1491
    %1493 = vrot.lane.b32.xlu0 %v330, 4
    %v1494 = vpop.permute.xlu0 %1493
    %1495 = vrot.lane.b32.xlu0 %v331, 4
    %v1496 = vpop.permute.xlu0 %1495
    %1497 = vrot.lane.b32.xlu0 %v332, 4
    %v1498 = vpop.permute.xlu0 %1497
    %1499 = vrot.lane.b32.xlu0 %v333, 4
    %v1500 = vpop.permute.xlu0 %1499
    %1501 = vrot.lane.b32.xlu0 %v334, 4
    %v1502 = vpop.permute.xlu0 %1501
    %1503 = vrot.lane.b32.xlu0 %v335, 4
    %v1504 = vpop.permute.xlu0 %1503
    %1505 = vrot.lane.b32.xlu0 %v336, 4
    %v1506 = vpop.permute.xlu0 %1505
    %1507 = vrot.lane.b32.xlu0 %v337, 4
    %v1508 = vpop.permute.xlu0 %1507
    %1509 = vrot.lane.b32.xlu0 %v338, 4
    %v1510 = vpop.permute.xlu0 %1509
    %1511 = vrot.lane.b32.xlu0 %v339, 4
    %v1512 = vpop.permute.xlu0 %1511
    %1513 = vrot.lane.b32.xlu0 %v340, 4
    %v1514 = vpop.permute.xlu0 %1513
    %1515 = vrot.lane.b32.xlu0 %v341, 4
    %v1516 = vpop.permute.xlu0 %1515
    %1517 = vrot.lane.b32.xlu0 %v342, 4
    %v1518 = vpop.permute.xlu0 %1517
    %1519 = vrot.lane.b32.xlu0 %v343, 4
    %v1520 = vpop.permute.xlu0 %1519
    %1521 = vrot.lane.b32.xlu0 %v344, 4
    %v1522 = vpop.permute.xlu0 %1521
    %1523 = vrot.lane.b32.xlu0 %v345, 4
    %v1524 = vpop.permute.xlu0 %1523
    %1525 = vrot.lane.b32.xlu0 %v346, 4
    %v1526 = vpop.permute.xlu0 %1525
    %1527 = vrot.lane.b32.xlu0 %v347, 4
    %v1528 = vpop.permute.xlu0 %1527
    %1529 = vrot.lane.b32.xlu0 %v348, 4
    %v1530 = vpop.permute.xlu0 %1529
    %1531 = vrot.lane.b32.xlu0 %v349, 4
    %v1532 = vpop.permute.xlu0 %1531
    %1533 = vrot.lane.b32.xlu0 %v350, 4
    %v1534 = vpop.permute.xlu0 %1533
    %1535 = vrot.lane.b32.xlu0 %v351, 4
    %v1536 = vpop.permute.xlu0 %1535
    %1537 = vrot.lane.b32.xlu0 %v352, 4
    %v1538 = vpop.permute.xlu0 %1537
    %1539 = vrot.lane.b32.xlu0 %v353, 4
    %v1540 = vpop.permute.xlu0 %1539
    %1541 = vrot.lane.b32.xlu0 %v354, 4
    %v1542 = vpop.permute.xlu0 %1541
    %1543 = vrot.lane.b32.xlu0 %v355, 4
    %v1544 = vpop.permute.xlu0 %1543
    %1545 = vrot.lane.b32.xlu0 %v356, 4
    %v1546 = vpop.permute.xlu0 %1545
    %1547 = vrot.lane.b32.xlu0 %v357, 4
    %v1548 = vpop.permute.xlu0 %1547
    %1549 = vrot.lane.b32.xlu0 %v358, 4
    %v1550 = vpop.permute.xlu0 %1549
    %1551 = vrot.lane.b32.xlu0 %v359, 4
    %v1552 = vpop.permute.xlu0 %1551
    %1553 = vrot.lane.b32.xlu0 %v360, 4
    %v1554 = vpop.permute.xlu0 %1553
    %1555 = vrot.lane.b32.xlu0 %v361, 4
    %v1556 = vpop.permute.xlu0 %1555
    %1557 = vrot.lane.b32.xlu0 %v362, 4
    %v1558 = vpop.permute.xlu0 %1557
    %1559 = vrot.lane.b32.xlu0 %v363, 4
    %v1560 = vpop.permute.xlu0 %1559
    %1561 = vrot.lane.b32.xlu0 %v364, 4
    %v1562 = vpop.permute.xlu0 %1561
    %1563 = vrot.lane.b32.xlu0 %v365, 4
    %v1564 = vpop.permute.xlu0 %1563
    %1565 = vrot.lane.b32.xlu0 %v366, 4
    %v1566 = vpop.permute.xlu0 %1565
    %1567 = vrot.lane.b32.xlu0 %v367, 4
    %v1568 = vpop.permute.xlu0 %1567
    %1569 = vrot.lane.b32.xlu0 %v368, 4
    %v1570 = vpop.permute.xlu0 %1569
    %1571 = vrot.lane.b32.xlu0 %v369, 4
    %v1572 = vpop.permute.xlu0 %1571
    %1573 = vrot.lane.b32.xlu0 %v370, 4
    %v1574 = vpop.permute.xlu0 %1573
    %1575 = vrot.lane.b32.xlu0 %v371, 4
    %v1576 = vpop.permute.xlu0 %1575
    %1577 = vrot.lane.b32.xlu0 %v372, 4
    %v1578 = vpop.permute.xlu0 %1577
    %1579 = vrot.lane.b32.xlu0 %v373, 4
    %v1580 = vpop.permute.xlu0 %1579
    %1581 = vrot.lane.b32.xlu0 %v374, 4
    %v1582 = vpop.permute.xlu0 %1581
    %1583 = vrot.lane.b32.xlu0 %v375, 4
    %v1584 = vpop.permute.xlu0 %1583
    %1585 = vrot.lane.b32.xlu0 %v376, 4
    %v1586 = vpop.permute.xlu0 %1585
    %1587 = vrot.lane.b32.xlu0 %v377, 4
    %v1588 = vpop.permute.xlu0 %1587
    %1589 = vrot.lane.b32.xlu0 %v378, 4
    %v1590 = vpop.permute.xlu0 %1589
    %1591 = vrot.lane.b32.xlu0 %v379, 4
    %v1592 = vpop.permute.xlu0 %1591
    %1593 = vrot.lane.b32.xlu0 %v380, 4
    %v1594 = vpop.permute.xlu0 %1593
    %1595 = vrot.lane.b32.xlu0 %v381, 4
    %v1596 = vpop.permute.xlu0 %1595
    %1597 = vrot.lane.b32.xlu0 %v382, 4
    %v1598 = vpop.permute.xlu0 %1597
    %1599 = vrot.lane.b32.xlu0 %v383, 4
    %v1600 = vpop.permute.xlu0 %1599
    %1729 = vrot.lane.b32.xlu0 %v384, 5
    %v1730 = vpop.permute.xlu0 %1729
    %1731 = vrot.lane.b32.xlu0 %v385, 5
    %v1732 = vpop.permute.xlu0 %1731
    %1733 = vrot.lane.b32.xlu0 %v386, 5
    %v1734 = vpop.permute.xlu0 %1733
    %1735 = vrot.lane.b32.xlu0 %v387, 5
    %v1736 = vpop.permute.xlu0 %1735
    %1737 = vrot.lane.b32.xlu0 %v388, 5
    %v1738 = vpop.permute.xlu0 %1737
    %1739 = vrot.lane.b32.xlu0 %v389, 5
    %v1740 = vpop.permute.xlu0 %1739
    %1741 = vrot.lane.b32.xlu0 %v390, 5
    %v1742 = vpop.permute.xlu0 %1741
    %1743 = vrot.lane.b32.xlu0 %v391, 5
    %v1744 = vpop.permute.xlu0 %1743
    %1745 = vrot.lane.b32.xlu0 %v392, 5
    %v1746 = vpop.permute.xlu0 %1745
    %1747 = vrot.lane.b32.xlu0 %v393, 5
    %v1748 = vpop.permute.xlu0 %1747
    %1749 = vrot.lane.b32.xlu0 %v394, 5
    %v1750 = vpop.permute.xlu0 %1749
    %1751 = vrot.lane.b32.xlu0 %v395, 5
    %v1752 = vpop.permute.xlu0 %1751
    %1753 = vrot.lane.b32.xlu0 %v396, 5
    %v1754 = vpop.permute.xlu0 %1753
    %1755 = vrot.lane.b32.xlu0 %v397, 5
    %v1756 = vpop.permute.xlu0 %1755
    %1757 = vrot.lane.b32.xlu0 %v398, 5
    %v1758 = vpop.permute.xlu0 %1757
    %1759 = vrot.lane.b32.xlu0 %v399, 5
    %v1760 = vpop.permute.xlu0 %1759
    %1761 = vrot.lane.b32.xlu0 %v400, 5
    %v1762 = vpop.permute.xlu0 %1761
    %1763 = vrot.lane.b32.xlu0 %v401, 5
    %v1764 = vpop.permute.xlu0 %1763
    %1765 = vrot.lane.b32.xlu0 %v402, 5
    %v1766 = vpop.permute.xlu0 %1765
    %1767 = vrot.lane.b32.xlu0 %v403, 5
    %v1768 = vpop.permute.xlu0 %1767
    %1769 = vrot.lane.b32.xlu0 %v404, 5
    %v1770 = vpop.permute.xlu0 %1769
    %1771 = vrot.lane.b32.xlu0 %v405, 5
    %v1772 = vpop.permute.xlu0 %1771
    %1773 = vrot.lane.b32.xlu0 %v406, 5
    %v1774 = vpop.permute.xlu0 %1773
    %1775 = vrot.lane.b32.xlu0 %v407, 5
    %v1776 = vpop.permute.xlu0 %1775
    %1777 = vrot.lane.b32.xlu0 %v408, 5
    %v1778 = vpop.permute.xlu0 %1777
    %1779 = vrot.lane.b32.xlu0 %v409, 5
    %v1780 = vpop.permute.xlu0 %1779
    %1781 = vrot.lane.b32.xlu0 %v410, 5
    %v1782 = vpop.permute.xlu0 %1781
    %1783 = vrot.lane.b32.xlu0 %v411, 5
    %v1784 = vpop.permute.xlu0 %1783
    %1785 = vrot.lane.b32.xlu0 %v412, 5
    %v1786 = vpop.permute.xlu0 %1785
    %1787 = vrot.lane.b32.xlu0 %v413, 5
    %v1788 = vpop.permute.xlu0 %1787
    %1789 = vrot.lane.b32.xlu0 %v414, 5
    %v1790 = vpop.permute.xlu0 %1789
    %1791 = vrot.lane.b32.xlu0 %v415, 5
    %v1792 = vpop.permute.xlu0 %1791
    %1793 = vrot.lane.b32.xlu0 %v416, 5
    %v1794 = vpop.permute.xlu0 %1793
    %1795 = vrot.lane.b32.xlu0 %v417, 5
    %v1796 = vpop.permute.xlu0 %1795
    %1797 = vrot.lane.b32.xlu0 %v418, 5
    %v1798 = vpop.permute.xlu0 %1797
    %1799 = vrot.lane.b32.xlu0 %v419, 5
    %v1800 = vpop.permute.xlu0 %1799
    %1801 = vrot.lane.b32.xlu0 %v420, 5
    %v1802 = vpop.permute.xlu0 %1801
    %1803 = vrot.lane.b32.xlu0 %v421, 5
    %v1804 = vpop.permute.xlu0 %1803
    %1805 = vrot.lane.b32.xlu0 %v422, 5
    %v1806 = vpop.permute.xlu0 %1805
    %1807 = vrot.lane.b32.xlu0 %v423, 5
    %v1808 = vpop.permute.xlu0 %1807
    %1809 = vrot.lane.b32.xlu0 %v424, 5
    %v1810 = vpop.permute.xlu0 %1809
    %1811 = vrot.lane.b32.xlu0 %v425, 5
    %v1812 = vpop.permute.xlu0 %1811
    %1813 = vrot.lane.b32.xlu0 %v426, 5
    %v1814 = vpop.permute.xlu0 %1813
    %1815 = vrot.lane.b32.xlu0 %v427, 5
    %v1816 = vpop.permute.xlu0 %1815
    %1817 = vrot.lane.b32.xlu0 %v428, 5
    %v1818 = vpop.permute.xlu0 %1817
    %1819 = vrot.lane.b32.xlu0 %v429, 5
    %v1820 = vpop.permute.xlu0 %1819
    %1821 = vrot.lane.b32.xlu0 %v430, 5
    %v1822 = vpop.permute.xlu0 %1821
    %1823 = vrot.lane.b32.xlu0 %v431, 5
    %v1824 = vpop.permute.xlu0 %1823
    %1825 = vrot.lane.b32.xlu0 %v432, 5
    %v1826 = vpop.permute.xlu0 %1825
    %1827 = vrot.lane.b32.xlu0 %v433, 5
    %v1828 = vpop.permute.xlu0 %1827
    %1829 = vrot.lane.b32.xlu0 %v434, 5
    %v1830 = vpop.permute.xlu0 %1829
    %1831 = vrot.lane.b32.xlu0 %v435, 5
    %v1832 = vpop.permute.xlu0 %1831
    %1833 = vrot.lane.b32.xlu0 %v436, 5
    %v1834 = vpop.permute.xlu0 %1833
    %1835 = vrot.lane.b32.xlu0 %v437, 5
    %v1836 = vpop.permute.xlu0 %1835
    %1837 = vrot.lane.b32.xlu0 %v438, 5
    %v1838 = vpop.permute.xlu0 %1837
    %1839 = vrot.lane.b32.xlu0 %v439, 5
    %v1840 = vpop.permute.xlu0 %1839
    %1841 = vrot.lane.b32.xlu0 %v440, 5
    %v1842 = vpop.permute.xlu0 %1841
    %1843 = vrot.lane.b32.xlu0 %v441, 5
    %v1844 = vpop.permute.xlu0 %1843
    %1845 = vrot.lane.b32.xlu0 %v442, 5
    %v1846 = vpop.permute.xlu0 %1845
    %1847 = vrot.lane.b32.xlu0 %v443, 5
    %v1848 = vpop.permute.xlu0 %1847
    %1849 = vrot.lane.b32.xlu0 %v444, 5
    %v1850 = vpop.permute.xlu0 %1849
    %1851 = vrot.lane.b32.xlu0 %v445, 5
    %v1852 = vpop.permute.xlu0 %1851
    %1853 = vrot.lane.b32.xlu0 %v446, 5
    %v1854 = vpop.permute.xlu0 %1853
    %1855 = vrot.lane.b32.xlu0 %v447, 5
    %v1856 = vpop.permute.xlu0 %1855
    %1985 = vrot.lane.b32.xlu0 %v449, 6
    %v1986 = vpop.permute.xlu0 %1985
    %1987 = vrot.lane.b32.xlu0 %v450, 6
    %v1988 = vpop.permute.xlu0 %1987
    %1989 = vrot.lane.b32.xlu0 %v451, 6
    %v1990 = vpop.permute.xlu0 %1989
    %1991 = vrot.lane.b32.xlu0 %v452, 6
    %v1992 = vpop.permute.xlu0 %1991
    %1993 = vrot.lane.b32.xlu0 %v453, 6
    %v1994 = vpop.permute.xlu0 %1993
    %1995 = vrot.lane.b32.xlu0 %v454, 6
    %v1996 = vpop.permute.xlu0 %1995
    %1997 = vrot.lane.b32.xlu0 %v455, 6
    %v1998 = vpop.permute.xlu0 %1997
    %1999 = vrot.lane.b32.xlu0 %v456, 6
    %v2000 = vpop.permute.xlu0 %1999
    %2001 = vrot.lane.b32.xlu0 %v457, 6
    %v2002 = vpop.permute.xlu0 %2001
    %2003 = vrot.lane.b32.xlu0 %v458, 6
    %v2004 = vpop.permute.xlu0 %2003
    %2005 = vrot.lane.b32.xlu0 %v459, 6
    %v2006 = vpop.permute.xlu0 %2005
    %2007 = vrot.lane.b32.xlu0 %v460, 6
    %v2008 = vpop.permute.xlu0 %2007
    %2009 = vrot.lane.b32.xlu0 %v461, 6
    %v2010 = vpop.permute.xlu0 %2009
    %2011 = vrot.lane.b32.xlu0 %v462, 6
    %v2012 = vpop.permute.xlu0 %2011
    %2013 = vrot.lane.b32.xlu0 %v463, 6
    %v2014 = vpop.permute.xlu0 %2013
    %2015 = vrot.lane.b32.xlu0 %v464, 6
    %v2016 = vpop.permute.xlu0 %2015
    %2017 = vrot.lane.b32.xlu0 %v465, 6
    %v2018 = vpop.permute.xlu0 %2017
    %2019 = vrot.lane.b32.xlu0 %v466, 6
    %v2020 = vpop.permute.xlu0 %2019
    %2021 = vrot.lane.b32.xlu0 %v467, 6
    %v2022 = vpop.permute.xlu0 %2021
    %2023 = vrot.lane.b32.xlu0 %v468, 6
    %v2024 = vpop.permute.xlu0 %2023
    %2025 = vrot.lane.b32.xlu0 %v469, 6
    %v2026 = vpop.permute.xlu0 %2025
    %2027 = vrot.lane.b32.xlu0 %v470, 6
    %v2028 = vpop.permute.xlu0 %2027
    %2029 = vrot.lane.b32.xlu0 %v471, 6
    %v2030 = vpop.permute.xlu0 %2029
    %2031 = vrot.lane.b32.xlu0 %v472, 6
    %v2032 = vpop.permute.xlu0 %2031
    %2033 = vrot.lane.b32.xlu0 %v473, 6
    %v2034 = vpop.permute.xlu0 %2033
    %2035 = vrot.lane.b32.xlu0 %v474, 6
    %v2036 = vpop.permute.xlu0 %2035
    %2037 = vrot.lane.b32.xlu0 %v475, 6
    %v2038 = vpop.permute.xlu0 %2037
    %2039 = vrot.lane.b32.xlu0 %v476, 6
    %v2040 = vpop.permute.xlu0 %2039
    %2041 = vrot.lane.b32.xlu0 %v477, 6
    %v2042 = vpop.permute.xlu0 %2041
    %2043 = vrot.lane.b32.xlu0 %v478, 6
    %v2044 = vpop.permute.xlu0 %2043
    %2045 = vrot.lane.b32.xlu0 %v479, 6
    %v2046 = vpop.permute.xlu0 %2045
    %2047 = vrot.lane.b32.xlu0 %v480, 6
    %v2048 = vpop.permute.xlu0 %2047
    %2049 = vrot.lane.b32.xlu0 %v481, 6
    %v2050 = vpop.permute.xlu0 %2049
    %2051 = vrot.lane.b32.xlu0 %v482, 6
    %v2052 = vpop.permute.xlu0 %2051
    %2053 = vrot.lane.b32.xlu0 %v483, 6
    %v2054 = vpop.permute.xlu0 %2053
    %2055 = vrot.lane.b32.xlu0 %v484, 6
    %v2056 = vpop.permute.xlu0 %2055
    %2057 = vrot.lane.b32.xlu0 %v485, 6
    %v2058 = vpop.permute.xlu0 %2057
    %2059 = vrot.lane.b32.xlu0 %v486, 6
    %v2060 = vpop.permute.xlu0 %2059
    %2061 = vrot.lane.b32.xlu0 %v487, 6
    %v2062 = vpop.permute.xlu0 %2061
    %2063 = vrot.lane.b32.xlu0 %v488, 6
    %v2064 = vpop.permute.xlu0 %2063
    %2065 = vrot.lane.b32.xlu0 %v489, 6
    %v2066 = vpop.permute.xlu0 %2065
    %2067 = vrot.lane.b32.xlu0 %v490, 6
    %v2068 = vpop.permute.xlu0 %2067
    %2069 = vrot.lane.b32.xlu0 %v491, 6
    %v2070 = vpop.permute.xlu0 %2069
    %2071 = vrot.lane.b32.xlu0 %v492, 6
    %v2072 = vpop.permute.xlu0 %2071
    %2073 = vrot.lane.b32.xlu0 %v493, 6
    %v2074 = vpop.permute.xlu0 %2073
    %2075 = vrot.lane.b32.xlu0 %v494, 6
    %v2076 = vpop.permute.xlu0 %2075
    %2077 = vrot.lane.b32.xlu0 %v495, 6
    %v2078 = vpop.permute.xlu0 %2077
    %2079 = vrot.lane.b32.xlu0 %v496, 6
    %v2080 = vpop.permute.xlu0 %2079
    %2081 = vrot.lane.b32.xlu0 %v497, 6
    %v2082 = vpop.permute.xlu0 %2081
    %2083 = vrot.lane.b32.xlu0 %v498, 6
    %v2084 = vpop.permute.xlu0 %2083
    %2085 = vrot.lane.b32.xlu0 %v499, 6
    %v2086 = vpop.permute.xlu0 %2085
    %2087 = vrot.lane.b32.xlu0 %v500, 6
    %v2088 = vpop.permute.xlu0 %2087
    %2089 = vrot.lane.b32.xlu0 %v501, 6
    %v2090 = vpop.permute.xlu0 %2089
    %2091 = vrot.lane.b32.xlu0 %v502, 6
    %v2092 = vpop.permute.xlu0 %2091
    %2093 = vrot.lane.b32.xlu0 %v503, 6
    %v2094 = vpop.permute.xlu0 %2093
    %2095 = vrot.lane.b32.xlu0 %v504, 6
    %v2096 = vpop.permute.xlu0 %2095
    %2097 = vrot.lane.b32.xlu0 %v505, 6
    %v2098 = vpop.permute.xlu0 %2097
    %2099 = vrot.lane.b32.xlu0 %v506, 6
    %v2100 = vpop.permute.xlu0 %2099
    %2101 = vrot.lane.b32.xlu0 %v507, 6
    %v2102 = vpop.permute.xlu0 %2101
    %2103 = vrot.lane.b32.xlu0 %v508, 6
    %v2104 = vpop.permute.xlu0 %2103
    %2105 = vrot.lane.b32.xlu0 %v509, 6
    %v2106 = vpop.permute.xlu0 %2105
    %2107 = vrot.lane.b32.xlu0 %v510, 6
    %v2108 = vpop.permute.xlu0 %2107
    %2109 = vrot.lane.b32.xlu0 %v511, 6
    %v2110 = vpop.permute.xlu0 %2109
    %2111 = vrot.lane.b32.xlu0 %v512, 6
    %v2112 = vpop.permute.xlu0 %2111
    %2241 = vrot.lane.b32.xlu0 %v513, 7
    %v2242 = vpop.permute.xlu0 %2241
    %2243 = vrot.lane.b32.xlu0 %v514, 7
    %v2244 = vpop.permute.xlu0 %2243
    %2245 = vrot.lane.b32.xlu0 %v515, 7
    %v2246 = vpop.permute.xlu0 %2245
    %2247 = vrot.lane.b32.xlu0 %v516, 7
    %v2248 = vpop.permute.xlu0 %2247
    %2249 = vrot.lane.b32.xlu0 %v517, 7
    %v2250 = vpop.permute.xlu0 %2249
    %2251 = vrot.lane.b32.xlu0 %v518, 7
    %v2252 = vpop.permute.xlu0 %2251
    %2253 = vrot.lane.b32.xlu0 %v519, 7
    %v2254 = vpop.permute.xlu0 %2253
    %2255 = vrot.lane.b32.xlu0 %v520, 7
    %v2256 = vpop.permute.xlu0 %2255
    %2257 = vrot.lane.b32.xlu0 %v521, 7
    %v2258 = vpop.permute.xlu0 %2257
    %2259 = vrot.lane.b32.xlu0 %v522, 7
    %v2260 = vpop.permute.xlu0 %2259
    %2261 = vrot.lane.b32.xlu0 %v523, 7
    %v2262 = vpop.permute.xlu0 %2261
    %2263 = vrot.lane.b32.xlu0 %v524, 7
    %v2264 = vpop.permute.xlu0 %2263
    %2265 = vrot.lane.b32.xlu0 %v525, 7
    %v2266 = vpop.permute.xlu0 %2265
    %2267 = vrot.lane.b32.xlu0 %v526, 7
    %v2268 = vpop.permute.xlu0 %2267
    %2269 = vrot.lane.b32.xlu0 %v527, 7
    %v2270 = vpop.permute.xlu0 %2269
    %2271 = vrot.lane.b32.xlu0 %v528, 7
    %v2272 = vpop.permute.xlu0 %2271
    %2273 = vrot.lane.b32.xlu0 %v529, 7
    %v2274 = vpop.permute.xlu0 %2273
    %2275 = vrot.lane.b32.xlu0 %v530, 7
    %v2276 = vpop.permute.xlu0 %2275
    %2277 = vrot.lane.b32.xlu0 %v531, 7
    %v2278 = vpop.permute.xlu0 %2277
    %2279 = vrot.lane.b32.xlu0 %v532, 7
    %v2280 = vpop.permute.xlu0 %2279
    %2281 = vrot.lane.b32.xlu0 %v533, 7
    %v2282 = vpop.permute.xlu0 %2281
    %2283 = vrot.lane.b32.xlu0 %v534, 7
    %v2284 = vpop.permute.xlu0 %2283
    %2285 = vrot.lane.b32.xlu0 %v535, 7
    %v2286 = vpop.permute.xlu0 %2285
    %2287 = vrot.lane.b32.xlu0 %v536, 7
    %v2288 = vpop.permute.xlu0 %2287
    %2289 = vrot.lane.b32.xlu0 %v537, 7
    %v2290 = vpop.permute.xlu0 %2289
    %2291 = vrot.lane.b32.xlu0 %v538, 7
    %v2292 = vpop.permute.xlu0 %2291
    %2293 = vrot.lane.b32.xlu0 %v539, 7
    %v2294 = vpop.permute.xlu0 %2293
    %2295 = vrot.lane.b32.xlu0 %v540, 7
    %v2296 = vpop.permute.xlu0 %2295
    %2297 = vrot.lane.b32.xlu0 %v541, 7
    %v2298 = vpop.permute.xlu0 %2297
    %2299 = vrot.lane.b32.xlu0 %v542, 7
    %v2300 = vpop.permute.xlu0 %2299
    %2301 = vrot.lane.b32.xlu0 %v543, 7
    %v2302 = vpop.permute.xlu0 %2301
    %2303 = vrot.lane.b32.xlu0 %v544, 7
    %v2304 = vpop.permute.xlu0 %2303
    %2305 = vrot.lane.b32.xlu0 %v545, 7
    %v2306 = vpop.permute.xlu0 %2305
    %2307 = vrot.lane.b32.xlu0 %v546, 7
    %v2308 = vpop.permute.xlu0 %2307
    %2309 = vrot.lane.b32.xlu0 %v547, 7
    %v2310 = vpop.permute.xlu0 %2309
    %2311 = vrot.lane.b32.xlu0 %v548, 7
    %v2312 = vpop.permute.xlu0 %2311
    %2313 = vrot.lane.b32.xlu0 %v549, 7
    %v2314 = vpop.permute.xlu0 %2313
    %2315 = vrot.lane.b32.xlu0 %v550, 7
    %v2316 = vpop.permute.xlu0 %2315
    %2317 = vrot.lane.b32.xlu0 %v551, 7
    %v2318 = vpop.permute.xlu0 %2317
    %2319 = vrot.lane.b32.xlu0 %v552, 7
    %v2320 = vpop.permute.xlu0 %2319
    %2321 = vrot.lane.b32.xlu0 %v553, 7
    %v2322 = vpop.permute.xlu0 %2321
    %2323 = vrot.lane.b32.xlu0 %v554, 7
    %v2324 = vpop.permute.xlu0 %2323
    %2325 = vrot.lane.b32.xlu0 %v555, 7
    %v2326 = vpop.permute.xlu0 %2325
    %2327 = vrot.lane.b32.xlu0 %v556, 7
    %v2328 = vpop.permute.xlu0 %2327
    %2329 = vrot.lane.b32.xlu0 %v557, 7
    %v2330 = vpop.permute.xlu0 %2329
    %2331 = vrot.lane.b32.xlu0 %v558, 7
    %v2332 = vpop.permute.xlu0 %2331
    %2333 = vrot.lane.b32.xlu0 %v559, 7
    %v2334 = vpop.permute.xlu0 %2333
    %2335 = vrot.lane.b32.xlu0 %v560, 7
    %v2336 = vpop.permute.xlu0 %2335
    %2337 = vrot.lane.b32.xlu0 %v561, 7
    %v2338 = vpop.permute.xlu0 %2337
    %2339 = vrot.lane.b32.xlu0 %v562, 7
    %v2340 = vpop.permute.xlu0 %2339
    %2341 = vrot.lane.b32.xlu0 %v563, 7
    %v2342 = vpop.permute.xlu0 %2341
    %2343 = vrot.lane.b32.xlu0 %v564, 7
    %v2344 = vpop.permute.xlu0 %2343
    %2345 = vrot.lane.b32.xlu0 %v565, 7
    %v2346 = vpop.permute.xlu0 %2345
    %2347 = vrot.lane.b32.xlu0 %v566, 7
    %v2348 = vpop.permute.xlu0 %2347
    %2349 = vrot.lane.b32.xlu0 %v567, 7
    %v2350 = vpop.permute.xlu0 %2349
    %2351 = vrot.lane.b32.xlu0 %v568, 7
    %v2352 = vpop.permute.xlu0 %2351
    %2353 = vrot.lane.b32.xlu0 %v569, 7
    %v2354 = vpop.permute.xlu0 %2353
    %2355 = vrot.lane.b32.xlu0 %v570, 7
    %v2356 = vpop.permute.xlu0 %2355
    %2357 = vrot.lane.b32.xlu0 %v571, 7
    %v2358 = vpop.permute.xlu0 %2357
    %2359 = vrot.lane.b32.xlu0 %v572, 7
    %v2360 = vpop.permute.xlu0 %2359
    %2361 = vrot.lane.b32.xlu0 %v573, 7
    %v2362 = vpop.permute.xlu0 %2361
    %2363 = vrot.lane.b32.xlu0 %v574, 7
    %v2364 = vpop.permute.xlu0 %2363
    %2365 = vrot.lane.b32.xlu0 %v575, 7
    %v2366 = vpop.permute.xlu0 %2365
    %2367 = vrot.lane.b32.xlu0 %v576, 7
    %v2368 = vpop.permute.xlu0 %2367
    %2497 = vrot.lane.b32.xlu0 %v577, 8
    %v2498 = vpop.permute.xlu0 %2497
    %2499 = vrot.lane.b32.xlu0 %v578, 8
    %v2500 = vpop.permute.xlu0 %2499
    %2501 = vrot.lane.b32.xlu0 %v579, 8
    %v2502 = vpop.permute.xlu0 %2501
    %2503 = vrot.lane.b32.xlu0 %v580, 8
    %v2504 = vpop.permute.xlu0 %2503
    %2505 = vrot.lane.b32.xlu0 %v581, 8
    %v2506 = vpop.permute.xlu0 %2505
    %2507 = vrot.lane.b32.xlu0 %v582, 8
    %v2508 = vpop.permute.xlu0 %2507
    %2509 = vrot.lane.b32.xlu0 %v583, 8
    %v2510 = vpop.permute.xlu0 %2509
    %2511 = vrot.lane.b32.xlu0 %v584, 8
    %v2512 = vpop.permute.xlu0 %2511
    %2513 = vrot.lane.b32.xlu0 %v585, 8
    %v2514 = vpop.permute.xlu0 %2513
    %2515 = vrot.lane.b32.xlu0 %v586, 8
    %v2516 = vpop.permute.xlu0 %2515
    %2517 = vrot.lane.b32.xlu0 %v587, 8
    %v2518 = vpop.permute.xlu0 %2517
    %2519 = vrot.lane.b32.xlu0 %v588, 8
    %v2520 = vpop.permute.xlu0 %2519
    %2521 = vrot.lane.b32.xlu0 %v589, 8
    %v2522 = vpop.permute.xlu0 %2521
    %2523 = vrot.lane.b32.xlu0 %v590, 8
    %v2524 = vpop.permute.xlu0 %2523
    %2525 = vrot.lane.b32.xlu0 %v591, 8
    %v2526 = vpop.permute.xlu0 %2525
    %2527 = vrot.lane.b32.xlu0 %v592, 8
    %v2528 = vpop.permute.xlu0 %2527
    %2529 = vrot.lane.b32.xlu0 %v593, 8
    %v2530 = vpop.permute.xlu0 %2529
    %2531 = vrot.lane.b32.xlu0 %v594, 8
    %v2532 = vpop.permute.xlu0 %2531
    %2533 = vrot.lane.b32.xlu0 %v595, 8
    %v2534 = vpop.permute.xlu0 %2533
    %2535 = vrot.lane.b32.xlu0 %v596, 8
    %v2536 = vpop.permute.xlu0 %2535
    %2537 = vrot.lane.b32.xlu0 %v597, 8
    %v2538 = vpop.permute.xlu0 %2537
    %2539 = vrot.lane.b32.xlu0 %v598, 8
    %v2540 = vpop.permute.xlu0 %2539
    %2541 = vrot.lane.b32.xlu0 %v599, 8
    %v2542 = vpop.permute.xlu0 %2541
    %2543 = vrot.lane.b32.xlu0 %v600, 8
    %v2544 = vpop.permute.xlu0 %2543
    %2545 = vrot.lane.b32.xlu0 %v601, 8
    %v2546 = vpop.permute.xlu0 %2545
    %2547 = vrot.lane.b32.xlu0 %v602, 8
    %v2548 = vpop.permute.xlu0 %2547
    %2549 = vrot.lane.b32.xlu0 %v603, 8
    %v2550 = vpop.permute.xlu0 %2549
    %2551 = vrot.lane.b32.xlu0 %v604, 8
    %v2552 = vpop.permute.xlu0 %2551
    %2553 = vrot.lane.b32.xlu0 %v605, 8
    %v2554 = vpop.permute.xlu0 %2553
    %2555 = vrot.lane.b32.xlu0 %v606, 8
    %v2556 = vpop.permute.xlu0 %2555
    %2557 = vrot.lane.b32.xlu0 %v607, 8
    %v2558 = vpop.permute.xlu0 %2557
    %2559 = vrot.lane.b32.xlu0 %v608, 8
    %v2560 = vpop.permute.xlu0 %2559
    %2561 = vrot.lane.b32.xlu0 %v609, 8
    %v2562 = vpop.permute.xlu0 %2561
    %2563 = vrot.lane.b32.xlu0 %v610, 8
    %v2564 = vpop.permute.xlu0 %2563
    %2565 = vrot.lane.b32.xlu0 %v611, 8
    %v2566 = vpop.permute.xlu0 %2565
    %2567 = vrot.lane.b32.xlu0 %v612, 8
    %v2568 = vpop.permute.xlu0 %2567
    %2569 = vrot.lane.b32.xlu0 %v613, 8
    %v2570 = vpop.permute.xlu0 %2569
    %2571 = vrot.lane.b32.xlu0 %v614, 8
    %v2572 = vpop.permute.xlu0 %2571
    %2573 = vrot.lane.b32.xlu0 %v615, 8
    %v2574 = vpop.permute.xlu0 %2573
    %2575 = vrot.lane.b32.xlu0 %v616, 8
    %v2576 = vpop.permute.xlu0 %2575
    %2577 = vrot.lane.b32.xlu0 %v617, 8
    %v2578 = vpop.permute.xlu0 %2577
    %2579 = vrot.lane.b32.xlu0 %v618, 8
    %v2580 = vpop.permute.xlu0 %2579
    %2581 = vrot.lane.b32.xlu0 %v619, 8
    %v2582 = vpop.permute.xlu0 %2581
    %2583 = vrot.lane.b32.xlu0 %v620, 8
    %v2584 = vpop.permute.xlu0 %2583
    %2585 = vrot.lane.b32.xlu0 %v621, 8
    %v2586 = vpop.permute.xlu0 %2585
    %2587 = vrot.lane.b32.xlu0 %v622, 8
    %v2588 = vpop.permute.xlu0 %2587
    %2589 = vrot.lane.b32.xlu0 %v623, 8
    %v2590 = vpop.permute.xlu0 %2589
    %2591 = vrot.lane.b32.xlu0 %v624, 8
    %v2592 = vpop.permute.xlu0 %2591
    %2593 = vrot.lane.b32.xlu0 %v625, 8
    %v2594 = vpop.permute.xlu0 %2593
    %2595 = vrot.lane.b32.xlu0 %v626, 8
    %v2596 = vpop.permute.xlu0 %2595
    %2597 = vrot.lane.b32.xlu0 %v627, 8
    %v2598 = vpop.permute.xlu0 %2597
    %2599 = vrot.lane.b32.xlu0 %v628, 8
    %v2600 = vpop.permute.xlu0 %2599
    %2601 = vrot.lane.b32.xlu0 %v629, 8
    %v2602 = vpop.permute.xlu0 %2601
    %2603 = vrot.lane.b32.xlu0 %v630, 8
    %v2604 = vpop.permute.xlu0 %2603
    %2605 = vrot.lane.b32.xlu0 %v631, 8
    %v2606 = vpop.permute.xlu0 %2605
    %2607 = vrot.lane.b32.xlu0 %v632, 8
    %v2608 = vpop.permute.xlu0 %2607
    %2609 = vrot.lane.b32.xlu0 %v633, 8
    %v2610 = vpop.permute.xlu0 %2609
    %2611 = vrot.lane.b32.xlu0 %v634, 8
    %v2612 = vpop.permute.xlu0 %2611
    %2613 = vrot.lane.b32.xlu0 %v635, 8
    %v2614 = vpop.permute.xlu0 %2613
    %2615 = vrot.lane.b32.xlu0 %v636, 8
    %v2616 = vpop.permute.xlu0 %2615
    %2617 = vrot.lane.b32.xlu0 %v637, 8
    %v2618 = vpop.permute.xlu0 %2617
    %2619 = vrot.lane.b32.xlu0 %v638, 8
    %v2620 = vpop.permute.xlu0 %2619
    %2621 = vrot.lane.b32.xlu0 %v639, 8
    %v2622 = vpop.permute.xlu0 %2621
    %2623 = vrot.lane.b32.xlu0 %v640, 8
    %v2624 = vpop.permute.xlu0 %2623
    %vm2689 = vcmask 7168
    %v2690 = vsel %vm2689, %v63, %v706
    %v2691 = vsel %vm2689, %v64, %v708
    %v2692 = vsel %vm2689, %v65, %v710
    %v2693 = vsel %vm2689, %v66, %v712
    %v2694 = vsel %vm2689, %v67, %v714
    %v2695 = vsel %vm2689, %v68, %v716
    %v2696 = vsel %vm2689, %v69, %v718
    %v2697 = vsel %vm2689, %v70, %v720
    %v2698 = vsel %vm2689, %v71, %v722
    %v2699 = vsel %vm2689, %v72, %v724
    %v2700 = vsel %vm2689, %v73, %v726
    %v2701 = vsel %vm2689, %v74, %v728
    %v2702 = vsel %vm2689, %v75, %v730
    %v2703 = vsel %vm2689, %v76, %v732
    %v2704 = vsel %vm2689, %v77, %v734
    %v2705 = vsel %vm2689, %v78, %v736
    %v2706 = vsel %vm2689, %v79, %v738
    %v2707 = vsel %vm2689, %v80, %v740
    %v2708 = vsel %vm2689, %v81, %v742
    %v2709 = vsel %vm2689, %v82, %v744
    %v2710 = vsel %vm2689, %v83, %v746
    %v2711 = vsel %vm2689, %v84, %v748
    %v2712 = vsel %vm2689, %v85, %v750
    %v2713 = vsel %vm2689, %v86, %v752
    %v2714 = vsel %vm2689, %v87, %v754
    %v2715 = vsel %vm2689, %v88, %v756
    %v2716 = vsel %vm2689, %v89, %v758
    %v2717 = vsel %vm2689, %v90, %v760
    %v2718 = vsel %vm2689, %v91, %v762
    %v2719 = vsel %vm2689, %v92, %v764
    %v2720 = vsel %vm2689, %v93, %v766
    %v2721 = vsel %vm2689, %v94, %v768
    %v2722 = vsel %vm2689, %v95, %v770
    %v2723 = vsel %vm2689, %v96, %v772
    %v2724 = vsel %vm2689, %v97, %v774
    %v2725 = vsel %vm2689, %v98, %v776
    %v2726 = vsel %vm2689, %v99, %v778
    %v2727 = vsel %vm2689, %v100, %v780
    %v2728 = vsel %vm2689, %v101, %v782
    %v2729 = vsel %vm2689, %v102, %v784
    %v2730 = vsel %vm2689, %v103, %v786
    %v2731 = vsel %vm2689, %v104, %v788
    %v2732 = vsel %vm2689, %v105, %v790
    %v2733 = vsel %vm2689, %v106, %v792
    %v2734 = vsel %vm2689, %v107, %v794
    %v2735 = vsel %vm2689, %v108, %v796
    %v2736 = vsel %vm2689, %v109, %v798
    %v2737 = vsel %vm2689, %v110, %v800
    %v2738 = vsel %vm2689, %v111, %v802
    %v2739 = vsel %vm2689, %v112, %v804
    %v2740 = vsel %vm2689, %v113, %v806
    %v2741 = vsel %vm2689, %v114, %v808
    %v2742 = vsel %vm2689, %v115, %v810
    %v2743 = vsel %vm2689, %v116, %v812
    %v2744 = vsel %vm2689, %v117, %v814
    %v2745 = vsel %vm2689, %v118, %v816
    %v2746 = vsel %vm2689, %v119, %v818
    %v2747 = vsel %vm2689, %v120, %v820
    %v2748 = vsel %vm2689, %v121, %v822
    %v2749 = vsel %vm2689, %v122, %v824
    %v2750 = vsel %vm2689, %v123, %v826
    %v2751 = vsel %vm2689, %v124, %v828
    %v2752 = vsel %vm2689, %v125, %v830
    %v2753 = vsel %vm2689, %v126, %v832
    %vm2754 = vcmask 15360
    %v2755 = vsel %vm2754, %v2690, %v962
    %v2756 = vsel %vm2754, %v2691, %v964
    %v2757 = vsel %vm2754, %v2692, %v966
    %v2758 = vsel %vm2754, %v2693, %v968
    %v2759 = vsel %vm2754, %v2694, %v970
    %v2760 = vsel %vm2754, %v2695, %v972
    %v2761 = vsel %vm2754, %v2696, %v974
    %v2762 = vsel %vm2754, %v2697, %v976
    %v2763 = vsel %vm2754, %v2698, %v978
    %v2764 = vsel %vm2754, %v2699, %v980
    %v2765 = vsel %vm2754, %v2700, %v982
    %v2766 = vsel %vm2754, %v2701, %v984
    %v2767 = vsel %vm2754, %v2702, %v986
    %v2768 = vsel %vm2754, %v2703, %v988
    %v2769 = vsel %vm2754, %v2704, %v990
    %v2770 = vsel %vm2754, %v2705, %v992
    %v2771 = vsel %vm2754, %v2706, %v994
    %v2772 = vsel %vm2754, %v2707, %v996
    %v2773 = vsel %vm2754, %v2708, %v998
    %v2774 = vsel %vm2754, %v2709, %v1000
    %v2775 = vsel %vm2754, %v2710, %v1002
    %v2776 = vsel %vm2754, %v2711, %v1004
    %v2777 = vsel %vm2754, %v2712, %v1006
    %v2778 = vsel %vm2754, %v2713, %v1008
    %v2779 = vsel %vm2754, %v2714, %v1010
    %v2780 = vsel %vm2754, %v2715, %v1012
    %v2781 = vsel %vm2754, %v2716, %v1014
    %v2782 = vsel %vm2754, %v2717, %v1016
    %v2783 = vsel %vm2754, %v2718, %v1018
    %v2784 = vsel %vm2754, %v2719, %v1020
    %v2785 = vsel %vm2754, %v2720, %v1022
    %v2786 = vsel %vm2754, %v2721, %v1024
    %v2787 = vsel %vm2754, %v2722, %v1026
    %v2788 = vsel %vm2754, %v2723, %v1028
    %v2789 = vsel %vm2754, %v2724, %v1030
    %v2790 = vsel %vm2754, %v2725, %v1032
    %v2791 = vsel %vm2754, %v2726, %v1034
    %v2792 = vsel %vm2754, %v2727, %v1036
    %v2793 = vsel %vm2754, %v2728, %v1038
    %v2794 = vsel %vm2754, %v2729, %v1040
    %v2795 = vsel %vm2754, %v2730, %v1042
    %v2796 = vsel %vm2754, %v2731, %v1044
    %v2797 = vsel %vm2754, %v2732, %v1046
    %v2798 = vsel %vm2754, %v2733, %v1048
    %v2799 = vsel %vm2754, %v2734, %v1050
    %v2800 = vsel %vm2754, %v2735, %v1052
    %v2801 = vsel %vm2754, %v2736, %v1054
    %v2802 = vsel %vm2754, %v2737, %v1056
    %v2803 = vsel %vm2754, %v2738, %v1058
    %v2804 = vsel %vm2754, %v2739, %v1060
    %v2805 = vsel %vm2754, %v2740, %v1062
    %v2806 = vsel %vm2754, %v2741, %v1064
    %v2807 = vsel %vm2754, %v2742, %v1066
    %v2808 = vsel %vm2754, %v2743, %v1068
    %v2809 = vsel %vm2754, %v2744, %v1070
    %v2810 = vsel %vm2754, %v2745, %v1072
    %v2811 = vsel %vm2754, %v2746, %v1074
    %v2812 = vsel %vm2754, %v2747, %v1076
    %v2813 = vsel %vm2754, %v2748, %v1078
    %v2814 = vsel %vm2754, %v2749, %v1080
    %v2815 = vsel %vm2754, %v2750, %v1082
    %v2816 = vsel %vm2754, %v2751, %v1084
    %v2817 = vsel %vm2754, %v2752, %v1086
    %v2818 = vsel %vm2754, %v2753, %v1088
    %vm2819 = vcmask 23552
    %v2820 = vsel %vm2819, %v2755, %v1218
    %v2821 = vsel %vm2819, %v2756, %v1220
    %v2822 = vsel %vm2819, %v2757, %v1222
    %v2823 = vsel %vm2819, %v2758, %v1224
    %v2824 = vsel %vm2819, %v2759, %v1226
    %v2825 = vsel %vm2819, %v2760, %v1228
    %v2826 = vsel %vm2819, %v2761, %v1230
    %v2827 = vsel %vm2819, %v2762, %v1232
    %v2828 = vsel %vm2819, %v2763, %v1234
    %v2829 = vsel %vm2819, %v2764, %v1236
    %v2830 = vsel %vm2819, %v2765, %v1238
    %v2831 = vsel %vm2819, %v2766, %v1240
    %v2832 = vsel %vm2819, %v2767, %v1242
    %v2833 = vsel %vm2819, %v2768, %v1244
    %v2834 = vsel %vm2819, %v2769, %v1246
    %v2835 = vsel %vm2819, %v2770, %v1248
    %v2836 = vsel %vm2819, %v2771, %v1250
    %v2837 = vsel %vm2819, %v2772, %v1252
    %v2838 = vsel %vm2819, %v2773, %v1254
    %v2839 = vsel %vm2819, %v2774, %v1256
    %v2840 = vsel %vm2819, %v2775, %v1258
    %v2841 = vsel %vm2819, %v2776, %v1260
    %v2842 = vsel %vm2819, %v2777, %v1262
    %v2843 = vsel %vm2819, %v2778, %v1264
    %v2844 = vsel %vm2819, %v2779, %v1266
    %v2845 = vsel %vm2819, %v2780, %v1268
    %v2846 = vsel %vm2819, %v2781, %v1270
    %v2847 = vsel %vm2819, %v2782, %v1272
    %v2848 = vsel %vm2819, %v2783, %v1274
    %v2849 = vsel %vm2819, %v2784, %v1276
    %v2850 = vsel %vm2819, %v2785, %v1278
    %v2851 = vsel %vm2819, %v2786, %v1280
    %v2852 = vsel %vm2819, %v2787, %v1282
    %v2853 = vsel %vm2819, %v2788, %v1284
    %v2854 = vsel %vm2819, %v2789, %v1286
    %v2855 = vsel %vm2819, %v2790, %v1288
    %v2856 = vsel %vm2819, %v2791, %v1290
    %v2857 = vsel %vm2819, %v2792, %v1292
    %v2858 = vsel %vm2819, %v2793, %v1294
    %v2859 = vsel %vm2819, %v2794, %v1296
    %v2860 = vsel %vm2819, %v2795, %v1298
    %v2861 = vsel %vm2819, %v2796, %v1300
    %v2862 = vsel %vm2819, %v2797, %v1302
    %v2863 = vsel %vm2819, %v2798, %v1304
    %v2864 = vsel %vm2819, %v2799, %v1306
    %v2865 = vsel %vm2819, %v2800, %v1308
    %v2866 = vsel %vm2819, %v2801, %v1310
    %v2867 = vsel %vm2819, %v2802, %v1312
    %v2868 = vsel %vm2819, %v2803, %v1314
    %v2869 = vsel %vm2819, %v2804, %v1316
    %v2870 = vsel %vm2819, %v2805, %v1318
    %v2871 = vsel %vm2819, %v2806, %v1320
    %v2872 = vsel %vm2819, %v2807, %v1322
    %v2873 = vsel %vm2819, %v2808, %v1324
    %v2874 = vsel %vm2819, %v2809, %v1326
    %v2875 = vsel %vm2819, %v2810, %v1328
    %v2876 = vsel %vm2819, %v2811, %v1330
    %v2877 = vsel %vm2819, %v2812, %v1332
    %v2878 = vsel %vm2819, %v2813, %v1334
    %v2879 = vsel %vm2819, %v2814, %v1336
    %v2880 = vsel %vm2819, %v2815, %v1338
    %v2881 = vsel %vm2819, %v2816, %v1340
    %v2882 = vsel %vm2819, %v2817, %v1342
    %v2883 = vsel %vm2819, %v2818, %v1344
    %vm2884 = vcmask 31744
    %v2885 = vsel %vm2884, %v2820, %v1474
    %v2886 = vsel %vm2884, %v2821, %v1476
    %v2887 = vsel %vm2884, %v2822, %v1478
    %v2888 = vsel %vm2884, %v2823, %v1480
    %v2889 = vsel %vm2884, %v2824, %v1482
    %v2890 = vsel %vm2884, %v2825, %v1484
    %v2891 = vsel %vm2884, %v2826, %v1486
    %v2892 = vsel %vm2884, %v2827, %v1488
    %v2893 = vsel %vm2884, %v2828, %v1490
    %v2894 = vsel %vm2884, %v2829, %v1492
    %v2895 = vsel %vm2884, %v2830, %v1494
    %v2896 = vsel %vm2884, %v2831, %v1496
    %v2897 = vsel %vm2884, %v2832, %v1498
    %v2898 = vsel %vm2884, %v2833, %v1500
    %v2899 = vsel %vm2884, %v2834, %v1502
    %v2900 = vsel %vm2884, %v2835, %v1504
    %v2901 = vsel %vm2884, %v2836, %v1506
    %v2902 = vsel %vm2884, %v2837, %v1508
    %v2903 = vsel %vm2884, %v2838, %v1510
    %v2904 = vsel %vm2884, %v2839, %v1512
    %v2905 = vsel %vm2884, %v2840, %v1514
    %v2906 = vsel %vm2884, %v2841, %v1516
    %v2907 = vsel %vm2884, %v2842, %v1518
    %v2908 = vsel %vm2884, %v2843, %v1520
    %v2909 = vsel %vm2884, %v2844, %v1522
    %v2910 = vsel %vm2884, %v2845, %v1524
    %v2911 = vsel %vm2884, %v2846, %v1526
    %v2912 = vsel %vm2884, %v2847, %v1528
    %v2913 = vsel %vm2884, %v2848, %v1530
    %v2914 = vsel %vm2884, %v2849, %v1532
    %v2915 = vsel %vm2884, %v2850, %v1534
    %v2916 = vsel %vm2884, %v2851, %v1536
    %v2917 = vsel %vm2884, %v2852, %v1538
    %v2918 = vsel %vm2884, %v2853, %v1540
    %v2919 = vsel %vm2884, %v2854, %v1542
    %v2920 = vsel %vm2884, %v2855, %v1544
    %v2921 = vsel %vm2884, %v2856, %v1546
    %v2922 = vsel %vm2884, %v2857, %v1548
    %v2923 = vsel %vm2884, %v2858, %v1550
    %v2924 = vsel %vm2884, %v2859, %v1552
    %v2925 = vsel %vm2884, %v2860, %v1554
    %v2926 = vsel %vm2884, %v2861, %v1556
    %v2927 = vsel %vm2884, %v2862, %v1558
    %v2928 = vsel %vm2884, %v2863, %v1560
    %v2929 = vsel %vm2884, %v2864, %v1562
    %v2930 = vsel %vm2884, %v2865, %v1564
    %v2931 = vsel %vm2884, %v2866, %v1566
    %v2932 = vsel %vm2884, %v2867, %v1568
    %v2933 = vsel %vm2884, %v2868, %v1570
    %v2934 = vsel %vm2884, %v2869, %v1572
    %v2935 = vsel %vm2884, %v2870, %v1574
    %v2936 = vsel %vm2884, %v2871, %v1576
    %v2937 = vsel %vm2884, %v2872, %v1578
    %v2938 = vsel %vm2884, %v2873, %v1580
    %v2939 = vsel %vm2884, %v2874, %v1582
    %v2940 = vsel %vm2884, %v2875, %v1584
    %v2941 = vsel %vm2884, %v2876, %v1586
    %v2942 = vsel %vm2884, %v2877, %v1588
    %v2943 = vsel %vm2884, %v2878, %v1590
    %v2944 = vsel %vm2884, %v2879, %v1592
    %v2945 = vsel %vm2884, %v2880, %v1594
    %v2946 = vsel %vm2884, %v2881, %v1596
    %v2947 = vsel %vm2884, %v2882, %v1598
    %v2948 = vsel %vm2884, %v2883, %v1600
    %vm2949 = vcmask 39936
    %v2950 = vsel %vm2949, %v2885, %v1730
    %v2951 = vsel %vm2949, %v2886, %v1732
    %v2952 = vsel %vm2949, %v2887, %v1734
    %v2953 = vsel %vm2949, %v2888, %v1736
    %v2954 = vsel %vm2949, %v2889, %v1738
    %v2955 = vsel %vm2949, %v2890, %v1740
    %v2956 = vsel %vm2949, %v2891, %v1742
    %v2957 = vsel %vm2949, %v2892, %v1744
    %v2958 = vsel %vm2949, %v2893, %v1746
    %v2959 = vsel %vm2949, %v2894, %v1748
    %v2960 = vsel %vm2949, %v2895, %v1750
    %v2961 = vsel %vm2949, %v2896, %v1752
    %v2962 = vsel %vm2949, %v2897, %v1754
    %v2963 = vsel %vm2949, %v2898, %v1756
    %v2964 = vsel %vm2949, %v2899, %v1758
    %v2965 = vsel %vm2949, %v2900, %v1760
    %v2966 = vsel %vm2949, %v2901, %v1762
    %v2967 = vsel %vm2949, %v2902, %v1764
    %v2968 = vsel %vm2949, %v2903, %v1766
    %v2969 = vsel %vm2949, %v2904, %v1768
    %v2970 = vsel %vm2949, %v2905, %v1770
    %v2971 = vsel %vm2949, %v2906, %v1772
    %v2972 = vsel %vm2949, %v2907, %v1774
    %v2973 = vsel %vm2949, %v2908, %v1776
    %v2974 = vsel %vm2949, %v2909, %v1778
    %v2975 = vsel %vm2949, %v2910, %v1780
    %v2976 = vsel %vm2949, %v2911, %v1782
    %v2977 = vsel %vm2949, %v2912, %v1784
    %v2978 = vsel %vm2949, %v2913, %v1786
    %v2979 = vsel %vm2949, %v2914, %v1788
    %v2980 = vsel %vm2949, %v2915, %v1790
    %v2981 = vsel %vm2949, %v2916, %v1792
    %v2982 = vsel %vm2949, %v2917, %v1794
    %v2983 = vsel %vm2949, %v2918, %v1796
    %v2984 = vsel %vm2949, %v2919, %v1798
    %v2985 = vsel %vm2949, %v2920, %v1800
    %v2986 = vsel %vm2949, %v2921, %v1802
    %v2987 = vsel %vm2949, %v2922, %v1804
    %v2988 = vsel %vm2949, %v2923, %v1806
    %v2989 = vsel %vm2949, %v2924, %v1808
    %v2990 = vsel %vm2949, %v2925, %v1810
    %v2991 = vsel %vm2949, %v2926, %v1812
    %v2992 = vsel %vm2949, %v2927, %v1814
    %v2993 = vsel %vm2949, %v2928, %v1816
    %v2994 = vsel %vm2949, %v2929, %v1818
    %v2995 = vsel %vm2949, %v2930, %v1820
    %v2996 = vsel %vm2949, %v2931, %v1822
    %v2997 = vsel %vm2949, %v2932, %v1824
    %v2998 = vsel %vm2949, %v2933, %v1826
    %v2999 = vsel %vm2949, %v2934, %v1828
    %v3000 = vsel %vm2949, %v2935, %v1830
    %v3001 = vsel %vm2949, %v2936, %v1832
    %v3002 = vsel %vm2949, %v2937, %v1834
    %v3003 = vsel %vm2949, %v2938, %v1836
    %v3004 = vsel %vm2949, %v2939, %v1838
    %v3005 = vsel %vm2949, %v2940, %v1840
    %v3006 = vsel %vm2949, %v2941, %v1842
    %v3007 = vsel %vm2949, %v2942, %v1844
    %v3008 = vsel %vm2949, %v2943, %v1846
    %v3009 = vsel %vm2949, %v2944, %v1848
    %v3010 = vsel %vm2949, %v2945, %v1850
    %v3011 = vsel %vm2949, %v2946, %v1852
    %v3012 = vsel %vm2949, %v2947, %v1854
    %v3013 = vsel %vm2949, %v2948, %v1856
    %vm3014 = vcmask 48128
    %v3015 = vsel %vm3014, %v2950, %v1986
    %v3016 = vsel %vm3014, %v2951, %v1988
    %v3017 = vsel %vm3014, %v2952, %v1990
    %v3018 = vsel %vm3014, %v2953, %v1992
    %v3019 = vsel %vm3014, %v2954, %v1994
    %v3020 = vsel %vm3014, %v2955, %v1996
    %v3021 = vsel %vm3014, %v2956, %v1998
    %v3022 = vsel %vm3014, %v2957, %v2000
    %v3023 = vsel %vm3014, %v2958, %v2002
    %v3024 = vsel %vm3014, %v2959, %v2004
    %v3025 = vsel %vm3014, %v2960, %v2006
    %v3026 = vsel %vm3014, %v2961, %v2008
    %v3027 = vsel %vm3014, %v2962, %v2010
    %v3028 = vsel %vm3014, %v2963, %v2012
    %v3029 = vsel %vm3014, %v2964, %v2014
    %v3030 = vsel %vm3014, %v2965, %v2016
    %v3031 = vsel %vm3014, %v2966, %v2018
    %v3032 = vsel %vm3014, %v2967, %v2020
    %v3033 = vsel %vm3014, %v2968, %v2022
    %v3034 = vsel %vm3014, %v2969, %v2024
    %v3035 = vsel %vm3014, %v2970, %v2026
    %v3036 = vsel %vm3014, %v2971, %v2028
    %v3037 = vsel %vm3014, %v2972, %v2030
    %v3038 = vsel %vm3014, %v2973, %v2032
    %v3039 = vsel %vm3014, %v2974, %v2034
    %v3040 = vsel %vm3014, %v2975, %v2036
    %v3041 = vsel %vm3014, %v2976, %v2038
    %v3042 = vsel %vm3014, %v2977, %v2040
    %v3043 = vsel %vm3014, %v2978, %v2042
    %v3044 = vsel %vm3014, %v2979, %v2044
    %v3045 = vsel %vm3014, %v2980, %v2046
    %v3046 = vsel %vm3014, %v2981, %v2048
    %v3047 = vsel %vm3014, %v2982, %v2050
    %v3048 = vsel %vm3014, %v2983, %v2052
    %v3049 = vsel %vm3014, %v2984, %v2054
    %v3050 = vsel %vm3014, %v2985, %v2056
    %v3051 = vsel %vm3014, %v2986, %v2058
    %v3052 = vsel %vm3014, %v2987, %v2060
    %v3053 = vsel %vm3014, %v2988, %v2062
    %v3054 = vsel %vm3014, %v2989, %v2064
    %v3055 = vsel %vm3014, %v2990, %v2066
    %v3056 = vsel %vm3014, %v2991, %v2068
    %v3057 = vsel %vm3014, %v2992, %v2070
    %v3058 = vsel %vm3014, %v2993, %v2072
    %v3059 = vsel %vm3014, %v2994, %v2074
    %v3060 = vsel %vm3014, %v2995, %v2076
    %v3061 = vsel %vm3014, %v2996, %v2078
    %v3062 = vsel %vm3014, %v2997, %v2080
    %v3063 = vsel %vm3014, %v2998, %v2082
    %v3064 = vsel %vm3014, %v2999, %v2084
    %v3065 = vsel %vm3014, %v3000, %v2086
    %v3066 = vsel %vm3014, %v3001, %v2088
    %v3067 = vsel %vm3014, %v3002, %v2090
    %v3068 = vsel %vm3014, %v3003, %v2092
    %v3069 = vsel %vm3014, %v3004, %v2094
    %v3070 = vsel %vm3014, %v3005, %v2096
    %v3071 = vsel %vm3014, %v3006, %v2098
    %v3072 = vsel %vm3014, %v3007, %v2100
    %v3073 = vsel %vm3014, %v3008, %v2102
    %v3074 = vsel %vm3014, %v3009, %v2104
    %v3075 = vsel %vm3014, %v3010, %v2106
    %v3076 = vsel %vm3014, %v3011, %v2108
    %v3077 = vsel %vm3014, %v3012, %v2110
    %v3078 = vsel %vm3014, %v3013, %v2112
    %vm3079 = vcmask 56320
    %v3080 = vsel %vm3079, %v3015, %v2242
    %v3081 = vsel %vm3079, %v3016, %v2244
    %v3082 = vsel %vm3079, %v3017, %v2246
    %v3083 = vsel %vm3079, %v3018, %v2248
    %v3084 = vsel %vm3079, %v3019, %v2250
    %v3085 = vsel %vm3079, %v3020, %v2252
    %v3086 = vsel %vm3079, %v3021, %v2254
    %v3087 = vsel %vm3079, %v3022, %v2256
    %v3088 = vsel %vm3079, %v3023, %v2258
    %v3089 = vsel %vm3079, %v3024, %v2260
    %v3090 = vsel %vm3079, %v3025, %v2262
    %v3091 = vsel %vm3079, %v3026, %v2264
    %v3092 = vsel %vm3079, %v3027, %v2266
    %v3093 = vsel %vm3079, %v3028, %v2268
    %v3094 = vsel %vm3079, %v3029, %v2270
    %v3095 = vsel %vm3079, %v3030, %v2272
    %v3096 = vsel %vm3079, %v3031, %v2274
    %v3097 = vsel %vm3079, %v3032, %v2276
    %v3098 = vsel %vm3079, %v3033, %v2278
    %v3099 = vsel %vm3079, %v3034, %v2280
    %v3100 = vsel %vm3079, %v3035, %v2282
    %v3101 = vsel %vm3079, %v3036, %v2284
    %v3102 = vsel %vm3079, %v3037, %v2286
    %v3103 = vsel %vm3079, %v3038, %v2288
    %v3104 = vsel %vm3079, %v3039, %v2290
    %v3105 = vsel %vm3079, %v3040, %v2292
    %v3106 = vsel %vm3079, %v3041, %v2294
    %v3107 = vsel %vm3079, %v3042, %v2296
    %v3108 = vsel %vm3079, %v3043, %v2298
    %v3109 = vsel %vm3079, %v3044, %v2300
    %v3110 = vsel %vm3079, %v3045, %v2302
    %v3111 = vsel %vm3079, %v3046, %v2304
    %v3112 = vsel %vm3079, %v3047, %v2306
    %v3113 = vsel %vm3079, %v3048, %v2308
    %v3114 = vsel %vm3079, %v3049, %v2310
    %v3115 = vsel %vm3079, %v3050, %v2312
    %v3116 = vsel %vm3079, %v3051, %v2314
    %v3117 = vsel %vm3079, %v3052, %v2316
    %v3118 = vsel %vm3079, %v3053, %v2318
    %v3119 = vsel %vm3079, %v3054, %v2320
    %v3120 = vsel %vm3079, %v3055, %v2322
    %v3121 = vsel %vm3079, %v3056, %v2324
    %v3122 = vsel %vm3079, %v3057, %v2326
    %v3123 = vsel %vm3079, %v3058, %v2328
    %v3124 = vsel %vm3079, %v3059, %v2330
    %v3125 = vsel %vm3079, %v3060, %v2332
    %v3126 = vsel %vm3079, %v3061, %v2334
    %v3127 = vsel %vm3079, %v3062, %v2336
    %v3128 = vsel %vm3079, %v3063, %v2338
    %v3129 = vsel %vm3079, %v3064, %v2340
    %v3130 = vsel %vm3079, %v3065, %v2342
    %v3131 = vsel %vm3079, %v3066, %v2344
    %v3132 = vsel %vm3079, %v3067, %v2346
    %v3133 = vsel %vm3079, %v3068, %v2348
    %v3134 = vsel %vm3079, %v3069, %v2350
    %v3135 = vsel %vm3079, %v3070, %v2352
    %v3136 = vsel %vm3079, %v3071, %v2354
    %v3137 = vsel %vm3079, %v3072, %v2356
    %v3138 = vsel %vm3079, %v3073, %v2358
    %v3139 = vsel %vm3079, %v3074, %v2360
    %v3140 = vsel %vm3079, %v3075, %v2362
    %v3141 = vsel %vm3079, %v3076, %v2364
    %v3142 = vsel %vm3079, %v3077, %v2366
    %v3143 = vsel %vm3079, %v3078, %v2368
    %vm3144 = vcmask 64512
    %v3145 = vsel %vm3144, %v3080, %v2498
    %v3146 = vsel %vm3144, %v3081, %v2500
    %v3147 = vsel %vm3144, %v3082, %v2502
    %v3148 = vsel %vm3144, %v3083, %v2504
    %v3149 = vsel %vm3144, %v3084, %v2506
    %v3150 = vsel %vm3144, %v3085, %v2508
    %v3151 = vsel %vm3144, %v3086, %v2510
    %v3152 = vsel %vm3144, %v3087, %v2512
    %v3153 = vsel %vm3144, %v3088, %v2514
    %v3154 = vsel %vm3144, %v3089, %v2516
    %v3155 = vsel %vm3144, %v3090, %v2518
    %v3156 = vsel %vm3144, %v3091, %v2520
    %v3157 = vsel %vm3144, %v3092, %v2522
    %v3158 = vsel %vm3144, %v3093, %v2524
    %v3159 = vsel %vm3144, %v3094, %v2526
    %v3160 = vsel %vm3144, %v3095, %v2528
    %v3161 = vsel %vm3144, %v3096, %v2530
    %v3162 = vsel %vm3144, %v3097, %v2532
    %v3163 = vsel %vm3144, %v3098, %v2534
    %v3164 = vsel %vm3144, %v3099, %v2536
    %v3165 = vsel %vm3144, %v3100, %v2538
    %v3166 = vsel %vm3144, %v3101, %v2540
    %v3167 = vsel %vm3144, %v3102, %v2542
    %v3168 = vsel %vm3144, %v3103, %v2544
    %v3169 = vsel %vm3144, %v3104, %v2546
    %v3170 = vsel %vm3144, %v3105, %v2548
    %v3171 = vsel %vm3144, %v3106, %v2550
    %v3172 = vsel %vm3144, %v3107, %v2552
    %v3173 = vsel %vm3144, %v3108, %v2554
    %v3174 = vsel %vm3144, %v3109, %v2556
    %v3175 = vsel %vm3144, %v3110, %v2558
    %v3176 = vsel %vm3144, %v3111, %v2560
    %v3177 = vsel %vm3144, %v3112, %v2562
    %v3178 = vsel %vm3144, %v3113, %v2564
    %v3179 = vsel %vm3144, %v3114, %v2566
    %v3180 = vsel %vm3144, %v3115, %v2568
    %v3181 = vsel %vm3144, %v3116, %v2570
    %v3182 = vsel %vm3144, %v3117, %v2572
    %v3183 = vsel %vm3144, %v3118, %v2574
    %v3184 = vsel %vm3144, %v3119, %v2576
    %v3185 = vsel %vm3144, %v3120, %v2578
    %v3186 = vsel %vm3144, %v3121, %v2580
    %v3187 = vsel %vm3144, %v3122, %v2582
    %v3188 = vsel %vm3144, %v3123, %v2584
    %v3189 = vsel %vm3144, %v3124, %v2586
    %v3190 = vsel %vm3144, %v3125, %v2588
    %v3191 = vsel %vm3144, %v3126, %v2590
    %v3192 = vsel %vm3144, %v3127, %v2592
    %v3193 = vsel %vm3144, %v3128, %v2594
    %v3194 = vsel %vm3144, %v3129, %v2596
    %v3195 = vsel %vm3144, %v3130, %v2598
    %v3196 = vsel %vm3144, %v3131, %v2600
    %v3197 = vsel %vm3144, %v3132, %v2602
    %v3198 = vsel %vm3144, %v3133, %v2604
    %v3199 = vsel %vm3144, %v3134, %v2606
    %v3200 = vsel %vm3144, %v3135, %v2608
    %v3201 = vsel %vm3144, %v3136, %v2610
    %v3202 = vsel %vm3144, %v3137, %v2612
    %v3203 = vsel %vm3144, %v3138, %v2614
    %v3204 = vsel %vm3144, %v3139, %v2616
    %v3205 = vsel %vm3144, %v3140, %v2618
    %v3206 = vsel %vm3144, %v3141, %v2620
    %v3207 = vsel %vm3144, %v3142, %v2622
    %v3208 = vsel %vm3144, %v3143, %v2624
    %v3209 = vld [vmem:[%s1] sm:$0xff]
    %v3210 = vld [vmem:[%s1 + $0x8] sm:$0x1]
    %v3211 = vld [vmem:[%s7] sm:$0x1]
    %v3213 = vperm.slane %v3211, 0
    %vm3215 = vcmask 72704
    %v3217 = vsel %vm3215, %v3145, 0
    %v3220 = vsel %vm3215, %v3146, 0
    %v3223 = vsel %vm3215, %v3147, 0
    %v3226 = vsel %vm3215, %v3148, 0
    %v3229 = vsel %vm3215, %v3149, 0
    %v3232 = vsel %vm3215, %v3150, 0
    %v3235 = vsel %vm3215, %v3151, 0
    %v3238 = vsel %vm3215, %v3152, 0
    %v3241 = vsel %vm3215, %v3153, 0
    %v3244 = vsel %vm3215, %v3154, 0
    %v3247 = vsel %vm3215, %v3155, 0
    %v3250 = vsel %vm3215, %v3156, 0
    %v3253 = vsel %vm3215, %v3157, 0
    %v3256 = vsel %vm3215, %v3158, 0
    %v3259 = vsel %vm3215, %v3159, 0
    %v3262 = vsel %vm3215, %v3160, 0
    %v3265 = vsel %vm3215, %v3161, 0
    %v3268 = vsel %vm3215, %v3162, 0
    %v3271 = vsel %vm3215, %v3163, 0
    %v3274 = vsel %vm3215, %v3164, 0
    %v3277 = vsel %vm3215, %v3165, 0
    %v3280 = vsel %vm3215, %v3166, 0
    %v3283 = vsel %vm3215, %v3167, 0
    %v3286 = vsel %vm3215, %v3168, 0
    %v3289 = vsel %vm3215, %v3169, 0
    %v3292 = vsel %vm3215, %v3170, 0
    %v3295 = vsel %vm3215, %v3171, 0
    %v3298 = vsel %vm3215, %v3172, 0
    %v3301 = vsel %vm3215, %v3173, 0
    %v3304 = vsel %vm3215, %v3174, 0
    %v3307 = vsel %vm3215, %v3175, 0
    %v3310 = vsel %vm3215, %v3176, 0
    %v3313 = vsel %vm3215, %v3177, 0
    %v3316 = vsel %vm3215, %v3178, 0
    %v3319 = vsel %vm3215, %v3179, 0
    %v3322 = vsel %vm3215, %v3180, 0
    %v3325 = vsel %vm3215, %v3181, 0
    %v3328 = vsel %vm3215, %v3182, 0
    %v3331 = vsel %vm3215, %v3183, 0
    %v3334 = vsel %vm3215, %v3184, 0
    %v3337 = vsel %vm3215, %v3185, 0
    %v3340 = vsel %vm3215, %v3186, 0
    %v3343 = vsel %vm3215, %v3187, 0
    %v3346 = vsel %vm3215, %v3188, 0
    %v3349 = vsel %vm3215, %v3189, 0
    %v3352 = vsel %vm3215, %v3190, 0
    %v3355 = vsel %vm3215, %v3191, 0
    %v3358 = vsel %vm3215, %v3192, 0
    %v3361 = vsel %vm3215, %v3193, 0
    %v3364 = vsel %vm3215, %v3194, 0
    %v3367 = vsel %vm3215, %v3195, 0
    %v3370 = vsel %vm3215, %v3196, 0
    %v3373 = vsel %vm3215, %v3197, 0
    %v3376 = vsel %vm3215, %v3198, 0
    %v3379 = vsel %vm3215, %v3199, 0
    %v3382 = vsel %vm3215, %v3200, 0
    %v3385 = vsel %vm3215, %v3201, 0
    %v3388 = vsel %vm3215, %v3202, 0
    %v3391 = vsel %vm3215, %v3203, 0
    %v3394 = vsel %vm3215, %v3204, 0
    %v3397 = vsel %vm3215, %v3205, 0
    %v3400 = vsel %vm3215, %v3206, 0
    %v3403 = vsel %vm3215, %v3207, 0
    %v3406 = vsel %vm3215, %v3208, 0
    %vm3408 = vcmask 1040384
    %v3410 = vsel %vm3408, %v3210, 0
    %3412 = vmatpush.msra.mxu0 0.0
    %3413 = vmatpush.msra.mxu0 0.0
    %3414 = vmatpush.msra.mxu0 0.0
    %3415 = vmatpush.msra.mxu0 0.0
    %3416 = vmatpush.msra.mxu0 0.0
    %3417 = vmatpush.msra.mxu0 0.0
    %3418 = vmatpush.msra.mxu0 0.0
    %3419 = vmatpush.msra.mxu0 0.0
    %3420 = vmatpush.msra.mxu0 0.0
    %3421 = vmatpush.msra.mxu0 0.0
    %3422 = vmatpush.msra.mxu0 0.0
    %3423 = vmatpush.msra.mxu0 0.0
    %3424 = vmatpush.msra.mxu0 0.0
    %3425 = vmatpush.msra.mxu0 0.0
    %3426 = vmatpush.msra.mxu0 %v3410
    %3427 = vmatpush.msra.mxu0 %v3209
    %3428 = vmatmul.f32.gmra.mxu0 %v3217
    %v3429 = vpop.f32.mrf.mxu0
    %v3430 = vadd.f32 %v3213, %v3429
    %3431 = vmatmul.f32.gmra.mxu0 %v3220
    %v3432 = vpop.f32.mrf.mxu0
    %v3433 = vadd.f32 %v3213, %v3432
    %3434 = vmatmul.f32.gmra.mxu0 %v3223
    %v3435 = vpop.f32.mrf.mxu0
    %v3436 = vadd.f32 %v3213, %v3435
    %3437 = vmatmul.f32.gmra.mxu0 %v3226
    %v3438 = vpop.f32.mrf.mxu0
    %v3439 = vadd.f32 %v3213, %v3438
    %3440 = vmatmul.f32.gmra.mxu0 %v3229
    %v3441 = vpop.f32.mrf.mxu0
    %v3442 = vadd.f32 %v3213, %v3441
    %3443 = vmatmul.f32.gmra.mxu0 %v3232
    %v3444 = vpop.f32.mrf.mxu0
    %v3445 = vadd.f32 %v3213, %v3444
    %3446 = vmatmul.f32.gmra.mxu0 %v3235
    %v3447 = vpop.f32.mrf.mxu0
    %v3448 = vadd.f32 %v3213, %v3447
    %3449 = vmatmul.f32.gmra.mxu0 %v3238
    %v3450 = vpop.f32.mrf.mxu0
    %v3451 = vadd.f32 %v3213, %v3450
    %3452 = vmatmul.f32.gmra.mxu0 %v3241
    %v3453 = vpop.f32.mrf.mxu0
    %v3454 = vadd.f32 %v3213, %v3453
    %3455 = vmatmul.f32.gmra.mxu0 %v3244
    %v3456 = vpop.f32.mrf.mxu0
    %v3457 = vadd.f32 %v3213, %v3456
    %3458 = vmatmul.f32.gmra.mxu0 %v3247
    %v3459 = vpop.f32.mrf.mxu0
    %v3460 = vadd.f32 %v3213, %v3459
    %3461 = vmatmul.f32.gmra.mxu0 %v3250
    %v3462 = vpop.f32.mrf.mxu0
    %v3463 = vadd.f32 %v3213, %v3462
    %3464 = vmatmul.f32.gmra.mxu0 %v3253
    %v3465 = vpop.f32.mrf.mxu0
    %v3466 = vadd.f32 %v3213, %v3465
    %3467 = vmatmul.f32.gmra.mxu0 %v3256
    %v3468 = vpop.f32.mrf.mxu0
    %v3469 = vadd.f32 %v3213, %v3468
    %3470 = vmatmul.f32.gmra.mxu0 %v3259
    %v3471 = vpop.f32.mrf.mxu0
    %v3472 = vadd.f32 %v3213, %v3471
    %3473 = vmatmul.f32.gmra.mxu0 %v3262
    %v3474 = vpop.f32.mrf.mxu0
    %v3475 = vadd.f32 %v3213, %v3474
    %3476 = vmatmul.f32.gmra.mxu0 %v3265
    %v3477 = vpop.f32.mrf.mxu0
    %v3478 = vadd.f32 %v3213, %v3477
    %3479 = vmatmul.f32.gmra.mxu0 %v3268
    %v3480 = vpop.f32.mrf.mxu0
    %v3481 = vadd.f32 %v3213, %v3480
    %3482 = vmatmul.f32.gmra.mxu0 %v3271
    %v3483 = vpop.f32.mrf.mxu0
    %v3484 = vadd.f32 %v3213, %v3483
    %3485 = vmatmul.f32.gmra.mxu0 %v3274
    %v3486 = vpop.f32.mrf.mxu0
    %v3487 = vadd.f32 %v3213, %v3486
    %3488 = vmatmul.f32.gmra.mxu0 %v3277
    %v3489 = vpop.f32.mrf.mxu0
    %v3490 = vadd.f32 %v3213, %v3489
    %3491 = vmatmul.f32.gmra.mxu0 %v3280
    %v3492 = vpop.f32.mrf.mxu0
    %v3493 = vadd.f32 %v3213, %v3492
    %3494 = vmatmul.f32.gmra.mxu0 %v3283
    %v3495 = vpop.f32.mrf.mxu0
    %v3496 = vadd.f32 %v3213, %v3495
    %3497 = vmatmul.f32.gmra.mxu0 %v3286
    %v3498 = vpop.f32.mrf.mxu0
    %v3499 = vadd.f32 %v3213, %v3498
    %3500 = vmatmul.f32.gmra.mxu0 %v3289
    %v3501 = vpop.f32.mrf.mxu0
    %v3502 = vadd.f32 %v3213, %v3501
    %3503 = vmatmul.f32.gmra.mxu0 %v3292
    %v3504 = vpop.f32.mrf.mxu0
    %v3505 = vadd.f32 %v3213, %v3504
    %3506 = vmatmul.f32.gmra.mxu0 %v3295
    %v3507 = vpop.f32.mrf.mxu0
    %v3508 = vadd.f32 %v3213, %v3507
    %3509 = vmatmul.f32.gmra.mxu0 %v3298
    %v3510 = vpop.f32.mrf.mxu0
    %v3511 = vadd.f32 %v3213, %v3510
    %3512 = vmatmul.f32.gmra.mxu0 %v3301
    %v3513 = vpop.f32.mrf.mxu0
    %v3514 = vadd.f32 %v3213, %v3513
    %3515 = vmatmul.f32.gmra.mxu0 %v3304
    %v3516 = vpop.f32.mrf.mxu0
    %v3517 = vadd.f32 %v3213, %v3516
    %3518 = vmatmul.f32.gmra.mxu0 %v3307
    %v3519 = vpop.f32.mrf.mxu0
    %v3520 = vadd.f32 %v3213, %v3519
    %3521 = vmatmul.f32.gmra.mxu0 %v3310
    %v3522 = vpop.f32.mrf.mxu0
    %v3523 = vadd.f32 %v3213, %v3522
    %3524 = vmatmul.f32.gmra.mxu0 %v3313
    %v3525 = vpop.f32.mrf.mxu0
    %v3526 = vadd.f32 %v3213, %v3525
    %3527 = vmatmul.f32.gmra.mxu0 %v3316
    %v3528 = vpop.f32.mrf.mxu0
    %v3529 = vadd.f32 %v3213, %v3528
    %3530 = vmatmul.f32.gmra.mxu0 %v3319
    %v3531 = vpop.f32.mrf.mxu0
    %v3532 = vadd.f32 %v3213, %v3531
    %3533 = vmatmul.f32.gmra.mxu0 %v3322
    %v3534 = vpop.f32.mrf.mxu0
    %v3535 = vadd.f32 %v3213, %v3534
    %3536 = vmatmul.f32.gmra.mxu0 %v3325
    %v3537 = vpop.f32.mrf.mxu0
    %v3538 = vadd.f32 %v3213, %v3537
    %3539 = vmatmul.f32.gmra.mxu0 %v3328
    %v3540 = vpop.f32.mrf.mxu0
    %v3541 = vadd.f32 %v3213, %v3540
    %3542 = vmatmul.f32.gmra.mxu0 %v3331
    %v3543 = vpop.f32.mrf.mxu0
    %v3544 = vadd.f32 %v3213, %v3543
    %3545 = vmatmul.f32.gmra.mxu0 %v3334
    %v3546 = vpop.f32.mrf.mxu0
    %v3547 = vadd.f32 %v3213, %v3546
    %3548 = vmatmul.f32.gmra.mxu0 %v3337
    %v3549 = vpop.f32.mrf.mxu0
    %v3550 = vadd.f32 %v3213, %v3549
    %3551 = vmatmul.f32.gmra.mxu0 %v3340
    %v3552 = vpop.f32.mrf.mxu0
    %v3553 = vadd.f32 %v3213, %v3552
    %3554 = vmatmul.f32.gmra.mxu0 %v3343
    %v3555 = vpop.f32.mrf.mxu0
    %v3556 = vadd.f32 %v3213, %v3555
    %3557 = vmatmul.f32.gmra.mxu0 %v3346
    %v3558 = vpop.f32.mrf.mxu0
    %v3559 = vadd.f32 %v3213, %v3558
    %3560 = vmatmul.f32.gmra.mxu0 %v3349
    %v3561 = vpop.f32.mrf.mxu0
    %v3562 = vadd.f32 %v3213, %v3561
    %3563 = vmatmul.f32.gmra.mxu0 %v3352
    %v3564 = vpop.f32.mrf.mxu0
    %v3565 = vadd.f32 %v3213, %v3564
    %3566 = vmatmul.f32.gmra.mxu0 %v3355
    %v3567 = vpop.f32.mrf.mxu0
    %v3568 = vadd.f32 %v3213, %v3567
    %3569 = vmatmul.f32.gmra.mxu0 %v3358
    %v3570 = vpop.f32.mrf.mxu0
    %v3571 = vadd.f32 %v3213, %v3570
    %3572 = vmatmul.f32.gmra.mxu0 %v3361
    %v3573 = vpop.f32.mrf.mxu0
    %v3574 = vadd.f32 %v3213, %v3573
    %3575 = vmatmul.f32.gmra.mxu0 %v3364
    %v3576 = vpop.f32.mrf.mxu0
    %v3577 = vadd.f32 %v3213, %v3576
    %3578 = vmatmul.f32.gmra.mxu0 %v3367
    %v3579 = vpop.f32.mrf.mxu0
    %v3580 = vadd.f32 %v3213, %v3579
    %3581 = vmatmul.f32.gmra.mxu0 %v3370
    %v3582 = vpop.f32.mrf.mxu0
    %v3583 = vadd.f32 %v3213, %v3582
    %3584 = vmatmul.f32.gmra.mxu0 %v3373
    %v3585 = vpop.f32.mrf.mxu0
    %v3586 = vadd.f32 %v3213, %v3585
    %3587 = vmatmul.f32.gmra.mxu0 %v3376
    %v3588 = vpop.f32.mrf.mxu0
    %v3589 = vadd.f32 %v3213, %v3588
    %3590 = vmatmul.f32.gmra.mxu0 %v3379
    %v3591 = vpop.f32.mrf.mxu0
    %v3592 = vadd.f32 %v3213, %v3591
    %3593 = vmatmul.f32.gmra.mxu0 %v3382
    %v3594 = vpop.f32.mrf.mxu0
    %v3595 = vadd.f32 %v3213, %v3594
    %3596 = vmatmul.f32.gmra.mxu0 %v3385
    %v3597 = vpop.f32.mrf.mxu0
    %v3598 = vadd.f32 %v3213, %v3597
    %3599 = vmatmul.f32.gmra.mxu0 %v3388
    %v3600 = vpop.f32.mrf.mxu0
    %v3601 = vadd.f32 %v3213, %v3600
    %3602 = vmatmul.f32.gmra.mxu0 %v3391
    %v3603 = vpop.f32.mrf.mxu0
    %v3604 = vadd.f32 %v3213, %v3603
    %3605 = vmatmul.f32.gmra.mxu0 %v3394
    %v3606 = vpop.f32.mrf.mxu0
    %v3607 = vadd.f32 %v3213, %v3606
    %3608 = vmatmul.f32.gmra.mxu0 %v3397
    %v3609 = vpop.f32.mrf.mxu0
    %v3610 = vadd.f32 %v3213, %v3609
    %3611 = vmatmul.f32.gmra.mxu0 %v3400
    %v3612 = vpop.f32.mrf.mxu0
    %v3613 = vadd.f32 %v3213, %v3612
    %3614 = vmatmul.f32.gmra.mxu0 %v3403
    %v3615 = vpop.f32.mrf.mxu0
    %v3616 = vadd.f32 %v3213, %v3615
    %3617 = vmatmul.f32.gmra.mxu0 %v3406
    %v3618 = vpop.f32.mrf.mxu0
    %v3619 = vadd.f32 %v3213, %v3618
    %3620 = vdwg.mxu0
    %vm3621 = vcmp.gt.f32.partialorder %v3430, 0.0
    %vm3622 = vcmp.gt.f32.partialorder %v3433, 0.0
    %vm3623 = vcmp.gt.f32.partialorder %v3436, 0.0
    %vm3624 = vcmp.gt.f32.partialorder %v3439, 0.0
    %vm3625 = vcmp.gt.f32.partialorder %v3442, 0.0
    %vm3626 = vcmp.gt.f32.partialorder %v3445, 0.0
    %vm3627 = vcmp.gt.f32.partialorder %v3448, 0.0
    %vm3628 = vcmp.gt.f32.partialorder %v3451, 0.0
    %vm3629 = vcmp.gt.f32.partialorder %v3454, 0.0
    %vm3630 = vcmp.gt.f32.partialorder %v3457, 0.0
    %vm3631 = vcmp.gt.f32.partialorder %v3460, 0.0
    %vm3632 = vcmp.gt.f32.partialorder %v3463, 0.0
    %vm3633 = vcmp.gt.f32.partialorder %v3466, 0.0
    %vm3634 = vcmp.gt.f32.partialorder %v3469, 0.0
    %vm3635 = vcmp.gt.f32.partialorder %v3472, 0.0
    %vm3636 = vcmp.gt.f32.partialorder %v3475, 0.0
    %vm3637 = vcmp.gt.f32.partialorder %v3478, 0.0
    %vm3638 = vcmp.gt.f32.partialorder %v3481, 0.0
    %vm3639 = vcmp.gt.f32.partialorder %v3484, 0.0
    %vm3640 = vcmp.gt.f32.partialorder %v3487, 0.0
    %vm3641 = vcmp.gt.f32.partialorder %v3490, 0.0
    %vm3642 = vcmp.gt.f32.partialorder %v3493, 0.0
    %vm3643 = vcmp.gt.f32.partialorder %v3496, 0.0
    %vm3644 = vcmp.gt.f32.partialorder %v3499, 0.0
    %vm3645 = vcmp.gt.f32.partialorder %v3502, 0.0
    %vm3646 = vcmp.gt.f32.partialorder %v3505, 0.0
    %vm3647 = vcmp.gt.f32.partialorder %v3508, 0.0
    %vm3648 = vcmp.gt.f32.partialorder %v3511, 0.0
    %vm3649 = vcmp.gt.f32.partialorder %v3514, 0.0
    %vm3650 = vcmp.gt.f32.partialorder %v3517, 0.0
    %vm3651 = vcmp.gt.f32.partialorder %v3520, 0.0
    %vm3652 = vcmp.gt.f32.partialorder %v3523, 0.0
    %vm3653 = vcmp.gt.f32.partialorder %v3526, 0.0
    %vm3654 = vcmp.gt.f32.partialorder %v3529, 0.0
    %vm3655 = vcmp.gt.f32.partialorder %v3532, 0.0
    %vm3656 = vcmp.gt.f32.partialorder %v3535, 0.0
    %vm3657 = vcmp.gt.f32.partialorder %v3538, 0.0
    %vm3658 = vcmp.gt.f32.partialorder %v3541, 0.0
    %vm3659 = vcmp.gt.f32.partialorder %v3544, 0.0
    %vm3660 = vcmp.gt.f32.partialorder %v3547, 0.0
    %vm3661 = vcmp.gt.f32.partialorder %v3550, 0.0
    %vm3662 = vcmp.gt.f32.partialorder %v3553, 0.0
    %vm3663 = vcmp.gt.f32.partialorder %v3556, 0.0
    %vm3664 = vcmp.gt.f32.partialorder %v3559, 0.0
    %vm3665 = vcmp.gt.f32.partialorder %v3562, 0.0
    %vm3666 = vcmp.gt.f32.partialorder %v3565, 0.0
    %vm3667 = vcmp.gt.f32.partialorder %v3568, 0.0
    %vm3668 = vcmp.gt.f32.partialorder %v3571, 0.0
    %vm3669 = vcmp.gt.f32.partialorder %v3574, 0.0
    %vm3670 = vcmp.gt.f32.partialorder %v3577, 0.0
    %vm3671 = vcmp.gt.f32.partialorder %v3580, 0.0
    %vm3672 = vcmp.gt.f32.partialorder %v3583, 0.0
    %vm3673 = vcmp.gt.f32.partialorder %v3586, 0.0
    %vm3674 = vcmp.gt.f32.partialorder %v3589, 0.0
    %vm3675 = vcmp.gt.f32.partialorder %v3592, 0.0
    %vm3676 = vcmp.gt.f32.partialorder %v3595, 0.0
    %vm3677 = vcmp.gt.f32.partialorder %v3598, 0.0
    %vm3678 = vcmp.gt.f32.partialorder %v3601, 0.0
    %vm3679 = vcmp.gt.f32.partialorder %v3604, 0.0
    %vm3680 = vcmp.gt.f32.partialorder %v3607, 0.0
    %vm3681 = vcmp.gt.f32.partialorder %v3610, 0.0
    %vm3682 = vcmp.gt.f32.partialorder %v3613, 0.0
    %vm3683 = vcmp.gt.f32.partialorder %v3616, 0.0
    %vm3684 = vcmp.gt.f32.partialorder %v3619, 0.0
    %v3685 = vmul.f32 %v3430, 0.01
    %v3686 = vmul.f32 %v3433, 0.01
    %v3687 = vmul.f32 %v3436, 0.01
    %v3688 = vmul.f32 %v3439, 0.01
    %v3689 = vmul.f32 %v3442, 0.01
    %v3690 = vmul.f32 %v3445, 0.01
    %v3691 = vmul.f32 %v3448, 0.01
    %v3692 = vmul.f32 %v3451, 0.01
    %v3693 = vmul.f32 %v3454, 0.01
    %v3694 = vmul.f32 %v3457, 0.01
    %v3695 = vmul.f32 %v3460, 0.01
    %v3696 = vmul.f32 %v3463, 0.01
    %v3697 = vmul.f32 %v3466, 0.01
    %v3698 = vmul.f32 %v3469, 0.01
    %v3699 = vmul.f32 %v3472, 0.01
    %v3700 = vmul.f32 %v3475, 0.01
    %v3701 = vmul.f32 %v3478, 0.01
    %v3702 = vmul.f32 %v3481, 0.01
    %v3703 = vmul.f32 %v3484, 0.01
    %v3704 = vmul.f32 %v3487, 0.01
    %v3705 = vmul.f32 %v3490, 0.01
    %v3706 = vmul.f32 %v3493, 0.01
    %v3707 = vmul.f32 %v3496, 0.01
    %v3708 = vmul.f32 %v3499, 0.01
    %v3709 = vmul.f32 %v3502, 0.01
    %v3710 = vmul.f32 %v3505, 0.01
    %v3711 = vmul.f32 %v3508, 0.01
    %v3712 = vmul.f32 %v3511, 0.01
    %v3713 = vmul.f32 %v3514, 0.01
    %v3714 = vmul.f32 %v3517, 0.01
    %v3715 = vmul.f32 %v3520, 0.01
    %v3716 = vmul.f32 %v3523, 0.01
    %v3717 = vmul.f32 %v3526, 0.01
    %v3718 = vmul.f32 %v3529, 0.01
    %v3719 = vmul.f32 %v3532, 0.01
    %v3720 = vmul.f32 %v3535, 0.01
    %v3721 = vmul.f32 %v3538, 0.01
    %v3722 = vmul.f32 %v3541, 0.01
    %v3723 = vmul.f32 %v3544, 0.01
    %v3724 = vmul.f32 %v3547, 0.01
    %v3725 = vmul.f32 %v3550, 0.01
    %v3726 = vmul.f32 %v3553, 0.01
    %v3727 = vmul.f32 %v3556, 0.01
    %v3728 = vmul.f32 %v3559, 0.01
    %v3729 = vmul.f32 %v3562, 0.01
    %v3730 = vmul.f32 %v3565, 0.01
    %v3731 = vmul.f32 %v3568, 0.01
    %v3732 = vmul.f32 %v3571, 0.01
    %v3733 = vmul.f32 %v3574, 0.01
    %v3734 = vmul.f32 %v3577, 0.01
    %v3735 = vmul.f32 %v3580, 0.01
    %v3736 = vmul.f32 %v3583, 0.01
    %v3737 = vmul.f32 %v3586, 0.01
    %v3738 = vmul.f32 %v3589, 0.01
    %v3739 = vmul.f32 %v3592, 0.01
    %v3740 = vmul.f32 %v3595, 0.01
    %v3741 = vmul.f32 %v3598, 0.01
    %v3742 = vmul.f32 %v3601, 0.01
    %v3743 = vmul.f32 %v3604, 0.01
    %v3744 = vmul.f32 %v3607, 0.01
    %v3745 = vmul.f32 %v3610, 0.01
    %v3746 = vmul.f32 %v3613, 0.01
    %v3747 = vmul.f32 %v3616, 0.01
    %v3748 = vmul.f32 %v3619, 0.01
    %v3749 = vsel %vm3621, %v3430, %v3685
    %v3750 = vsel %vm3622, %v3433, %v3686
    %v3751 = vsel %vm3623, %v3436, %v3687
    %v3752 = vsel %vm3624, %v3439, %v3688
    %v3753 = vsel %vm3625, %v3442, %v3689
    %v3754 = vsel %vm3626, %v3445, %v3690
    %v3755 = vsel %vm3627, %v3448, %v3691
    %v3756 = vsel %vm3628, %v3451, %v3692
    %v3757 = vsel %vm3629, %v3454, %v3693
    %v3758 = vsel %vm3630, %v3457, %v3694
    %v3759 = vsel %vm3631, %v3460, %v3695
    %v3760 = vsel %vm3632, %v3463, %v3696
    %v3761 = vsel %vm3633, %v3466, %v3697
    %v3762 = vsel %vm3634, %v3469, %v3698
    %v3763 = vsel %vm3635, %v3472, %v3699
    %v3764 = vsel %vm3636, %v3475, %v3700
    %v3765 = vsel %vm3637, %v3478, %v3701
    %v3766 = vsel %vm3638, %v3481, %v3702
    %v3767 = vsel %vm3639, %v3484, %v3703
    %v3768 = vsel %vm3640, %v3487, %v3704
    %v3769 = vsel %vm3641, %v3490, %v3705
    %v3770 = vsel %vm3642, %v3493, %v3706
    %v3771 = vsel %vm3643, %v3496, %v3707
    %v3772 = vsel %vm3644, %v3499, %v3708
    %v3773 = vsel %vm3645, %v3502, %v3709
    %v3774 = vsel %vm3646, %v3505, %v3710
    %v3775 = vsel %vm3647, %v3508, %v3711
    %v3776 = vsel %vm3648, %v3511, %v3712
    %v3777 = vsel %vm3649, %v3514, %v3713
    %v3778 = vsel %vm3650, %v3517, %v3714
    %v3779 = vsel %vm3651, %v3520, %v3715
    %v3780 = vsel %vm3652, %v3523, %v3716
    %v3781 = vsel %vm3653, %v3526, %v3717
    %v3782 = vsel %vm3654, %v3529, %v3718
    %v3783 = vsel %vm3655, %v3532, %v3719
    %v3784 = vsel %vm3656, %v3535, %v3720
    %v3785 = vsel %vm3657, %v3538, %v3721
    %v3786 = vsel %vm3658, %v3541, %v3722
    %v3787 = vsel %vm3659, %v3544, %v3723
    %v3788 = vsel %vm3660, %v3547, %v3724
    %v3789 = vsel %vm3661, %v3550, %v3725
    %v3790 = vsel %vm3662, %v3553, %v3726
    %v3791 = vsel %vm3663, %v3556, %v3727
    %v3792 = vsel %vm3664, %v3559, %v3728
    %v3793 = vsel %vm3665, %v3562, %v3729
    %v3794 = vsel %vm3666, %v3565, %v3730
    %v3795 = vsel %vm3667, %v3568, %v3731
    %v3796 = vsel %vm3668, %v3571, %v3732
    %v3797 = vsel %vm3669, %v3574, %v3733
    %v3798 = vsel %vm3670, %v3577, %v3734
    %v3799 = vsel %vm3671, %v3580, %v3735
    %v3800 = vsel %vm3672, %v3583, %v3736
    %v3801 = vsel %vm3673, %v3586, %v3737
    %v3802 = vsel %vm3674, %v3589, %v3738
    %v3803 = vsel %vm3675, %v3592, %v3739
    %v3804 = vsel %vm3676, %v3595, %v3740
    %v3805 = vsel %vm3677, %v3598, %v3741
    %v3806 = vsel %vm3678, %v3601, %v3742
    %v3807 = vsel %vm3679, %v3604, %v3743
    %v3808 = vsel %vm3680, %v3607, %v3744
    %v3809 = vsel %vm3681, %v3610, %v3745
    %v3810 = vsel %vm3682, %v3613, %v3746
    %v3811 = vsel %vm3683, %v3616, %v3747
    %v3812 = vsel %vm3684, %v3619, %v3748
    %v3813 = vmax.f32 %v3749, %v3751
    %v3814 = vmax.f32 %v3750, %v3752
    %v3815 = vmax.f32 %v3753, %v3755
    %v3816 = vmax.f32 %v3754, %v3756
    %v3817 = vmax.f32 %v3757, %v3759
    %v3818 = vmax.f32 %v3758, %v3760
    %v3819 = vmax.f32 %v3761, %v3763
    %v3820 = vmax.f32 %v3762, %v3764
    %v3821 = vmax.f32 %v3765, %v3767
    %v3822 = vmax.f32 %v3766, %v3768
    %v3823 = vmax.f32 %v3769, %v3771
    %v3824 = vmax.f32 %v3770, %v3772
    %v3825 = vmax.f32 %v3773, %v3775
    %v3826 = vmax.f32 %v3774, %v3776
    %v3827 = vmax.f32 %v3777, %v3779
    %v3828 = vmax.f32 %v3778, %v3780
    %v3829 = vmax.f32 %v3781, %v3783
    %v3830 = vmax.f32 %v3782, %v3784
    %v3831 = vmax.f32 %v3785, %v3787
    %v3832 = vmax.f32 %v3786, %v3788
    %v3833 = vmax.f32 %v3789, %v3791
    %v3834 = vmax.f32 %v3790, %v3792
    %v3835 = vmax.f32 %v3793, %v3795
    %v3836 = vmax.f32 %v3794, %v3796
    %v3837 = vmax.f32 %v3797, %v3799
    %v3838 = vmax.f32 %v3798, %v3800
    %v3839 = vmax.f32 %v3801, %v3803
    %v3840 = vmax.f32 %v3802, %v3804
    %v3841 = vmax.f32 %v3805, %v3807
    %v3842 = vmax.f32 %v3806, %v3808
    %v3843 = vmax.f32 %v3809, %v3811
    %v3844 = vmax.f32 %v3810, %v3812
    %v3877 = vrot.slane %v3813, 2
    %v3878 = vrot.slane %v3813, 4
    %v3879 = vrot.slane %v3813, 6
    %v3880 = vrot.slane %v3814, 2
    %v3881 = vrot.slane %v3814, 4
    %v3882 = vrot.slane %v3814, 6
    %v3883 = vrot.slane %v3815, 2
    %v3884 = vrot.slane %v3815, 4
    %v3885 = vrot.slane %v3815, 6
    %v3886 = vrot.slane %v3816, 2
    %v3887 = vrot.slane %v3816, 4
    %v3888 = vrot.slane %v3816, 6
    %v3889 = vrot.slane %v3817, 2
    %v3890 = vrot.slane %v3817, 4
    %v3891 = vrot.slane %v3817, 6
    %v3892 = vrot.slane %v3818, 2
    %v3893 = vrot.slane %v3818, 4
    %v3894 = vrot.slane %v3818, 6
    %v3895 = vrot.slane %v3819, 2
    %v3896 = vrot.slane %v3819, 4
    %v3897 = vrot.slane %v3819, 6
    %v3898 = vrot.slane %v3820, 2
    %v3899 = vrot.slane %v3820, 4
    %v3900 = vrot.slane %v3820, 6
    %v3901 = vrot.slane %v3821, 2
    %v3902 = vrot.slane %v3821, 4
    %v3903 = vrot.slane %v3821, 6
    %v3904 = vrot.slane %v3822, 2
    %v3905 = vrot.slane %v3822, 4
    %v3906 = vrot.slane %v3822, 6
    %v3907 = vrot.slane %v3823, 2
    %v3908 = vrot.slane %v3823, 4
    %v3909 = vrot.slane %v3823, 6
    %v3910 = vrot.slane %v3824, 2
    %v3911 = vrot.slane %v3824, 4
    %v3912 = vrot.slane %v3824, 6
    %v3913 = vrot.slane %v3825, 2
    %v3914 = vrot.slane %v3825, 4
    %v3915 = vrot.slane %v3825, 6
    %v3916 = vrot.slane %v3826, 2
    %v3917 = vrot.slane %v3826, 4
    %v3918 = vrot.slane %v3826, 6
    %v3919 = vrot.slane %v3827, 2
    %v3920 = vrot.slane %v3827, 4
    %v3921 = vrot.slane %v3827, 6
    %v3922 = vrot.slane %v3828, 2
    %v3923 = vrot.slane %v3828, 4
    %v3924 = vrot.slane %v3828, 6
    %v3925 = vrot.slane %v3829, 2
    %v3926 = vrot.slane %v3829, 4
    %v3927 = vrot.slane %v3829, 6
    %v3928 = vrot.slane %v3830, 2
    %v3929 = vrot.slane %v3830, 4
    %v3930 = vrot.slane %v3830, 6
    %v3931 = vrot.slane %v3831, 2
    %v3932 = vrot.slane %v3831, 4
    %v3933 = vrot.slane %v3831, 6
    %v3934 = vrot.slane %v3832, 2
    %v3935 = vrot.slane %v3832, 4
    %v3936 = vrot.slane %v3832, 6
    %v3937 = vrot.slane %v3833, 2
    %v3938 = vrot.slane %v3833, 4
    %v3939 = vrot.slane %v3833, 6
    %v3940 = vrot.slane %v3834, 2
    %v3941 = vrot.slane %v3834, 4
    %v3942 = vrot.slane %v3834, 6
    %v3943 = vrot.slane %v3835, 2
    %v3944 = vrot.slane %v3835, 4
    %v3945 = vrot.slane %v3835, 6
    %v3946 = vrot.slane %v3836, 2
    %v3947 = vrot.slane %v3836, 4
    %v3948 = vrot.slane %v3836, 6
    %v3949 = vrot.slane %v3837, 2
    %v3950 = vrot.slane %v3837, 4
    %v3951 = vrot.slane %v3837, 6
    %v3952 = vrot.slane %v3838, 2
    %v3953 = vrot.slane %v3838, 4
    %v3954 = vrot.slane %v3838, 6
    %v3955 = vrot.slane %v3839, 2
    %v3956 = vrot.slane %v3839, 4
    %v3957 = vrot.slane %v3839, 6
    %v3958 = vrot.slane %v3840, 2
    %v3959 = vrot.slane %v3840, 4
    %v3960 = vrot.slane %v3840, 6
    %v3961 = vrot.slane %v3841, 2
    %v3962 = vrot.slane %v3841, 4
    %v3963 = vrot.slane %v3841, 6
    %v3964 = vrot.slane %v3842, 2
    %v3965 = vrot.slane %v3842, 4
    %v3966 = vrot.slane %v3842, 6
    %v3967 = vrot.slane %v3843, 2
    %v3968 = vrot.slane %v3843, 4
    %v3969 = vrot.slane %v3843, 6
    %v3970 = vrot.slane %v3844, 2
    %v3971 = vrot.slane %v3844, 4
    %v3972 = vrot.slane %v3844, 6
    %vm4069 = vcmask 9216
    %v4070 = vsel %vm4069, %v3813, -inf
    %v4071 = vrot.slane %v4070, 4
    %v4072 = vmax.f32 %v4070, %v4071
    %v4073 = vrot.slane %v4072, 2
    %v4074 = vmax.f32 %v4072, %v4073
    %v4075 = vrot.slane %v4074, 1
    %v4076 = vmax.f32 %v4074, %v4075
    %v4077 = vsel %vm4069, %v3877, -inf
    %v4078 = vrot.slane %v4077, 4
    %v4079 = vmax.f32 %v4077, %v4078
    %v4080 = vrot.slane %v4079, 2
    %v4081 = vmax.f32 %v4079, %v4080
    %v4082 = vrot.slane %v4081, 1
    %v4083 = vmax.f32 %v4081, %v4082
    %v4084 = vsel %vm4069, %v3878, -inf
    %v4085 = vrot.slane %v4084, 4
    %v4086 = vmax.f32 %v4084, %v4085
    %v4087 = vrot.slane %v4086, 2
    %v4088 = vmax.f32 %v4086, %v4087
    %v4089 = vrot.slane %v4088, 1
    %v4090 = vmax.f32 %v4088, %v4089
    %v4091 = vsel %vm4069, %v3879, -inf
    %v4092 = vrot.slane %v4091, 4
    %v4093 = vmax.f32 %v4091, %v4092
    %v4094 = vrot.slane %v4093, 2
    %v4095 = vmax.f32 %v4093, %v4094
    %v4096 = vrot.slane %v4095, 1
    %v4097 = vmax.f32 %v4095, %v4096
    %v4098 = vsel %vm4069, %v3814, -inf
    %v4099 = vrot.slane %v4098, 4
    %v4100 = vmax.f32 %v4098, %v4099
    %v4101 = vrot.slane %v4100, 2
    %v4102 = vmax.f32 %v4100, %v4101
    %v4103 = vrot.slane %v4102, 1
    %v4104 = vmax.f32 %v4102, %v4103
    %v4105 = vsel %vm4069, %v3880, -inf
    %v4106 = vrot.slane %v4105, 4
    %v4107 = vmax.f32 %v4105, %v4106
    %v4108 = vrot.slane %v4107, 2
    %v4109 = vmax.f32 %v4107, %v4108
    %v4110 = vrot.slane %v4109, 1
    %v4111 = vmax.f32 %v4109, %v4110
    %v4112 = vsel %vm4069, %v3881, -inf
    %v4113 = vrot.slane %v4112, 4
    %v4114 = vmax.f32 %v4112, %v4113
    %v4115 = vrot.slane %v4114, 2
    %v4116 = vmax.f32 %v4114, %v4115
    %v4117 = vrot.slane %v4116, 1
    %v4118 = vmax.f32 %v4116, %v4117
    %v4119 = vsel %vm4069, %v3882, -inf
    %v4120 = vrot.slane %v4119, 4
    %v4121 = vmax.f32 %v4119, %v4120
    %v4122 = vrot.slane %v4121, 2
    %v4123 = vmax.f32 %v4121, %v4122
    %v4124 = vrot.slane %v4123, 1
    %v4125 = vmax.f32 %v4123, %v4124
    %v4126 = vsel %vm4069, %v3815, -inf
    %v4127 = vrot.slane %v4126, 4
    %v4128 = vmax.f32 %v4126, %v4127
    %v4129 = vrot.slane %v4128, 2
    %v4130 = vmax.f32 %v4128, %v4129
    %v4131 = vrot.slane %v4130, 1
    %v4132 = vmax.f32 %v4130, %v4131
    %v4133 = vsel %vm4069, %v3883, -inf
    %v4134 = vrot.slane %v4133, 4
    %v4135 = vmax.f32 %v4133, %v4134
    %v4136 = vrot.slane %v4135, 2
    %v4137 = vmax.f32 %v4135, %v4136
    %v4138 = vrot.slane %v4137, 1
    %v4139 = vmax.f32 %v4137, %v4138
    %v4140 = vsel %vm4069, %v3884, -inf
    %v4141 = vrot.slane %v4140, 4
    %v4142 = vmax.f32 %v4140, %v4141
    %v4143 = vrot.slane %v4142, 2
    %v4144 = vmax.f32 %v4142, %v4143
    %v4145 = vrot.slane %v4144, 1
    %v4146 = vmax.f32 %v4144, %v4145
    %v4147 = vsel %vm4069, %v3885, -inf
    %v4148 = vrot.slane %v4147, 4
    %v4149 = vmax.f32 %v4147, %v4148
    %v4150 = vrot.slane %v4149, 2
    %v4151 = vmax.f32 %v4149, %v4150
    %v4152 = vrot.slane %v4151, 1
    %v4153 = vmax.f32 %v4151, %v4152
    %v4154 = vsel %vm4069, %v3816, -inf
    %v4155 = vrot.slane %v4154, 4
    %v4156 = vmax.f32 %v4154, %v4155
    %v4157 = vrot.slane %v4156, 2
    %v4158 = vmax.f32 %v4156, %v4157
    %v4159 = vrot.slane %v4158, 1
    %v4160 = vmax.f32 %v4158, %v4159
    %v4161 = vsel %vm4069, %v3886, -inf
    %v4162 = vrot.slane %v4161, 4
    %v4163 = vmax.f32 %v4161, %v4162
    %v4164 = vrot.slane %v4163, 2
    %v4165 = vmax.f32 %v4163, %v4164
    %v4166 = vrot.slane %v4165, 1
    %v4167 = vmax.f32 %v4165, %v4166
    %v4168 = vsel %vm4069, %v3887, -inf
    %v4169 = vrot.slane %v4168, 4
    %v4170 = vmax.f32 %v4168, %v4169
    %v4171 = vrot.slane %v4170, 2
    %v4172 = vmax.f32 %v4170, %v4171
    %v4173 = vrot.slane %v4172, 1
    %v4174 = vmax.f32 %v4172, %v4173
    %v4175 = vsel %vm4069, %v3888, -inf
    %v4176 = vrot.slane %v4175, 4
    %v4177 = vmax.f32 %v4175, %v4176
    %v4178 = vrot.slane %v4177, 2
    %v4179 = vmax.f32 %v4177, %v4178
    %v4180 = vrot.slane %v4179, 1
    %v4181 = vmax.f32 %v4179, %v4180
    %v4182 = vsel %vm4069, %v3817, -inf
    %v4183 = vrot.slane %v4182, 4
    %v4184 = vmax.f32 %v4182, %v4183
    %v4185 = vrot.slane %v4184, 2
    %v4186 = vmax.f32 %v4184, %v4185
    %v4187 = vrot.slane %v4186, 1
    %v4188 = vmax.f32 %v4186, %v4187
    %v4189 = vsel %vm4069, %v3889, -inf
    %v4190 = vrot.slane %v4189, 4
    %v4191 = vmax.f32 %v4189, %v4190
    %v4192 = vrot.slane %v4191, 2
    %v4193 = vmax.f32 %v4191, %v4192
    %v4194 = vrot.slane %v4193, 1
    %v4195 = vmax.f32 %v4193, %v4194
    %v4196 = vsel %vm4069, %v3890, -inf
    %v4197 = vrot.slane %v4196, 4
    %v4198 = vmax.f32 %v4196, %v4197
    %v4199 = vrot.slane %v4198, 2
    %v4200 = vmax.f32 %v4198, %v4199
    %v4201 = vrot.slane %v4200, 1
    %v4202 = vmax.f32 %v4200, %v4201
    %v4203 = vsel %vm4069, %v3891, -inf
    %v4204 = vrot.slane %v4203, 4
    %v4205 = vmax.f32 %v4203, %v4204
    %v4206 = vrot.slane %v4205, 2
    %v4207 = vmax.f32 %v4205, %v4206
    %v4208 = vrot.slane %v4207, 1
    %v4209 = vmax.f32 %v4207, %v4208
    %v4210 = vsel %vm4069, %v3818, -inf
    %v4211 = vrot.slane %v4210, 4
    %v4212 = vmax.f32 %v4210, %v4211
    %v4213 = vrot.slane %v4212, 2
    %v4214 = vmax.f32 %v4212, %v4213
    %v4215 = vrot.slane %v4214, 1
    %v4216 = vmax.f32 %v4214, %v4215
    %v4217 = vsel %vm4069, %v3892, -inf
    %v4218 = vrot.slane %v4217, 4
    %v4219 = vmax.f32 %v4217, %v4218
    %v4220 = vrot.slane %v4219, 2
    %v4221 = vmax.f32 %v4219, %v4220
    %v4222 = vrot.slane %v4221, 1
    %v4223 = vmax.f32 %v4221, %v4222
    %v4224 = vsel %vm4069, %v3893, -inf
    %v4225 = vrot.slane %v4224, 4
    %v4226 = vmax.f32 %v4224, %v4225
    %v4227 = vrot.slane %v4226, 2
    %v4228 = vmax.f32 %v4226, %v4227
    %v4229 = vrot.slane %v4228, 1
    %v4230 = vmax.f32 %v4228, %v4229
    %v4231 = vsel %vm4069, %v3894, -inf
    %v4232 = vrot.slane %v4231, 4
    %v4233 = vmax.f32 %v4231, %v4232
    %v4234 = vrot.slane %v4233, 2
    %v4235 = vmax.f32 %v4233, %v4234
    %v4236 = vrot.slane %v4235, 1
    %v4237 = vmax.f32 %v4235, %v4236
    %v4238 = vsel %vm4069, %v3819, -inf
    %v4239 = vrot.slane %v4238, 4
    %v4240 = vmax.f32 %v4238, %v4239
    %v4241 = vrot.slane %v4240, 2
    %v4242 = vmax.f32 %v4240, %v4241
    %v4243 = vrot.slane %v4242, 1
    %v4244 = vmax.f32 %v4242, %v4243
    %v4245 = vsel %vm4069, %v3895, -inf
    %v4246 = vrot.slane %v4245, 4
    %v4247 = vmax.f32 %v4245, %v4246
    %v4248 = vrot.slane %v4247, 2
    %v4249 = vmax.f32 %v4247, %v4248
    %v4250 = vrot.slane %v4249, 1
    %v4251 = vmax.f32 %v4249, %v4250
    %v4252 = vsel %vm4069, %v3896, -inf
    %v4253 = vrot.slane %v4252, 4
    %v4254 = vmax.f32 %v4252, %v4253
    %v4255 = vrot.slane %v4254, 2
    %v4256 = vmax.f32 %v4254, %v4255
    %v4257 = vrot.slane %v4256, 1
    %v4258 = vmax.f32 %v4256, %v4257
    %v4259 = vsel %vm4069, %v3897, -inf
    %v4260 = vrot.slane %v4259, 4
    %v4261 = vmax.f32 %v4259, %v4260
    %v4262 = vrot.slane %v4261, 2
    %v4263 = vmax.f32 %v4261, %v4262
    %v4264 = vrot.slane %v4263, 1
    %v4265 = vmax.f32 %v4263, %v4264
    %v4266 = vsel %vm4069, %v3820, -inf
    %v4267 = vrot.slane %v4266, 4
    %v4268 = vmax.f32 %v4266, %v4267
    %v4269 = vrot.slane %v4268, 2
    %v4270 = vmax.f32 %v4268, %v4269
    %v4271 = vrot.slane %v4270, 1
    %v4272 = vmax.f32 %v4270, %v4271
    %v4273 = vsel %vm4069, %v3898, -inf
    %v4274 = vrot.slane %v4273, 4
    %v4275 = vmax.f32 %v4273, %v4274
    %v4276 = vrot.slane %v4275, 2
    %v4277 = vmax.f32 %v4275, %v4276
    %v4278 = vrot.slane %v4277, 1
    %v4279 = vmax.f32 %v4277, %v4278
    %v4280 = vsel %vm4069, %v3899, -inf
    %v4281 = vrot.slane %v4280, 4
    %v4282 = vmax.f32 %v4280, %v4281
    %v4283 = vrot.slane %v4282, 2
    %v4284 = vmax.f32 %v4282, %v4283
    %v4285 = vrot.slane %v4284, 1
    %v4286 = vmax.f32 %v4284, %v4285
    %v4287 = vsel %vm4069, %v3900, -inf
    %v4288 = vrot.slane %v4287, 4
    %v4289 = vmax.f32 %v4287, %v4288
    %v4290 = vrot.slane %v4289, 2
    %v4291 = vmax.f32 %v4289, %v4290
    %v4292 = vrot.slane %v4291, 1
    %v4293 = vmax.f32 %v4291, %v4292
    %v4294 = vsel %vm4069, %v3821, -inf
    %v4295 = vrot.slane %v4294, 4
    %v4296 = vmax.f32 %v4294, %v4295
    %v4297 = vrot.slane %v4296, 2
    %v4298 = vmax.f32 %v4296, %v4297
    %v4299 = vrot.slane %v4298, 1
    %v4300 = vmax.f32 %v4298, %v4299
    %v4301 = vsel %vm4069, %v3901, -inf
    %v4302 = vrot.slane %v4301, 4
    %v4303 = vmax.f32 %v4301, %v4302
    %v4304 = vrot.slane %v4303, 2
    %v4305 = vmax.f32 %v4303, %v4304
    %v4306 = vrot.slane %v4305, 1
    %v4307 = vmax.f32 %v4305, %v4306
    %v4308 = vsel %vm4069, %v3902, -inf
    %v4309 = vrot.slane %v4308, 4
    %v4310 = vmax.f32 %v4308, %v4309
    %v4311 = vrot.slane %v4310, 2
    %v4312 = vmax.f32 %v4310, %v4311
    %v4313 = vrot.slane %v4312, 1
    %v4314 = vmax.f32 %v4312, %v4313
    %v4315 = vsel %vm4069, %v3903, -inf
    %v4316 = vrot.slane %v4315, 4
    %v4317 = vmax.f32 %v4315, %v4316
    %v4318 = vrot.slane %v4317, 2
    %v4319 = vmax.f32 %v4317, %v4318
    %v4320 = vrot.slane %v4319, 1
    %v4321 = vmax.f32 %v4319, %v4320
    %v4322 = vsel %vm4069, %v3822, -inf
    %v4323 = vrot.slane %v4322, 4
    %v4324 = vmax.f32 %v4322, %v4323
    %v4325 = vrot.slane %v4324, 2
    %v4326 = vmax.f32 %v4324, %v4325
    %v4327 = vrot.slane %v4326, 1
    %v4328 = vmax.f32 %v4326, %v4327
    %v4329 = vsel %vm4069, %v3904, -inf
    %v4330 = vrot.slane %v4329, 4
    %v4331 = vmax.f32 %v4329, %v4330
    %v4332 = vrot.slane %v4331, 2
    %v4333 = vmax.f32 %v4331, %v4332
    %v4334 = vrot.slane %v4333, 1
    %v4335 = vmax.f32 %v4333, %v4334
    %v4336 = vsel %vm4069, %v3905, -inf
    %v4337 = vrot.slane %v4336, 4
    %v4338 = vmax.f32 %v4336, %v4337
    %v4339 = vrot.slane %v4338, 2
    %v4340 = vmax.f32 %v4338, %v4339
    %v4341 = vrot.slane %v4340, 1
    %v4342 = vmax.f32 %v4340, %v4341
    %v4343 = vsel %vm4069, %v3906, -inf
    %v4344 = vrot.slane %v4343, 4
    %v4345 = vmax.f32 %v4343, %v4344
    %v4346 = vrot.slane %v4345, 2
    %v4347 = vmax.f32 %v4345, %v4346
    %v4348 = vrot.slane %v4347, 1
    %v4349 = vmax.f32 %v4347, %v4348
    %v4350 = vsel %vm4069, %v3823, -inf
    %v4351 = vrot.slane %v4350, 4
    %v4352 = vmax.f32 %v4350, %v4351
    %v4353 = vrot.slane %v4352, 2
    %v4354 = vmax.f32 %v4352, %v4353
    %v4355 = vrot.slane %v4354, 1
    %v4356 = vmax.f32 %v4354, %v4355
    %v4357 = vsel %vm4069, %v3907, -inf
    %v4358 = vrot.slane %v4357, 4
    %v4359 = vmax.f32 %v4357, %v4358
    %v4360 = vrot.slane %v4359, 2
    %v4361 = vmax.f32 %v4359, %v4360
    %v4362 = vrot.slane %v4361, 1
    %v4363 = vmax.f32 %v4361, %v4362
    %v4364 = vsel %vm4069, %v3908, -inf
    %v4365 = vrot.slane %v4364, 4
    %v4366 = vmax.f32 %v4364, %v4365
    %v4367 = vrot.slane %v4366, 2
    %v4368 = vmax.f32 %v4366, %v4367
    %v4369 = vrot.slane %v4368, 1
    %v4370 = vmax.f32 %v4368, %v4369
    %v4371 = vsel %vm4069, %v3909, -inf
    %v4372 = vrot.slane %v4371, 4
    %v4373 = vmax.f32 %v4371, %v4372
    %v4374 = vrot.slane %v4373, 2
    %v4375 = vmax.f32 %v4373, %v4374
    %v4376 = vrot.slane %v4375, 1
    %v4377 = vmax.f32 %v4375, %v4376
    %v4378 = vsel %vm4069, %v3824, -inf
    %v4379 = vrot.slane %v4378, 4
    %v4380 = vmax.f32 %v4378, %v4379
    %v4381 = vrot.slane %v4380, 2
    %v4382 = vmax.f32 %v4380, %v4381
    %v4383 = vrot.slane %v4382, 1
    %v4384 = vmax.f32 %v4382, %v4383
    %v4385 = vsel %vm4069, %v3910, -inf
    %v4386 = vrot.slane %v4385, 4
    %v4387 = vmax.f32 %v4385, %v4386
    %v4388 = vrot.slane %v4387, 2
    %v4389 = vmax.f32 %v4387, %v4388
    %v4390 = vrot.slane %v4389, 1
    %v4391 = vmax.f32 %v4389, %v4390
    %v4392 = vsel %vm4069, %v3911, -inf
    %v4393 = vrot.slane %v4392, 4
    %v4394 = vmax.f32 %v4392, %v4393
    %v4395 = vrot.slane %v4394, 2
    %v4396 = vmax.f32 %v4394, %v4395
    %v4397 = vrot.slane %v4396, 1
    %v4398 = vmax.f32 %v4396, %v4397
    %v4399 = vsel %vm4069, %v3912, -inf
    %v4400 = vrot.slane %v4399, 4
    %v4401 = vmax.f32 %v4399, %v4400
    %v4402 = vrot.slane %v4401, 2
    %v4403 = vmax.f32 %v4401, %v4402
    %v4404 = vrot.slane %v4403, 1
    %v4405 = vmax.f32 %v4403, %v4404
    %v4406 = vsel %vm4069, %v3825, -inf
    %v4407 = vrot.slane %v4406, 4
    %v4408 = vmax.f32 %v4406, %v4407
    %v4409 = vrot.slane %v4408, 2
    %v4410 = vmax.f32 %v4408, %v4409
    %v4411 = vrot.slane %v4410, 1
    %v4412 = vmax.f32 %v4410, %v4411
    %v4413 = vsel %vm4069, %v3913, -inf
    %v4414 = vrot.slane %v4413, 4
    %v4415 = vmax.f32 %v4413, %v4414
    %v4416 = vrot.slane %v4415, 2
    %v4417 = vmax.f32 %v4415, %v4416
    %v4418 = vrot.slane %v4417, 1
    %v4419 = vmax.f32 %v4417, %v4418
    %v4420 = vsel %vm4069, %v3914, -inf
    %v4421 = vrot.slane %v4420, 4
    %v4422 = vmax.f32 %v4420, %v4421
    %v4423 = vrot.slane %v4422, 2
    %v4424 = vmax.f32 %v4422, %v4423
    %v4425 = vrot.slane %v4424, 1
    %v4426 = vmax.f32 %v4424, %v4425
    %v4427 = vsel %vm4069, %v3915, -inf
    %v4428 = vrot.slane %v4427, 4
    %v4429 = vmax.f32 %v4427, %v4428
    %v4430 = vrot.slane %v4429, 2
    %v4431 = vmax.f32 %v4429, %v4430
    %v4432 = vrot.slane %v4431, 1
    %v4433 = vmax.f32 %v4431, %v4432
    %v4434 = vsel %vm4069, %v3826, -inf
    %v4435 = vrot.slane %v4434, 4
    %v4436 = vmax.f32 %v4434, %v4435
    %v4437 = vrot.slane %v4436, 2
    %v4438 = vmax.f32 %v4436, %v4437
    %v4439 = vrot.slane %v4438, 1
    %v4440 = vmax.f32 %v4438, %v4439
    %v4441 = vsel %vm4069, %v3916, -inf
    %v4442 = vrot.slane %v4441, 4
    %v4443 = vmax.f32 %v4441, %v4442
    %v4444 = vrot.slane %v4443, 2
    %v4445 = vmax.f32 %v4443, %v4444
    %v4446 = vrot.slane %v4445, 1
    %v4447 = vmax.f32 %v4445, %v4446
    %v4448 = vsel %vm4069, %v3917, -inf
    %v4449 = vrot.slane %v4448, 4
    %v4450 = vmax.f32 %v4448, %v4449
    %v4451 = vrot.slane %v4450, 2
    %v4452 = vmax.f32 %v4450, %v4451
    %v4453 = vrot.slane %v4452, 1
    %v4454 = vmax.f32 %v4452, %v4453
    %v4455 = vsel %vm4069, %v3918, -inf
    %v4456 = vrot.slane %v4455, 4
    %v4457 = vmax.f32 %v4455, %v4456
    %v4458 = vrot.slane %v4457, 2
    %v4459 = vmax.f32 %v4457, %v4458
    %v4460 = vrot.slane %v4459, 1
    %v4461 = vmax.f32 %v4459, %v4460
    %v4462 = vsel %vm4069, %v3827, -inf
    %v4463 = vrot.slane %v4462, 4
    %v4464 = vmax.f32 %v4462, %v4463
    %v4465 = vrot.slane %v4464, 2
    %v4466 = vmax.f32 %v4464, %v4465
    %v4467 = vrot.slane %v4466, 1
    %v4468 = vmax.f32 %v4466, %v4467
    %v4469 = vsel %vm4069, %v3919, -inf
    %v4470 = vrot.slane %v4469, 4
    %v4471 = vmax.f32 %v4469, %v4470
    %v4472 = vrot.slane %v4471, 2
    %v4473 = vmax.f32 %v4471, %v4472
    %v4474 = vrot.slane %v4473, 1
    %v4475 = vmax.f32 %v4473, %v4474
    %v4476 = vsel %vm4069, %v3920, -inf
    %v4477 = vrot.slane %v4476, 4
    %v4478 = vmax.f32 %v4476, %v4477
    %v4479 = vrot.slane %v4478, 2
    %v4480 = vmax.f32 %v4478, %v4479
    %v4481 = vrot.slane %v4480, 1
    %v4482 = vmax.f32 %v4480, %v4481
    %v4483 = vsel %vm4069, %v3921, -inf
    %v4484 = vrot.slane %v4483, 4
    %v4485 = vmax.f32 %v4483, %v4484
    %v4486 = vrot.slane %v4485, 2
    %v4487 = vmax.f32 %v4485, %v4486
    %v4488 = vrot.slane %v4487, 1
    %v4489 = vmax.f32 %v4487, %v4488
    %v4490 = vsel %vm4069, %v3828, -inf
    %v4491 = vrot.slane %v4490, 4
    %v4492 = vmax.f32 %v4490, %v4491
    %v4493 = vrot.slane %v4492, 2
    %v4494 = vmax.f32 %v4492, %v4493
    %v4495 = vrot.slane %v4494, 1
    %v4496 = vmax.f32 %v4494, %v4495
    %v4497 = vsel %vm4069, %v3922, -inf
    %v4498 = vrot.slane %v4497, 4
    %v4499 = vmax.f32 %v4497, %v4498
    %v4500 = vrot.slane %v4499, 2
    %v4501 = vmax.f32 %v4499, %v4500
    %v4502 = vrot.slane %v4501, 1
    %v4503 = vmax.f32 %v4501, %v4502
    %v4504 = vsel %vm4069, %v3923, -inf
    %v4505 = vrot.slane %v4504, 4
    %v4506 = vmax.f32 %v4504, %v4505
    %v4507 = vrot.slane %v4506, 2
    %v4508 = vmax.f32 %v4506, %v4507
    %v4509 = vrot.slane %v4508, 1
    %v4510 = vmax.f32 %v4508, %v4509
    %v4511 = vsel %vm4069, %v3924, -inf
    %v4512 = vrot.slane %v4511, 4
    %v4513 = vmax.f32 %v4511, %v4512
    %v4514 = vrot.slane %v4513, 2
    %v4515 = vmax.f32 %v4513, %v4514
    %v4516 = vrot.slane %v4515, 1
    %v4517 = vmax.f32 %v4515, %v4516
    %v4518 = vsel %vm4069, %v3829, -inf
    %v4519 = vrot.slane %v4518, 4
    %v4520 = vmax.f32 %v4518, %v4519
    %v4521 = vrot.slane %v4520, 2
    %v4522 = vmax.f32 %v4520, %v4521
    %v4523 = vrot.slane %v4522, 1
    %v4524 = vmax.f32 %v4522, %v4523
    %v4525 = vsel %vm4069, %v3925, -inf
    %v4526 = vrot.slane %v4525, 4
    %v4527 = vmax.f32 %v4525, %v4526
    %v4528 = vrot.slane %v4527, 2
    %v4529 = vmax.f32 %v4527, %v4528
    %v4530 = vrot.slane %v4529, 1
    %v4531 = vmax.f32 %v4529, %v4530
    %v4532 = vsel %vm4069, %v3926, -inf
    %v4533 = vrot.slane %v4532, 4
    %v4534 = vmax.f32 %v4532, %v4533
    %v4535 = vrot.slane %v4534, 2
    %v4536 = vmax.f32 %v4534, %v4535
    %v4537 = vrot.slane %v4536, 1
    %v4538 = vmax.f32 %v4536, %v4537
    %v4539 = vsel %vm4069, %v3927, -inf
    %v4540 = vrot.slane %v4539, 4
    %v4541 = vmax.f32 %v4539, %v4540
    %v4542 = vrot.slane %v4541, 2
    %v4543 = vmax.f32 %v4541, %v4542
    %v4544 = vrot.slane %v4543, 1
    %v4545 = vmax.f32 %v4543, %v4544
    %v4546 = vsel %vm4069, %v3830, -inf
    %v4547 = vrot.slane %v4546, 4
    %v4548 = vmax.f32 %v4546, %v4547
    %v4549 = vrot.slane %v4548, 2
    %v4550 = vmax.f32 %v4548, %v4549
    %v4551 = vrot.slane %v4550, 1
    %v4552 = vmax.f32 %v4550, %v4551
    %v4553 = vsel %vm4069, %v3928, -inf
    %v4554 = vrot.slane %v4553, 4
    %v4555 = vmax.f32 %v4553, %v4554
    %v4556 = vrot.slane %v4555, 2
    %v4557 = vmax.f32 %v4555, %v4556
    %v4558 = vrot.slane %v4557, 1
    %v4559 = vmax.f32 %v4557, %v4558
    %v4560 = vsel %vm4069, %v3929, -inf
    %v4561 = vrot.slane %v4560, 4
    %v4562 = vmax.f32 %v4560, %v4561
    %v4563 = vrot.slane %v4562, 2
    %v4564 = vmax.f32 %v4562, %v4563
    %v4565 = vrot.slane %v4564, 1
    %v4566 = vmax.f32 %v4564, %v4565
    %v4567 = vsel %vm4069, %v3930, -inf
    %v4568 = vrot.slane %v4567, 4
    %v4569 = vmax.f32 %v4567, %v4568
    %v4570 = vrot.slane %v4569, 2
    %v4571 = vmax.f32 %v4569, %v4570
    %v4572 = vrot.slane %v4571, 1
    %v4573 = vmax.f32 %v4571, %v4572
    %v4574 = vsel %vm4069, %v3831, -inf
    %v4575 = vrot.slane %v4574, 4
    %v4576 = vmax.f32 %v4574, %v4575
    %v4577 = vrot.slane %v4576, 2
    %v4578 = vmax.f32 %v4576, %v4577
    %v4579 = vrot.slane %v4578, 1
    %v4580 = vmax.f32 %v4578, %v4579
    %v4581 = vsel %vm4069, %v3931, -inf
    %v4582 = vrot.slane %v4581, 4
    %v4583 = vmax.f32 %v4581, %v4582
    %v4584 = vrot.slane %v4583, 2
    %v4585 = vmax.f32 %v4583, %v4584
    %v4586 = vrot.slane %v4585, 1
    %v4587 = vmax.f32 %v4585, %v4586
    %v4588 = vsel %vm4069, %v3932, -inf
    %v4589 = vrot.slane %v4588, 4
    %v4590 = vmax.f32 %v4588, %v4589
    %v4591 = vrot.slane %v4590, 2
    %v4592 = vmax.f32 %v4590, %v4591
    %v4593 = vrot.slane %v4592, 1
    %v4594 = vmax.f32 %v4592, %v4593
    %v4595 = vsel %vm4069, %v3933, -inf
    %v4596 = vrot.slane %v4595, 4
    %v4597 = vmax.f32 %v4595, %v4596
    %v4598 = vrot.slane %v4597, 2
    %v4599 = vmax.f32 %v4597, %v4598
    %v4600 = vrot.slane %v4599, 1
    %v4601 = vmax.f32 %v4599, %v4600
    %v4602 = vsel %vm4069, %v3832, -inf
    %v4603 = vrot.slane %v4602, 4
    %v4604 = vmax.f32 %v4602, %v4603
    %v4605 = vrot.slane %v4604, 2
    %v4606 = vmax.f32 %v4604, %v4605
    %v4607 = vrot.slane %v4606, 1
    %v4608 = vmax.f32 %v4606, %v4607
    %v4609 = vsel %vm4069, %v3934, -inf
    %v4610 = vrot.slane %v4609, 4
    %v4611 = vmax.f32 %v4609, %v4610
    %v4612 = vrot.slane %v4611, 2
    %v4613 = vmax.f32 %v4611, %v4612
    %v4614 = vrot.slane %v4613, 1
    %v4615 = vmax.f32 %v4613, %v4614
    %v4616 = vsel %vm4069, %v3935, -inf
    %v4617 = vrot.slane %v4616, 4
    %v4618 = vmax.f32 %v4616, %v4617
    %v4619 = vrot.slane %v4618, 2
    %v4620 = vmax.f32 %v4618, %v4619
    %v4621 = vrot.slane %v4620, 1
    %v4622 = vmax.f32 %v4620, %v4621
    %v4623 = vsel %vm4069, %v3936, -inf
    %v4624 = vrot.slane %v4623, 4
    %v4625 = vmax.f32 %v4623, %v4624
    %v4626 = vrot.slane %v4625, 2
    %v4627 = vmax.f32 %v4625, %v4626
    %v4628 = vrot.slane %v4627, 1
    %v4629 = vmax.f32 %v4627, %v4628
    %v4630 = vsel %vm4069, %v3833, -inf
    %v4631 = vrot.slane %v4630, 4
    %v4632 = vmax.f32 %v4630, %v4631
    %v4633 = vrot.slane %v4632, 2
    %v4634 = vmax.f32 %v4632, %v4633
    %v4635 = vrot.slane %v4634, 1
    %v4636 = vmax.f32 %v4634, %v4635
    %v4637 = vsel %vm4069, %v3937, -inf
    %v4638 = vrot.slane %v4637, 4
    %v4639 = vmax.f32 %v4637, %v4638
    %v4640 = vrot.slane %v4639, 2
    %v4641 = vmax.f32 %v4639, %v4640
    %v4642 = vrot.slane %v4641, 1
    %v4643 = vmax.f32 %v4641, %v4642
    %v4644 = vsel %vm4069, %v3938, -inf
    %v4645 = vrot.slane %v4644, 4
    %v4646 = vmax.f32 %v4644, %v4645
    %v4647 = vrot.slane %v4646, 2
    %v4648 = vmax.f32 %v4646, %v4647
    %v4649 = vrot.slane %v4648, 1
    %v4650 = vmax.f32 %v4648, %v4649
    %v4651 = vsel %vm4069, %v3939, -inf
    %v4652 = vrot.slane %v4651, 4
    %v4653 = vmax.f32 %v4651, %v4652
    %v4654 = vrot.slane %v4653, 2
    %v4655 = vmax.f32 %v4653, %v4654
    %v4656 = vrot.slane %v4655, 1
    %v4657 = vmax.f32 %v4655, %v4656
    %v4658 = vsel %vm4069, %v3834, -inf
    %v4659 = vrot.slane %v4658, 4
    %v4660 = vmax.f32 %v4658, %v4659
    %v4661 = vrot.slane %v4660, 2
    %v4662 = vmax.f32 %v4660, %v4661
    %v4663 = vrot.slane %v4662, 1
    %v4664 = vmax.f32 %v4662, %v4663
    %v4665 = vsel %vm4069, %v3940, -inf
    %v4666 = vrot.slane %v4665, 4
    %v4667 = vmax.f32 %v4665, %v4666
    %v4668 = vrot.slane %v4667, 2
    %v4669 = vmax.f32 %v4667, %v4668
    %v4670 = vrot.slane %v4669, 1
    %v4671 = vmax.f32 %v4669, %v4670
    %v4672 = vsel %vm4069, %v3941, -inf
    %v4673 = vrot.slane %v4672, 4
    %v4674 = vmax.f32 %v4672, %v4673
    %v4675 = vrot.slane %v4674, 2
    %v4676 = vmax.f32 %v4674, %v4675
    %v4677 = vrot.slane %v4676, 1
    %v4678 = vmax.f32 %v4676, %v4677
    %v4679 = vsel %vm4069, %v3942, -inf
    %v4680 = vrot.slane %v4679, 4
    %v4681 = vmax.f32 %v4679, %v4680
    %v4682 = vrot.slane %v4681, 2
    %v4683 = vmax.f32 %v4681, %v4682
    %v4684 = vrot.slane %v4683, 1
    %v4685 = vmax.f32 %v4683, %v4684
    %v4686 = vsel %vm4069, %v3835, -inf
    %v4687 = vrot.slane %v4686, 4
    %v4688 = vmax.f32 %v4686, %v4687
    %v4689 = vrot.slane %v4688, 2
    %v4690 = vmax.f32 %v4688, %v4689
    %v4691 = vrot.slane %v4690, 1
    %v4692 = vmax.f32 %v4690, %v4691
    %v4693 = vsel %vm4069, %v3943, -inf
    %v4694 = vrot.slane %v4693, 4
    %v4695 = vmax.f32 %v4693, %v4694
    %v4696 = vrot.slane %v4695, 2
    %v4697 = vmax.f32 %v4695, %v4696
    %v4698 = vrot.slane %v4697, 1
    %v4699 = vmax.f32 %v4697, %v4698
    %v4700 = vsel %vm4069, %v3944, -inf
    %v4701 = vrot.slane %v4700, 4
    %v4702 = vmax.f32 %v4700, %v4701
    %v4703 = vrot.slane %v4702, 2
    %v4704 = vmax.f32 %v4702, %v4703
    %v4705 = vrot.slane %v4704, 1
    %v4706 = vmax.f32 %v4704, %v4705
    %v4707 = vsel %vm4069, %v3945, -inf
    %v4708 = vrot.slane %v4707, 4
    %v4709 = vmax.f32 %v4707, %v4708
    %v4710 = vrot.slane %v4709, 2
    %v4711 = vmax.f32 %v4709, %v4710
    %v4712 = vrot.slane %v4711, 1
    %v4713 = vmax.f32 %v4711, %v4712
    %v4714 = vsel %vm4069, %v3836, -inf
    %v4715 = vrot.slane %v4714, 4
    %v4716 = vmax.f32 %v4714, %v4715
    %v4717 = vrot.slane %v4716, 2
    %v4718 = vmax.f32 %v4716, %v4717
    %v4719 = vrot.slane %v4718, 1
    %v4720 = vmax.f32 %v4718, %v4719
    %v4721 = vsel %vm4069, %v3946, -inf
    %v4722 = vrot.slane %v4721, 4
    %v4723 = vmax.f32 %v4721, %v4722
    %v4724 = vrot.slane %v4723, 2
    %v4725 = vmax.f32 %v4723, %v4724
    %v4726 = vrot.slane %v4725, 1
    %v4727 = vmax.f32 %v4725, %v4726
    %v4728 = vsel %vm4069, %v3947, -inf
    %v4729 = vrot.slane %v4728, 4
    %v4730 = vmax.f32 %v4728, %v4729
    %v4731 = vrot.slane %v4730, 2
    %v4732 = vmax.f32 %v4730, %v4731
    %v4733 = vrot.slane %v4732, 1
    %v4734 = vmax.f32 %v4732, %v4733
    %v4735 = vsel %vm4069, %v3948, -inf
    %v4736 = vrot.slane %v4735, 4
    %v4737 = vmax.f32 %v4735, %v4736
    %v4738 = vrot.slane %v4737, 2
    %v4739 = vmax.f32 %v4737, %v4738
    %v4740 = vrot.slane %v4739, 1
    %v4741 = vmax.f32 %v4739, %v4740
    %v4742 = vsel %vm4069, %v3837, -inf
    %v4743 = vrot.slane %v4742, 4
    %v4744 = vmax.f32 %v4742, %v4743
    %v4745 = vrot.slane %v4744, 2
    %v4746 = vmax.f32 %v4744, %v4745
    %v4747 = vrot.slane %v4746, 1
    %v4748 = vmax.f32 %v4746, %v4747
    %v4749 = vsel %vm4069, %v3949, -inf
    %v4750 = vrot.slane %v4749, 4
    %v4751 = vmax.f32 %v4749, %v4750
    %v4752 = vrot.slane %v4751, 2
    %v4753 = vmax.f32 %v4751, %v4752
    %v4754 = vrot.slane %v4753, 1
    %v4755 = vmax.f32 %v4753, %v4754
    %v4756 = vsel %vm4069, %v3950, -inf
    %v4757 = vrot.slane %v4756, 4
    %v4758 = vmax.f32 %v4756, %v4757
    %v4759 = vrot.slane %v4758, 2
    %v4760 = vmax.f32 %v4758, %v4759
    %v4761 = vrot.slane %v4760, 1
    %v4762 = vmax.f32 %v4760, %v4761
    %v4763 = vsel %vm4069, %v3951, -inf
    %v4764 = vrot.slane %v4763, 4
    %v4765 = vmax.f32 %v4763, %v4764
    %v4766 = vrot.slane %v4765, 2
    %v4767 = vmax.f32 %v4765, %v4766
    %v4768 = vrot.slane %v4767, 1
    %v4769 = vmax.f32 %v4767, %v4768
    %v4770 = vsel %vm4069, %v3838, -inf
    %v4771 = vrot.slane %v4770, 4
    %v4772 = vmax.f32 %v4770, %v4771
    %v4773 = vrot.slane %v4772, 2
    %v4774 = vmax.f32 %v4772, %v4773
    %v4775 = vrot.slane %v4774, 1
    %v4776 = vmax.f32 %v4774, %v4775
    %v4777 = vsel %vm4069, %v3952, -inf
    %v4778 = vrot.slane %v4777, 4
    %v4779 = vmax.f32 %v4777, %v4778
    %v4780 = vrot.slane %v4779, 2
    %v4781 = vmax.f32 %v4779, %v4780
    %v4782 = vrot.slane %v4781, 1
    %v4783 = vmax.f32 %v4781, %v4782
    %v4784 = vsel %vm4069, %v3953, -inf
    %v4785 = vrot.slane %v4784, 4
    %v4786 = vmax.f32 %v4784, %v4785
    %v4787 = vrot.slane %v4786, 2
    %v4788 = vmax.f32 %v4786, %v4787
    %v4789 = vrot.slane %v4788, 1
    %v4790 = vmax.f32 %v4788, %v4789
    %v4791 = vsel %vm4069, %v3954, -inf
    %v4792 = vrot.slane %v4791, 4
    %v4793 = vmax.f32 %v4791, %v4792
    %v4794 = vrot.slane %v4793, 2
    %v4795 = vmax.f32 %v4793, %v4794
    %v4796 = vrot.slane %v4795, 1
    %v4797 = vmax.f32 %v4795, %v4796
    %v4798 = vsel %vm4069, %v3839, -inf
    %v4799 = vrot.slane %v4798, 4
    %v4800 = vmax.f32 %v4798, %v4799
    %v4801 = vrot.slane %v4800, 2
    %v4802 = vmax.f32 %v4800, %v4801
    %v4803 = vrot.slane %v4802, 1
    %v4804 = vmax.f32 %v4802, %v4803
    %v4805 = vsel %vm4069, %v3955, -inf
    %v4806 = vrot.slane %v4805, 4
    %v4807 = vmax.f32 %v4805, %v4806
    %v4808 = vrot.slane %v4807, 2
    %v4809 = vmax.f32 %v4807, %v4808
    %v4810 = vrot.slane %v4809, 1
    %v4811 = vmax.f32 %v4809, %v4810
    %v4812 = vsel %vm4069, %v3956, -inf
    %v4813 = vrot.slane %v4812, 4
    %v4814 = vmax.f32 %v4812, %v4813
    %v4815 = vrot.slane %v4814, 2
    %v4816 = vmax.f32 %v4814, %v4815
    %v4817 = vrot.slane %v4816, 1
    %v4818 = vmax.f32 %v4816, %v4817
    %v4819 = vsel %vm4069, %v3957, -inf
    %v4820 = vrot.slane %v4819, 4
    %v4821 = vmax.f32 %v4819, %v4820
    %v4822 = vrot.slane %v4821, 2
    %v4823 = vmax.f32 %v4821, %v4822
    %v4824 = vrot.slane %v4823, 1
    %v4825 = vmax.f32 %v4823, %v4824
    %v4826 = vsel %vm4069, %v3840, -inf
    %v4827 = vrot.slane %v4826, 4
    %v4828 = vmax.f32 %v4826, %v4827
    %v4829 = vrot.slane %v4828, 2
    %v4830 = vmax.f32 %v4828, %v4829
    %v4831 = vrot.slane %v4830, 1
    %v4832 = vmax.f32 %v4830, %v4831
    %v4833 = vsel %vm4069, %v3958, -inf
    %v4834 = vrot.slane %v4833, 4
    %v4835 = vmax.f32 %v4833, %v4834
    %v4836 = vrot.slane %v4835, 2
    %v4837 = vmax.f32 %v4835, %v4836
    %v4838 = vrot.slane %v4837, 1
    %v4839 = vmax.f32 %v4837, %v4838
    %v4840 = vsel %vm4069, %v3959, -inf
    %v4841 = vrot.slane %v4840, 4
    %v4842 = vmax.f32 %v4840, %v4841
    %v4843 = vrot.slane %v4842, 2
    %v4844 = vmax.f32 %v4842, %v4843
    %v4845 = vrot.slane %v4844, 1
    %v4846 = vmax.f32 %v4844, %v4845
    %v4847 = vsel %vm4069, %v3960, -inf
    %v4848 = vrot.slane %v4847, 4
    %v4849 = vmax.f32 %v4847, %v4848
    %v4850 = vrot.slane %v4849, 2
    %v4851 = vmax.f32 %v4849, %v4850
    %v4852 = vrot.slane %v4851, 1
    %v4853 = vmax.f32 %v4851, %v4852
    %v4854 = vsel %vm4069, %v3841, -inf
    %v4855 = vrot.slane %v4854, 4
    %v4856 = vmax.f32 %v4854, %v4855
    %v4857 = vrot.slane %v4856, 2
    %v4858 = vmax.f32 %v4856, %v4857
    %v4859 = vrot.slane %v4858, 1
    %v4860 = vmax.f32 %v4858, %v4859
    %v4861 = vsel %vm4069, %v3961, -inf
    %v4862 = vrot.slane %v4861, 4
    %v4863 = vmax.f32 %v4861, %v4862
    %v4864 = vrot.slane %v4863, 2
    %v4865 = vmax.f32 %v4863, %v4864
    %v4866 = vrot.slane %v4865, 1
    %v4867 = vmax.f32 %v4865, %v4866
    %v4868 = vsel %vm4069, %v3962, -inf
    %v4869 = vrot.slane %v4868, 4
    %v4870 = vmax.f32 %v4868, %v4869
    %v4871 = vrot.slane %v4870, 2
    %v4872 = vmax.f32 %v4870, %v4871
    %v4873 = vrot.slane %v4872, 1
    %v4874 = vmax.f32 %v4872, %v4873
    %v4875 = vsel %vm4069, %v3963, -inf
    %v4876 = vrot.slane %v4875, 4
    %v4877 = vmax.f32 %v4875, %v4876
    %v4878 = vrot.slane %v4877, 2
    %v4879 = vmax.f32 %v4877, %v4878
    %v4880 = vrot.slane %v4879, 1
    %v4881 = vmax.f32 %v4879, %v4880
    %v4882 = vsel %vm4069, %v3842, -inf
    %v4883 = vrot.slane %v4882, 4
    %v4884 = vmax.f32 %v4882, %v4883
    %v4885 = vrot.slane %v4884, 2
    %v4886 = vmax.f32 %v4884, %v4885
    %v4887 = vrot.slane %v4886, 1
    %v4888 = vmax.f32 %v4886, %v4887
    %v4889 = vsel %vm4069, %v3964, -inf
    %v4890 = vrot.slane %v4889, 4
    %v4891 = vmax.f32 %v4889, %v4890
    %v4892 = vrot.slane %v4891, 2
    %v4893 = vmax.f32 %v4891, %v4892
    %v4894 = vrot.slane %v4893, 1
    %v4895 = vmax.f32 %v4893, %v4894
    %v4896 = vsel %vm4069, %v3965, -inf
    %v4897 = vrot.slane %v4896, 4
    %v4898 = vmax.f32 %v4896, %v4897
    %v4899 = vrot.slane %v4898, 2
    %v4900 = vmax.f32 %v4898, %v4899
    %v4901 = vrot.slane %v4900, 1
    %v4902 = vmax.f32 %v4900, %v4901
    %v4903 = vsel %vm4069, %v3966, -inf
    %v4904 = vrot.slane %v4903, 4
    %v4905 = vmax.f32 %v4903, %v4904
    %v4906 = vrot.slane %v4905, 2
    %v4907 = vmax.f32 %v4905, %v4906
    %v4908 = vrot.slane %v4907, 1
    %v4909 = vmax.f32 %v4907, %v4908
    %v4910 = vsel %vm4069, %v3843, -inf
    %v4911 = vrot.slane %v4910, 4
    %v4912 = vmax.f32 %v4910, %v4911
    %v4913 = vrot.slane %v4912, 2
    %v4914 = vmax.f32 %v4912, %v4913
    %v4915 = vrot.slane %v4914, 1
    %v4916 = vmax.f32 %v4914, %v4915
    %v4917 = vsel %vm4069, %v3967, -inf
    %v4918 = vrot.slane %v4917, 4
    %v4919 = vmax.f32 %v4917, %v4918
    %v4920 = vrot.slane %v4919, 2
    %v4921 = vmax.f32 %v4919, %v4920
    %v4922 = vrot.slane %v4921, 1
    %v4923 = vmax.f32 %v4921, %v4922
    %v4924 = vsel %vm4069, %v3968, -inf
    %v4925 = vrot.slane %v4924, 4
    %v4926 = vmax.f32 %v4924, %v4925
    %v4927 = vrot.slane %v4926, 2
    %v4928 = vmax.f32 %v4926, %v4927
    %v4929 = vrot.slane %v4928, 1
    %v4930 = vmax.f32 %v4928, %v4929
    %v4931 = vsel %vm4069, %v3969, -inf
    %v4932 = vrot.slane %v4931, 4
    %v4933 = vmax.f32 %v4931, %v4932
    %v4934 = vrot.slane %v4933, 2
    %v4935 = vmax.f32 %v4933, %v4934
    %v4936 = vrot.slane %v4935, 1
    %v4937 = vmax.f32 %v4935, %v4936
    %v4938 = vsel %vm4069, %v3844, -inf
    %v4939 = vrot.slane %v4938, 4
    %v4940 = vmax.f32 %v4938, %v4939
    %v4941 = vrot.slane %v4940, 2
    %v4942 = vmax.f32 %v4940, %v4941
    %v4943 = vrot.slane %v4942, 1
    %v4944 = vmax.f32 %v4942, %v4943
    %v4945 = vsel %vm4069, %v3970, -inf
    %v4946 = vrot.slane %v4945, 4
    %v4947 = vmax.f32 %v4945, %v4946
    %v4948 = vrot.slane %v4947, 2
    %v4949 = vmax.f32 %v4947, %v4948
    %v4950 = vrot.slane %v4949, 1
    %v4951 = vmax.f32 %v4949, %v4950
    %v4952 = vsel %vm4069, %v3971, -inf
    %v4953 = vrot.slane %v4952, 4
    %v4954 = vmax.f32 %v4952, %v4953
    %v4955 = vrot.slane %v4954, 2
    %v4956 = vmax.f32 %v4954, %v4955
    %v4957 = vrot.slane %v4956, 1
    %v4958 = vmax.f32 %v4956, %v4957
    %v4959 = vsel %vm4069, %v3972, -inf
    %v4960 = vrot.slane %v4959, 4
    %v4961 = vmax.f32 %v4959, %v4960
    %v4962 = vrot.slane %v4961, 2
    %v4963 = vmax.f32 %v4961, %v4962
    %v4964 = vrot.slane %v4963, 1
    %v4965 = vmax.f32 %v4963, %v4964
    %4966 = vst.msk [vmem:[#allocation2] sm:$0xff] %vm2754, 0.0
    %4967 = vst.msk [vmem:[#allocation2 + $0x8] sm:$0x3] %vm4069, 0.0
    %4968 = vst.msk [vmem:[#allocation2 + $0xa0] sm:$0xff] %vm2754, 0.0
    %4969 = vst.msk [vmem:[#allocation2 + $0xa8] sm:$0x3] %vm4069, 0.0
    %s4970 = scalar_lea.vmem [#allocation2], 144
    %4971 = vst.msk [vmem:[%s4970] sm:$0xff] %vm2754, 0.0
    %4972 = vst.msk [vmem:[%s4970 + $0x8] sm:$0x3] %vm4069, 0.0
    %4973 = vst.msk [vmem:[%s4970 + $0xa0] sm:$0xff] %vm2754, 0.0
    %4974 = vst.msk [vmem:[%s4970 + $0xa8] sm:$0x3] %vm4069, 0.0
    %vm4975 = vcmask 8192
    %4976 = vst.msk [vmem:[#allocation2] sm:$0x1] %vm4975, 0.0
    %4977 = vst.msk [vmem:[#allocation2 + $0x10] sm:$0x1] %vm4975, 0.0
    %4978 = vst.msk [vmem:[#allocation2 + $0x20] sm:$0x1] %vm4975, 0.0
    %4979 = vst.msk [vmem:[#allocation2 + $0x30] sm:$0x1] %vm4975, 0.0
    %4980 = vst.msk [vmem:[#allocation2 + $0x40] sm:$0x1] %vm4975, 0.0
    %4981 = vst.msk [vmem:[#allocation2 + $0x50] sm:$0x1] %vm4975, 0.0
    %4982 = vst.msk [vmem:[#allocation2 + $0x60] sm:$0x1] %vm4975, 0.0
    %4983 = vst.msk [vmem:[#allocation2 + $0x70] sm:$0x1] %vm4975, 0.0
    %4984 = vst.msk [vmem:[#allocation2 + $0x80] sm:$0x1] %vm4975, 0.0
    %4985 = vst.msk [vmem:[#allocation2 + $0x90] sm:$0x1] %vm4975, 0.0
    %4986 = vst.msk [vmem:[#allocation2 + $0xa0] sm:$0x1] %vm4975, 0.0
    %4987 = vst.msk [vmem:[#allocation2 + $0xb0] sm:$0x1] %vm4975, 0.0
    %4988 = vst.msk [vmem:[#allocation2 + $0xc0] sm:$0x1] %vm4975, 0.0
    %4989 = vst.msk [vmem:[#allocation2 + $0xd0] sm:$0x1] %vm4975, 0.0
    %4990 = vst.msk [vmem:[#allocation2 + $0xe0] sm:$0x1] %vm4975, 0.0
    %4991 = vst.msk [vmem:[#allocation2 + $0xf0] sm:$0x1] %vm4975, 0.0
    %4992 = vst.msk [vmem:[#allocation2 + $0x100] sm:$0x1] %vm4975, 0.0
    %4993 = vst.msk [vmem:[#allocation2 + $0x110] sm:$0x1] %vm4975, 0.0
    %4994 = vst.msk [vmem:[#allocation2 + $0x120] sm:$0x1] %vm4975, 0.0
    %4995 = vst.msk [vmem:[#allocation2 + $0x130] sm:$0x1] %vm4975, 0.0
    %4996 = vst.msk [vmem:[#allocation2 + $0x9] sm:$0x1] %vm4975, 0.0
    %4997 = vst.msk [vmem:[#allocation2 + $0x19] sm:$0x1] %vm4975, 0.0
    %4998 = vst.msk [vmem:[#allocation2 + $0x29] sm:$0x1] %vm4975, 0.0
    %4999 = vst.msk [vmem:[#allocation2 + $0x39] sm:$0x1] %vm4975, 0.0
    %5000 = vst.msk [vmem:[#allocation2 + $0x49] sm:$0x1] %vm4975, 0.0
    %5001 = vst.msk [vmem:[#allocation2 + $0x59] sm:$0x1] %vm4975, 0.0
    %5002 = vst.msk [vmem:[#allocation2 + $0x69] sm:$0x1] %vm4975, 0.0
    %5003 = vst.msk [vmem:[#allocation2 + $0x79] sm:$0x1] %vm4975, 0.0
    %5004 = vst.msk [vmem:[#allocation2 + $0x89] sm:$0x1] %vm4975, 0.0
    %5005 = vst.msk [vmem:[#allocation2 + $0x99] sm:$0x1] %vm4975, 0.0
    %5006 = vst.msk [vmem:[#allocation2 + $0xa9] sm:$0x1] %vm4975, 0.0
    %5007 = vst.msk [vmem:[#allocation2 + $0xb9] sm:$0x1] %vm4975, 0.0
    %5008 = vst.msk [vmem:[#allocation2 + $0xc9] sm:$0x1] %vm4975, 0.0
    %5009 = vst.msk [vmem:[#allocation2 + $0xd9] sm:$0x1] %vm4975, 0.0
    %5010 = vst.msk [vmem:[#allocation2 + $0xe9] sm:$0x1] %vm4975, 0.0
    %5011 = vst.msk [vmem:[#allocation2 + $0xf9] sm:$0x1] %vm4975, 0.0
    %5012 = vst.msk [vmem:[#allocation2 + $0x109] sm:$0x1] %vm4975, 0.0
    %5013 = vst.msk [vmem:[#allocation2 + $0x119] sm:$0x1] %vm4975, 0.0
    %5014 = vst.msk [vmem:[#allocation2 + $0x129] sm:$0x1] %vm4975, 0.0
    %5015 = vst.msk [vmem:[#allocation2 + $0x139] sm:$0x1] %vm4975, 0.0
    %vm5144 = vcmask 1041409
    %v5145 = vsel %vm5144, %v4083, %v4076
    %vm5146 = vcmask 1042434
    %v5147 = vsel %vm5146, %v4090, %v5145
    %vm5148 = vcmask 1043459
    %v5149 = vsel %vm5148, %v4097, %v5147
    %vm5150 = vcmask 1044484
    %v5151 = vsel %vm5150, %v4104, %v5149
    %vm5152 = vcmask 1045509
    %v5153 = vsel %vm5152, %v4111, %v5151
    %vm5154 = vcmask 1046534
    %v5155 = vsel %vm5154, %v4118, %v5153
    %vm5156 = vcmask 1047559
    %v5157 = vsel %vm5156, %v4125, %v5155
    %v5158 = vsel %vm5144, %v4139, %v4132
    %v5159 = vsel %vm5146, %v4146, %v5158
    %v5160 = vsel %vm5148, %v4153, %v5159
    %v5161 = vsel %vm5150, %v4160, %v5160
    %v5162 = vsel %vm5152, %v4167, %v5161
    %v5163 = vsel %vm5154, %v4174, %v5162
    %v5164 = vsel %vm5156, %v4181, %v5163
    %v5165 = vsel %vm5144, %v4195, %v4188
    %v5166 = vsel %vm5146, %v4202, %v5165
    %v5167 = vsel %vm5148, %v4209, %v5166
    %v5168 = vsel %vm5150, %v4216, %v5167
    %v5169 = vsel %vm5152, %v4223, %v5168
    %v5170 = vsel %vm5154, %v4230, %v5169
    %v5171 = vsel %vm5156, %v4237, %v5170
    %v5172 = vsel %vm5144, %v4251, %v4244
    %v5173 = vsel %vm5146, %v4258, %v5172
    %v5174 = vsel %vm5148, %v4265, %v5173
    %v5175 = vsel %vm5150, %v4272, %v5174
    %v5176 = vsel %vm5152, %v4279, %v5175
    %v5177 = vsel %vm5154, %v4286, %v5176
    %v5178 = vsel %vm5156, %v4293, %v5177
    %v5179 = vsel %vm5144, %v4307, %v4300
    %v5180 = vsel %vm5146, %v4314, %v5179
    %v5181 = vsel %vm5148, %v4321, %v5180
    %v5182 = vsel %vm5150, %v4328, %v5181
    %v5183 = vsel %vm5152, %v4335, %v5182
    %v5184 = vsel %vm5154, %v4342, %v5183
    %v5185 = vsel %vm5156, %v4349, %v5184
    %v5186 = vsel %vm5144, %v4363, %v4356
    %v5187 = vsel %vm5146, %v4370, %v5186
    %v5188 = vsel %vm5148, %v4377, %v5187
    %v5189 = vsel %vm5150, %v4384, %v5188
    %v5190 = vsel %vm5152, %v4391, %v5189
    %v5191 = vsel %vm5154, %v4398, %v5190
    %v5192 = vsel %vm5156, %v4405, %v5191
    %v5193 = vsel %vm5144, %v4419, %v4412
    %v5194 = vsel %vm5146, %v4426, %v5193
    %v5195 = vsel %vm5148, %v4433, %v5194
    %v5196 = vsel %vm5150, %v4440, %v5195
    %v5197 = vsel %vm5152, %v4447, %v5196
    %v5198 = vsel %vm5154, %v4454, %v5197
    %v5199 = vsel %vm5156, %v4461, %v5198
    %v5200 = vsel %vm5144, %v4475, %v4468
    %v5201 = vsel %vm5146, %v4482, %v5200
    %v5202 = vsel %vm5148, %v4489, %v5201
    %v5203 = vsel %vm5150, %v4496, %v5202
    %v5204 = vsel %vm5152, %v4503, %v5203
    %v5205 = vsel %vm5154, %v4510, %v5204
    %v5206 = vsel %vm5156, %v4517, %v5205
    %v5207 = vsel %vm5144, %v4531, %v4524
    %v5208 = vsel %vm5146, %v4538, %v5207
    %v5209 = vsel %vm5148, %v4545, %v5208
    %v5210 = vsel %vm5150, %v4552, %v5209
    %v5211 = vsel %vm5152, %v4559, %v5210
    %v5212 = vsel %vm5154, %v4566, %v5211
    %v5213 = vsel %vm5156, %v4573, %v5212
    %v5214 = vsel %vm5144, %v4587, %v4580
    %v5215 = vsel %vm5146, %v4594, %v5214
    %v5216 = vsel %vm5148, %v4601, %v5215
    %v5217 = vsel %vm5150, %v4608, %v5216
    %v5218 = vsel %vm5152, %v4615, %v5217
    %v5219 = vsel %vm5154, %v4622, %v5218
    %v5220 = vsel %vm5156, %v4629, %v5219
    %v5221 = vsel %vm5144, %v4643, %v4636
    %v5222 = vsel %vm5146, %v4650, %v5221
    %v5223 = vsel %vm5148, %v4657, %v5222
    %v5224 = vsel %vm5150, %v4664, %v5223
    %v5225 = vsel %vm5152, %v4671, %v5224
    %v5226 = vsel %vm5154, %v4678, %v5225
    %v5227 = vsel %vm5156, %v4685, %v5226
    %v5228 = vsel %vm5144, %v4699, %v4692
    %v5229 = vsel %vm5146, %v4706, %v5228
    %v5230 = vsel %vm5148, %v4713, %v5229
    %v5231 = vsel %vm5150, %v4720, %v5230
    %v5232 = vsel %vm5152, %v4727, %v5231
    %v5233 = vsel %vm5154, %v4734, %v5232
    %v5234 = vsel %vm5156, %v4741, %v5233
    %v5235 = vsel %vm5144, %v4755, %v4748
    %v5236 = vsel %vm5146, %v4762, %v5235
    %v5237 = vsel %vm5148, %v4769, %v5236
    %v5238 = vsel %vm5150, %v4776, %v5237
    %v5239 = vsel %vm5152, %v4783, %v5238
    %v5240 = vsel %vm5154, %v4790, %v5239
    %v5241 = vsel %vm5156, %v4797, %v5240
    %v5242 = vsel %vm5144, %v4811, %v4804
    %v5243 = vsel %vm5146, %v4818, %v5242
    %v5244 = vsel %vm5148, %v4825, %v5243
    %v5245 = vsel %vm5150, %v4832, %v5244
    %v5246 = vsel %vm5152, %v4839, %v5245
    %v5247 = vsel %vm5154, %v4846, %v5246
    %v5248 = vsel %vm5156, %v4853, %v5247
    %v5249 = vsel %vm5144, %v4867, %v4860
    %v5250 = vsel %vm5146, %v4874, %v5249
    %v5251 = vsel %vm5148, %v4881, %v5250
    %v5252 = vsel %vm5150, %v4888, %v5251
    %v5253 = vsel %vm5152, %v4895, %v5252
    %v5254 = vsel %vm5154, %v4902, %v5253
    %v5255 = vsel %vm5156, %v4909, %v5254
    %v5256 = vsel %vm5144, %v4923, %v4916
    %v5257 = vsel %vm5146, %v4930, %v5256
    %v5258 = vsel %vm5148, %v4937, %v5257
    %v5259 = vsel %vm5150, %v4944, %v5258
    %v5260 = vsel %vm5152, %v4951, %v5259
    %v5261 = vsel %vm5154, %v4958, %v5260
    %v5262 = vsel %vm5156, %v4965, %v5261
    %s5279 = scalar_lea.vmem [#allocation2], 16
    %5280 = vst.msk [vmem:[%s5279 + $0x1] sm:$0xff] %vm2754, %v5157
    %5281 = vst.msk [vmem:[%s5279 + $0x11] sm:$0xff] %vm2754, %v5164
    %5282 = vst.msk [vmem:[%s5279 + $0x21] sm:$0xff] %vm2754, %v5171
    %5283 = vst.msk [vmem:[%s5279 + $0x31] sm:$0xff] %vm2754, %v5178
    %5284 = vst.msk [vmem:[%s5279 + $0x41] sm:$0xff] %vm2754, %v5185
    %5285 = vst.msk [vmem:[%s5279 + $0x51] sm:$0xff] %vm2754, %v5192
    %5286 = vst.msk [vmem:[%s5279 + $0x61] sm:$0xff] %vm2754, %v5199
    %5287 = vst.msk [vmem:[%s5279 + $0x71] sm:$0xff] %vm2754, %v5206
    %5288 = vst.msk [vmem:[%s5279 + $0xa1] sm:$0xff] %vm2754, %v5213
    %5289 = vst.msk [vmem:[%s5279 + $0xb1] sm:$0xff] %vm2754, %v5220
    %5290 = vst.msk [vmem:[%s5279 + $0xc1] sm:$0xff] %vm2754, %v5227
    %5291 = vst.msk [vmem:[%s5279 + $0xd1] sm:$0xff] %vm2754, %v5234
    %5292 = vst.msk [vmem:[%s5279 + $0xe1] sm:$0xff] %vm2754, %v5241
    %5293 = vst.msk [vmem:[%s5279 + $0xf1] sm:$0xff] %vm2754, %v5248
    %5294 = vst.msk [vmem:[%s5279 + $0x101] sm:$0xff] %vm2754, %v5255
    %5295 = vst.msk [vmem:[%s5279 + $0x111] sm:$0xff] %vm2754, %v5262
    %v5296 = vld [vmem:[#allocation2] sm:$0xff]
    %v5297 = vld [vmem:[#allocation2 + $0x10] sm:$0xff]
    %v5298 = vld [vmem:[#allocation2 + $0x20] sm:$0xff]
    %v5299 = vld [vmem:[#allocation2 + $0x30] sm:$0xff]
    %v5300 = vld [vmem:[#allocation2 + $0x40] sm:$0xff]
    %v5301 = vld [vmem:[#allocation2 + $0x50] sm:$0xff]
    %v5302 = vld [vmem:[#allocation2 + $0x60] sm:$0xff]
    %v5303 = vld [vmem:[#allocation2 + $0x70] sm:$0xff]
    %v5304 = vld [vmem:[#allocation2 + $0xa0] sm:$0xff]
    %v5305 = vld [vmem:[#allocation2 + $0xb0] sm:$0xff]
    %v5306 = vld [vmem:[#allocation2 + $0xc0] sm:$0xff]
    %v5307 = vld [vmem:[#allocation2 + $0xd0] sm:$0xff]
    %v5308 = vld [vmem:[#allocation2 + $0xe0] sm:$0xff]
    %v5309 = vld [vmem:[#allocation2 + $0xf0] sm:$0xff]
    %v5310 = vld [vmem:[#allocation2 + $0x100] sm:$0xff]
    %v5311 = vld [vmem:[#allocation2 + $0x110] sm:$0xff]
    %v5312 = vld [vmem:[#allocation2 + $0x1] sm:$0xff]
    %v5313 = vld [vmem:[#allocation2 + $0x11] sm:$0xff]
    %v5314 = vld [vmem:[#allocation2 + $0x21] sm:$0xff]
    %v5315 = vld [vmem:[#allocation2 + $0x31] sm:$0xff]
    %v5316 = vld [vmem:[#allocation2 + $0x41] sm:$0xff]
    %v5317 = vld [vmem:[#allocation2 + $0x51] sm:$0xff]
    %v5318 = vld [vmem:[#allocation2 + $0x61] sm:$0xff]
    %v5319 = vld [vmem:[#allocation2 + $0x71] sm:$0xff]
    %v5320 = vld [vmem:[#allocation2 + $0xa1] sm:$0xff]
    %v5321 = vld [vmem:[#allocation2 + $0xb1] sm:$0xff]
    %v5322 = vld [vmem:[#allocation2 + $0xc1] sm:$0xff]
    %v5323 = vld [vmem:[#allocation2 + $0xd1] sm:$0xff]
    %v5324 = vld [vmem:[#allocation2 + $0xe1] sm:$0xff]
    %v5325 = vld [vmem:[#allocation2 + $0xf1] sm:$0xff]
    %v5326 = vld [vmem:[#allocation2 + $0x101] sm:$0xff]
    %v5327 = vld [vmem:[#allocation2 + $0x111] sm:$0xff]
    %v5328 = vld [vmem:[#allocation2 + $0x2] sm:$0xff]
    %v5329 = vld [vmem:[#allocation2 + $0x12] sm:$0xff]
    %v5330 = vld [vmem:[#allocation2 + $0x22] sm:$0xff]
    %v5331 = vld [vmem:[#allocation2 + $0x32] sm:$0xff]
    %v5332 = vld [vmem:[#allocation2 + $0x42] sm:$0xff]
    %v5333 = vld [vmem:[#allocation2 + $0x52] sm:$0xff]
    %v5334 = vld [vmem:[#allocation2 + $0x62] sm:$0xff]
    %v5335 = vld [vmem:[#allocation2 + $0x72] sm:$0xff]
    %v5336 = vld [vmem:[#allocation2 + $0xa2] sm:$0xff]
    %v5337 = vld [vmem:[#allocation2 + $0xb2] sm:$0xff]
    %v5338 = vld [vmem:[#allocation2 + $0xc2] sm:$0xff]
    %v5339 = vld [vmem:[#allocation2 + $0xd2] sm:$0xff]
    %v5340 = vld [vmem:[#allocation2 + $0xe2] sm:$0xff]
    %v5341 = vld [vmem:[#allocation2 + $0xf2] sm:$0xff]
    %v5342 = vld [vmem:[#allocation2 + $0x102] sm:$0xff]
    %v5343 = vld [vmem:[#allocation2 + $0x112] sm:$0xff]
    %v5344 = vld [vmem:[%s5279] sm:$0xff]
    %v5345 = vld [vmem:[%s5279 + $0x10] sm:$0xff]
    %v5346 = vld [vmem:[%s5279 + $0x20] sm:$0xff]
    %v5347 = vld [vmem:[%s5279 + $0x30] sm:$0xff]
    %v5348 = vld [vmem:[%s5279 + $0x40] sm:$0xff]
    %v5349 = vld [vmem:[%s5279 + $0x50] sm:$0xff]
    %v5350 = vld [vmem:[%s5279 + $0x60] sm:$0xff]
    %v5351 = vld [vmem:[%s5279 + $0x70] sm:$0xff]
    %v5352 = vld [vmem:[%s5279 + $0xa0] sm:$0xff]
    %v5353 = vld [vmem:[%s5279 + $0xb0] sm:$0xff]
    %v5354 = vld [vmem:[%s5279 + $0xc0] sm:$0xff]
    %v5355 = vld [vmem:[%s5279 + $0xd0] sm:$0xff]
    %v5356 = vld [vmem:[%s5279 + $0xe0] sm:$0xff]
    %v5357 = vld [vmem:[%s5279 + $0xf0] sm:$0xff]
    %v5358 = vld [vmem:[%s5279 + $0x100] sm:$0xff]
    %v5359 = vld [vmem:[%s5279 + $0x110] sm:$0xff]
    %v5360 = vld [vmem:[%s5279 + $0x1] sm:$0xff]
    %v5361 = vld [vmem:[%s5279 + $0x11] sm:$0xff]
    %v5362 = vld [vmem:[%s5279 + $0x21] sm:$0xff]
    %v5363 = vld [vmem:[%s5279 + $0x31] sm:$0xff]
    %v5364 = vld [vmem:[%s5279 + $0x41] sm:$0xff]
    %v5365 = vld [vmem:[%s5279 + $0x51] sm:$0xff]
    %v5366 = vld [vmem:[%s5279 + $0x61] sm:$0xff]
    %v5367 = vld [vmem:[%s5279 + $0x71] sm:$0xff]
    %v5368 = vld [vmem:[%s5279 + $0xa1] sm:$0xff]
    %v5369 = vld [vmem:[%s5279 + $0xb1] sm:$0xff]
    %v5370 = vld [vmem:[%s5279 + $0xc1] sm:$0xff]
    %v5371 = vld [vmem:[%s5279 + $0xd1] sm:$0xff]
    %v5372 = vld [vmem:[%s5279 + $0xe1] sm:$0xff]
    %v5373 = vld [vmem:[%s5279 + $0xf1] sm:$0xff]
    %v5374 = vld [vmem:[%s5279 + $0x101] sm:$0xff]
    %v5375 = vld [vmem:[%s5279 + $0x111] sm:$0xff]
    %v5376 = vld [vmem:[%s5279 + $0x2] sm:$0xff]
    %v5377 = vld [vmem:[%s5279 + $0x12] sm:$0xff]
    %v5378 = vld [vmem:[%s5279 + $0x22] sm:$0xff]
    %v5379 = vld [vmem:[%s5279 + $0x32] sm:$0xff]
    %v5380 = vld [vmem:[%s5279 + $0x42] sm:$0xff]
    %v5381 = vld [vmem:[%s5279 + $0x52] sm:$0xff]
    %v5382 = vld [vmem:[%s5279 + $0x62] sm:$0xff]
    %v5383 = vld [vmem:[%s5279 + $0x72] sm:$0xff]
    %v5384 = vld [vmem:[%s5279 + $0xa2] sm:$0xff]
    %v5385 = vld [vmem:[%s5279 + $0xb2] sm:$0xff]
    %v5386 = vld [vmem:[%s5279 + $0xc2] sm:$0xff]
    %v5387 = vld [vmem:[%s5279 + $0xd2] sm:$0xff]
    %v5388 = vld [vmem:[%s5279 + $0xe2] sm:$0xff]
    %v5389 = vld [vmem:[%s5279 + $0xf2] sm:$0xff]
    %v5390 = vld [vmem:[%s5279 + $0x102] sm:$0xff]
    %v5391 = vld [vmem:[%s5279 + $0x112] sm:$0xff]
    %s5392 = scalar_lea.vmem [#allocation2], 32
    %v5393 = vld [vmem:[%s5392] sm:$0xff]
    %v5394 = vld [vmem:[%s5392 + $0x10] sm:$0xff]
    %v5395 = vld [vmem:[%s5392 + $0x20] sm:$0xff]
    %v5396 = vld [vmem:[%s5392 + $0x30] sm:$0xff]
    %v5397 = vld [vmem:[%s5392 + $0x40] sm:$0xff]
    %v5398 = vld [vmem:[%s5392 + $0x50] sm:$0xff]
    %v5399 = vld [vmem:[%s5392 + $0x60] sm:$0xff]
    %v5400 = vld [vmem:[%s5392 + $0x70] sm:$0xff]
    %v5401 = vld [vmem:[%s5392 + $0xa0] sm:$0xff]
    %v5402 = vld [vmem:[%s5392 + $0xb0] sm:$0xff]
    %v5403 = vld [vmem:[%s5392 + $0xc0] sm:$0xff]
    %v5404 = vld [vmem:[%s5392 + $0xd0] sm:$0xff]
    %v5405 = vld [vmem:[%s5392 + $0xe0] sm:$0xff]
    %v5406 = vld [vmem:[%s5392 + $0xf0] sm:$0xff]
    %v5407 = vld [vmem:[%s5392 + $0x100] sm:$0xff]
    %v5408 = vld [vmem:[%s5392 + $0x110] sm:$0xff]
    %v5409 = vld [vmem:[%s5392 + $0x1] sm:$0xff]
    %v5410 = vld [vmem:[%s5392 + $0x11] sm:$0xff]
    %v5411 = vld [vmem:[%s5392 + $0x21] sm:$0xff]
    %v5412 = vld [vmem:[%s5392 + $0x31] sm:$0xff]
    %v5413 = vld [vmem:[%s5392 + $0x41] sm:$0xff]
    %v5414 = vld [vmem:[%s5392 + $0x51] sm:$0xff]
    %v5415 = vld [vmem:[%s5392 + $0x61] sm:$0xff]
    %v5416 = vld [vmem:[%s5392 + $0x71] sm:$0xff]
    %v5417 = vld [vmem:[%s5392 + $0xa1] sm:$0xff]
    %v5418 = vld [vmem:[%s5392 + $0xb1] sm:$0xff]
    %v5419 = vld [vmem:[%s5392 + $0xc1] sm:$0xff]
    %v5420 = vld [vmem:[%s5392 + $0xd1] sm:$0xff]
    %v5421 = vld [vmem:[%s5392 + $0xe1] sm:$0xff]
    %v5422 = vld [vmem:[%s5392 + $0xf1] sm:$0xff]
    %v5423 = vld [vmem:[%s5392 + $0x101] sm:$0xff]
    %v5424 = vld [vmem:[%s5392 + $0x111] sm:$0xff]
    %v5425 = vld [vmem:[%s5392 + $0x2] sm:$0xff]
    %v5426 = vld [vmem:[%s5392 + $0x12] sm:$0xff]
    %v5427 = vld [vmem:[%s5392 + $0x22] sm:$0xff]
    %v5428 = vld [vmem:[%s5392 + $0x32] sm:$0xff]
    %v5429 = vld [vmem:[%s5392 + $0x42] sm:$0xff]
    %v5430 = vld [vmem:[%s5392 + $0x52] sm:$0xff]
    %v5431 = vld [vmem:[%s5392 + $0x62] sm:$0xff]
    %v5432 = vld [vmem:[%s5392 + $0x72] sm:$0xff]
    %v5433 = vld [vmem:[%s5392 + $0xa2] sm:$0xff]
    %v5434 = vld [vmem:[%s5392 + $0xb2] sm:$0xff]
    %v5435 = vld [vmem:[%s5392 + $0xc2] sm:$0xff]
    %v5436 = vld [vmem:[%s5392 + $0xd2] sm:$0xff]
    %v5437 = vld [vmem:[%s5392 + $0xe2] sm:$0xff]
    %v5438 = vld [vmem:[%s5392 + $0xf2] sm:$0xff]
    %v5439 = vld [vmem:[%s5392 + $0x102] sm:$0xff]
    %v5440 = vld [vmem:[%s5392 + $0x112] sm:$0xff]
    %5457 = vrot.lane.b32.xlu0 %v5312, 2
    %v5458 = vpop.permute.xlu0 %5457
    %5459 = vrot.lane.b32.xlu0 %v5313, 2
    %v5460 = vpop.permute.xlu0 %5459
    %5461 = vrot.lane.b32.xlu0 %v5314, 2
    %v5462 = vpop.permute.xlu0 %5461
    %5463 = vrot.lane.b32.xlu0 %v5315, 2
    %v5464 = vpop.permute.xlu0 %5463
    %5465 = vrot.lane.b32.xlu0 %v5316, 2
    %v5466 = vpop.permute.xlu0 %5465
    %5467 = vrot.lane.b32.xlu0 %v5317, 2
    %v5468 = vpop.permute.xlu0 %5467
    %5469 = vrot.lane.b32.xlu0 %v5318, 2
    %v5470 = vpop.permute.xlu0 %5469
    %5471 = vrot.lane.b32.xlu0 %v5319, 2
    %v5472 = vpop.permute.xlu0 %5471
    %5473 = vrot.lane.b32.xlu0 %v5320, 2
    %v5474 = vpop.permute.xlu0 %5473
    %5475 = vrot.lane.b32.xlu0 %v5321, 2
    %v5476 = vpop.permute.xlu0 %5475
    %5477 = vrot.lane.b32.xlu0 %v5322, 2
    %v5478 = vpop.permute.xlu0 %5477
    %5479 = vrot.lane.b32.xlu0 %v5323, 2
    %v5480 = vpop.permute.xlu0 %5479
    %5481 = vrot.lane.b32.xlu0 %v5324, 2
    %v5482 = vpop.permute.xlu0 %5481
    %5483 = vrot.lane.b32.xlu0 %v5325, 2
    %v5484 = vpop.permute.xlu0 %5483
    %5485 = vrot.lane.b32.xlu0 %v5326, 2
    %v5486 = vpop.permute.xlu0 %5485
    %5487 = vrot.lane.b32.xlu0 %v5327, 2
    %v5488 = vpop.permute.xlu0 %5487
    %5521 = vrot.lane.b32.xlu0 %v5328, 4
    %v5522 = vpop.permute.xlu0 %5521
    %5523 = vrot.lane.b32.xlu0 %v5329, 4
    %v5524 = vpop.permute.xlu0 %5523
    %5525 = vrot.lane.b32.xlu0 %v5330, 4
    %v5526 = vpop.permute.xlu0 %5525
    %5527 = vrot.lane.b32.xlu0 %v5331, 4
    %v5528 = vpop.permute.xlu0 %5527
    %5529 = vrot.lane.b32.xlu0 %v5332, 4
    %v5530 = vpop.permute.xlu0 %5529
    %5531 = vrot.lane.b32.xlu0 %v5333, 4
    %v5532 = vpop.permute.xlu0 %5531
    %5533 = vrot.lane.b32.xlu0 %v5334, 4
    %v5534 = vpop.permute.xlu0 %5533
    %5535 = vrot.lane.b32.xlu0 %v5335, 4
    %v5536 = vpop.permute.xlu0 %5535
    %5537 = vrot.lane.b32.xlu0 %v5336, 4
    %v5538 = vpop.permute.xlu0 %5537
    %5539 = vrot.lane.b32.xlu0 %v5337, 4
    %v5540 = vpop.permute.xlu0 %5539
    %5541 = vrot.lane.b32.xlu0 %v5338, 4
    %v5542 = vpop.permute.xlu0 %5541
    %5543 = vrot.lane.b32.xlu0 %v5339, 4
    %v5544 = vpop.permute.xlu0 %5543
    %5545 = vrot.lane.b32.xlu0 %v5340, 4
    %v5546 = vpop.permute.xlu0 %5545
    %5547 = vrot.lane.b32.xlu0 %v5341, 4
    %v5548 = vpop.permute.xlu0 %5547
    %5549 = vrot.lane.b32.xlu0 %v5342, 4
    %v5550 = vpop.permute.xlu0 %5549
    %5551 = vrot.lane.b32.xlu0 %v5343, 4
    %v5552 = vpop.permute.xlu0 %5551
    %5585 = vrot.lane.b32.xlu0 %v5344, 6
    %v5586 = vpop.permute.xlu0 %5585
    %5587 = vrot.lane.b32.xlu0 %v5345, 6
    %v5588 = vpop.permute.xlu0 %5587
    %5589 = vrot.lane.b32.xlu0 %v5346, 6
    %v5590 = vpop.permute.xlu0 %5589
    %5591 = vrot.lane.b32.xlu0 %v5347, 6
    %v5592 = vpop.permute.xlu0 %5591
    %5593 = vrot.lane.b32.xlu0 %v5348, 6
    %v5594 = vpop.permute.xlu0 %5593
    %5595 = vrot.lane.b32.xlu0 %v5349, 6
    %v5596 = vpop.permute.xlu0 %5595
    %5597 = vrot.lane.b32.xlu0 %v5350, 6
    %v5598 = vpop.permute.xlu0 %5597
    %5599 = vrot.lane.b32.xlu0 %v5351, 6
    %v5600 = vpop.permute.xlu0 %5599
    %5601 = vrot.lane.b32.xlu0 %v5352, 6
    %v5602 = vpop.permute.xlu0 %5601
    %5603 = vrot.lane.b32.xlu0 %v5353, 6
    %v5604 = vpop.permute.xlu0 %5603
    %5605 = vrot.lane.b32.xlu0 %v5354, 6
    %v5606 = vpop.permute.xlu0 %5605
    %5607 = vrot.lane.b32.xlu0 %v5355, 6
    %v5608 = vpop.permute.xlu0 %5607
    %5609 = vrot.lane.b32.xlu0 %v5356, 6
    %v5610 = vpop.permute.xlu0 %5609
    %5611 = vrot.lane.b32.xlu0 %v5357, 6
    %v5612 = vpop.permute.xlu0 %5611
    %5613 = vrot.lane.b32.xlu0 %v5358, 6
    %v5614 = vpop.permute.xlu0 %5613
    %5615 = vrot.lane.b32.xlu0 %v5359, 6
    %v5616 = vpop.permute.xlu0 %5615
    %5649 = vrot.lane.b32.xlu0 %v5360, 8
    %v5650 = vpop.permute.xlu0 %5649
    %5651 = vrot.lane.b32.xlu0 %v5361, 8
    %v5652 = vpop.permute.xlu0 %5651
    %5653 = vrot.lane.b32.xlu0 %v5362, 8
    %v5654 = vpop.permute.xlu0 %5653
    %5655 = vrot.lane.b32.xlu0 %v5363, 8
    %v5656 = vpop.permute.xlu0 %5655
    %5657 = vrot.lane.b32.xlu0 %v5364, 8
    %v5658 = vpop.permute.xlu0 %5657
    %5659 = vrot.lane.b32.xlu0 %v5365, 8
    %v5660 = vpop.permute.xlu0 %5659
    %5661 = vrot.lane.b32.xlu0 %v5366, 8
    %v5662 = vpop.permute.xlu0 %5661
    %5663 = vrot.lane.b32.xlu0 %v5367, 8
    %v5664 = vpop.permute.xlu0 %5663
    %5665 = vrot.lane.b32.xlu0 %v5368, 8
    %v5666 = vpop.permute.xlu0 %5665
    %5667 = vrot.lane.b32.xlu0 %v5369, 8
    %v5668 = vpop.permute.xlu0 %5667
    %5669 = vrot.lane.b32.xlu0 %v5370, 8
    %v5670 = vpop.permute.xlu0 %5669
    %5671 = vrot.lane.b32.xlu0 %v5371, 8
    %v5672 = vpop.permute.xlu0 %5671
    %5673 = vrot.lane.b32.xlu0 %v5372, 8
    %v5674 = vpop.permute.xlu0 %5673
    %5675 = vrot.lane.b32.xlu0 %v5373, 8
    %v5676 = vpop.permute.xlu0 %5675
    %5677 = vrot.lane.b32.xlu0 %v5374, 8
    %v5678 = vpop.permute.xlu0 %5677
    %5679 = vrot.lane.b32.xlu0 %v5375, 8
    %v5680 = vpop.permute.xlu0 %5679
    %5713 = vrot.lane.b32.xlu0 %v5376, 10
    %v5714 = vpop.permute.xlu0 %5713
    %5715 = vrot.lane.b32.xlu0 %v5377, 10
    %v5716 = vpop.permute.xlu0 %5715
    %5717 = vrot.lane.b32.xlu0 %v5378, 10
    %v5718 = vpop.permute.xlu0 %5717
    %5719 = vrot.lane.b32.xlu0 %v5379, 10
    %v5720 = vpop.permute.xlu0 %5719
    %5721 = vrot.lane.b32.xlu0 %v5380, 10
    %v5722 = vpop.permute.xlu0 %5721
    %5723 = vrot.lane.b32.xlu0 %v5381, 10
    %v5724 = vpop.permute.xlu0 %5723
    %5725 = vrot.lane.b32.xlu0 %v5382, 10
    %v5726 = vpop.permute.xlu0 %5725
    %5727 = vrot.lane.b32.xlu0 %v5383, 10
    %v5728 = vpop.permute.xlu0 %5727
    %5729 = vrot.lane.b32.xlu0 %v5384, 10
    %v5730 = vpop.permute.xlu0 %5729
    %5731 = vrot.lane.b32.xlu0 %v5385, 10
    %v5732 = vpop.permute.xlu0 %5731
    %5733 = vrot.lane.b32.xlu0 %v5386, 10
    %v5734 = vpop.permute.xlu0 %5733
    %5735 = vrot.lane.b32.xlu0 %v5387, 10
    %v5736 = vpop.permute.xlu0 %5735
    %5737 = vrot.lane.b32.xlu0 %v5388, 10
    %v5738 = vpop.permute.xlu0 %5737
    %5739 = vrot.lane.b32.xlu0 %v5389, 10
    %v5740 = vpop.permute.xlu0 %5739
    %5741 = vrot.lane.b32.xlu0 %v5390, 10
    %v5742 = vpop.permute.xlu0 %5741
    %5743 = vrot.lane.b32.xlu0 %v5391, 10
    %v5744 = vpop.permute.xlu0 %5743
    %5777 = vrot.lane.b32.xlu0 %v5393, 12
    %v5778 = vpop.permute.xlu0 %5777
    %5779 = vrot.lane.b32.xlu0 %v5394, 12
    %v5780 = vpop.permute.xlu0 %5779
    %5781 = vrot.lane.b32.xlu0 %v5395, 12
    %v5782 = vpop.permute.xlu0 %5781
    %5783 = vrot.lane.b32.xlu0 %v5396, 12
    %v5784 = vpop.permute.xlu0 %5783
    %5785 = vrot.lane.b32.xlu0 %v5397, 12
    %v5786 = vpop.permute.xlu0 %5785
    %5787 = vrot.lane.b32.xlu0 %v5398, 12
    %v5788 = vpop.permute.xlu0 %5787
    %5789 = vrot.lane.b32.xlu0 %v5399, 12
    %v5790 = vpop.permute.xlu0 %5789
    %5791 = vrot.lane.b32.xlu0 %v5400, 12
    %v5792 = vpop.permute.xlu0 %5791
    %5793 = vrot.lane.b32.xlu0 %v5401, 12
    %v5794 = vpop.permute.xlu0 %5793
    %5795 = vrot.lane.b32.xlu0 %v5402, 12
    %v5796 = vpop.permute.xlu0 %5795
    %5797 = vrot.lane.b32.xlu0 %v5403, 12
    %v5798 = vpop.permute.xlu0 %5797
    %5799 = vrot.lane.b32.xlu0 %v5404, 12
    %v5800 = vpop.permute.xlu0 %5799
    %5801 = vrot.lane.b32.xlu0 %v5405, 12
    %v5802 = vpop.permute.xlu0 %5801
    %5803 = vrot.lane.b32.xlu0 %v5406, 12
    %v5804 = vpop.permute.xlu0 %5803
    %5805 = vrot.lane.b32.xlu0 %v5407, 12
    %v5806 = vpop.permute.xlu0 %5805
    %5807 = vrot.lane.b32.xlu0 %v5408, 12
    %v5808 = vpop.permute.xlu0 %5807
    %5841 = vrot.lane.b32.xlu0 %v5409, 14
    %v5842 = vpop.permute.xlu0 %5841
    %5843 = vrot.lane.b32.xlu0 %v5410, 14
    %v5844 = vpop.permute.xlu0 %5843
    %5845 = vrot.lane.b32.xlu0 %v5411, 14
    %v5846 = vpop.permute.xlu0 %5845
    %5847 = vrot.lane.b32.xlu0 %v5412, 14
    %v5848 = vpop.permute.xlu0 %5847
    %5849 = vrot.lane.b32.xlu0 %v5413, 14
    %v5850 = vpop.permute.xlu0 %5849
    %5851 = vrot.lane.b32.xlu0 %v5414, 14
    %v5852 = vpop.permute.xlu0 %5851
    %5853 = vrot.lane.b32.xlu0 %v5415, 14
    %v5854 = vpop.permute.xlu0 %5853
    %5855 = vrot.lane.b32.xlu0 %v5416, 14
    %v5856 = vpop.permute.xlu0 %5855
    %5857 = vrot.lane.b32.xlu0 %v5417, 14
    %v5858 = vpop.permute.xlu0 %5857
    %5859 = vrot.lane.b32.xlu0 %v5418, 14
    %v5860 = vpop.permute.xlu0 %5859
    %5861 = vrot.lane.b32.xlu0 %v5419, 14
    %v5862 = vpop.permute.xlu0 %5861
    %5863 = vrot.lane.b32.xlu0 %v5420, 14
    %v5864 = vpop.permute.xlu0 %5863
    %5865 = vrot.lane.b32.xlu0 %v5421, 14
    %v5866 = vpop.permute.xlu0 %5865
    %5867 = vrot.lane.b32.xlu0 %v5422, 14
    %v5868 = vpop.permute.xlu0 %5867
    %5869 = vrot.lane.b32.xlu0 %v5423, 14
    %v5870 = vpop.permute.xlu0 %5869
    %5871 = vrot.lane.b32.xlu0 %v5424, 14
    %v5872 = vpop.permute.xlu0 %5871
    %5905 = vrot.lane.b32.xlu0 %v5425, 16
    %v5906 = vpop.permute.xlu0 %5905
    %5907 = vrot.lane.b32.xlu0 %v5426, 16
    %v5908 = vpop.permute.xlu0 %5907
    %5909 = vrot.lane.b32.xlu0 %v5427, 16
    %v5910 = vpop.permute.xlu0 %5909
    %5911 = vrot.lane.b32.xlu0 %v5428, 16
    %v5912 = vpop.permute.xlu0 %5911
    %5913 = vrot.lane.b32.xlu0 %v5429, 16
    %v5914 = vpop.permute.xlu0 %5913
    %5915 = vrot.lane.b32.xlu0 %v5430, 16
    %v5916 = vpop.permute.xlu0 %5915
    %5917 = vrot.lane.b32.xlu0 %v5431, 16
    %v5918 = vpop.permute.xlu0 %5917
    %5919 = vrot.lane.b32.xlu0 %v5432, 16
    %v5920 = vpop.permute.xlu0 %5919
    %5921 = vrot.lane.b32.xlu0 %v5433, 16
    %v5922 = vpop.permute.xlu0 %5921
    %5923 = vrot.lane.b32.xlu0 %v5434, 16
    %v5924 = vpop.permute.xlu0 %5923
    %5925 = vrot.lane.b32.xlu0 %v5435, 16
    %v5926 = vpop.permute.xlu0 %5925
    %5927 = vrot.lane.b32.xlu0 %v5436, 16
    %v5928 = vpop.permute.xlu0 %5927
    %5929 = vrot.lane.b32.xlu0 %v5437, 16
    %v5930 = vpop.permute.xlu0 %5929
    %5931 = vrot.lane.b32.xlu0 %v5438, 16
    %v5932 = vpop.permute.xlu0 %5931
    %5933 = vrot.lane.b32.xlu0 %v5439, 16
    %v5934 = vpop.permute.xlu0 %5933
    %5935 = vrot.lane.b32.xlu0 %v5440, 16
    %v5936 = vpop.permute.xlu0 %5935
    %v5953 = vsel %vm2754, %v5296, %v5458
    %v5954 = vsel %vm2754, %v5297, %v5460
    %v5955 = vsel %vm2754, %v5298, %v5462
    %v5956 = vsel %vm2754, %v5299, %v5464
    %v5957 = vsel %vm2754, %v5300, %v5466
    %v5958 = vsel %vm2754, %v5301, %v5468
    %v5959 = vsel %vm2754, %v5302, %v5470
    %v5960 = vsel %vm2754, %v5303, %v5472
    %v5961 = vsel %vm2754, %v5304, %v5474
    %v5962 = vsel %vm2754, %v5305, %v5476
    %v5963 = vsel %vm2754, %v5306, %v5478
    %v5964 = vsel %vm2754, %v5307, %v5480
    %v5965 = vsel %vm2754, %v5308, %v5482
    %v5966 = vsel %vm2754, %v5309, %v5484
    %v5967 = vsel %vm2754, %v5310, %v5486
    %v5968 = vsel %vm2754, %v5311, %v5488
    %v5969 = vsel %vm2884, %v5953, %v5522
    %v5970 = vsel %vm2884, %v5954, %v5524
    %v5971 = vsel %vm2884, %v5955, %v5526
    %v5972 = vsel %vm2884, %v5956, %v5528
    %v5973 = vsel %vm2884, %v5957, %v5530
    %v5974 = vsel %vm2884, %v5958, %v5532
    %v5975 = vsel %vm2884, %v5959, %v5534
    %v5976 = vsel %vm2884, %v5960, %v5536
    %v5977 = vsel %vm2884, %v5961, %v5538
    %v5978 = vsel %vm2884, %v5962, %v5540
    %v5979 = vsel %vm2884, %v5963, %v5542
    %v5980 = vsel %vm2884, %v5964, %v5544
    %v5981 = vsel %vm2884, %v5965, %v5546
    %v5982 = vsel %vm2884, %v5966, %v5548
    %v5983 = vsel %vm2884, %v5967, %v5550
    %v5984 = vsel %vm2884, %v5968, %v5552
    %v5985 = vsel %vm3014, %v5969, %v5586
    %v5986 = vsel %vm3014, %v5970, %v5588
    %v5987 = vsel %vm3014, %v5971, %v5590
    %v5988 = vsel %vm3014, %v5972, %v5592
    %v5989 = vsel %vm3014, %v5973, %v5594
    %v5990 = vsel %vm3014, %v5974, %v5596
    %v5991 = vsel %vm3014, %v5975, %v5598
    %v5992 = vsel %vm3014, %v5976, %v5600
    %v5993 = vsel %vm3014, %v5977, %v5602
    %v5994 = vsel %vm3014, %v5978, %v5604
    %v5995 = vsel %vm3014, %v5979, %v5606
    %v5996 = vsel %vm3014, %v5980, %v5608
    %v5997 = vsel %vm3014, %v5981, %v5610
    %v5998 = vsel %vm3014, %v5982, %v5612
    %v5999 = vsel %vm3014, %v5983, %v5614
    %v6000 = vsel %vm3014, %v5984, %v5616
    %v6001 = vsel %vm3144, %v5985, %v5650
    %v6002 = vsel %vm3144, %v5986, %v5652
    %v6003 = vsel %vm3144, %v5987, %v5654
    %v6004 = vsel %vm3144, %v5988, %v5656
    %v6005 = vsel %vm3144, %v5989, %v5658
    %v6006 = vsel %vm3144, %v5990, %v5660
    %v6007 = vsel %vm3144, %v5991, %v5662
    %v6008 = vsel %vm3144, %v5992, %v5664
    %v6009 = vsel %vm3144, %v5993, %v5666
    %v6010 = vsel %vm3144, %v5994, %v5668
    %v6011 = vsel %vm3144, %v5995, %v5670
    %v6012 = vsel %vm3144, %v5996, %v5672
    %v6013 = vsel %vm3144, %v5997, %v5674
    %v6014 = vsel %vm3144, %v5998, %v5676
    %v6015 = vsel %vm3144, %v5999, %v5678
    %v6016 = vsel %vm3144, %v6000, %v5680
    %vm6017 = vcmask 80896
    %v6018 = vsel %vm6017, %v6001, %v5714
    %v6019 = vsel %vm6017, %v6002, %v5716
    %v6020 = vsel %vm6017, %v6003, %v5718
    %v6021 = vsel %vm6017, %v6004, %v5720
    %v6022 = vsel %vm6017, %v6005, %v5722
    %v6023 = vsel %vm6017, %v6006, %v5724
    %v6024 = vsel %vm6017, %v6007, %v5726
    %v6025 = vsel %vm6017, %v6008, %v5728
    %v6026 = vsel %vm6017, %v6009, %v5730
    %v6027 = vsel %vm6017, %v6010, %v5732
    %v6028 = vsel %vm6017, %v6011, %v5734
    %v6029 = vsel %vm6017, %v6012, %v5736
    %v6030 = vsel %vm6017, %v6013, %v5738
    %v6031 = vsel %vm6017, %v6014, %v5740
    %v6032 = vsel %vm6017, %v6015, %v5742
    %v6033 = vsel %vm6017, %v6016, %v5744
    %vm6034 = vcmask 97280
    %v6035 = vsel %vm6034, %v6018, %v5778
    %v6036 = vsel %vm6034, %v6019, %v5780
    %v6037 = vsel %vm6034, %v6020, %v5782
    %v6038 = vsel %vm6034, %v6021, %v5784
    %v6039 = vsel %vm6034, %v6022, %v5786
    %v6040 = vsel %vm6034, %v6023, %v5788
    %v6041 = vsel %vm6034, %v6024, %v5790
    %v6042 = vsel %vm6034, %v6025, %v5792
    %v6043 = vsel %vm6034, %v6026, %v5794
    %v6044 = vsel %vm6034, %v6027, %v5796
    %v6045 = vsel %vm6034, %v6028, %v5798
    %v6046 = vsel %vm6034, %v6029, %v5800
    %v6047 = vsel %vm6034, %v6030, %v5802
    %v6048 = vsel %vm6034, %v6031, %v5804
    %v6049 = vsel %vm6034, %v6032, %v5806
    %v6050 = vsel %vm6034, %v6033, %v5808
    %vm6051 = vcmask 113664
    %v6052 = vsel %vm6051, %v6035, %v5842
    %v6053 = vsel %vm6051, %v6036, %v5844
    %v6054 = vsel %vm6051, %v6037, %v5846
    %v6055 = vsel %vm6051, %v6038, %v5848
    %v6056 = vsel %vm6051, %v6039, %v5850
    %v6057 = vsel %vm6051, %v6040, %v5852
    %v6058 = vsel %vm6051, %v6041, %v5854
    %v6059 = vsel %vm6051, %v6042, %v5856
    %v6060 = vsel %vm6051, %v6043, %v5858
    %v6061 = vsel %vm6051, %v6044, %v5860
    %v6062 = vsel %vm6051, %v6045, %v5862
    %v6063 = vsel %vm6051, %v6046, %v5864
    %v6064 = vsel %vm6051, %v6047, %v5866
    %v6065 = vsel %vm6051, %v6048, %v5868
    %v6066 = vsel %vm6051, %v6049, %v5870
    %v6067 = vsel %vm6051, %v6050, %v5872
    %vm6068 = vcmask 130048
    %v6069 = vsel %vm6068, %v6052, %v5906
    %v6070 = vsel %vm6068, %v6053, %v5908
    %v6071 = vsel %vm6068, %v6054, %v5910
    %v6072 = vsel %vm6068, %v6055, %v5912
    %v6073 = vsel %vm6068, %v6056, %v5914
    %v6074 = vsel %vm6068, %v6057, %v5916
    %v6075 = vsel %vm6068, %v6058, %v5918
    %v6076 = vsel %vm6068, %v6059, %v5920
    %v6077 = vsel %vm6068, %v6060, %v5922
    %v6078 = vsel %vm6068, %v6061, %v5924
    %v6079 = vsel %vm6068, %v6062, %v5926
    %v6080 = vsel %vm6068, %v6063, %v5928
    %v6081 = vsel %vm6068, %v6064, %v5930
    %v6082 = vsel %vm6068, %v6065, %v5932
    %v6083 = vsel %vm6068, %v6066, %v5934
    %v6084 = vsel %vm6068, %v6067, %v5936
    %v6085 = vld [vmem:[%s2] sm:$0xff]
    %v6086 = vld [vmem:[%s2 + $0x8] sm:$0xff]
    %v6087 = vld [vmem:[%s2 + $0x10] sm:$0x3]
    %v6088 = vld [vmem:[%s8] sm:$0x1]
    %v6090 = vperm.slane %v6088, 0
    %vm6092 = vcmask 146432
    %v6094 = vsel %vm6092, %v6069, 0
    %v6097 = vsel %vm6092, %v6070, 0
    %v6100 = vsel %vm6092, %v6071, 0
    %v6103 = vsel %vm6092, %v6072, 0
    %v6106 = vsel %vm6092, %v6073, 0
    %v6109 = vsel %vm6092, %v6074, 0
    %v6112 = vsel %vm6092, %v6075, 0
    %v6115 = vsel %vm6092, %v6076, 0
    %v6118 = vsel %vm6092, %v6077, 0
    %v6121 = vsel %vm6092, %v6078, 0
    %v6124 = vsel %vm6092, %v6079, 0
    %v6127 = vsel %vm6092, %v6080, 0
    %v6130 = vsel %vm6092, %v6081, 0
    %v6133 = vsel %vm6092, %v6082, 0
    %v6136 = vsel %vm6092, %v6083, 0
    %v6139 = vsel %vm6092, %v6084, 0
    %vm6141 = vcmask 1041408
    %v6143 = vsel %vm6141, %v6087, 0
    %6145 = vmatpush.msra.mxu0 0.0
    %6146 = vmatpush.msra.mxu0 0.0
    %6147 = vmatpush.msra.mxu0 0.0
    %6148 = vmatpush.msra.mxu0 0.0
    %6149 = vmatpush.msra.mxu0 0.0
    %6150 = vmatpush.msra.mxu0 0.0
    %6151 = vmatpush.msra.mxu0 0.0
    %6152 = vmatpush.msra.mxu0 0.0
    %6153 = vmatpush.msra.mxu0 0.0
    %6154 = vmatpush.msra.mxu0 0.0
    %6155 = vmatpush.msra.mxu0 0.0
    %6156 = vmatpush.msra.mxu0 0.0
    %6157 = vmatpush.msra.mxu0 0.0
    %6158 = vmatpush.msra.mxu0 %v6143
    %6159 = vmatpush.msra.mxu0 %v6086
    %6160 = vmatpush.msra.mxu0 %v6085
    %6161 = vmatmul.f32.gmra.mxu0 %v6094
    %v6162 = vpop.f32.mrf.mxu0
    %v6163 = vadd.f32 %v6090, %v6162
    %6164 = vmatmul.f32.gmra.mxu0 %v6097
    %v6165 = vpop.f32.mrf.mxu0
    %v6166 = vadd.f32 %v6090, %v6165
    %6167 = vmatmul.f32.gmra.mxu0 %v6100
    %v6168 = vpop.f32.mrf.mxu0
    %v6169 = vadd.f32 %v6090, %v6168
    %6170 = vmatmul.f32.gmra.mxu0 %v6103
    %v6171 = vpop.f32.mrf.mxu0
    %v6172 = vadd.f32 %v6090, %v6171
    %6173 = vmatmul.f32.gmra.mxu0 %v6106
    %v6174 = vpop.f32.mrf.mxu0
    %v6175 = vadd.f32 %v6090, %v6174
    %6176 = vmatmul.f32.gmra.mxu0 %v6109
    %v6177 = vpop.f32.mrf.mxu0
    %v6178 = vadd.f32 %v6090, %v6177
    %6179 = vmatmul.f32.gmra.mxu0 %v6112
    %v6180 = vpop.f32.mrf.mxu0
    %v6181 = vadd.f32 %v6090, %v6180
    %6182 = vmatmul.f32.gmra.mxu0 %v6115
    %v6183 = vpop.f32.mrf.mxu0
    %v6184 = vadd.f32 %v6090, %v6183
    %6185 = vmatmul.f32.gmra.mxu0 %v6118
    %v6186 = vpop.f32.mrf.mxu0
    %v6187 = vadd.f32 %v6090, %v6186
    %6188 = vmatmul.f32.gmra.mxu0 %v6121
    %v6189 = vpop.f32.mrf.mxu0
    %v6190 = vadd.f32 %v6090, %v6189
    %6191 = vmatmul.f32.gmra.mxu0 %v6124
    %v6192 = vpop.f32.mrf.mxu0
    %v6193 = vadd.f32 %v6090, %v6192
    %6194 = vmatmul.f32.gmra.mxu0 %v6127
    %v6195 = vpop.f32.mrf.mxu0
    %v6196 = vadd.f32 %v6090, %v6195
    %6197 = vmatmul.f32.gmra.mxu0 %v6130
    %v6198 = vpop.f32.mrf.mxu0
    %v6199 = vadd.f32 %v6090, %v6198
    %6200 = vmatmul.f32.gmra.mxu0 %v6133
    %v6201 = vpop.f32.mrf.mxu0
    %v6202 = vadd.f32 %v6090, %v6201
    %6203 = vmatmul.f32.gmra.mxu0 %v6136
    %v6204 = vpop.f32.mrf.mxu0
    %v6205 = vadd.f32 %v6090, %v6204
    %6206 = vmatmul.f32.gmra.mxu0 %v6139
    %v6207 = vpop.f32.mrf.mxu0
    %v6208 = vadd.f32 %v6090, %v6207
    %6209 = vdwg.mxu0
    %vm6210 = vcmp.gt.f32.partialorder %v6163, 0.0
    %vm6211 = vcmp.gt.f32.partialorder %v6166, 0.0
    %vm6212 = vcmp.gt.f32.partialorder %v6169, 0.0
    %vm6213 = vcmp.gt.f32.partialorder %v6172, 0.0
    %vm6214 = vcmp.gt.f32.partialorder %v6175, 0.0
    %vm6215 = vcmp.gt.f32.partialorder %v6178, 0.0
    %vm6216 = vcmp.gt.f32.partialorder %v6181, 0.0
    %vm6217 = vcmp.gt.f32.partialorder %v6184, 0.0
    %vm6218 = vcmp.gt.f32.partialorder %v6187, 0.0
    %vm6219 = vcmp.gt.f32.partialorder %v6190, 0.0
    %vm6220 = vcmp.gt.f32.partialorder %v6193, 0.0
    %vm6221 = vcmp.gt.f32.partialorder %v6196, 0.0
    %vm6222 = vcmp.gt.f32.partialorder %v6199, 0.0
    %vm6223 = vcmp.gt.f32.partialorder %v6202, 0.0
    %vm6224 = vcmp.gt.f32.partialorder %v6205, 0.0
    %vm6225 = vcmp.gt.f32.partialorder %v6208, 0.0
    %v6226 = vmul.f32 %v6163, 0.01
    %v6227 = vmul.f32 %v6166, 0.01
    %v6228 = vmul.f32 %v6169, 0.01
    %v6229 = vmul.f32 %v6172, 0.01
    %v6230 = vmul.f32 %v6175, 0.01
    %v6231 = vmul.f32 %v6178, 0.01
    %v6232 = vmul.f32 %v6181, 0.01
    %v6233 = vmul.f32 %v6184, 0.01
    %v6234 = vmul.f32 %v6187, 0.01
    %v6235 = vmul.f32 %v6190, 0.01
    %v6236 = vmul.f32 %v6193, 0.01
    %v6237 = vmul.f32 %v6196, 0.01
    %v6238 = vmul.f32 %v6199, 0.01
    %v6239 = vmul.f32 %v6202, 0.01
    %v6240 = vmul.f32 %v6205, 0.01
    %v6241 = vmul.f32 %v6208, 0.01
    %v6242 = vsel %vm6210, %v6163, %v6226
    %v6243 = vsel %vm6211, %v6166, %v6227
    %v6244 = vsel %vm6212, %v6169, %v6228
    %v6245 = vsel %vm6213, %v6172, %v6229
    %v6246 = vsel %vm6214, %v6175, %v6230
    %v6247 = vsel %vm6215, %v6178, %v6231
    %v6248 = vsel %vm6216, %v6181, %v6232
    %v6249 = vsel %vm6217, %v6184, %v6233
    %v6250 = vsel %vm6218, %v6187, %v6234
    %v6251 = vsel %vm6219, %v6190, %v6235
    %v6252 = vsel %vm6220, %v6193, %v6236
    %v6253 = vsel %vm6221, %v6196, %v6237
    %v6254 = vsel %vm6222, %v6199, %v6238
    %v6255 = vsel %vm6223, %v6202, %v6239
    %v6256 = vsel %vm6224, %v6205, %v6240
    %v6257 = vsel %vm6225, %v6208, %v6241
    %v6258 = vmax.f32 %v6242, %v6243
    %v6259 = vmax.f32 %v6244, %v6245
    %v6260 = vmax.f32 %v6246, %v6247
    %v6261 = vmax.f32 %v6248, %v6249
    %v6262 = vmax.f32 %v6250, %v6251
    %v6263 = vmax.f32 %v6252, %v6253
    %v6264 = vmax.f32 %v6254, %v6255
    %v6265 = vmax.f32 %v6256, %v6257
    %v6274 = vrot.slane %v6258, 2
    %v6275 = vrot.slane %v6258, 4
    %v6276 = vrot.slane %v6258, 6
    %v6277 = vrot.slane %v6259, 2
    %v6278 = vrot.slane %v6259, 4
    %v6279 = vrot.slane %v6259, 6
    %v6280 = vrot.slane %v6260, 2
    %v6281 = vrot.slane %v6260, 4
    %v6282 = vrot.slane %v6260, 6
    %v6283 = vrot.slane %v6261, 2
    %v6284 = vrot.slane %v6261, 4
    %v6285 = vrot.slane %v6261, 6
    %v6286 = vrot.slane %v6262, 2
    %v6287 = vrot.slane %v6262, 4
    %v6288 = vrot.slane %v6262, 6
    %v6289 = vrot.slane %v6263, 2
    %v6290 = vrot.slane %v6263, 4
    %v6291 = vrot.slane %v6263, 6
    %v6292 = vrot.slane %v6264, 2
    %v6293 = vrot.slane %v6264, 4
    %v6294 = vrot.slane %v6264, 6
    %v6295 = vrot.slane %v6265, 2
    %v6296 = vrot.slane %v6265, 4
    %v6297 = vrot.slane %v6265, 6
    %vm6322 = vcmask 25600
    %v6323 = vsel %vm6322, %v6258, -inf
    %v6324 = vrot.slane %v6323, 4
    %v6325 = vmax.f32 %v6323, %v6324
    %v6326 = vrot.slane %v6325, 2
    %v6327 = vmax.f32 %v6325, %v6326
    %v6328 = vrot.slane %v6327, 1
    %v6329 = vmax.f32 %v6327, %v6328
    %v6330 = vsel %vm6322, %v6274, -inf
    %v6331 = vrot.slane %v6330, 4
    %v6332 = vmax.f32 %v6330, %v6331
    %v6333 = vrot.slane %v6332, 2
    %v6334 = vmax.f32 %v6332, %v6333
    %v6335 = vrot.slane %v6334, 1
    %v6336 = vmax.f32 %v6334, %v6335
    %v6337 = vsel %vm6322, %v6275, -inf
    %v6338 = vrot.slane %v6337, 4
    %v6339 = vmax.f32 %v6337, %v6338
    %v6340 = vrot.slane %v6339, 2
    %v6341 = vmax.f32 %v6339, %v6340
    %v6342 = vrot.slane %v6341, 1
    %v6343 = vmax.f32 %v6341, %v6342
    %v6344 = vsel %vm6322, %v6276, -inf
    %v6345 = vrot.slane %v6344, 4
    %v6346 = vmax.f32 %v6344, %v6345
    %v6347 = vrot.slane %v6346, 2
    %v6348 = vmax.f32 %v6346, %v6347
    %v6349 = vrot.slane %v6348, 1
    %v6350 = vmax.f32 %v6348, %v6349
    %v6351 = vsel %vm6322, %v6259, -inf
    %v6352 = vrot.slane %v6351, 4
    %v6353 = vmax.f32 %v6351, %v6352
    %v6354 = vrot.slane %v6353, 2
    %v6355 = vmax.f32 %v6353, %v6354
    %v6356 = vrot.slane %v6355, 1
    %v6357 = vmax.f32 %v6355, %v6356
    %v6358 = vsel %vm6322, %v6277, -inf
    %v6359 = vrot.slane %v6358, 4
    %v6360 = vmax.f32 %v6358, %v6359
    %v6361 = vrot.slane %v6360, 2
    %v6362 = vmax.f32 %v6360, %v6361
    %v6363 = vrot.slane %v6362, 1
    %v6364 = vmax.f32 %v6362, %v6363
    %v6365 = vsel %vm6322, %v6278, -inf
    %v6366 = vrot.slane %v6365, 4
    %v6367 = vmax.f32 %v6365, %v6366
    %v6368 = vrot.slane %v6367, 2
    %v6369 = vmax.f32 %v6367, %v6368
    %v6370 = vrot.slane %v6369, 1
    %v6371 = vmax.f32 %v6369, %v6370
    %v6372 = vsel %vm6322, %v6279, -inf
    %v6373 = vrot.slane %v6372, 4
    %v6374 = vmax.f32 %v6372, %v6373
    %v6375 = vrot.slane %v6374, 2
    %v6376 = vmax.f32 %v6374, %v6375
    %v6377 = vrot.slane %v6376, 1
    %v6378 = vmax.f32 %v6376, %v6377
    %v6379 = vsel %vm6322, %v6260, -inf
    %v6380 = vrot.slane %v6379, 4
    %v6381 = vmax.f32 %v6379, %v6380
    %v6382 = vrot.slane %v6381, 2
    %v6383 = vmax.f32 %v6381, %v6382
    %v6384 = vrot.slane %v6383, 1
    %v6385 = vmax.f32 %v6383, %v6384
    %v6386 = vsel %vm6322, %v6280, -inf
    %v6387 = vrot.slane %v6386, 4
    %v6388 = vmax.f32 %v6386, %v6387
    %v6389 = vrot.slane %v6388, 2
    %v6390 = vmax.f32 %v6388, %v6389
    %v6391 = vrot.slane %v6390, 1
    %v6392 = vmax.f32 %v6390, %v6391
    %v6393 = vsel %vm6322, %v6281, -inf
    %v6394 = vrot.slane %v6393, 4
    %v6395 = vmax.f32 %v6393, %v6394
    %v6396 = vrot.slane %v6395, 2
    %v6397 = vmax.f32 %v6395, %v6396
    %v6398 = vrot.slane %v6397, 1
    %v6399 = vmax.f32 %v6397, %v6398
    %v6400 = vsel %vm6322, %v6282, -inf
    %v6401 = vrot.slane %v6400, 4
    %v6402 = vmax.f32 %v6400, %v6401
    %v6403 = vrot.slane %v6402, 2
    %v6404 = vmax.f32 %v6402, %v6403
    %v6405 = vrot.slane %v6404, 1
    %v6406 = vmax.f32 %v6404, %v6405
    %v6407 = vsel %vm6322, %v6261, -inf
    %v6408 = vrot.slane %v6407, 4
    %v6409 = vmax.f32 %v6407, %v6408
    %v6410 = vrot.slane %v6409, 2
    %v6411 = vmax.f32 %v6409, %v6410
    %v6412 = vrot.slane %v6411, 1
    %v6413 = vmax.f32 %v6411, %v6412
    %v6414 = vsel %vm6322, %v6283, -inf
    %v6415 = vrot.slane %v6414, 4
    %v6416 = vmax.f32 %v6414, %v6415
    %v6417 = vrot.slane %v6416, 2
    %v6418 = vmax.f32 %v6416, %v6417
    %v6419 = vrot.slane %v6418, 1
    %v6420 = vmax.f32 %v6418, %v6419
    %v6421 = vsel %vm6322, %v6284, -inf
    %v6422 = vrot.slane %v6421, 4
    %v6423 = vmax.f32 %v6421, %v6422
    %v6424 = vrot.slane %v6423, 2
    %v6425 = vmax.f32 %v6423, %v6424
    %v6426 = vrot.slane %v6425, 1
    %v6427 = vmax.f32 %v6425, %v6426
    %v6428 = vsel %vm6322, %v6285, -inf
    %v6429 = vrot.slane %v6428, 4
    %v6430 = vmax.f32 %v6428, %v6429
    %v6431 = vrot.slane %v6430, 2
    %v6432 = vmax.f32 %v6430, %v6431
    %v6433 = vrot.slane %v6432, 1
    %v6434 = vmax.f32 %v6432, %v6433
    %v6435 = vsel %vm6322, %v6262, -inf
    %v6436 = vrot.slane %v6435, 4
    %v6437 = vmax.f32 %v6435, %v6436
    %v6438 = vrot.slane %v6437, 2
    %v6439 = vmax.f32 %v6437, %v6438
    %v6440 = vrot.slane %v6439, 1
    %v6441 = vmax.f32 %v6439, %v6440
    %v6442 = vsel %vm6322, %v6286, -inf
    %v6443 = vrot.slane %v6442, 4
    %v6444 = vmax.f32 %v6442, %v6443
    %v6445 = vrot.slane %v6444, 2
    %v6446 = vmax.f32 %v6444, %v6445
    %v6447 = vrot.slane %v6446, 1
    %v6448 = vmax.f32 %v6446, %v6447
    %v6449 = vsel %vm6322, %v6287, -inf
    %v6450 = vrot.slane %v6449, 4
    %v6451 = vmax.f32 %v6449, %v6450
    %v6452 = vrot.slane %v6451, 2
    %v6453 = vmax.f32 %v6451, %v6452
    %v6454 = vrot.slane %v6453, 1
    %v6455 = vmax.f32 %v6453, %v6454
    %v6456 = vsel %vm6322, %v6288, -inf
    %v6457 = vrot.slane %v6456, 4
    %v6458 = vmax.f32 %v6456, %v6457
    %v6459 = vrot.slane %v6458, 2
    %v6460 = vmax.f32 %v6458, %v6459
    %v6461 = vrot.slane %v6460, 1
    %v6462 = vmax.f32 %v6460, %v6461
    %v6463 = vsel %vm6322, %v6263, -inf
    %v6464 = vrot.slane %v6463, 4
    %v6465 = vmax.f32 %v6463, %v6464
    %v6466 = vrot.slane %v6465, 2
    %v6467 = vmax.f32 %v6465, %v6466
    %v6468 = vrot.slane %v6467, 1
    %v6469 = vmax.f32 %v6467, %v6468
    %v6470 = vsel %vm6322, %v6289, -inf
    %v6471 = vrot.slane %v6470, 4
    %v6472 = vmax.f32 %v6470, %v6471
    %v6473 = vrot.slane %v6472, 2
    %v6474 = vmax.f32 %v6472, %v6473
    %v6475 = vrot.slane %v6474, 1
    %v6476 = vmax.f32 %v6474, %v6475
    %v6477 = vsel %vm6322, %v6290, -inf
    %v6478 = vrot.slane %v6477, 4
    %v6479 = vmax.f32 %v6477, %v6478
    %v6480 = vrot.slane %v6479, 2
    %v6481 = vmax.f32 %v6479, %v6480
    %v6482 = vrot.slane %v6481, 1
    %v6483 = vmax.f32 %v6481, %v6482
    %v6484 = vsel %vm6322, %v6291, -inf
    %v6485 = vrot.slane %v6484, 4
    %v6486 = vmax.f32 %v6484, %v6485
    %v6487 = vrot.slane %v6486, 2
    %v6488 = vmax.f32 %v6486, %v6487
    %v6489 = vrot.slane %v6488, 1
    %v6490 = vmax.f32 %v6488, %v6489
    %v6491 = vsel %vm6322, %v6264, -inf
    %v6492 = vrot.slane %v6491, 4
    %v6493 = vmax.f32 %v6491, %v6492
    %v6494 = vrot.slane %v6493, 2
    %v6495 = vmax.f32 %v6493, %v6494
    %v6496 = vrot.slane %v6495, 1
    %v6497 = vmax.f32 %v6495, %v6496
    %v6498 = vsel %vm6322, %v6292, -inf
    %v6499 = vrot.slane %v6498, 4
    %v6500 = vmax.f32 %v6498, %v6499
    %v6501 = vrot.slane %v6500, 2
    %v6502 = vmax.f32 %v6500, %v6501
    %v6503 = vrot.slane %v6502, 1
    %v6504 = vmax.f32 %v6502, %v6503
    %v6505 = vsel %vm6322, %v6293, -inf
    %v6506 = vrot.slane %v6505, 4
    %v6507 = vmax.f32 %v6505, %v6506
    %v6508 = vrot.slane %v6507, 2
    %v6509 = vmax.f32 %v6507, %v6508
    %v6510 = vrot.slane %v6509, 1
    %v6511 = vmax.f32 %v6509, %v6510
    %v6512 = vsel %vm6322, %v6294, -inf
    %v6513 = vrot.slane %v6512, 4
    %v6514 = vmax.f32 %v6512, %v6513
    %v6515 = vrot.slane %v6514, 2
    %v6516 = vmax.f32 %v6514, %v6515
    %v6517 = vrot.slane %v6516, 1
    %v6518 = vmax.f32 %v6516, %v6517
    %v6519 = vsel %vm6322, %v6265, -inf
    %v6520 = vrot.slane %v6519, 4
    %v6521 = vmax.f32 %v6519, %v6520
    %v6522 = vrot.slane %v6521, 2
    %v6523 = vmax.f32 %v6521, %v6522
    %v6524 = vrot.slane %v6523, 1
    %v6525 = vmax.f32 %v6523, %v6524
    %v6526 = vsel %vm6322, %v6295, -inf
    %v6527 = vrot.slane %v6526, 4
    %v6528 = vmax.f32 %v6526, %v6527
    %v6529 = vrot.slane %v6528, 2
    %v6530 = vmax.f32 %v6528, %v6529
    %v6531 = vrot.slane %v6530, 1
    %v6532 = vmax.f32 %v6530, %v6531
    %v6533 = vsel %vm6322, %v6296, -inf
    %v6534 = vrot.slane %v6533, 4
    %v6535 = vmax.f32 %v6533, %v6534
    %v6536 = vrot.slane %v6535, 2
    %v6537 = vmax.f32 %v6535, %v6536
    %v6538 = vrot.slane %v6537, 1
    %v6539 = vmax.f32 %v6537, %v6538
    %v6540 = vsel %vm6322, %v6297, -inf
    %v6541 = vrot.slane %v6540, 4
    %v6542 = vmax.f32 %v6540, %v6541
    %v6543 = vrot.slane %v6542, 2
    %v6544 = vmax.f32 %v6542, %v6543
    %v6545 = vrot.slane %v6544, 1
    %v6546 = vmax.f32 %v6544, %v6545
    %vm6547 = vcmask 29696
    %6548 = vst.msk [vmem:[#allocation3] sm:$0x3f] %vm6547, 0.0
    %6549 = vst.msk [vmem:[#allocation3 + $0x30] sm:$0x3f] %vm6547, 0.0
    %s6550 = scalar_lea.vmem [#allocation3], 40
    %6551 = vst.msk [vmem:[%s6550] sm:$0x3f] %vm6547, 0.0
    %6552 = vst.msk [vmem:[%s6550 + $0x30] sm:$0x3f] %vm6547, 0.0
    %vm6553 = vcmask 24576
    %6554 = vst.msk [vmem:[#allocation3] sm:$0x1] %vm6553, 0.0
    %6555 = vst.msk [vmem:[#allocation3 + $0x8] sm:$0x1] %vm6553, 0.0
    %6556 = vst.msk [vmem:[#allocation3 + $0x10] sm:$0x1] %vm6553, 0.0
    %6557 = vst.msk [vmem:[#allocation3 + $0x18] sm:$0x1] %vm6553, 0.0
    %6558 = vst.msk [vmem:[#allocation3 + $0x20] sm:$0x1] %vm6553, 0.0
    %6559 = vst.msk [vmem:[#allocation3 + $0x28] sm:$0x1] %vm6553, 0.0
    %6560 = vst.msk [vmem:[#allocation3 + $0x30] sm:$0x1] %vm6553, 0.0
    %6561 = vst.msk [vmem:[#allocation3 + $0x38] sm:$0x1] %vm6553, 0.0
    %6562 = vst.msk [vmem:[#allocation3 + $0x40] sm:$0x1] %vm6553, 0.0
    %6563 = vst.msk [vmem:[#allocation3 + $0x48] sm:$0x1] %vm6553, 0.0
    %6564 = vst.msk [vmem:[#allocation3 + $0x50] sm:$0x1] %vm6553, 0.0
    %6565 = vst.msk [vmem:[#allocation3 + $0x58] sm:$0x1] %vm6553, 0.0
    %6566 = vst.msk [vmem:[#allocation3 + $0x5] sm:$0x1] %vm6553, 0.0
    %6567 = vst.msk [vmem:[#allocation3 + $0xd] sm:$0x1] %vm6553, 0.0
    %6568 = vst.msk [vmem:[#allocation3 + $0x15] sm:$0x1] %vm6553, 0.0
    %6569 = vst.msk [vmem:[#allocation3 + $0x1d] sm:$0x1] %vm6553, 0.0
    %6570 = vst.msk [vmem:[#allocation3 + $0x25] sm:$0x1] %vm6553, 0.0
    %6571 = vst.msk [vmem:[#allocation3 + $0x2d] sm:$0x1] %vm6553, 0.0
    %6572 = vst.msk [vmem:[#allocation3 + $0x35] sm:$0x1] %vm6553, 0.0
    %6573 = vst.msk [vmem:[#allocation3 + $0x3d] sm:$0x1] %vm6553, 0.0
    %6574 = vst.msk [vmem:[#allocation3 + $0x45] sm:$0x1] %vm6553, 0.0
    %6575 = vst.msk [vmem:[#allocation3 + $0x4d] sm:$0x1] %vm6553, 0.0
    %6576 = vst.msk [vmem:[#allocation3 + $0x55] sm:$0x1] %vm6553, 0.0
    %6577 = vst.msk [vmem:[#allocation3 + $0x5d] sm:$0x1] %vm6553, 0.0
    %v6610 = vsel %vm5144, %v6336, %v6329
    %v6611 = vsel %vm5146, %v6343, %v6610
    %v6612 = vsel %vm5148, %v6350, %v6611
    %v6613 = vsel %vm5144, %v6364, %v6357
    %v6614 = vsel %vm5146, %v6371, %v6613
    %v6615 = vsel %vm5148, %v6378, %v6614
    %v6616 = vsel %vm5144, %v6392, %v6385
    %v6617 = vsel %vm5146, %v6399, %v6616
    %v6618 = vsel %vm5148, %v6406, %v6617
    %v6619 = vsel %vm5144, %v6420, %v6413
    %v6620 = vsel %vm5146, %v6427, %v6619
    %v6621 = vsel %vm5148, %v6434, %v6620
    %v6622 = vsel %vm5144, %v6448, %v6441
    %v6623 = vsel %vm5146, %v6455, %v6622
    %v6624 = vsel %vm5148, %v6462, %v6623
    %v6625 = vsel %vm5144, %v6476, %v6469
    %v6626 = vsel %vm5146, %v6483, %v6625
    %v6627 = vsel %vm5148, %v6490, %v6626
    %v6628 = vsel %vm5144, %v6504, %v6497
    %v6629 = vsel %vm5146, %v6511, %v6628
    %v6630 = vsel %vm5148, %v6518, %v6629
    %v6631 = vsel %vm5144, %v6532, %v6525
    %v6632 = vsel %vm5146, %v6539, %v6631
    %v6633 = vsel %vm5148, %v6546, %v6632
    %s6642 = scalar_lea.vmem [#allocation3], 8
    %vm6643 = vcmask 27648
    %6644 = vst.msk [vmem:[%s6642 + $0x1] sm:$0xf] %vm6643, %v6612
    %6645 = vst.msk [vmem:[%s6642 + $0x9] sm:$0xf] %vm6643, %v6615
    %6646 = vst.msk [vmem:[%s6642 + $0x11] sm:$0xf] %vm6643, %v6618
    %6647 = vst.msk [vmem:[%s6642 + $0x19] sm:$0xf] %vm6643, %v6621
    %6648 = vst.msk [vmem:[%s6642 + $0x31] sm:$0xf] %vm6643, %v6624
    %6649 = vst.msk [vmem:[%s6642 + $0x39] sm:$0xf] %vm6643, %v6627
    %6650 = vst.msk [vmem:[%s6642 + $0x41] sm:$0xf] %vm6643, %v6630
    %6651 = vst.msk [vmem:[%s6642 + $0x49] sm:$0xf] %vm6643, %v6633
    %v6652 = vld [vmem:[#allocation3] sm:$0xf]
    %v6653 = vld [vmem:[#allocation3 + $0x8] sm:$0xf]
    %v6654 = vld [vmem:[#allocation3 + $0x10] sm:$0xf]
    %v6655 = vld [vmem:[#allocation3 + $0x18] sm:$0xf]
    %v6656 = vld [vmem:[#allocation3 + $0x30] sm:$0xf]
    %v6657 = vld [vmem:[#allocation3 + $0x38] sm:$0xf]
    %v6658 = vld [vmem:[#allocation3 + $0x40] sm:$0xf]
    %v6659 = vld [vmem:[#allocation3 + $0x48] sm:$0xf]
    %v6660 = vld [vmem:[#allocation3 + $0x1] sm:$0xf]
    %v6661 = vld [vmem:[#allocation3 + $0x9] sm:$0xf]
    %v6662 = vld [vmem:[#allocation3 + $0x11] sm:$0xf]
    %v6663 = vld [vmem:[#allocation3 + $0x19] sm:$0xf]
    %v6664 = vld [vmem:[#allocation3 + $0x31] sm:$0xf]
    %v6665 = vld [vmem:[#allocation3 + $0x39] sm:$0xf]
    %v6666 = vld [vmem:[#allocation3 + $0x41] sm:$0xf]
    %v6667 = vld [vmem:[#allocation3 + $0x49] sm:$0xf]
    %v6668 = vld [vmem:[#allocation3 + $0x2] sm:$0xf]
    %v6669 = vld [vmem:[#allocation3 + $0xa] sm:$0xf]
    %v6670 = vld [vmem:[#allocation3 + $0x12] sm:$0xf]
    %v6671 = vld [vmem:[#allocation3 + $0x1a] sm:$0xf]
    %v6672 = vld [vmem:[#allocation3 + $0x32] sm:$0xf]
    %v6673 = vld [vmem:[#allocation3 + $0x3a] sm:$0xf]
    %v6674 = vld [vmem:[#allocation3 + $0x42] sm:$0xf]
    %v6675 = vld [vmem:[#allocation3 + $0x4a] sm:$0xf]
    %v6676 = vld [vmem:[%s6642] sm:$0xf]
    %v6677 = vld [vmem:[%s6642 + $0x8] sm:$0xf]
    %v6678 = vld [vmem:[%s6642 + $0x10] sm:$0xf]
    %v6679 = vld [vmem:[%s6642 + $0x18] sm:$0xf]
    %v6680 = vld [vmem:[%s6642 + $0x30] sm:$0xf]
    %v6681 = vld [vmem:[%s6642 + $0x38] sm:$0xf]
    %v6682 = vld [vmem:[%s6642 + $0x40] sm:$0xf]
    %v6683 = vld [vmem:[%s6642 + $0x48] sm:$0xf]
    %v6684 = vld [vmem:[%s6642 + $0x1] sm:$0xf]
    %v6685 = vld [vmem:[%s6642 + $0x9] sm:$0xf]
    %v6686 = vld [vmem:[%s6642 + $0x11] sm:$0xf]
    %v6687 = vld [vmem:[%s6642 + $0x19] sm:$0xf]
    %v6688 = vld [vmem:[%s6642 + $0x31] sm:$0xf]
    %v6689 = vld [vmem:[%s6642 + $0x39] sm:$0xf]
    %v6690 = vld [vmem:[%s6642 + $0x41] sm:$0xf]
    %v6691 = vld [vmem:[%s6642 + $0x49] sm:$0xf]
    %v6692 = vld [vmem:[%s6642 + $0x2] sm:$0xf]
    %v6693 = vld [vmem:[%s6642 + $0xa] sm:$0xf]
    %v6694 = vld [vmem:[%s6642 + $0x12] sm:$0xf]
    %v6695 = vld [vmem:[%s6642 + $0x1a] sm:$0xf]
    %v6696 = vld [vmem:[%s6642 + $0x32] sm:$0xf]
    %v6697 = vld [vmem:[%s6642 + $0x3a] sm:$0xf]
    %v6698 = vld [vmem:[%s6642 + $0x42] sm:$0xf]
    %v6699 = vld [vmem:[%s6642 + $0x4a] sm:$0xf]
    %s6700 = scalar_lea.vmem [#allocation3], 16
    %v6701 = vld [vmem:[%s6700] sm:$0xf]
    %v6702 = vld [vmem:[%s6700 + $0x8] sm:$0xf]
    %v6703 = vld [vmem:[%s6700 + $0x10] sm:$0xf]
    %v6704 = vld [vmem:[%s6700 + $0x18] sm:$0xf]
    %v6705 = vld [vmem:[%s6700 + $0x30] sm:$0xf]
    %v6706 = vld [vmem:[%s6700 + $0x38] sm:$0xf]
    %v6707 = vld [vmem:[%s6700 + $0x40] sm:$0xf]
    %v6708 = vld [vmem:[%s6700 + $0x48] sm:$0xf]
    %v6709 = vld [vmem:[%s6700 + $0x1] sm:$0xf]
    %v6710 = vld [vmem:[%s6700 + $0x9] sm:$0xf]
    %v6711 = vld [vmem:[%s6700 + $0x11] sm:$0xf]
    %v6712 = vld [vmem:[%s6700 + $0x19] sm:$0xf]
    %v6713 = vld [vmem:[%s6700 + $0x31] sm:$0xf]
    %v6714 = vld [vmem:[%s6700 + $0x39] sm:$0xf]
    %v6715 = vld [vmem:[%s6700 + $0x41] sm:$0xf]
    %v6716 = vld [vmem:[%s6700 + $0x49] sm:$0xf]
    %v6717 = vld [vmem:[%s6700 + $0x2] sm:$0xf]
    %v6718 = vld [vmem:[%s6700 + $0xa] sm:$0xf]
    %v6719 = vld [vmem:[%s6700 + $0x12] sm:$0xf]
    %v6720 = vld [vmem:[%s6700 + $0x1a] sm:$0xf]
    %v6721 = vld [vmem:[%s6700 + $0x32] sm:$0xf]
    %v6722 = vld [vmem:[%s6700 + $0x3a] sm:$0xf]
    %v6723 = vld [vmem:[%s6700 + $0x42] sm:$0xf]
    %v6724 = vld [vmem:[%s6700 + $0x4a] sm:$0xf]
    %6733 = vst [vmem:[#allocation1] ss:$2 sm:$0xff] %v6652
    %s6734 = scalar_lea.vmem [#allocation1], 1
    %6735 = vst [vmem:[%s6734] ss:$2 sm:$0xff] %v6653
    %s6736 = scalar_lea.vmem [#allocation1], 16
    %6737 = vst [vmem:[%s6736] ss:$2 sm:$0xff] %v6654
    %s6738 = scalar_lea.vmem [#allocation1], 17
    %6739 = vst [vmem:[%s6738] ss:$2 sm:$0xff] %v6655
    %s6740 = scalar_lea.vmem [#allocation1], 32
    %6741 = vst [vmem:[%s6740] ss:$2 sm:$0xff] %v6656
    %s6742 = scalar_lea.vmem [#allocation1], 33
    %6743 = vst [vmem:[%s6742] ss:$2 sm:$0xff] %v6657
    %s6744 = scalar_lea.vmem [#allocation1], 48
    %6745 = vst [vmem:[%s6744] ss:$2 sm:$0xff] %v6658
    %s6746 = scalar_lea.vmem [#allocation1], 49
    %6747 = vst [vmem:[%s6746] ss:$2 sm:$0xff] %v6659
    %v6748 = vld.sshfl [vmem:[#allocation1] sm:$0xff pattern:$0x75316420]
    %v6749 = vld.sshfl [vmem:[#allocation1 + $0x10] sm:$0xff pattern:$0x75316420]
    %v6750 = vld.sshfl [vmem:[#allocation1 + $0x20] sm:$0xff pattern:$0x75316420]
    %v6751 = vld.sshfl [vmem:[#allocation1 + $0x30] sm:$0xff pattern:$0x75316420]
    %6764 = vst [vmem:[#allocation1] ss:$2 sm:$0xff] %v6660
    %s6765 = scalar_lea.vmem [#allocation1], 1
    %6766 = vst [vmem:[%s6765] ss:$2 sm:$0xff] %v6661
    %s6767 = scalar_lea.vmem [#allocation1], 16
    %6768 = vst [vmem:[%s6767] ss:$2 sm:$0xff] %v6662
    %s6769 = scalar_lea.vmem [#allocation1], 17
    %6770 = vst [vmem:[%s6769] ss:$2 sm:$0xff] %v6663
    %s6771 = scalar_lea.vmem [#allocation1], 32
    %6772 = vst [vmem:[%s6771] ss:$2 sm:$0xff] %v6664
    %s6773 = scalar_lea.vmem [#allocation1], 33
    %6774 = vst [vmem:[%s6773] ss:$2 sm:$0xff] %v6665
    %s6775 = scalar_lea.vmem [#allocation1], 48
    %6776 = vst [vmem:[%s6775] ss:$2 sm:$0xff] %v6666
    %s6777 = scalar_lea.vmem [#allocation1], 49
    %6778 = vst [vmem:[%s6777] ss:$2 sm:$0xff] %v6667
    %v6779 = vld.sshfl [vmem:[#allocation1] sm:$0xff pattern:$0x75316420]
    %v6780 = vld.sshfl [vmem:[#allocation1 + $0x10] sm:$0xff pattern:$0x75316420]
    %v6781 = vld.sshfl [vmem:[#allocation1 + $0x20] sm:$0xff pattern:$0x75316420]
    %v6782 = vld.sshfl [vmem:[#allocation1 + $0x30] sm:$0xff pattern:$0x75316420]
    %6783 = vrot.lane.b32.xlu0 %v6779, 4
    %v6784 = vpop.permute.xlu0 %6783
    %6785 = vrot.lane.b32.xlu0 %v6780, 4
    %v6786 = vpop.permute.xlu0 %6785
    %6787 = vrot.lane.b32.xlu0 %v6781, 4
    %v6788 = vpop.permute.xlu0 %6787
    %6789 = vrot.lane.b32.xlu0 %v6782, 4
    %v6790 = vpop.permute.xlu0 %6789
    %6803 = vst [vmem:[#allocation1] ss:$2 sm:$0xff] %v6668
    %s6804 = scalar_lea.vmem [#allocation1], 1
    %6805 = vst [vmem:[%s6804] ss:$2 sm:$0xff] %v6669
    %s6806 = scalar_lea.vmem [#allocation1], 16
    %6807 = vst [vmem:[%s6806] ss:$2 sm:$0xff] %v6670
    %s6808 = scalar_lea.vmem [#allocation1], 17
    %6809 = vst [vmem:[%s6808] ss:$2 sm:$0xff] %v6671
    %s6810 = scalar_lea.vmem [#allocation1], 32
    %6811 = vst [vmem:[%s6810] ss:$2 sm:$0xff] %v6672
    %s6812 = scalar_lea.vmem [#allocation1], 33
    %6813 = vst [vmem:[%s6812] ss:$2 sm:$0xff] %v6673
    %s6814 = scalar_lea.vmem [#allocation1], 48
    %6815 = vst [vmem:[%s6814] ss:$2 sm:$0xff] %v6674
    %s6816 = scalar_lea.vmem [#allocation1], 49
    %6817 = vst [vmem:[%s6816] ss:$2 sm:$0xff] %v6675
    %v6818 = vld.sshfl [vmem:[#allocation1] sm:$0xff pattern:$0x75316420]
    %v6819 = vld.sshfl [vmem:[#allocation1 + $0x10] sm:$0xff pattern:$0x75316420]
    %v6820 = vld.sshfl [vmem:[#allocation1 + $0x20] sm:$0xff pattern:$0x75316420]
    %v6821 = vld.sshfl [vmem:[#allocation1 + $0x30] sm:$0xff pattern:$0x75316420]
    %6822 = vrot.lane.b32.xlu0 %v6818, 8
    %v6823 = vpop.permute.xlu0 %6822
    %6824 = vrot.lane.b32.xlu0 %v6819, 8
    %v6825 = vpop.permute.xlu0 %6824
    %6826 = vrot.lane.b32.xlu0 %v6820, 8
    %v6827 = vpop.permute.xlu0 %6826
    %6828 = vrot.lane.b32.xlu0 %v6821, 8
    %v6829 = vpop.permute.xlu0 %6828
    %6842 = vst [vmem:[#allocation1] ss:$2 sm:$0xff] %v6676
    %s6843 = scalar_lea.vmem [#allocation1], 1
    %6844 = vst [vmem:[%s6843] ss:$2 sm:$0xff] %v6677
    %s6845 = scalar_lea.vmem [#allocation1], 16
    %6846 = vst [vmem:[%s6845] ss:$2 sm:$0xff] %v6678
    %s6847 = scalar_lea.vmem [#allocation1], 17
    %6848 = vst [vmem:[%s6847] ss:$2 sm:$0xff] %v6679
    %s6849 = scalar_lea.vmem [#allocation1], 32
    %6850 = vst [vmem:[%s6849] ss:$2 sm:$0xff] %v6680
    %s6851 = scalar_lea.vmem [#allocation1], 33
    %6852 = vst [vmem:[%s6851] ss:$2 sm:$0xff] %v6681
    %s6853 = scalar_lea.vmem [#allocation1], 48
    %6854 = vst [vmem:[%s6853] ss:$2 sm:$0xff] %v6682
    %s6855 = scalar_lea.vmem [#allocation1], 49
    %6856 = vst [vmem:[%s6855] ss:$2 sm:$0xff] %v6683
    %v6857 = vld.sshfl [vmem:[#allocation1] sm:$0xff pattern:$0x75316420]
    %v6858 = vld.sshfl [vmem:[#allocation1 + $0x10] sm:$0xff pattern:$0x75316420]
    %v6859 = vld.sshfl [vmem:[#allocation1 + $0x20] sm:$0xff pattern:$0x75316420]
    %v6860 = vld.sshfl [vmem:[#allocation1 + $0x30] sm:$0xff pattern:$0x75316420]
    %6861 = vrot.lane.b32.xlu0 %v6857, 12
    %v6862 = vpop.permute.xlu0 %6861
    %6863 = vrot.lane.b32.xlu0 %v6858, 12
    %v6864 = vpop.permute.xlu0 %6863
    %6865 = vrot.lane.b32.xlu0 %v6859, 12
    %v6866 = vpop.permute.xlu0 %6865
    %6867 = vrot.lane.b32.xlu0 %v6860, 12
    %v6868 = vpop.permute.xlu0 %6867
    %6881 = vst [vmem:[#allocation1] ss:$2 sm:$0xff] %v6684
    %s6882 = scalar_lea.vmem [#allocation1], 1
    %6883 = vst [vmem:[%s6882] ss:$2 sm:$0xff] %v6685
    %s6884 = scalar_lea.vmem [#allocation1], 16
    %6885 = vst [vmem:[%s6884] ss:$2 sm:$0xff] %v6686
    %s6886 = scalar_lea.vmem [#allocation1], 17
    %6887 = vst [vmem:[%s6886] ss:$2 sm:$0xff] %v6687
    %s6888 = scalar_lea.vmem [#allocation1], 32
    %6889 = vst [vmem:[%s6888] ss:$2 sm:$0xff] %v6688
    %s6890 = scalar_lea.vmem [#allocation1], 33
    %6891 = vst [vmem:[%s6890] ss:$2 sm:$0xff] %v6689
    %s6892 = scalar_lea.vmem [#allocation1], 48
    %6893 = vst [vmem:[%s6892] ss:$2 sm:$0xff] %v6690
    %s6894 = scalar_lea.vmem [#allocation1], 49
    %6895 = vst [vmem:[%s6894] ss:$2 sm:$0xff] %v6691
    %v6896 = vld.sshfl [vmem:[#allocation1] sm:$0xff pattern:$0x75316420]
    %v6897 = vld.sshfl [vmem:[#allocation1 + $0x10] sm:$0xff pattern:$0x75316420]
    %v6898 = vld.sshfl [vmem:[#allocation1 + $0x20] sm:$0xff pattern:$0x75316420]
    %v6899 = vld.sshfl [vmem:[#allocation1 + $0x30] sm:$0xff pattern:$0x75316420]
    %6900 = vrot.lane.b32.xlu0 %v6896, 16
    %v6901 = vpop.permute.xlu0 %6900
    %6902 = vrot.lane.b32.xlu0 %v6897, 16
    %v6903 = vpop.permute.xlu0 %6902
    %6904 = vrot.lane.b32.xlu0 %v6898, 16
    %v6905 = vpop.permute.xlu0 %6904
    %6906 = vrot.lane.b32.xlu0 %v6899, 16
    %v6907 = vpop.permute.xlu0 %6906
    %6920 = vst [vmem:[#allocation1] ss:$2 sm:$0xff] %v6692
    %s6921 = scalar_lea.vmem [#allocation1], 1
    %6922 = vst [vmem:[%s6921] ss:$2 sm:$0xff] %v6693
    %s6923 = scalar_lea.vmem [#allocation1], 16
    %6924 = vst [vmem:[%s6923] ss:$2 sm:$0xff] %v6694
    %s6925 = scalar_lea.vmem [#allocation1], 17
    %6926 = vst [vmem:[%s6925] ss:$2 sm:$0xff] %v6695
    %s6927 = scalar_lea.vmem [#allocation1], 32
    %6928 = vst [vmem:[%s6927] ss:$2 sm:$0xff] %v6696
    %s6929 = scalar_lea.vmem [#allocation1], 33
    %6930 = vst [vmem:[%s6929] ss:$2 sm:$0xff] %v6697
    %s6931 = scalar_lea.vmem [#allocation1], 48
    %6932 = vst [vmem:[%s6931] ss:$2 sm:$0xff] %v6698
    %s6933 = scalar_lea.vmem [#allocation1], 49
    %6934 = vst [vmem:[%s6933] ss:$2 sm:$0xff] %v6699
    %v6935 = vld.sshfl [vmem:[#allocation1] sm:$0xff pattern:$0x75316420]
    %v6936 = vld.sshfl [vmem:[#allocation1 + $0x10] sm:$0xff pattern:$0x75316420]
    %v6937 = vld.sshfl [vmem:[#allocation1 + $0x20] sm:$0xff pattern:$0x75316420]
    %v6938 = vld.sshfl [vmem:[#allocation1 + $0x30] sm:$0xff pattern:$0x75316420]
    %6939 = vrot.lane.b32.xlu0 %v6935, 20
    %v6940 = vpop.permute.xlu0 %6939
    %6941 = vrot.lane.b32.xlu0 %v6936, 20
    %v6942 = vpop.permute.xlu0 %6941
    %6943 = vrot.lane.b32.xlu0 %v6937, 20
    %v6944 = vpop.permute.xlu0 %6943
    %6945 = vrot.lane.b32.xlu0 %v6938, 20
    %v6946 = vpop.permute.xlu0 %6945
    %6959 = vst [vmem:[#allocation1] ss:$2 sm:$0xff] %v6701
    %s6960 = scalar_lea.vmem [#allocation1], 1
    %6961 = vst [vmem:[%s6960] ss:$2 sm:$0xff] %v6702
    %s6962 = scalar_lea.vmem [#allocation1], 16
    %6963 = vst [vmem:[%s6962] ss:$2 sm:$0xff] %v6703
    %s6964 = scalar_lea.vmem [#allocation1], 17
    %6965 = vst [vmem:[%s6964] ss:$2 sm:$0xff] %v6704
    %s6966 = scalar_lea.vmem [#allocation1], 32
    %6967 = vst [vmem:[%s6966] ss:$2 sm:$0xff] %v6705
    %s6968 = scalar_lea.vmem [#allocation1], 33
    %6969 = vst [vmem:[%s6968] ss:$2 sm:$0xff] %v6706
    %s6970 = scalar_lea.vmem [#allocation1], 48
    %6971 = vst [vmem:[%s6970] ss:$2 sm:$0xff] %v6707
    %s6972 = scalar_lea.vmem [#allocation1], 49
    %6973 = vst [vmem:[%s6972] ss:$2 sm:$0xff] %v6708
    %v6974 = vld.sshfl [vmem:[#allocation1] sm:$0xff pattern:$0x75316420]
    %v6975 = vld.sshfl [vmem:[#allocation1 + $0x10] sm:$0xff pattern:$0x75316420]
    %v6976 = vld.sshfl [vmem:[#allocation1 + $0x20] sm:$0xff pattern:$0x75316420]
    %v6977 = vld.sshfl [vmem:[#allocation1 + $0x30] sm:$0xff pattern:$0x75316420]
    %6978 = vrot.lane.b32.xlu0 %v6974, 24
    %v6979 = vpop.permute.xlu0 %6978
    %6980 = vrot.lane.b32.xlu0 %v6975, 24
    %v6981 = vpop.permute.xlu0 %6980
    %6982 = vrot.lane.b32.xlu0 %v6976, 24
    %v6983 = vpop.permute.xlu0 %6982
    %6984 = vrot.lane.b32.xlu0 %v6977, 24
    %v6985 = vpop.permute.xlu0 %6984
    %6998 = vst [vmem:[#allocation1] ss:$2 sm:$0xff] %v6709
    %s6999 = scalar_lea.vmem [#allocation1], 1
    %7000 = vst [vmem:[%s6999] ss:$2 sm:$0xff] %v6710
    %s7001 = scalar_lea.vmem [#allocation1], 16
    %7002 = vst [vmem:[%s7001] ss:$2 sm:$0xff] %v6711
    %s7003 = scalar_lea.vmem [#allocation1], 17
    %7004 = vst [vmem:[%s7003] ss:$2 sm:$0xff] %v6712
    %s7005 = scalar_lea.vmem [#allocation1], 32
    %7006 = vst [vmem:[%s7005] ss:$2 sm:$0xff] %v6713
    %s7007 = scalar_lea.vmem [#allocation1], 33
    %7008 = vst [vmem:[%s7007] ss:$2 sm:$0xff] %v6714
    %s7009 = scalar_lea.vmem [#allocation1], 48
    %7010 = vst [vmem:[%s7009] ss:$2 sm:$0xff] %v6715
    %s7011 = scalar_lea.vmem [#allocation1], 49
    %7012 = vst [vmem:[%s7011] ss:$2 sm:$0xff] %v6716
    %v7013 = vld.sshfl [vmem:[#allocation1] sm:$0xff pattern:$0x75316420]
    %v7014 = vld.sshfl [vmem:[#allocation1 + $0x10] sm:$0xff pattern:$0x75316420]
    %v7015 = vld.sshfl [vmem:[#allocation1 + $0x20] sm:$0xff pattern:$0x75316420]
    %v7016 = vld.sshfl [vmem:[#allocation1 + $0x30] sm:$0xff pattern:$0x75316420]
    %7017 = vrot.lane.b32.xlu0 %v7013, 28
    %v7018 = vpop.permute.xlu0 %7017
    %7019 = vrot.lane.b32.xlu0 %v7014, 28
    %v7020 = vpop.permute.xlu0 %7019
    %7021 = vrot.lane.b32.xlu0 %v7015, 28
    %v7022 = vpop.permute.xlu0 %7021
    %7023 = vrot.lane.b32.xlu0 %v7016, 28
    %v7024 = vpop.permute.xlu0 %7023
    %7037 = vst [vmem:[#allocation1] ss:$2 sm:$0xff] %v6717
    %s7038 = scalar_lea.vmem [#allocation1], 1
    %7039 = vst [vmem:[%s7038] ss:$2 sm:$0xff] %v6718
    %s7040 = scalar_lea.vmem [#allocation1], 16
    %7041 = vst [vmem:[%s7040] ss:$2 sm:$0xff] %v6719
    %s7042 = scalar_lea.vmem [#allocation1], 17
    %7043 = vst [vmem:[%s7042] ss:$2 sm:$0xff] %v6720
    %s7044 = scalar_lea.vmem [#allocation1], 32
    %7045 = vst [vmem:[%s7044] ss:$2 sm:$0xff] %v6721
    %s7046 = scalar_lea.vmem [#allocation1], 33
    %7047 = vst [vmem:[%s7046] ss:$2 sm:$0xff] %v6722
    %s7048 = scalar_lea.vmem [#allocation1], 48
    %7049 = vst [vmem:[%s7048] ss:$2 sm:$0xff] %v6723
    %s7050 = scalar_lea.vmem [#allocation1], 49
    %7051 = vst [vmem:[%s7050] ss:$2 sm:$0xff] %v6724
    %v7052 = vld.sshfl [vmem:[#allocation1] sm:$0xff pattern:$0x75316420]
    %v7053 = vld.sshfl [vmem:[#allocation1 + $0x10] sm:$0xff pattern:$0x75316420]
    %v7054 = vld.sshfl [vmem:[#allocation1 + $0x20] sm:$0xff pattern:$0x75316420]
    %v7055 = vld.sshfl [vmem:[#allocation1 + $0x30] sm:$0xff pattern:$0x75316420]
    %7056 = vrot.lane.b32.xlu0 %v7052, 32
    %v7057 = vpop.permute.xlu0 %7056
    %7058 = vrot.lane.b32.xlu0 %v7053, 32
    %v7059 = vpop.permute.xlu0 %7058
    %7060 = vrot.lane.b32.xlu0 %v7054, 32
    %v7061 = vpop.permute.xlu0 %7060
    %7062 = vrot.lane.b32.xlu0 %v7055, 32
    %v7063 = vpop.permute.xlu0 %7062
    %v7068 = vsel %vm2884, %v6748, %v6784
    %v7069 = vsel %vm2884, %v6749, %v6786
    %v7070 = vsel %vm2884, %v6750, %v6788
    %v7071 = vsel %vm2884, %v6751, %v6790
    %v7072 = vsel %vm3144, %v7068, %v6823
    %v7073 = vsel %vm3144, %v7069, %v6825
    %v7074 = vsel %vm3144, %v7070, %v6827
    %v7075 = vsel %vm3144, %v7071, %v6829
    %v7076 = vsel %vm6034, %v7072, %v6862
    %v7077 = vsel %vm6034, %v7073, %v6864
    %v7078 = vsel %vm6034, %v7074, %v6866
    %v7079 = vsel %vm6034, %v7075, %v6868
    %v7080 = vsel %vm6068, %v7076, %v6901
    %v7081 = vsel %vm6068, %v7077, %v6903
    %v7082 = vsel %vm6068, %v7078, %v6905
    %v7083 = vsel %vm6068, %v7079, %v6907
    %vm7084 = vcmask 162816
    %v7085 = vsel %vm7084, %v7080, %v6940
    %v7086 = vsel %vm7084, %v7081, %v6942
    %v7087 = vsel %vm7084, %v7082, %v6944
    %v7088 = vsel %vm7084, %v7083, %v6946
    %vm7089 = vcmask 195584
    %v7090 = vsel %vm7089, %v7085, %v6979
    %v7091 = vsel %vm7089, %v7086, %v6981
    %v7092 = vsel %vm7089, %v7087, %v6983
    %v7093 = vsel %vm7089, %v7088, %v6985
    %vm7094 = vcmask 228352
    %v7095 = vsel %vm7094, %v7090, %v7018
    %v7096 = vsel %vm7094, %v7091, %v7020
    %v7097 = vsel %vm7094, %v7092, %v7022
    %v7098 = vsel %vm7094, %v7093, %v7024
    %vm7099 = vcmask 261120
    %v7100 = vsel %vm7099, %v7095, %v7057
    %v7101 = vsel %vm7099, %v7096, %v7059
    %v7102 = vsel %vm7099, %v7097, %v7061
    %v7103 = vsel %vm7099, %v7098, %v7063
    %v7104 = vld [vmem:[%s3] sm:$0xff]
    %v7105 = vld [vmem:[%s3 + $0x8] sm:$0xff]
    %v7106 = vld [vmem:[%s3 + $0x10] sm:$0xff]
    %v7107 = vld [vmem:[%s3 + $0x18] sm:$0xff]
    %v7108 = vld [vmem:[%s3 + $0x20] sm:$0xf]
    %v7109 = vld [vmem:[%s9] sm:$0x1]
    %v7111 = vperm.slane %v7109, 0
    %vm7113 = vcmask 293888
    %v7115 = vsel %vm7113, %v7100, 0
    %v7118 = vsel %vm7113, %v7101, 0
    %v7121 = vsel %vm7113, %v7102, 0
    %v7124 = vsel %vm7113, %v7103, 0
    %vm7126 = vcmask 1043456
    %v7128 = vsel %vm7126, %v7108, 0
    %7130 = vmatpush.msra.mxu0 0.0
    %7131 = vmatpush.msra.mxu0 0.0
    %7132 = vmatpush.msra.mxu0 0.0
    %7133 = vmatpush.msra.mxu0 0.0
    %7134 = vmatpush.msra.mxu0 0.0
    %7135 = vmatpush.msra.mxu0 0.0
    %7136 = vmatpush.msra.mxu0 0.0
    %7137 = vmatpush.msra.mxu0 0.0
    %7138 = vmatpush.msra.mxu0 0.0
    %7139 = vmatpush.msra.mxu0 0.0
    %7140 = vmatpush.msra.mxu0 0.0
    %7141 = vmatpush.msra.mxu0 %v7128
    %7142 = vmatpush.msra.mxu0 %v7107
    %7143 = vmatpush.msra.mxu0 %v7106
    %7144 = vmatpush.msra.mxu0 %v7105
    %7145 = vmatpush.msra.mxu0 %v7104
    %7146 = vmatmul.f32.gmra.mxu0 %v7115
    %v7147 = vpop.f32.mrf.mxu0
    %v7148 = vadd.f32 %v7111, %v7147
    %7149 = vmatmul.f32.gmra.mxu0 %v7118
    %v7150 = vpop.f32.mrf.mxu0
    %v7151 = vadd.f32 %v7111, %v7150
    %7152 = vmatmul.f32.gmra.mxu0 %v7121
    %v7153 = vpop.f32.mrf.mxu0
    %v7154 = vadd.f32 %v7111, %v7153
    %7155 = vmatmul.f32.gmra.mxu0 %v7124
    %v7156 = vpop.f32.mrf.mxu0
    %v7157 = vadd.f32 %v7111, %v7156
    %7158 = vdwg.mxu0
    %vm7159 = vcmp.gt.f32.partialorder %v7148, 0.0
    %vm7160 = vcmp.gt.f32.partialorder %v7151, 0.0
    %vm7161 = vcmp.gt.f32.partialorder %v7154, 0.0
    %vm7162 = vcmp.gt.f32.partialorder %v7157, 0.0
    %v7163 = vmul.f32 %v7148, 0.01
    %v7164 = vmul.f32 %v7151, 0.01
    %v7165 = vmul.f32 %v7154, 0.01
    %v7166 = vmul.f32 %v7157, 0.01
    %v7167 = vsel %vm7159, %v7148, %v7163
    %v7168 = vsel %vm7160, %v7151, %v7164
    %v7169 = vsel %vm7161, %v7154, %v7165
    %v7170 = vsel %vm7162, %v7157, %v7166
    %v7175 = vrot.slane %v7167, 4
    %v7176 = vrot.slane %v7168, 4
    %v7177 = vrot.slane %v7169, 4
    %v7178 = vrot.slane %v7170, 4
    %vm7183 = vcmask 62464
    %7184 = vst.msk [vmem:[#allocation4] sm:$0x3f] %vm7183, 0.0
    %7185 = vst.msk [vmem:[#allocation4 + $0x30] sm:$0x3f] %vm7183, 0.0
    %s7186 = scalar_lea.vmem [#allocation4], 40
    %7187 = vst.msk [vmem:[%s7186] sm:$0x3f] %vm7183, 0.0
    %7188 = vst.msk [vmem:[%s7186 + $0x30] sm:$0x3f] %vm7183, 0.0
    %vm7189 = vcmask 57344
    %7190 = vst.msk [vmem:[#allocation4] sm:$0x1] %vm7189, 0.0
    %7191 = vst.msk [vmem:[#allocation4 + $0x8] sm:$0x1] %vm7189, 0.0
    %7192 = vst.msk [vmem:[#allocation4 + $0x10] sm:$0x1] %vm7189, 0.0
    %7193 = vst.msk [vmem:[#allocation4 + $0x18] sm:$0x1] %vm7189, 0.0
    %7194 = vst.msk [vmem:[#allocation4 + $0x20] sm:$0x1] %vm7189, 0.0
    %7195 = vst.msk [vmem:[#allocation4 + $0x28] sm:$0x1] %vm7189, 0.0
    %7196 = vst.msk [vmem:[#allocation4 + $0x30] sm:$0x1] %vm7189, 0.0
    %7197 = vst.msk [vmem:[#allocation4 + $0x38] sm:$0x1] %vm7189, 0.0
    %7198 = vst.msk [vmem:[#allocation4 + $0x40] sm:$0x1] %vm7189, 0.0
    %7199 = vst.msk [vmem:[#allocation4 + $0x48] sm:$0x1] %vm7189, 0.0
    %7200 = vst.msk [vmem:[#allocation4 + $0x50] sm:$0x1] %vm7189, 0.0
    %7201 = vst.msk [vmem:[#allocation4 + $0x58] sm:$0x1] %vm7189, 0.0
    %7202 = vst.msk [vmem:[#allocation4 + $0x5] sm:$0x1] %vm7189, 0.0
    %7203 = vst.msk [vmem:[#allocation4 + $0xd] sm:$0x1] %vm7189, 0.0
    %7204 = vst.msk [vmem:[#allocation4 + $0x15] sm:$0x1] %vm7189, 0.0
    %7205 = vst.msk [vmem:[#allocation4 + $0x1d] sm:$0x1] %vm7189, 0.0
    %7206 = vst.msk [vmem:[#allocation4 + $0x25] sm:$0x1] %vm7189, 0.0
    %7207 = vst.msk [vmem:[#allocation4 + $0x2d] sm:$0x1] %vm7189, 0.0
    %7208 = vst.msk [vmem:[#allocation4 + $0x35] sm:$0x1] %vm7189, 0.0
    %7209 = vst.msk [vmem:[#allocation4 + $0x3d] sm:$0x1] %vm7189, 0.0
    %7210 = vst.msk [vmem:[#allocation4 + $0x45] sm:$0x1] %vm7189, 0.0
    %7211 = vst.msk [vmem:[#allocation4 + $0x4d] sm:$0x1] %vm7189, 0.0
    %7212 = vst.msk [vmem:[#allocation4 + $0x55] sm:$0x1] %vm7189, 0.0
    %7213 = vst.msk [vmem:[#allocation4 + $0x5d] sm:$0x1] %vm7189, 0.0
    %s7214 = scalar_lea.vmem [#allocation4], 8
    %vm7215 = vcmask 60416
    %7216 = vst.msk [vmem:[%s7214 + $0x1] sm:$0xf] %vm7215, %v7167
    %7217 = vst.msk [vmem:[%s7214 + $0x9] sm:$0xf] %vm7215, %v7175
    %7218 = vst.msk [vmem:[%s7214 + $0x11] sm:$0xf] %vm7215, %v7168
    %7219 = vst.msk [vmem:[%s7214 + $0x19] sm:$0xf] %vm7215, %v7176
    %7220 = vst.msk [vmem:[%s7214 + $0x31] sm:$0xf] %vm7215, %v7169
    %7221 = vst.msk [vmem:[%s7214 + $0x39] sm:$0xf] %vm7215, %v7177
    %7222 = vst.msk [vmem:[%s7214 + $0x41] sm:$0xf] %vm7215, %v7170
    %7223 = vst.msk [vmem:[%s7214 + $0x49] sm:$0xf] %vm7215, %v7178
    %v7224 = vld [vmem:[#allocation4] sm:$0xf]
    %v7225 = vld [vmem:[#allocation4 + $0x8] sm:$0xf]
    %v7226 = vld [vmem:[#allocation4 + $0x10] sm:$0xf]
    %v7227 = vld [vmem:[#allocation4 + $0x18] sm:$0xf]
    %v7228 = vld [vmem:[#allocation4 + $0x30] sm:$0xf]
    %v7229 = vld [vmem:[#allocation4 + $0x38] sm:$0xf]
    %v7230 = vld [vmem:[#allocation4 + $0x40] sm:$0xf]
    %v7231 = vld [vmem:[#allocation4 + $0x48] sm:$0xf]
    %v7232 = vld [vmem:[#allocation4 + $0x1] sm:$0xf]
    %v7233 = vld [vmem:[#allocation4 + $0x9] sm:$0xf]
    %v7234 = vld [vmem:[#allocation4 + $0x11] sm:$0xf]
    %v7235 = vld [vmem:[#allocation4 + $0x19] sm:$0xf]
    %v7236 = vld [vmem:[#allocation4 + $0x31] sm:$0xf]
    %v7237 = vld [vmem:[#allocation4 + $0x39] sm:$0xf]
    %v7238 = vld [vmem:[#allocation4 + $0x41] sm:$0xf]
    %v7239 = vld [vmem:[#allocation4 + $0x49] sm:$0xf]
    %v7240 = vld [vmem:[#allocation4 + $0x2] sm:$0xf]
    %v7241 = vld [vmem:[#allocation4 + $0xa] sm:$0xf]
    %v7242 = vld [vmem:[#allocation4 + $0x12] sm:$0xf]
    %v7243 = vld [vmem:[#allocation4 + $0x1a] sm:$0xf]
    %v7244 = vld [vmem:[#allocation4 + $0x32] sm:$0xf]
    %v7245 = vld [vmem:[#allocation4 + $0x3a] sm:$0xf]
    %v7246 = vld [vmem:[#allocation4 + $0x42] sm:$0xf]
    %v7247 = vld [vmem:[#allocation4 + $0x4a] sm:$0xf]
    %v7248 = vld [vmem:[%s7214] sm:$0xf]
    %v7249 = vld [vmem:[%s7214 + $0x8] sm:$0xf]
    %v7250 = vld [vmem:[%s7214 + $0x10] sm:$0xf]
    %v7251 = vld [vmem:[%s7214 + $0x18] sm:$0xf]
    %v7252 = vld [vmem:[%s7214 + $0x30] sm:$0xf]
    %v7253 = vld [vmem:[%s7214 + $0x38] sm:$0xf]
    %v7254 = vld [vmem:[%s7214 + $0x40] sm:$0xf]
    %v7255 = vld [vmem:[%s7214 + $0x48] sm:$0xf]
    %v7256 = vld [vmem:[%s7214 + $0x1] sm:$0xf]
    %v7257 = vld [vmem:[%s7214 + $0x9] sm:$0xf]
    %v7258 = vld [vmem:[%s7214 + $0x11] sm:$0xf]
    %v7259 = vld [vmem:[%s7214 + $0x19] sm:$0xf]
    %v7260 = vld [vmem:[%s7214 + $0x31] sm:$0xf]
    %v7261 = vld [vmem:[%s7214 + $0x39] sm:$0xf]
    %v7262 = vld [vmem:[%s7214 + $0x41] sm:$0xf]
    %v7263 = vld [vmem:[%s7214 + $0x49] sm:$0xf]
    %v7264 = vld [vmem:[%s7214 + $0x2] sm:$0xf]
    %v7265 = vld [vmem:[%s7214 + $0xa] sm:$0xf]
    %v7266 = vld [vmem:[%s7214 + $0x12] sm:$0xf]
    %v7267 = vld [vmem:[%s7214 + $0x1a] sm:$0xf]
    %v7268 = vld [vmem:[%s7214 + $0x32] sm:$0xf]
    %v7269 = vld [vmem:[%s7214 + $0x3a] sm:$0xf]
    %v7270 = vld [vmem:[%s7214 + $0x42] sm:$0xf]
    %v7271 = vld [vmem:[%s7214 + $0x4a] sm:$0xf]
    %s7272 = scalar_lea.vmem [#allocation4], 16
    %v7273 = vld [vmem:[%s7272] sm:$0xf]
    %v7274 = vld [vmem:[%s7272 + $0x8] sm:$0xf]
    %v7275 = vld [vmem:[%s7272 + $0x10] sm:$0xf]
    %v7276 = vld [vmem:[%s7272 + $0x18] sm:$0xf]
    %v7277 = vld [vmem:[%s7272 + $0x30] sm:$0xf]
    %v7278 = vld [vmem:[%s7272 + $0x38] sm:$0xf]
    %v7279 = vld [vmem:[%s7272 + $0x40] sm:$0xf]
    %v7280 = vld [vmem:[%s7272 + $0x48] sm:$0xf]
    %v7281 = vld [vmem:[%s7272 + $0x1] sm:$0xf]
    %v7282 = vld [vmem:[%s7272 + $0x9] sm:$0xf]
    %v7283 = vld [vmem:[%s7272 + $0x11] sm:$0xf]
    %v7284 = vld [vmem:[%s7272 + $0x19] sm:$0xf]
    %v7285 = vld [vmem:[%s7272 + $0x31] sm:$0xf]
    %v7286 = vld [vmem:[%s7272 + $0x39] sm:$0xf]
    %v7287 = vld [vmem:[%s7272 + $0x41] sm:$0xf]
    %v7288 = vld [vmem:[%s7272 + $0x49] sm:$0xf]
    %v7289 = vld [vmem:[%s7272 + $0x2] sm:$0xf]
    %v7290 = vld [vmem:[%s7272 + $0xa] sm:$0xf]
    %v7291 = vld [vmem:[%s7272 + $0x12] sm:$0xf]
    %v7292 = vld [vmem:[%s7272 + $0x1a] sm:$0xf]
    %v7293 = vld [vmem:[%s7272 + $0x32] sm:$0xf]
    %v7294 = vld [vmem:[%s7272 + $0x3a] sm:$0xf]
    %v7295 = vld [vmem:[%s7272 + $0x42] sm:$0xf]
    %v7296 = vld [vmem:[%s7272 + $0x4a] sm:$0xf]
    %7305 = vst [vmem:[#allocation1] ss:$2 sm:$0xff] %v7224
    %s7306 = scalar_lea.vmem [#allocation1], 1
    %7307 = vst [vmem:[%s7306] ss:$2 sm:$0xff] %v7225
    %s7308 = scalar_lea.vmem [#allocation1], 16
    %7309 = vst [vmem:[%s7308] ss:$2 sm:$0xff] %v7226
    %s7310 = scalar_lea.vmem [#allocation1], 17
    %7311 = vst [vmem:[%s7310] ss:$2 sm:$0xff] %v7227
    %s7312 = scalar_lea.vmem [#allocation1], 32
    %7313 = vst [vmem:[%s7312] ss:$2 sm:$0xff] %v7228
    %s7314 = scalar_lea.vmem [#allocation1], 33
    %7315 = vst [vmem:[%s7314] ss:$2 sm:$0xff] %v7229
    %s7316 = scalar_lea.vmem [#allocation1], 48
    %7317 = vst [vmem:[%s7316] ss:$2 sm:$0xff] %v7230
    %s7318 = scalar_lea.vmem [#allocation1], 49
    %7319 = vst [vmem:[%s7318] ss:$2 sm:$0xff] %v7231
    %v7320 = vld.sshfl [vmem:[#allocation1] sm:$0xff pattern:$0x75316420]
    %v7321 = vld.sshfl [vmem:[#allocation1 + $0x10] sm:$0xff pattern:$0x75316420]
    %v7322 = vld.sshfl [vmem:[#allocation1 + $0x20] sm:$0xff pattern:$0x75316420]
    %v7323 = vld.sshfl [vmem:[#allocation1 + $0x30] sm:$0xff pattern:$0x75316420]
    %7336 = vst [vmem:[#allocation1] ss:$2 sm:$0xff] %v7232
    %s7337 = scalar_lea.vmem [#allocation1], 1
    %7338 = vst [vmem:[%s7337] ss:$2 sm:$0xff] %v7233
    %s7339 = scalar_lea.vmem [#allocation1], 16
    %7340 = vst [vmem:[%s7339] ss:$2 sm:$0xff] %v7234
    %s7341 = scalar_lea.vmem [#allocation1], 17
    %7342 = vst [vmem:[%s7341] ss:$2 sm:$0xff] %v7235
    %s7343 = scalar_lea.vmem [#allocation1], 32
    %7344 = vst [vmem:[%s7343] ss:$2 sm:$0xff] %v7236
    %s7345 = scalar_lea.vmem [#allocation1], 33
    %7346 = vst [vmem:[%s7345] ss:$2 sm:$0xff] %v7237
    %s7347 = scalar_lea.vmem [#allocation1], 48
    %7348 = vst [vmem:[%s7347] ss:$2 sm:$0xff] %v7238
    %s7349 = scalar_lea.vmem [#allocation1], 49
    %7350 = vst [vmem:[%s7349] ss:$2 sm:$0xff] %v7239
    %v7351 = vld.sshfl [vmem:[#allocation1] sm:$0xff pattern:$0x75316420]
    %v7352 = vld.sshfl [vmem:[#allocation1 + $0x10] sm:$0xff pattern:$0x75316420]
    %v7353 = vld.sshfl [vmem:[#allocation1 + $0x20] sm:$0xff pattern:$0x75316420]
    %v7354 = vld.sshfl [vmem:[#allocation1 + $0x30] sm:$0xff pattern:$0x75316420]
    %7355 = vrot.lane.b32.xlu0 %v7351, 8
    %v7356 = vpop.permute.xlu0 %7355
    %7357 = vrot.lane.b32.xlu0 %v7352, 8
    %v7358 = vpop.permute.xlu0 %7357
    %7359 = vrot.lane.b32.xlu0 %v7353, 8
    %v7360 = vpop.permute.xlu0 %7359
    %7361 = vrot.lane.b32.xlu0 %v7354, 8
    %v7362 = vpop.permute.xlu0 %7361
    %7375 = vst [vmem:[#allocation1] ss:$2 sm:$0xff] %v7240
    %s7376 = scalar_lea.vmem [#allocation1], 1
    %7377 = vst [vmem:[%s7376] ss:$2 sm:$0xff] %v7241
    %s7378 = scalar_lea.vmem [#allocation1], 16
    %7379 = vst [vmem:[%s7378] ss:$2 sm:$0xff] %v7242
    %s7380 = scalar_lea.vmem [#allocation1], 17
    %7381 = vst [vmem:[%s7380] ss:$2 sm:$0xff] %v7243
    %s7382 = scalar_lea.vmem [#allocation1], 32
    %7383 = vst [vmem:[%s7382] ss:$2 sm:$0xff] %v7244
    %s7384 = scalar_lea.vmem [#allocation1], 33
    %7385 = vst [vmem:[%s7384] ss:$2 sm:$0xff] %v7245
    %s7386 = scalar_lea.vmem [#allocation1], 48
    %7387 = vst [vmem:[%s7386] ss:$2 sm:$0xff] %v7246
    %s7388 = scalar_lea.vmem [#allocation1], 49
    %7389 = vst [vmem:[%s7388] ss:$2 sm:$0xff] %v7247
    %v7390 = vld.sshfl [vmem:[#allocation1] sm:$0xff pattern:$0x75316420]
    %v7391 = vld.sshfl [vmem:[#allocation1 + $0x10] sm:$0xff pattern:$0x75316420]
    %v7392 = vld.sshfl [vmem:[#allocation1 + $0x20] sm:$0xff pattern:$0x75316420]
    %v7393 = vld.sshfl [vmem:[#allocation1 + $0x30] sm:$0xff pattern:$0x75316420]
    %7394 = vrot.lane.b32.xlu0 %v7390, 16
    %v7395 = vpop.permute.xlu0 %7394
    %7396 = vrot.lane.b32.xlu0 %v7391, 16
    %v7397 = vpop.permute.xlu0 %7396
    %7398 = vrot.lane.b32.xlu0 %v7392, 16
    %v7399 = vpop.permute.xlu0 %7398
    %7400 = vrot.lane.b32.xlu0 %v7393, 16
    %v7401 = vpop.permute.xlu0 %7400
    %7414 = vst [vmem:[#allocation1] ss:$2 sm:$0xff] %v7248
    %s7415 = scalar_lea.vmem [#allocation1], 1
    %7416 = vst [vmem:[%s7415] ss:$2 sm:$0xff] %v7249
    %s7417 = scalar_lea.vmem [#allocation1], 16
    %7418 = vst [vmem:[%s7417] ss:$2 sm:$0xff] %v7250
    %s7419 = scalar_lea.vmem [#allocation1], 17
    %7420 = vst [vmem:[%s7419] ss:$2 sm:$0xff] %v7251
    %s7421 = scalar_lea.vmem [#allocation1], 32
    %7422 = vst [vmem:[%s7421] ss:$2 sm:$0xff] %v7252
    %s7423 = scalar_lea.vmem [#allocation1], 33
    %7424 = vst [vmem:[%s7423] ss:$2 sm:$0xff] %v7253
    %s7425 = scalar_lea.vmem [#allocation1], 48
    %7426 = vst [vmem:[%s7425] ss:$2 sm:$0xff] %v7254
    %s7427 = scalar_lea.vmem [#allocation1], 49
    %7428 = vst [vmem:[%s7427] ss:$2 sm:$0xff] %v7255
    %v7429 = vld.sshfl [vmem:[#allocation1] sm:$0xff pattern:$0x75316420]
    %v7430 = vld.sshfl [vmem:[#allocation1 + $0x10] sm:$0xff pattern:$0x75316420]
    %v7431 = vld.sshfl [vmem:[#allocation1 + $0x20] sm:$0xff pattern:$0x75316420]
    %v7432 = vld.sshfl [vmem:[#allocation1 + $0x30] sm:$0xff pattern:$0x75316420]
    %7433 = vrot.lane.b32.xlu0 %v7429, 24
    %v7434 = vpop.permute.xlu0 %7433
    %7435 = vrot.lane.b32.xlu0 %v7430, 24
    %v7436 = vpop.permute.xlu0 %7435
    %7437 = vrot.lane.b32.xlu0 %v7431, 24
    %v7438 = vpop.permute.xlu0 %7437
    %7439 = vrot.lane.b32.xlu0 %v7432, 24
    %v7440 = vpop.permute.xlu0 %7439
    %7453 = vst [vmem:[#allocation1] ss:$2 sm:$0xff] %v7256
    %s7454 = scalar_lea.vmem [#allocation1], 1
    %7455 = vst [vmem:[%s7454] ss:$2 sm:$0xff] %v7257
    %s7456 = scalar_lea.vmem [#allocation1], 16
    %7457 = vst [vmem:[%s7456] ss:$2 sm:$0xff] %v7258
    %s7458 = scalar_lea.vmem [#allocation1], 17
    %7459 = vst [vmem:[%s7458] ss:$2 sm:$0xff] %v7259
    %s7460 = scalar_lea.vmem [#allocation1], 32
    %7461 = vst [vmem:[%s7460] ss:$2 sm:$0xff] %v7260
    %s7462 = scalar_lea.vmem [#allocation1], 33
    %7463 = vst [vmem:[%s7462] ss:$2 sm:$0xff] %v7261
    %s7464 = scalar_lea.vmem [#allocation1], 48
    %7465 = vst [vmem:[%s7464] ss:$2 sm:$0xff] %v7262
    %s7466 = scalar_lea.vmem [#allocation1], 49
    %7467 = vst [vmem:[%s7466] ss:$2 sm:$0xff] %v7263
    %v7468 = vld.sshfl [vmem:[#allocation1] sm:$0xff pattern:$0x75316420]
    %v7469 = vld.sshfl [vmem:[#allocation1 + $0x10] sm:$0xff pattern:$0x75316420]
    %v7470 = vld.sshfl [vmem:[#allocation1 + $0x20] sm:$0xff pattern:$0x75316420]
    %v7471 = vld.sshfl [vmem:[#allocation1 + $0x30] sm:$0xff pattern:$0x75316420]
    %7472 = vrot.lane.b32.xlu0 %v7468, 32
    %v7473 = vpop.permute.xlu0 %7472
    %7474 = vrot.lane.b32.xlu0 %v7469, 32
    %v7475 = vpop.permute.xlu0 %7474
    %7476 = vrot.lane.b32.xlu0 %v7470, 32
    %v7477 = vpop.permute.xlu0 %7476
    %7478 = vrot.lane.b32.xlu0 %v7471, 32
    %v7479 = vpop.permute.xlu0 %7478
    %7492 = vst [vmem:[#allocation1] ss:$2 sm:$0xff] %v7264
    %s7493 = scalar_lea.vmem [#allocation1], 1
    %7494 = vst [vmem:[%s7493] ss:$2 sm:$0xff] %v7265
    %s7495 = scalar_lea.vmem [#allocation1], 16
    %7496 = vst [vmem:[%s7495] ss:$2 sm:$0xff] %v7266
    %s7497 = scalar_lea.vmem [#allocation1], 17
    %7498 = vst [vmem:[%s7497] ss:$2 sm:$0xff] %v7267
    %s7499 = scalar_lea.vmem [#allocation1], 32
    %7500 = vst [vmem:[%s7499] ss:$2 sm:$0xff] %v7268
    %s7501 = scalar_lea.vmem [#allocation1], 33
    %7502 = vst [vmem:[%s7501] ss:$2 sm:$0xff] %v7269
    %s7503 = scalar_lea.vmem [#allocation1], 48
    %7504 = vst [vmem:[%s7503] ss:$2 sm:$0xff] %v7270
    %s7505 = scalar_lea.vmem [#allocation1], 49
    %7506 = vst [vmem:[%s7505] ss:$2 sm:$0xff] %v7271
    %v7507 = vld.sshfl [vmem:[#allocation1] sm:$0xff pattern:$0x75316420]
    %v7508 = vld.sshfl [vmem:[#allocation1 + $0x10] sm:$0xff pattern:$0x75316420]
    %v7509 = vld.sshfl [vmem:[#allocation1 + $0x20] sm:$0xff pattern:$0x75316420]
    %v7510 = vld.sshfl [vmem:[#allocation1 + $0x30] sm:$0xff pattern:$0x75316420]
    %7511 = vrot.lane.b32.xlu0 %v7507, 40
    %v7512 = vpop.permute.xlu0 %7511
    %7513 = vrot.lane.b32.xlu0 %v7508, 40
    %v7514 = vpop.permute.xlu0 %7513
    %7515 = vrot.lane.b32.xlu0 %v7509, 40
    %v7516 = vpop.permute.xlu0 %7515
    %7517 = vrot.lane.b32.xlu0 %v7510, 40
    %v7518 = vpop.permute.xlu0 %7517
    %7531 = vst [vmem:[#allocation1] ss:$2 sm:$0xff] %v7273
    %s7532 = scalar_lea.vmem [#allocation1], 1
    %7533 = vst [vmem:[%s7532] ss:$2 sm:$0xff] %v7274
    %s7534 = scalar_lea.vmem [#allocation1], 16
    %7535 = vst [vmem:[%s7534] ss:$2 sm:$0xff] %v7275
    %s7536 = scalar_lea.vmem [#allocation1], 17
    %7537 = vst [vmem:[%s7536] ss:$2 sm:$0xff] %v7276
    %s7538 = scalar_lea.vmem [#allocation1], 32
    %7539 = vst [vmem:[%s7538] ss:$2 sm:$0xff] %v7277
    %s7540 = scalar_lea.vmem [#allocation1], 33
    %7541 = vst [vmem:[%s7540] ss:$2 sm:$0xff] %v7278
    %s7542 = scalar_lea.vmem [#allocation1], 48
    %7543 = vst [vmem:[%s7542] ss:$2 sm:$0xff] %v7279
    %s7544 = scalar_lea.vmem [#allocation1], 49
    %7545 = vst [vmem:[%s7544] ss:$2 sm:$0xff] %v7280
    %v7546 = vld.sshfl [vmem:[#allocation1] sm:$0xff pattern:$0x75316420]
    %v7547 = vld.sshfl [vmem:[#allocation1 + $0x10] sm:$0xff pattern:$0x75316420]
    %v7548 = vld.sshfl [vmem:[#allocation1 + $0x20] sm:$0xff pattern:$0x75316420]
    %v7549 = vld.sshfl [vmem:[#allocation1 + $0x30] sm:$0xff pattern:$0x75316420]
    %7550 = vrot.lane.b32.xlu0 %v7546, 48
    %v7551 = vpop.permute.xlu0 %7550
    %7552 = vrot.lane.b32.xlu0 %v7547, 48
    %v7553 = vpop.permute.xlu0 %7552
    %7554 = vrot.lane.b32.xlu0 %v7548, 48
    %v7555 = vpop.permute.xlu0 %7554
    %7556 = vrot.lane.b32.xlu0 %v7549, 48
    %v7557 = vpop.permute.xlu0 %7556
    %7570 = vst [vmem:[#allocation1] ss:$2 sm:$0xff] %v7281
    %s7571 = scalar_lea.vmem [#allocation1], 1
    %7572 = vst [vmem:[%s7571] ss:$2 sm:$0xff] %v7282
    %s7573 = scalar_lea.vmem [#allocation1], 16
    %7574 = vst [vmem:[%s7573] ss:$2 sm:$0xff] %v7283
    %s7575 = scalar_lea.vmem [#allocation1], 17
    %7576 = vst [vmem:[%s7575] ss:$2 sm:$0xff] %v7284
    %s7577 = scalar_lea.vmem [#allocation1], 32
    %7578 = vst [vmem:[%s7577] ss:$2 sm:$0xff] %v7285
    %s7579 = scalar_lea.vmem [#allocation1], 33
    %7580 = vst [vmem:[%s7579] ss:$2 sm:$0xff] %v7286
    %s7581 = scalar_lea.vmem [#allocation1], 48
    %7582 = vst [vmem:[%s7581] ss:$2 sm:$0xff] %v7287
    %s7583 = scalar_lea.vmem [#allocation1], 49
    %7584 = vst [vmem:[%s7583] ss:$2 sm:$0xff] %v7288
    %v7585 = vld.sshfl [vmem:[#allocation1] sm:$0xff pattern:$0x75316420]
    %v7586 = vld.sshfl [vmem:[#allocation1 + $0x10] sm:$0xff pattern:$0x75316420]
    %v7587 = vld.sshfl [vmem:[#allocation1 + $0x20] sm:$0xff pattern:$0x75316420]
    %v7588 = vld.sshfl [vmem:[#allocation1 + $0x30] sm:$0xff pattern:$0x75316420]
    %7589 = vrot.lane.b32.xlu0 %v7585, 56
    %v7590 = vpop.permute.xlu0 %7589
    %7591 = vrot.lane.b32.xlu0 %v7586, 56
    %v7592 = vpop.permute.xlu0 %7591
    %7593 = vrot.lane.b32.xlu0 %v7587, 56
    %v7594 = vpop.permute.xlu0 %7593
    %7595 = vrot.lane.b32.xlu0 %v7588, 56
    %v7596 = vpop.permute.xlu0 %7595
    %7609 = vst [vmem:[#allocation1] ss:$2 sm:$0xff] %v7289
    %s7610 = scalar_lea.vmem [#allocation1], 1
    %7611 = vst [vmem:[%s7610] ss:$2 sm:$0xff] %v7290
    %s7612 = scalar_lea.vmem [#allocation1], 16
    %7613 = vst [vmem:[%s7612] ss:$2 sm:$0xff] %v7291
    %s7614 = scalar_lea.vmem [#allocation1], 17
    %7615 = vst [vmem:[%s7614] ss:$2 sm:$0xff] %v7292
    %s7616 = scalar_lea.vmem [#allocation1], 32
    %7617 = vst [vmem:[%s7616] ss:$2 sm:$0xff] %v7293
    %s7618 = scalar_lea.vmem [#allocation1], 33
    %7619 = vst [vmem:[%s7618] ss:$2 sm:$0xff] %v7294
    %s7620 = scalar_lea.vmem [#allocation1], 48
    %7621 = vst [vmem:[%s7620] ss:$2 sm:$0xff] %v7295
    %s7622 = scalar_lea.vmem [#allocation1], 49
    %7623 = vst [vmem:[%s7622] ss:$2 sm:$0xff] %v7296
    %v7624 = vld.sshfl [vmem:[#allocation1] sm:$0xff pattern:$0x75316420]
    %v7625 = vld.sshfl [vmem:[#allocation1 + $0x10] sm:$0xff pattern:$0x75316420]
    %v7626 = vld.sshfl [vmem:[#allocation1 + $0x20] sm:$0xff pattern:$0x75316420]
    %v7627 = vld.sshfl [vmem:[#allocation1 + $0x30] sm:$0xff pattern:$0x75316420]
    %7628 = vrot.lane.b32.xlu0 %v7624, 64
    %v7629 = vpop.permute.xlu0 %7628
    %7630 = vrot.lane.b32.xlu0 %v7625, 64
    %v7631 = vpop.permute.xlu0 %7630
    %7632 = vrot.lane.b32.xlu0 %v7626, 64
    %v7633 = vpop.permute.xlu0 %7632
    %7634 = vrot.lane.b32.xlu0 %v7627, 64
    %v7635 = vpop.permute.xlu0 %7634
    %v7640 = vsel %vm3144, %v7320, %v7356
    %v7641 = vsel %vm3144, %v7321, %v7358
    %v7642 = vsel %vm3144, %v7322, %v7360
    %v7643 = vsel %vm3144, %v7323, %v7362
    %v7644 = vsel %vm6068, %v7640, %v7395
    %v7645 = vsel %vm6068, %v7641, %v7397
    %v7646 = vsel %vm6068, %v7642, %v7399
    %v7647 = vsel %vm6068, %v7643, %v7401
    %v7648 = vsel %vm7089, %v7644, %v7434
    %v7649 = vsel %vm7089, %v7645, %v7436
    %v7650 = vsel %vm7089, %v7646, %v7438
    %v7651 = vsel %vm7089, %v7647, %v7440
    %v7652 = vsel %vm7099, %v7648, %v7473
    %v7653 = vsel %vm7099, %v7649, %v7475
    %v7654 = vsel %vm7099, %v7650, %v7477
    %v7655 = vsel %vm7099, %v7651, %v7479
    %vm7656 = vcmask 326656
    %v7657 = vsel %vm7656, %v7652, %v7512
    %v7658 = vsel %vm7656, %v7653, %v7514
    %v7659 = vsel %vm7656, %v7654, %v7516
    %v7660 = vsel %vm7656, %v7655, %v7518
    %vm7661 = vcmask 392192
    %v7662 = vsel %vm7661, %v7657, %v7551
    %v7663 = vsel %vm7661, %v7658, %v7553
    %v7664 = vsel %vm7661, %v7659, %v7555
    %v7665 = vsel %vm7661, %v7660, %v7557
    %vm7666 = vcmask 457728
    %v7667 = vsel %vm7666, %v7662, %v7590
    %v7668 = vsel %vm7666, %v7663, %v7592
    %v7669 = vsel %vm7666, %v7664, %v7594
    %v7670 = vsel %vm7666, %v7665, %v7596
    %vm7671 = vcmask 523264
    %v7672 = vsel %vm7671, %v7667, %v7629
    %v7673 = vsel %vm7671, %v7668, %v7631
    %v7674 = vsel %vm7671, %v7669, %v7633
    %v7675 = vsel %vm7671, %v7670, %v7635
    %v7676 = vld [vmem:[%s4] sm:$0xff]
    %v7677 = vld [vmem:[%s4 + $0x8] sm:$0xff]
    %v7678 = vld [vmem:[%s4 + $0x10] sm:$0xff]
    %v7679 = vld [vmem:[%s4 + $0x18] sm:$0xff]
    %v7680 = vld [vmem:[%s4 + $0x20] sm:$0xff]
    %v7681 = vld [vmem:[%s4 + $0x28] sm:$0xff]
    %v7682 = vld [vmem:[%s4 + $0x30] sm:$0xff]
    %v7683 = vld [vmem:[%s4 + $0x38] sm:$0xff]
    %v7684 = vld [vmem:[%s4 + $0x40] sm:$0xff]
    %v7685 = vld [vmem:[%s10] sm:$0x1]
    %v7687 = vperm.slane %v7685, 0
    %vm7689 = vcmask 588800
    %v7691 = vsel %vm7689, %v7672, 0
    %v7694 = vsel %vm7689, %v7673, 0
    %v7697 = vsel %vm7689, %v7674, 0
    %v7700 = vsel %vm7689, %v7675, 0
    %7702 = vmatpush.msra.mxu0 0.0
    %7703 = vmatpush.msra.mxu0 0.0
    %7704 = vmatpush.msra.mxu0 0.0
    %7705 = vmatpush.msra.mxu0 0.0
    %7706 = vmatpush.msra.mxu0 0.0
    %7707 = vmatpush.msra.mxu0 0.0
    %7708 = vmatpush.msra.mxu0 0.0
    %7709 = vmatpush.msra.mxu0 %v7684
    %7710 = vmatpush.msra.mxu0 %v7683
    %7711 = vmatpush.msra.mxu0 %v7682
    %7712 = vmatpush.msra.mxu0 %v7681
    %7713 = vmatpush.msra.mxu0 %v7680
    %7714 = vmatpush.msra.mxu0 %v7679
    %7715 = vmatpush.msra.mxu0 %v7678
    %7716 = vmatpush.msra.mxu0 %v7677
    %7717 = vmatpush.msra.mxu0 %v7676
    %7718 = vmatmul.f32.gmra.mxu0 %v7691
    %v7719 = vpop.f32.mrf.mxu0
    %v7720 = vadd.f32 %v7687, %v7719
    %7721 = vmatmul.f32.gmra.mxu0 %v7694
    %v7722 = vpop.f32.mrf.mxu0
    %v7723 = vadd.f32 %v7687, %v7722
    %7724 = vmatmul.f32.gmra.mxu0 %v7697
    %v7725 = vpop.f32.mrf.mxu0
    %v7726 = vadd.f32 %v7687, %v7725
    %7727 = vmatmul.f32.gmra.mxu0 %v7700
    %v7728 = vpop.f32.mrf.mxu0
    %v7729 = vadd.f32 %v7687, %v7728
    %7730 = vdwg.mxu0
    %vm7731 = vcmp.gt.f32.partialorder %v7720, 0.0
    %vm7732 = vcmp.gt.f32.partialorder %v7723, 0.0
    %vm7733 = vcmp.gt.f32.partialorder %v7726, 0.0
    %vm7734 = vcmp.gt.f32.partialorder %v7729, 0.0
    %v7735 = vmul.f32 %v7720, 0.01
    %v7736 = vmul.f32 %v7723, 0.01
    %v7737 = vmul.f32 %v7726, 0.01
    %v7738 = vmul.f32 %v7729, 0.01
    %v7739 = vsel %vm7731, %v7720, %v7735
    %v7740 = vsel %vm7732, %v7723, %v7736
    %v7741 = vsel %vm7733, %v7726, %v7737
    %v7742 = vsel %vm7734, %v7729, %v7738
    %v7747 = vrot.slane %v7739, 4
    %v7748 = vrot.slane %v7740, 4
    %v7749 = vrot.slane %v7741, 4
    %v7750 = vrot.slane %v7742, 4
    %v7755 = vmax.f32 %v7739, %v7747
    %v7756 = vmax.f32 %v7740, %v7748
    %v7757 = vmax.f32 %v7741, %v7749
    %v7758 = vmax.f32 %v7742, %v7750
    %v7763 = vrot.slane %v7755, 2
    %v7764 = vrot.slane %v7756, 2
    %v7765 = vrot.slane %v7757, 2
    %v7766 = vrot.slane %v7758, 2
    %v7767 = vsel %vm6141, %v7755, %v7763
    %vm7768 = vcmask 1043458
    %v7769 = vsel %vm7768, %v7755, %v7763
    %v7770 = vrot.slane %v7769, 2
    %v7771 = vsel %vm6141, %v7756, %v7764
    %v7772 = vsel %vm7768, %v7756, %v7764
    %v7773 = vrot.slane %v7772, 2
    %v7774 = vsel %vm6141, %v7757, %v7765
    %v7775 = vsel %vm7768, %v7757, %v7765
    %v7776 = vrot.slane %v7775, 2
    %v7777 = vsel %vm6141, %v7758, %v7766
    %v7778 = vsel %vm7768, %v7758, %v7766
    %v7779 = vrot.slane %v7778, 2
    %vm7788 = vcmask 58368
    %v7789 = vsel %vm7788, %v7767, -inf
    %v7790 = vrot.slane %v7789, 4
    %v7791 = vmax.f32 %v7789, %v7790
    %v7792 = vrot.slane %v7791, 2
    %v7793 = vmax.f32 %v7791, %v7792
    %v7794 = vrot.slane %v7793, 1
    %v7795 = vmax.f32 %v7793, %v7794
    %v7796 = vsel %vm7788, %v7770, -inf
    %v7797 = vrot.slane %v7796, 4
    %v7798 = vmax.f32 %v7796, %v7797
    %v7799 = vrot.slane %v7798, 2
    %v7800 = vmax.f32 %v7798, %v7799
    %v7801 = vrot.slane %v7800, 1
    %v7802 = vmax.f32 %v7800, %v7801
    %v7803 = vsel %vm7788, %v7771, -inf
    %v7804 = vrot.slane %v7803, 4
    %v7805 = vmax.f32 %v7803, %v7804
    %v7806 = vrot.slane %v7805, 2
    %v7807 = vmax.f32 %v7805, %v7806
    %v7808 = vrot.slane %v7807, 1
    %v7809 = vmax.f32 %v7807, %v7808
    %v7810 = vsel %vm7788, %v7773, -inf
    %v7811 = vrot.slane %v7810, 4
    %v7812 = vmax.f32 %v7810, %v7811
    %v7813 = vrot.slane %v7812, 2
    %v7814 = vmax.f32 %v7812, %v7813
    %v7815 = vrot.slane %v7814, 1
    %v7816 = vmax.f32 %v7814, %v7815
    %v7817 = vsel %vm7788, %v7774, -inf
    %v7818 = vrot.slane %v7817, 4
    %v7819 = vmax.f32 %v7817, %v7818
    %v7820 = vrot.slane %v7819, 2
    %v7821 = vmax.f32 %v7819, %v7820
    %v7822 = vrot.slane %v7821, 1
    %v7823 = vmax.f32 %v7821, %v7822
    %v7824 = vsel %vm7788, %v7776, -inf
    %v7825 = vrot.slane %v7824, 4
    %v7826 = vmax.f32 %v7824, %v7825
    %v7827 = vrot.slane %v7826, 2
    %v7828 = vmax.f32 %v7826, %v7827
    %v7829 = vrot.slane %v7828, 1
    %v7830 = vmax.f32 %v7828, %v7829
    %v7831 = vsel %vm7788, %v7777, -inf
    %v7832 = vrot.slane %v7831, 4
    %v7833 = vmax.f32 %v7831, %v7832
    %v7834 = vrot.slane %v7833, 2
    %v7835 = vmax.f32 %v7833, %v7834
    %v7836 = vrot.slane %v7835, 1
    %v7837 = vmax.f32 %v7835, %v7836
    %v7838 = vsel %vm7788, %v7779, -inf
    %v7839 = vrot.slane %v7838, 4
    %v7840 = vmax.f32 %v7838, %v7839
    %v7841 = vrot.slane %v7840, 2
    %v7842 = vmax.f32 %v7840, %v7841
    %v7843 = vrot.slane %v7842, 1
    %v7844 = vmax.f32 %v7842, %v7843
    %7845 = vst.msk [vmem:[#allocation5] sm:$0xf] %vm7215, 0.0
    %7846 = vst.msk [vmem:[#allocation5 + $0x10] sm:$0xf] %vm7215, 0.0
    %s7847 = scalar_lea.vmem [#allocation5], 12
    %7848 = vst.msk [vmem:[%s7847] sm:$0xf] %vm7215, 0.0
    %7849 = vst.msk [vmem:[%s7847 + $0x10] sm:$0xf] %vm7215, 0.0
    %7850 = vst.msk [vmem:[#allocation5] sm:$0x1] %vm7189, 0.0
    %7851 = vst.msk [vmem:[#allocation5 + $0x4] sm:$0x1] %vm7189, 0.0
    %7852 = vst.msk [vmem:[#allocation5 + $0x8] sm:$0x1] %vm7189, 0.0
    %7853 = vst.msk [vmem:[#allocation5 + $0xc] sm:$0x1] %vm7189, 0.0
    %7854 = vst.msk [vmem:[#allocation5 + $0x10] sm:$0x1] %vm7189, 0.0
    %7855 = vst.msk [vmem:[#allocation5 + $0x14] sm:$0x1] %vm7189, 0.0
    %7856 = vst.msk [vmem:[#allocation5 + $0x18] sm:$0x1] %vm7189, 0.0
    %7857 = vst.msk [vmem:[#allocation5 + $0x1c] sm:$0x1] %vm7189, 0.0
    %7858 = vst.msk [vmem:[#allocation5 + $0x3] sm:$0x1] %vm7189, 0.0
    %7859 = vst.msk [vmem:[#allocation5 + $0x7] sm:$0x1] %vm7189, 0.0
    %7860 = vst.msk [vmem:[#allocation5 + $0xb] sm:$0x1] %vm7189, 0.0
    %7861 = vst.msk [vmem:[#allocation5 + $0xf] sm:$0x1] %vm7189, 0.0
    %7862 = vst.msk [vmem:[#allocation5 + $0x13] sm:$0x1] %vm7189, 0.0
    %7863 = vst.msk [vmem:[#allocation5 + $0x17] sm:$0x1] %vm7189, 0.0
    %7864 = vst.msk [vmem:[#allocation5 + $0x1b] sm:$0x1] %vm7189, 0.0
    %7865 = vst.msk [vmem:[#allocation5 + $0x1f] sm:$0x1] %vm7189, 0.0
    %v7874 = vsel %vm5144, %v7802, %v7795
    %v7875 = vsel %vm5144, %v7816, %v7809
    %v7876 = vsel %vm5144, %v7830, %v7823
    %v7877 = vsel %vm5144, %v7844, %v7837
    %s7882 = scalar_lea.vmem [#allocation5], 4
    %7883 = vst.msk [vmem:[%s7882 + $0x1] sm:$0x3] %vm7788, %v7874
    %7884 = vst.msk [vmem:[%s7882 + $0x5] sm:$0x3] %vm7788, %v7875
    %7885 = vst.msk [vmem:[%s7882 + $0x11] sm:$0x3] %vm7788, %v7876
    %7886 = vst.msk [vmem:[%s7882 + $0x15] sm:$0x3] %vm7788, %v7877
    %v7887 = vld [vmem:[#allocation5] sm:$0x3]
    %v7888 = vld [vmem:[#allocation5 + $0x4] sm:$0x3]
    %v7889 = vld [vmem:[#allocation5 + $0x10] sm:$0x3]
    %v7890 = vld [vmem:[#allocation5 + $0x14] sm:$0x3]
    %v7891 = vld [vmem:[#allocation5 + $0x1] sm:$0x3]
    %v7892 = vld [vmem:[#allocation5 + $0x5] sm:$0x3]
    %v7893 = vld [vmem:[#allocation5 + $0x11] sm:$0x3]
    %v7894 = vld [vmem:[#allocation5 + $0x15] sm:$0x3]
    %v7895 = vld [vmem:[#allocation5 + $0x2] sm:$0x3]
    %v7896 = vld [vmem:[#allocation5 + $0x6] sm:$0x3]
    %v7897 = vld [vmem:[#allocation5 + $0x12] sm:$0x3]
    %v7898 = vld [vmem:[#allocation5 + $0x16] sm:$0x3]
    %v7899 = vld [vmem:[%s7882] sm:$0x3]
    %v7900 = vld [vmem:[%s7882 + $0x4] sm:$0x3]
    %v7901 = vld [vmem:[%s7882 + $0x10] sm:$0x3]
    %v7902 = vld [vmem:[%s7882 + $0x14] sm:$0x3]
    %v7903 = vld [vmem:[%s7882 + $0x1] sm:$0x3]
    %v7904 = vld [vmem:[%s7882 + $0x5] sm:$0x3]
    %v7905 = vld [vmem:[%s7882 + $0x11] sm:$0x3]
    %v7906 = vld [vmem:[%s7882 + $0x15] sm:$0x3]
    %v7907 = vld [vmem:[%s7882 + $0x2] sm:$0x3]
    %v7908 = vld [vmem:[%s7882 + $0x6] sm:$0x3]
    %v7909 = vld [vmem:[%s7882 + $0x12] sm:$0x3]
    %v7910 = vld [vmem:[%s7882 + $0x16] sm:$0x3]
    %s7911 = scalar_lea.vmem [#allocation5], 8
    %v7912 = vld [vmem:[%s7911] sm:$0x3]
    %v7913 = vld [vmem:[%s7911 + $0x4] sm:$0x3]
    %v7914 = vld [vmem:[%s7911 + $0x10] sm:$0x3]
    %v7915 = vld [vmem:[%s7911 + $0x14] sm:$0x3]
    %v7916 = vld [vmem:[%s7911 + $0x1] sm:$0x3]
    %v7917 = vld [vmem:[%s7911 + $0x5] sm:$0x3]
    %v7918 = vld [vmem:[%s7911 + $0x11] sm:$0x3]
    %v7919 = vld [vmem:[%s7911 + $0x15] sm:$0x3]
    %v7920 = vld [vmem:[%s7911 + $0x2] sm:$0x3]
    %v7921 = vld [vmem:[%s7911 + $0x6] sm:$0x3]
    %v7922 = vld [vmem:[%s7911 + $0x12] sm:$0x3]
    %v7923 = vld [vmem:[%s7911 + $0x16] sm:$0x3]
    %7928 = vst [vmem:[#allocation1] ss:$4 sm:$0xff] %v7887
    %s7929 = scalar_lea.vmem [#allocation1], 1
    %7930 = vst [vmem:[%s7929] ss:$4 sm:$0xff] %v7888
    %s7931 = scalar_lea.vmem [#allocation1], 2
    %7932 = vst [vmem:[%s7931] ss:$4 sm:$0xff] %v7889
    %s7933 = scalar_lea.vmem [#allocation1], 3
    %7934 = vst [vmem:[%s7933] ss:$4 sm:$0xff] %v7890
    %v7935 = vld.sshfl [vmem:[#allocation1] sm:$0xff pattern:$0x73625140]
    %7941 = vst [vmem:[#allocation1] ss:$4 sm:$0xff] %v7891
    %s7942 = scalar_lea.vmem [#allocation1], 1
    %7943 = vst [vmem:[%s7942] ss:$4 sm:$0xff] %v7892
    %s7944 = scalar_lea.vmem [#allocation1], 2
    %7945 = vst [vmem:[%s7944] ss:$4 sm:$0xff] %v7893
    %s7946 = scalar_lea.vmem [#allocation1], 3
    %7947 = vst [vmem:[%s7946] ss:$4 sm:$0xff] %v7894
    %v7948 = vld.sshfl [vmem:[#allocation1] sm:$0xff pattern:$0x73625140]
    %7949 = vrot.lane.b32.xlu0 %v7948, 8
    %v7950 = vpop.permute.xlu0 %7949
    %7956 = vst [vmem:[#allocation1] ss:$4 sm:$0xff] %v7895
    %s7957 = scalar_lea.vmem [#allocation1], 1
    %7958 = vst [vmem:[%s7957] ss:$4 sm:$0xff] %v7896
    %s7959 = scalar_lea.vmem [#allocation1], 2
    %7960 = vst [vmem:[%s7959] ss:$4 sm:$0xff] %v7897
    %s7961 = scalar_lea.vmem [#allocation1], 3
    %7962 = vst [vmem:[%s7961] ss:$4 sm:$0xff] %v7898
    %v7963 = vld.sshfl [vmem:[#allocation1] sm:$0xff pattern:$0x73625140]
    %7964 = vrot.lane.b32.xlu0 %v7963, 16
    %v7965 = vpop.permute.xlu0 %7964
    %7971 = vst [vmem:[#allocation1] ss:$4 sm:$0xff] %v7899
    %s7972 = scalar_lea.vmem [#allocation1], 1
    %7973 = vst [vmem:[%s7972] ss:$4 sm:$0xff] %v7900
    %s7974 = scalar_lea.vmem [#allocation1], 2
    %7975 = vst [vmem:[%s7974] ss:$4 sm:$0xff] %v7901
    %s7976 = scalar_lea.vmem [#allocation1], 3
    %7977 = vst [vmem:[%s7976] ss:$4 sm:$0xff] %v7902
    %v7978 = vld.sshfl [vmem:[#allocation1] sm:$0xff pattern:$0x73625140]
    %7979 = vrot.lane.b32.xlu0 %v7978, 24
    %v7980 = vpop.permute.xlu0 %7979
    %7986 = vst [vmem:[#allocation1] ss:$4 sm:$0xff] %v7903
    %s7987 = scalar_lea.vmem [#allocation1], 1
    %7988 = vst [vmem:[%s7987] ss:$4 sm:$0xff] %v7904
    %s7989 = scalar_lea.vmem [#allocation1], 2
    %7990 = vst [vmem:[%s7989] ss:$4 sm:$0xff] %v7905
    %s7991 = scalar_lea.vmem [#allocation1], 3
    %7992 = vst [vmem:[%s7991] ss:$4 sm:$0xff] %v7906
    %v7993 = vld.sshfl [vmem:[#allocation1] sm:$0xff pattern:$0x73625140]
    %7994 = vrot.lane.b32.xlu0 %v7993, 32
    %v7995 = vpop.permute.xlu0 %7994
    %8001 = vst [vmem:[#allocation1] ss:$4 sm:$0xff] %v7907
    %s8002 = scalar_lea.vmem [#allocation1], 1
    %8003 = vst [vmem:[%s8002] ss:$4 sm:$0xff] %v7908
    %s8004 = scalar_lea.vmem [#allocation1], 2
    %8005 = vst [vmem:[%s8004] ss:$4 sm:$0xff] %v7909
    %s8006 = scalar_lea.vmem [#allocation1], 3
    %8007 = vst [vmem:[%s8006] ss:$4 sm:$0xff] %v7910
    %v8008 = vld.sshfl [vmem:[#allocation1] sm:$0xff pattern:$0x73625140]
    %8009 = vrot.lane.b32.xlu0 %v8008, 40
    %v8010 = vpop.permute.xlu0 %8009
    %8016 = vst [vmem:[#allocation1] ss:$4 sm:$0xff] %v7912
    %s8017 = scalar_lea.vmem [#allocation1], 1
    %8018 = vst [vmem:[%s8017] ss:$4 sm:$0xff] %v7913
    %s8019 = scalar_lea.vmem [#allocation1], 2
    %8020 = vst [vmem:[%s8019] ss:$4 sm:$0xff] %v7914
    %s8021 = scalar_lea.vmem [#allocation1], 3
    %8022 = vst [vmem:[%s8021] ss:$4 sm:$0xff] %v7915
    %v8023 = vld.sshfl [vmem:[#allocation1] sm:$0xff pattern:$0x73625140]
    %8024 = vrot.lane.b32.xlu0 %v8023, 48
    %v8025 = vpop.permute.xlu0 %8024
    %8031 = vst [vmem:[#allocation1] ss:$4 sm:$0xff] %v7916
    %s8032 = scalar_lea.vmem [#allocation1], 1
    %8033 = vst [vmem:[%s8032] ss:$4 sm:$0xff] %v7917
    %s8034 = scalar_lea.vmem [#allocation1], 2
    %8035 = vst [vmem:[%s8034] ss:$4 sm:$0xff] %v7918
    %s8036 = scalar_lea.vmem [#allocation1], 3
    %8037 = vst [vmem:[%s8036] ss:$4 sm:$0xff] %v7919
    %v8038 = vld.sshfl [vmem:[#allocation1] sm:$0xff pattern:$0x73625140]
    %8039 = vrot.lane.b32.xlu0 %v8038, 56
    %v8040 = vpop.permute.xlu0 %8039
    %8046 = vst [vmem:[#allocation1] ss:$4 sm:$0xff] %v7920
    %s8047 = scalar_lea.vmem [#allocation1], 1
    %8048 = vst [vmem:[%s8047] ss:$4 sm:$0xff] %v7921
    %s8049 = scalar_lea.vmem [#allocation1], 2
    %8050 = vst [vmem:[%s8049] ss:$4 sm:$0xff] %v7922
    %s8051 = scalar_lea.vmem [#allocation1], 3
    %8052 = vst [vmem:[%s8051] ss:$4 sm:$0xff] %v7923
    %v8053 = vld.sshfl [vmem:[#allocation1] sm:$0xff pattern:$0x73625140]
    %8054 = vrot.lane.b32.xlu0 %v8053, 64
    %v8055 = vpop.permute.xlu0 %8054
    %v8057 = vsel %vm3144, %v7935, %v7950
    %v8058 = vsel %vm6068, %v8057, %v7965
    %v8059 = vsel %vm7089, %v8058, %v7980
    %v8060 = vsel %vm7099, %v8059, %v7995
    %v8061 = vsel %vm7656, %v8060, %v8010
    %v8062 = vsel %vm7661, %v8061, %v8025
    %v8063 = vsel %vm7666, %v8062, %v8040
    %v8064 = vsel %vm7671, %v8063, %v8055
    %v8065 = vld [vmem:[%s5] sm:$0xff]
    %v8066 = vld [vmem:[%s5 + $0x8] sm:$0xff]
    %v8067 = vld [vmem:[%s5 + $0x10] sm:$0xff]
    %v8068 = vld [vmem:[%s5 + $0x18] sm:$0xff]
    %v8069 = vld [vmem:[%s5 + $0x20] sm:$0xff]
    %v8070 = vld [vmem:[%s5 + $0x28] sm:$0xff]
    %v8071 = vld [vmem:[%s5 + $0x30] sm:$0xff]
    %v8072 = vld [vmem:[%s5 + $0x38] sm:$0xff]
    %v8073 = vld [vmem:[%s5 + $0x40] sm:$0xff]
    %v8074 = vld [vmem:[%s11] sm:$0x1]
    %v8076 = vperm.slane %v8074, 0
    %v8079 = vsel %vm7689, %v8064, 0
    %8081 = vmatpush.msra.mxu0 0.0
    %8082 = vmatpush.msra.mxu0 0.0
    %8083 = vmatpush.msra.mxu0 0.0
    %8084 = vmatpush.msra.mxu0 0.0
    %8085 = vmatpush.msra.mxu0 0.0
    %8086 = vmatpush.msra.mxu0 0.0
    %8087 = vmatpush.msra.mxu0 0.0
    %8088 = vmatpush.msra.mxu0 %v8073
    %8089 = vmatpush.msra.mxu0 %v8072
    %8090 = vmatpush.msra.mxu0 %v8071
    %8091 = vmatpush.msra.mxu0 %v8070
    %8092 = vmatpush.msra.mxu0 %v8069
    %8093 = vmatpush.msra.mxu0 %v8068
    %8094 = vmatpush.msra.mxu0 %v8067
    %8095 = vmatpush.msra.mxu0 %v8066
    %8096 = vmatpush.msra.mxu0 %v8065
    %8097 = vmatmul.f32.gmra.mxu0 %v8079
    %v8098 = vpop.f32.mrf.mxu0
    %v8099 = vadd.f32 %v8076, %v8098
    %8100 = vdwg.mxu0
    %vm8101 = vcmp.gt.f32.partialorder %v8099, 0.0
    %v8102 = vmul.f32 %v8099, 0.01
    %v8103 = vsel %vm8101, %v8099, %v8102
    %v8105 = vrot.slane %v8103, 2
    %v8106 = vrot.slane %v8103, 4
    %v8107 = vrot.slane %v8103, 6
    %vm8111 = vcmask 125952
    %8112 = vst.msk [vmem:[#allocation6] sm:$0xf] %vm8111, 0.0
    %8113 = vst.msk [vmem:[#allocation6 + $0x10] sm:$0xf] %vm8111, 0.0
    %s8114 = scalar_lea.vmem [#allocation6], 12
    %8115 = vst.msk [vmem:[%s8114] sm:$0xf] %vm8111, 0.0
    %8116 = vst.msk [vmem:[%s8114 + $0x10] sm:$0xf] %vm8111, 0.0
    %vm8117 = vcmask 122880
    %8118 = vst.msk [vmem:[#allocation6] sm:$0x1] %vm8117, 0.0
    %8119 = vst.msk [vmem:[#allocation6 + $0x4] sm:$0x1] %vm8117, 0.0
    %8120 = vst.msk [vmem:[#allocation6 + $0x8] sm:$0x1] %vm8117, 0.0
    %8121 = vst.msk [vmem:[#allocation6 + $0xc] sm:$0x1] %vm8117, 0.0
    %8122 = vst.msk [vmem:[#allocation6 + $0x10] sm:$0x1] %vm8117, 0.0
    %8123 = vst.msk [vmem:[#allocation6 + $0x14] sm:$0x1] %vm8117, 0.0
    %8124 = vst.msk [vmem:[#allocation6 + $0x18] sm:$0x1] %vm8117, 0.0
    %8125 = vst.msk [vmem:[#allocation6 + $0x1c] sm:$0x1] %vm8117, 0.0
    %8126 = vst.msk [vmem:[#allocation6 + $0x3] sm:$0x1] %vm8117, 0.0
    %8127 = vst.msk [vmem:[#allocation6 + $0x7] sm:$0x1] %vm8117, 0.0
    %8128 = vst.msk [vmem:[#allocation6 + $0xb] sm:$0x1] %vm8117, 0.0
    %8129 = vst.msk [vmem:[#allocation6 + $0xf] sm:$0x1] %vm8117, 0.0
    %8130 = vst.msk [vmem:[#allocation6 + $0x13] sm:$0x1] %vm8117, 0.0
    %8131 = vst.msk [vmem:[#allocation6 + $0x17] sm:$0x1] %vm8117, 0.0
    %8132 = vst.msk [vmem:[#allocation6 + $0x1b] sm:$0x1] %vm8117, 0.0
    %8133 = vst.msk [vmem:[#allocation6 + $0x1f] sm:$0x1] %vm8117, 0.0
    %s8134 = scalar_lea.vmem [#allocation6], 4
    %vm8135 = vcmask 123904
    %8136 = vst.msk [vmem:[%s8134 + $0x1] sm:$0x3] %vm8135, %v8103
    %8137 = vst.msk [vmem:[%s8134 + $0x5] sm:$0x3] %vm8135, %v8105
    %8138 = vst.msk [vmem:[%s8134 + $0x11] sm:$0x3] %vm8135, %v8106
    %8139 = vst.msk [vmem:[%s8134 + $0x15] sm:$0x3] %vm8135, %v8107
    %v8140 = vld [vmem:[#allocation6] sm:$0x3]
    %v8141 = vld [vmem:[#allocation6 + $0x4] sm:$0x3]
    %v8142 = vld [vmem:[#allocation6 + $0x10] sm:$0x3]
    %v8143 = vld [vmem:[#allocation6 + $0x14] sm:$0x3]
    %v8144 = vld [vmem:[#allocation6 + $0x1] sm:$0x3]
    %v8145 = vld [vmem:[#allocation6 + $0x5] sm:$0x3]
    %v8146 = vld [vmem:[#allocation6 + $0x11] sm:$0x3]
    %v8147 = vld [vmem:[#allocation6 + $0x15] sm:$0x3]
    %v8148 = vld [vmem:[#allocation6 + $0x2] sm:$0x3]
    %v8149 = vld [vmem:[#allocation6 + $0x6] sm:$0x3]
    %v8150 = vld [vmem:[#allocation6 + $0x12] sm:$0x3]
    %v8151 = vld [vmem:[#allocation6 + $0x16] sm:$0x3]
    %v8152 = vld [vmem:[%s8134] sm:$0x3]
    %v8153 = vld [vmem:[%s8134 + $0x4] sm:$0x3]
    %v8154 = vld [vmem:[%s8134 + $0x10] sm:$0x3]
    %v8155 = vld [vmem:[%s8134 + $0x14] sm:$0x3]
    %v8156 = vld [vmem:[%s8134 + $0x1] sm:$0x3]
    %v8157 = vld [vmem:[%s8134 + $0x5] sm:$0x3]
    %v8158 = vld [vmem:[%s8134 + $0x11] sm:$0x3]
    %v8159 = vld [vmem:[%s8134 + $0x15] sm:$0x3]
    %v8160 = vld [vmem:[%s8134 + $0x2] sm:$0x3]
    %v8161 = vld [vmem:[%s8134 + $0x6] sm:$0x3]
    %v8162 = vld [vmem:[%s8134 + $0x12] sm:$0x3]
    %v8163 = vld [vmem:[%s8134 + $0x16] sm:$0x3]
    %s8164 = scalar_lea.vmem [#allocation6], 8
    %v8165 = vld [vmem:[%s8164] sm:$0x3]
    %v8166 = vld [vmem:[%s8164 + $0x4] sm:$0x3]
    %v8167 = vld [vmem:[%s8164 + $0x10] sm:$0x3]
    %v8168 = vld [vmem:[%s8164 + $0x14] sm:$0x3]
    %v8169 = vld [vmem:[%s8164 + $0x1] sm:$0x3]
    %v8170 = vld [vmem:[%s8164 + $0x5] sm:$0x3]
    %v8171 = vld [vmem:[%s8164 + $0x11] sm:$0x3]
    %v8172 = vld [vmem:[%s8164 + $0x15] sm:$0x3]
    %v8173 = vld [vmem:[%s8164 + $0x2] sm:$0x3]
    %v8174 = vld [vmem:[%s8164 + $0x6] sm:$0x3]
    %v8175 = vld [vmem:[%s8164 + $0x12] sm:$0x3]
    %v8176 = vld [vmem:[%s8164 + $0x16] sm:$0x3]
    %8181 = vst [vmem:[#allocation1] ss:$4 sm:$0xff] %v8140
    %s8182 = scalar_lea.vmem [#allocation1], 1
    %8183 = vst [vmem:[%s8182] ss:$4 sm:$0xff] %v8141
    %s8184 = scalar_lea.vmem [#allocation1], 2
    %8185 = vst [vmem:[%s8184] ss:$4 sm:$0xff] %v8142
    %s8186 = scalar_lea.vmem [#allocation1], 3
    %8187 = vst [vmem:[%s8186] ss:$4 sm:$0xff] %v8143
    %v8188 = vld.sshfl [vmem:[#allocation1] sm:$0xff pattern:$0x73625140]
    %8194 = vst [vmem:[#allocation1] ss:$4 sm:$0xff] %v8144
    %s8195 = scalar_lea.vmem [#allocation1], 1
    %8196 = vst [vmem:[%s8195] ss:$4 sm:$0xff] %v8145
    %s8197 = scalar_lea.vmem [#allocation1], 2
    %8198 = vst [vmem:[%s8197] ss:$4 sm:$0xff] %v8146
    %s8199 = scalar_lea.vmem [#allocation1], 3
    %8200 = vst [vmem:[%s8199] ss:$4 sm:$0xff] %v8147
    %v8201 = vld.sshfl [vmem:[#allocation1] sm:$0xff pattern:$0x73625140]
    %8202 = vrot.lane.b32.xlu0 %v8201, 16
    %v8203 = vpop.permute.xlu0 %8202
    %8209 = vst [vmem:[#allocation1] ss:$4 sm:$0xff] %v8148
    %s8210 = scalar_lea.vmem [#allocation1], 1
    %8211 = vst [vmem:[%s8210] ss:$4 sm:$0xff] %v8149
    %s8212 = scalar_lea.vmem [#allocation1], 2
    %8213 = vst [vmem:[%s8212] ss:$4 sm:$0xff] %v8150
    %s8214 = scalar_lea.vmem [#allocation1], 3
    %8215 = vst [vmem:[%s8214] ss:$4 sm:$0xff] %v8151
    %v8216 = vld.sshfl [vmem:[#allocation1] sm:$0xff pattern:$0x73625140]
    %8217 = vrot.lane.b32.xlu0 %v8216, 32
    %v8218 = vpop.permute.xlu0 %8217
    %8224 = vst [vmem:[#allocation1] ss:$4 sm:$0xff] %v8152
    %s8225 = scalar_lea.vmem [#allocation1], 1
    %8226 = vst [vmem:[%s8225] ss:$4 sm:$0xff] %v8153
    %s8227 = scalar_lea.vmem [#allocation1], 2
    %8228 = vst [vmem:[%s8227] ss:$4 sm:$0xff] %v8154
    %s8229 = scalar_lea.vmem [#allocation1], 3
    %8230 = vst [vmem:[%s8229] ss:$4 sm:$0xff] %v8155
    %v8231 = vld.sshfl [vmem:[#allocation1] sm:$0xff pattern:$0x73625140]
    %8232 = vrot.lane.b32.xlu0 %v8231, 48
    %v8233 = vpop.permute.xlu0 %8232
    %8239 = vst [vmem:[#allocation1] ss:$4 sm:$0xff] %v8156
    %s8240 = scalar_lea.vmem [#allocation1], 1
    %8241 = vst [vmem:[%s8240] ss:$4 sm:$0xff] %v8157
    %s8242 = scalar_lea.vmem [#allocation1], 2
    %8243 = vst [vmem:[%s8242] ss:$4 sm:$0xff] %v8158
    %s8244 = scalar_lea.vmem [#allocation1], 3
    %8245 = vst [vmem:[%s8244] ss:$4 sm:$0xff] %v8159
    %v8246 = vld.sshfl [vmem:[#allocation1] sm:$0xff pattern:$0x73625140]
    %8247 = vrot.lane.b32.xlu0 %v8246, 64
    %v8248 = vpop.permute.xlu0 %8247
    %8254 = vst [vmem:[#allocation1] ss:$4 sm:$0xff] %v8160
    %s8255 = scalar_lea.vmem [#allocation1], 1
    %8256 = vst [vmem:[%s8255] ss:$4 sm:$0xff] %v8161
    %s8257 = scalar_lea.vmem [#allocation1], 2
    %8258 = vst [vmem:[%s8257] ss:$4 sm:$0xff] %v8162
    %s8259 = scalar_lea.vmem [#allocation1], 3
    %8260 = vst [vmem:[%s8259] ss:$4 sm:$0xff] %v8163
    %v8261 = vld.sshfl [vmem:[#allocation1] sm:$0xff pattern:$0x73625140]
    %8262 = vrot.lane.b32.xlu0 %v8261, 80
    %v8263 = vpop.permute.xlu0 %8262
    %8269 = vst [vmem:[#allocation1] ss:$4 sm:$0xff] %v8165
    %s8270 = scalar_lea.vmem [#allocation1], 1
    %8271 = vst [vmem:[%s8270] ss:$4 sm:$0xff] %v8166
    %s8272 = scalar_lea.vmem [#allocation1], 2
    %8273 = vst [vmem:[%s8272] ss:$4 sm:$0xff] %v8167
    %s8274 = scalar_lea.vmem [#allocation1], 3
    %8275 = vst [vmem:[%s8274] ss:$4 sm:$0xff] %v8168
    %v8276 = vld.sshfl [vmem:[#allocation1] sm:$0xff pattern:$0x73625140]
    %8277 = vrot.lane.b32.xlu0 %v8276, 96
    %v8278 = vpop.permute.xlu0 %8277
    %8284 = vst [vmem:[#allocation1] ss:$4 sm:$0xff] %v8169
    %s8285 = scalar_lea.vmem [#allocation1], 1
    %8286 = vst [vmem:[%s8285] ss:$4 sm:$0xff] %v8170
    %s8287 = scalar_lea.vmem [#allocation1], 2
    %8288 = vst [vmem:[%s8287] ss:$4 sm:$0xff] %v8171
    %s8289 = scalar_lea.vmem [#allocation1], 3
    %8290 = vst [vmem:[%s8289] ss:$4 sm:$0xff] %v8172
    %v8291 = vld.sshfl [vmem:[#allocation1] sm:$0xff pattern:$0x73625140]
    %8292 = vrot.lane.b32.xlu0 %v8291, 112
    %v8293 = vpop.permute.xlu0 %8292
    %8299 = vst [vmem:[#allocation1] ss:$4 sm:$0xff] %v8173
    %s8300 = scalar_lea.vmem [#allocation1], 1
    %8301 = vst [vmem:[%s8300] ss:$4 sm:$0xff] %v8174
    %s8302 = scalar_lea.vmem [#allocation1], 2
    %8303 = vst [vmem:[%s8302] ss:$4 sm:$0xff] %v8175
    %s8304 = scalar_lea.vmem [#allocation1], 3
    %8305 = vst [vmem:[%s8304] ss:$4 sm:$0xff] %v8176
    %v8306 = vld.sshfl [vmem:[#allocation1] sm:$0xff pattern:$0x73625140]
    %v8307 = vsel %vm6068, %v8188, %v8203
    %v8308 = vsel %vm7099, %v8307, %v8218
    %v8309 = vsel %vm7661, %v8308, %v8233
    %v8310 = vsel %vm7671, %v8309, %v8248
    %vm8311 = vcmask 654336
    %v8312 = vsel %vm8311, %v8310, %v8263
    %vm8313 = vcmask 785408
    %v8314 = vsel %vm8313, %v8312, %v8278
    %vm8315 = vcmask 916480
    %v8316 = vsel %vm8315, %v8314, %v8293
    %v8317 = vld [vmem:[%s6] sm:$0xff]
    %v8318 = vld [vmem:[%s6 + $0x8] sm:$0xff]
    %v8319 = vld [vmem:[%s6 + $0x10] sm:$0xff]
    %v8320 = vld [vmem:[%s6 + $0x18] sm:$0xff]
    %v8321 = vld [vmem:[%s6 + $0x20] sm:$0xff]
    %v8322 = vld [vmem:[%s6 + $0x28] sm:$0xff]
    %v8323 = vld [vmem:[%s6 + $0x30] sm:$0xff]
    %v8324 = vld [vmem:[%s6 + $0x38] sm:$0xff]
    %v8325 = vld [vmem:[%s6 + $0x40] sm:$0xff]
    %v8326 = vld [vmem:[%s6 + $0x48] sm:$0xff]
    %v8327 = vld [vmem:[%s6 + $0x50] sm:$0xff]
    %v8328 = vld [vmem:[%s6 + $0x58] sm:$0xff]
    %v8329 = vld [vmem:[%s6 + $0x60] sm:$0xff]
    %v8330 = vld [vmem:[%s6 + $0x68] sm:$0xff]
    %v8331 = vld [vmem:[%s6 + $0x70] sm:$0xff]
    %v8332 = vld [vmem:[%s6 + $0x78] sm:$0xff]
    %v8333 = vld [vmem:[%s6 + $0x80] sm:$0xff]
    %v8334 = vld [vmem:[%s6 + $0x88] sm:$0xff]
    %v8335 = vld [vmem:[%s12] sm:$0x1]
    %v8337 = vperm.slane %v8335, 0
    %v8339 = vsel %vm6068, %v8306, 0
    %8341 = vmatpush.msra.mxu0 %v8332
    %8342 = vmatpush.msra.mxu0 %v8331
    %8343 = vmatpush.msra.mxu0 %v8330
    %8344 = vmatpush.msra.mxu0 %v8329
    %8345 = vmatpush.msra.mxu0 %v8328
    %8346 = vmatpush.msra.mxu0 %v8327
    %8347 = vmatpush.msra.mxu0 %v8326
    %8348 = vmatpush.msra.mxu0 %v8325
    %8349 = vmatpush.msra.mxu0 %v8324
    %8350 = vmatpush.msra.mxu0 %v8323
    %8351 = vmatpush.msra.mxu0 %v8322
    %8352 = vmatpush.msra.mxu0 %v8321
    %8353 = vmatpush.msra.mxu0 %v8320
    %8354 = vmatpush.msra.mxu0 %v8319
    %8355 = vmatpush.msra.mxu0 %v8318
    %8356 = vmatpush.msra.mxu0 %v8317
    %8357 = vmatmul.f32.gmra.mxu0 %v8316
    %v8358 = vpop.f32.mrf.mxu0
    %v8359 = vadd.f32 %v8337, %v8358
    %8360 = vdwg.mxu0
    %8361 = vmatpush.msra.mxu0 0.0
    %8362 = vmatpush.msra.mxu0 0.0
    %8363 = vmatpush.msra.mxu0 0.0
    %8364 = vmatpush.msra.mxu0 0.0
    %8365 = vmatpush.msra.mxu0 0.0
    %8366 = vmatpush.msra.mxu0 0.0
    %8367 = vmatpush.msra.mxu0 0.0
    %8368 = vmatpush.msra.mxu0 0.0
    %8369 = vmatpush.msra.mxu0 0.0
    %8370 = vmatpush.msra.mxu0 0.0
    %8371 = vmatpush.msra.mxu0 0.0
    %8372 = vmatpush.msra.mxu0 0.0
    %8373 = vmatpush.msra.mxu0 0.0
    %8374 = vmatpush.msra.mxu0 0.0
    %8375 = vmatpush.msra.mxu0 %v8334
    %8376 = vmatpush.msra.mxu0 %v8333
    %8377 = vmatmul.f32.gmra.mxu0 %v8339
    %v8378 = vpop.f32.mrf.mxu0
    %v8379 = vadd.f32 %v8359, %v8378
    %8380 = vdwg.mxu0
    %vm8381 = vcmp.gt.f32.partialorder %v8379, 0.0
    %v8382 = vmul.f32 %v8379, 0.01
    %v8383 = vsel %vm8381, %v8379, %v8382
    %v8385 = vrot.slane %v8383, 2
    %v8386 = vrot.slane %v8383, 4
    %v8387 = vrot.slane %v8383, 6
    %v8391 = vmax.f32 %v8383, %v8385
    %v8392 = vmax.f32 %v8386, %v8387
    %v8393 = vsel %vm8135, %v8391, -inf
    %v8394 = vrot.slane %v8393, 4
    %v8395 = vmax.f32 %v8393, %v8394
    %v8396 = vrot.slane %v8395, 2
    %v8397 = vmax.f32 %v8395, %v8396
    %v8398 = vrot.slane %v8397, 1
    %v8399 = vmax.f32 %v8397, %v8398
    %v8400 = vsel %vm8135, %v8392, -inf
    %v8401 = vrot.slane %v8400, 4
    %v8402 = vmax.f32 %v8400, %v8401
    %v8403 = vrot.slane %v8402, 2
    %v8404 = vmax.f32 %v8402, %v8403
    %v8405 = vrot.slane %v8404, 1
    %v8406 = vmax.f32 %v8404, %v8405
    %v8407 = vld [vmem:[%s13] sm:$0xff]
    %v8408 = vld [vmem:[%s13 + $0x8] sm:$0xff]
    %v8409 = vld [vmem:[%s14] sm:$0x1]
    %v8411 = vperm.slane %v8409, 0
    %v8415 = vsel %vm5144, %v8406, %v8399
    %v8416 = vsel %vm6068, %v8415, 0
    %8418 = vmatpush.msra.mxu0 0.0
    %8419 = vmatpush.msra.mxu0 0.0
    %8420 = vmatpush.msra.mxu0 0.0
    %8421 = vmatpush.msra.mxu0 0.0
    %8422 = vmatpush.msra.mxu0 0.0
    %8423 = vmatpush.msra.mxu0 0.0
    %8424 = vmatpush.msra.mxu0 0.0
    %8425 = vmatpush.msra.mxu0 0.0
    %8426 = vmatpush.msra.mxu0 0.0
    %8427 = vmatpush.msra.mxu0 0.0
    %8428 = vmatpush.msra.mxu0 0.0
    %8429 = vmatpush.msra.mxu0 0.0
    %8430 = vmatpush.msra.mxu0 0.0
    %8431 = vmatpush.msra.mxu0 0.0
    %8432 = vmatpush.msra.mxu0 %v8408
    %8433 = vmatpush.msra.mxu0 %v8407
    %8434 = vmatmul.f32.gmra.mxu0 %v8416
    %v8435 = vpop.f32.mrf.mxu0
    %v8436 = vadd.f32 %v8411, %v8435
    %8437 = vdwg.mxu0
    %vm8438 = vcmp.gt.f32.partialorder %v8436, 0.0
    %v8439 = vmul.f32 %v8436, 0.01
    %v8440 = vsel %vm8438, %v8436, %v8439
    %v8441 = vld [vmem:[%s15] sm:$0x3]
    %v8442 = vld [vmem:[%s16] sm:$0x1]
    %v8444 = vperm.slane %v8442, 0
    %v8447 = vsel %vm2754, %v8440, 0
    %v8450 = vsel %vm6141, %v8441, 0
    %8452 = vmatpush.msra.mxu0 0.0
    %8453 = vmatpush.msra.mxu0 0.0
    %8454 = vmatpush.msra.mxu0 0.0
    %8455 = vmatpush.msra.mxu0 0.0
    %8456 = vmatpush.msra.mxu0 0.0
    %8457 = vmatpush.msra.mxu0 0.0
    %8458 = vmatpush.msra.mxu0 0.0
    %8459 = vmatpush.msra.mxu0 0.0
    %8460 = vmatpush.msra.mxu0 0.0
    %8461 = vmatpush.msra.mxu0 0.0
    %8462 = vmatpush.msra.mxu0 0.0
    %8463 = vmatpush.msra.mxu0 0.0
    %8464 = vmatpush.msra.mxu0 0.0
    %8465 = vmatpush.msra.mxu0 0.0
    %8466 = vmatpush.msra.mxu0 0.0
    %8467 = vmatpush.msra.mxu0 %v8450
    %8468 = vmatmul.f32.gmra.mxu0 %v8447
    %v8469 = vpop.f32.mrf.mxu0
    %v8470 = vadd.f32 %v8444, %v8469
    %8471 = vdwg.mxu0
    %vm8472 = vcmp.gt.f32.partialorder %v8470, 0.0
    %v8473 = vmul.f32 %v8470, 0.01
    %v8474 = vsel %vm8472, %v8470, %v8473
    %v8475 = vld [vmem:[%s17] sm:$0xff]
    %v8476 = vld [vmem:[%s17 + $0x8] sm:$0xff]
    %v8477 = vld [vmem:[%s18] sm:$0x1]
    %v8479 = vperm.slane %v8477, 0
    %v8482 = vsel %vm6068, %v8474, 0
    %8484 = vmatpush.msra.mxu0 0.0
    %8485 = vmatpush.msra.mxu0 0.0
    %8486 = vmatpush.msra.mxu0 0.0
    %8487 = vmatpush.msra.mxu0 0.0
    %8488 = vmatpush.msra.mxu0 0.0
    %8489 = vmatpush.msra.mxu0 0.0
    %8490 = vmatpush.msra.mxu0 0.0
    %8491 = vmatpush.msra.mxu0 0.0
    %8492 = vmatpush.msra.mxu0 0.0
    %8493 = vmatpush.msra.mxu0 0.0
    %8494 = vmatpush.msra.mxu0 0.0
    %8495 = vmatpush.msra.mxu0 0.0
    %8496 = vmatpush.msra.mxu0 0.0
    %8497 = vmatpush.msra.mxu0 0.0
    %8498 = vmatpush.msra.mxu0 %v8476
    %8499 = vmatpush.msra.mxu0 %v8475
    %8500 = vmatmul.f32.gmra.mxu0 %v8482
    %v8501 = vpop.f32.mrf.mxu0
    %v8502 = vadd.f32 %v8479, %v8501
    %8503 = vdwg.mxu0
    %vm8504 = vcmask 33792
    %8505 = vst.msk [vmem:[#allocation7] sm:$0x3] %vm8504, %v8502
    // Predicated region
    $region78: #{tpu_custom_call.1} parent=1 // pred_check
      _
    $region79: #{tpu_custom_call.1} parent=1 // pred_check_branch
      %8507 = sbr.rel (0) target = $region81
    $region80: #{tpu_custom_call.1} parent=1 // pred_region
      %8509 = vsyncadd [#allocation8], 0
      %s8511 = sshll.u32 [#allocation7], 4
      %s8512 = int_to_ptr.vmem [resolvable:$true] %s8511
      %s8513 = sshll.u32 %s19, 4
      %s8514 = int_to_ptr.hbm [resolvable:$true] %s8513
      %8516 = dma.vmem_to_hbm [thread:$0]  %s8512, 32, %s8514, [#allocation8]
    $region81: #{tpu_custom_call.1} parent=1 // pred_fallthru
      _
    // Predicated region
    $region82: #{tpu_custom_call.1} parent=1 // pred_check
      _
    $region83: #{tpu_custom_call.1} parent=1 // pred_check_branch
      %8518 = sbr.rel (0) target = $region85
    $region84: #{tpu_custom_call.1} parent=1 // pred_region
      %8520 = dma.done [#allocation8], 32
    $region85: #{tpu_custom_call.1} parent=1 // pred_fallthru
      _
    %8521 = vsyncpa [#allocation8], 1

</llo_original>
